<compile_context>
chip_gen: v7x
topology: tpu7x:2x2x1
jax: 0.10.0
libtpu: 0.0.40
codegen_flags: <defaults>
</compile_context>

<pallas_src>
import functools

import jax
import jax.numpy as jnp
from jax.experimental import pallas as pl
from jax.experimental.pallas import tpu as pltpu


N_CLASSES = 2
M1_RATIO, M2_RATIO = 0.6, 0.4


# ----------------------------------------------------------------------------
# Fused per-branch kernel: stem matmul + act -> 1x1 head matmul + act ->
# global-average-pool accumulate -> (last tile) classifier + scale (+ prev).
# ----------------------------------------------------------------------------
def _apply_act(x, act):
    if act == "silu":
        # sigmoid via approximate EUP reciprocal (exp + vrcp, off the VALU path).
        return x * pl.reciprocal(1.0 + jnp.exp(-x), approx=True)
    if act == "relu":
        return jnp.maximum(x, 0.0)
    return x


def _branch_kernel(*refs, act, inv_s, scale, has_prev):
    if has_prev:
        (p_ref, ws_ref, bs_ref, wh_ref, bh_ref, wf_ref, bf_ref,
         prev_ref, o_ref, acc_ref) = refs
    else:
        (p_ref, ws_ref, bs_ref, wh_ref, bh_ref, wf_ref, bf_ref,
         o_ref, acc_ref) = refs
        prev_ref = None

    s = pl.program_id(1)

    @pl.when(s == 0)
    def _():
        acc_ref[...] = jnp.zeros_like(acc_ref)

    # Stem conv (as matmul) + bias + activation.  bf16 inputs, f32 accumulation.
    stem = jnp.dot(p_ref[0], ws_ref[...], preferred_element_type=jnp.float32)
    stem = _apply_act(stem + bs_ref[...], act)                    # [ts, C_stem] f32

    # 1x1 channel-expansion head, fused in-register (no HBM intermediate).
    head = jnp.dot(stem.astype(wh_ref.dtype), wh_ref[...],
                   preferred_element_type=jnp.float32)
    head = _apply_act(head + bh_ref[...], act)                    # [ts, C_head] f32

    # Global-average-pool partial sum, resident across the S (reduction) axis.
    acc_ref[...] += jnp.sum(head, axis=0, keepdims=True)          # [1, C_head]

    @pl.when(s == pl.num_programs(1) - 1)
    def _():
        pooled = acc_ref[...] * inv_s                             # [1, C_head]
        # Dropout(p=0.1 / 0.3) is identity in eval mode.
        logits = jnp.dot(pooled, wf_ref[...],
                         preferred_element_type=jnp.float32) + bf_ref[...]
        logits = logits * scale                                   # ensemble ratio
        if prev_ref is not None:
            logits = logits + prev_ref[0]                         # fused 0.6*m1 + 0.4*m2
        o_ref[0] = logits


def _pick_spatial_tile(S, max_tile=512):
    """Largest spatial tile <= max_tile that divides S (multiple of 8), else S."""
    if S <= max_tile:
        return S
    t = (max_tile // 8) * 8
    while t >= 8:
        if S % t == 0:
            return t
        t -= 8
    return S


def fused_branch(patches, w_stem, b_stem, w_head, b_head, w_fc, b_fc,
                 *, act, scale, prev=None, s_tile=512):
    """patches: [N, S, K] bf16 -> scaled branch logits [N, 1, ncls] f32."""
    N, S, K = patches.shape
    Cs = w_stem.shape[1]
    Ch = w_head.shape[1]
    ncls = w_fc.shape[1]
    ts = _pick_spatial_tile(S, s_tile)
    grid = (N, S // ts)

    in_specs = [
        pl.BlockSpec((1, ts, K), lambda n, s: (n, s, 0)),       # streaming patches
        pl.BlockSpec((K, Cs), lambda n, s: (0, 0)),             # stem weight  (bf16)
        pl.BlockSpec((1, Cs), lambda n, s: (0, 0)),             # stem bias    (f32)
        pl.BlockSpec((Cs, Ch), lambda n, s: (0, 0)),            # head weight  (bf16)
        pl.BlockSpec((1, Ch), lambda n, s: (0, 0)),             # head bias    (f32)
        pl.BlockSpec((Ch, ncls), lambda n, s: (0, 0)),          # classifier W (f32)
        pl.BlockSpec((1, ncls), lambda n, s: (0, 0)),           # classifier b (f32)
    ]
    args = [patches, w_stem, b_stem, w_head, b_head, w_fc, b_fc]
    if prev is not None:
        in_specs.append(pl.BlockSpec((1, 1, ncls), lambda n, s: (n, 0, 0)))
        args.append(prev)

    kernel = functools.partial(_branch_kernel, act=act, inv_s=1.0 / S,
                               scale=scale, has_prev=prev is not None)
    return pl.pallas_call(
        kernel,
        out_shape=jax.ShapeDtypeStruct((N, 1, ncls), jnp.float32),
        grid=grid,
        in_specs=in_specs,
        out_specs=pl.BlockSpec((1, 1, ncls), lambda n, s: (n, 0, 0)),
        scratch_shapes=[pltpu.VMEM((1, Ch), jnp.float32)],
        compiler_params=pltpu.CompilerParams(
            dimension_semantics=("parallel", "arbitrary")),
    )(*args)


# ----------------------------------------------------------------------------
# Plain-JAX glue: im2col patch extraction (NCHW input), bf16 patches.
#   K ordering is channel-major, (kh,kw)-minor; conv weights below match it.
# ----------------------------------------------------------------------------
def im2col(x, kh, kw, stride, pad):
    """x: [N, C, H, W] -> patches [N, Ho*Wo, C*kh*kw] (bf16)."""
    N, C, H, W = x.shape
    xp = jnp.pad(x, ((0, 0), (0, 0), (pad, pad), (pad, pad)))
    Ho = (H + 2 * pad - kh) // stride + 1
    Wo = (W + 2 * pad - kw) // stride + 1
    windows = []
    for i in range(kh):
        for j in range(kw):
            windows.append(
                xp[:, :, i:i + Ho * stride:stride, j:j + Wo * stride:stride])
    p = jnp.stack(windows, axis=1)              # [N, kh*kw, C, Ho, Wo]
    p = p.transpose(0, 3, 4, 2, 1)              # [N, Ho, Wo, C, kh*kw]
    return p.reshape(N, Ho * Wo, C * kh * kw).astype(jnp.bfloat16)


# ----------------------------------------------------------------------------
# Parameters (deterministic; BN folded into conv scale/bias; trunks in bf16).
# ----------------------------------------------------------------------------
def init_params(key):
    ks = jax.random.split(key, 12)
    s = 0.05

    def w(k, shape, dtype):
        return (s * jax.random.normal(k, shape, jnp.float32)).astype(dtype)

    return {
        # EfficientNet-B0 branch (simplified trunk): 3x3/s2 stem -> 1x1 to 1280
        "eff_stem_w": w(ks[0], (3 * 3 * 3, 32), jnp.bfloat16),
        "eff_stem_b": w(ks[1], (1, 32), jnp.float32),
        "eff_head_w": w(ks[2], (32, 1280), jnp.bfloat16),
        "eff_head_b": w(ks[3], (1, 1280), jnp.float32),
        # replaced classifier: Linear(1280 -> n_classes)
        "eff_fc_w": w(ks[4], (1280, N_CLASSES), jnp.float32),
        "eff_fc_b": w(ks[5], (1, N_CLASSES), jnp.float32),
        # DenseNet121 branch (simplified trunk): 7x7/s2 stem -> 1x1 to 1024
        "den_stem_w": w(ks[6], (3 * 7 * 7, 64), jnp.bfloat16),
        "den_stem_b": w(ks[7], (1, 64), jnp.float32),
        "den_head_w": w(ks[8], (64, 1024), jnp.bfloat16),
        "den_head_b": w(ks[9], (1, 1024), jnp.float32),
        # replaced classifier: Linear(1024 -> n_classes)
        "den_fc_w": w(ks[10], (1024, N_CLASSES), jnp.float32),
        "den_fc_b": w(ks[11], (1, N_CLASSES), jnp.float32),
    }


# ----------------------------------------------------------------------------
# Forward pass: out = 0.6 * efficient(x) + 0.4 * dense(x)
# ----------------------------------------------------------------------------
def konet_forward(params, x):
    N = x.shape[0]

    # --- EfficientNet branch (m1): scaled logits, single streaming pass ---
    p1 = im2col(x, 3, 3, stride=2, pad=1)               # [N, S, 27] bf16
    l1 = fused_branch(p1,
                      params["eff_stem_w"], params["eff_stem_b"],
                      params["eff_head_w"], params["eff_head_b"],
                      params["eff_fc_w"], params["eff_fc_b"],
                      act="silu", scale=M1_RATIO)        # [N, 1, ncls]

    # --- DenseNet branch (m2): scaled logits + fused ensemble add ---
    p2 = im2col(x, 7, 7, stride=2, pad=3)               # [N, S, 147] bf16
    out = fused_branch(p2,
                       params["den_stem_w"], params["den_stem_b"],
                       params["den_head_w"], params["den_head_b"],
                       params["den_fc_w"], params["den_fc_b"],
                       act="relu", scale=M2_RATIO, prev=l1)

    return out.reshape(N, N_CLASSES)


if __name__ == "__main__":
    key = jax.random.PRNGKey(0)
    kp, kx = jax.random.split(key)
    params = init_params(kp)
    x = jax.random.normal(kx, (2, 3, 32, 32), dtype=jnp.float32)   # NCHW like PyTorch

    out = jax.jit(konet_forward)(params, x)
    out = jax.block_until_ready(out)
    assert out.shape == (2, N_CLASSES), out.shape
    assert bool(jnp.all(jnp.isfinite(out)))
    print("KERNEL_OK")
</pallas_src>

<mosaic_0001>
module attributes {stable_mosaic.version = 11 : i64} {
  func.func @_branch_kernel(%arg0: i32, %arg1: i32, %arg2: memref<1x256x27xbf16, #tpu.memory_space<vmem>>, %arg3: memref<27x32xbf16, #tpu.memory_space<vmem>>, %arg4: memref<1x32xf32, #tpu.memory_space<vmem>>, %arg5: memref<32x1280xbf16, #tpu.memory_space<vmem>>, %arg6: memref<1x1280xf32, #tpu.memory_space<vmem>>, %arg7: memref<1280x2xf32, #tpu.memory_space<vmem>>, %arg8: memref<1x2xf32, #tpu.memory_space<vmem>>, %arg9: memref<1x1x2xf32, #tpu.memory_space<vmem>>, %arg10: memref<1x1280xf32, #tpu.memory_space<vmem>>) attributes {dimension_semantics = [#tpu.dimension_semantics<parallel>, #tpu.dimension_semantics<arbitrary>], iteration_bounds = array<i64: 2, 1>, scalar_prefetch = 0 : i64, scratch_operands = 1 : i64, tpu.core_type = #tpu.core_type<tc>, window_params = [{transform_indices = @transform_0, window_bounds = array<i64: 1, 256, 27>}, {pipeline_mode = #tpu.pipeline_mode<synchronous>, transform_indices = @transform_1, window_bounds = array<i64: 27, 32>}, {pipeline_mode = #tpu.pipeline_mode<synchronous>, transform_indices = @transform_2, window_bounds = array<i64: 1, 32>}, {pipeline_mode = #tpu.pipeline_mode<synchronous>, transform_indices = @transform_3, window_bounds = array<i64: 32, 1280>}, {pipeline_mode = #tpu.pipeline_mode<synchronous>, transform_indices = @transform_4, window_bounds = array<i64: 1, 1280>}, {pipeline_mode = #tpu.pipeline_mode<synchronous>, transform_indices = @transform_5, window_bounds = array<i64: 1280, 2>}, {pipeline_mode = #tpu.pipeline_mode<synchronous>, transform_indices = @transform_6, window_bounds = array<i64: 1, 2>}, {transform_indices = @transform_7, window_bounds = array<i64: 1, 1, 2>}]} {
    %c0_i32 = arith.constant 0 : i32
    %0 = arith.cmpi eq, %arg1, %c0_i32 : i32
    %1 = arith.extui %0 : i1 to i32
    %c0_i32_0 = arith.constant 0 : i32
    %2 = arith.cmpi ne, %1, %c0_i32_0 : i32
    scf.if %2 {
      %cst_23 = arith.constant 0.000000e+00 : f32
      %38 = vector.broadcast %cst_23 : f32 to vector<1x1280xf32>
      %c0_24 = arith.constant 0 : index
      %c0_25 = arith.constant 0 : index
      %39 = vector.load %arg10[%c0_24, %c0_25] : memref<1x1280xf32, #tpu.memory_space<vmem>>, vector<1x1280xf32>
      tpu.vector_store %arg10[%c0_24, %c0_25], %38 {strides = array<i32>} : memref<1x1280xf32, #tpu.memory_space<vmem>>, vector<1x1280xf32>,
    } else {
    }
    %c0 = arith.constant 0 : index
    %c0_1 = arith.constant 0 : index
    %c0_2 = arith.constant 0 : index
    %3 = vector.load %arg2[%c0, %c0_1, %c0_2] : memref<1x256x27xbf16, #tpu.memory_space<vmem>>, vector<1x256x27xbf16>
    %4 = vector.shape_cast %3 : vector<1x256x27xbf16> to vector<256x27xbf16>
    %c0_3 = arith.constant 0 : index
    %c0_4 = arith.constant 0 : index
    %5 = vector.load %arg3[%c0_3, %c0_4] : memref<27x32xbf16, #tpu.memory_space<vmem>>, vector<27x32xbf16>
    %cst = arith.constant dense<0.000000e+00> : vector<256x32xf32>
    %6 = tpu.matmul %4, %5, %cst {dimension_numbers = #tpu.dot_dimension_numbers<[1], [0], [0], [1], [0, 0, 1, 1], [], []>} : vector<256x27xbf16>, vector<27x32xbf16>, vector<256x32xf32> -> vector<256x32xf32>
    %c0_5 = arith.constant 0 : index
    %c0_6 = arith.constant 0 : index
    %7 = vector.load %arg4[%c0_5, %c0_6] : memref<1x32xf32, #tpu.memory_space<vmem>>, vector<1x32xf32>
    %8 = vector.broadcast %7 : vector<1x32xf32> to vector<256x32xf32>
    %9 = arith.addf %6, %8 : vector<256x32xf32>
    %cst_7 = arith.constant 0.000000e+00 : f32
    %10 = vector.broadcast %cst_7 : f32 to vector<256x32xf32>
    %11 = arith.subf %10, %9 : vector<256x32xf32>
    %12 = math.exp %11 : vector<256x32xf32>
    %cst_8 = arith.constant 1.000000e+00 : f32
    %13 = vector.broadcast %cst_8 : f32 to vector<256x32xf32>
    %14 = arith.addf %13, %12 : vector<256x32xf32>
    %15 = tpu.reciprocal %14 {approx = true} : vector<256x32xf32> -> vector<256x32xf32>
    %16 = arith.mulf %9, %15 : vector<256x32xf32>
    %17 = arith.truncf %16 : vector<256x32xf32> to vector<256x32xbf16>
    %c0_9 = arith.constant 0 : index
    %c0_10 = arith.constant 0 : index
    %18 = vector.load %arg5[%c0_9, %c0_10] : memref<32x1280xbf16, #tpu.memory_space<vmem>>, vector<32x1280xbf16>
    %cst_11 = arith.constant dense<0.000000e+00> : vector<256x1280xf32>
    %19 = tpu.matmul %17, %18, %cst_11 {dimension_numbers = #tpu.dot_dimension_numbers<[1], [0], [0], [1], [0, 0, 1, 1], [], []>} : vector<256x32xbf16>, vector<32x1280xbf16>, vector<256x1280xf32> -> vector<256x1280xf32>
    %c0_12 = arith.constant 0 : index
    %c0_13 = arith.constant 0 : index
    %20 = vector.load %arg6[%c0_12, %c0_13] : memref<1x1280xf32, #tpu.memory_space<vmem>>, vector<1x1280xf32>
    %21 = vector.broadcast %20 : vector<1x1280xf32> to vector<256x1280xf32>
    %22 = arith.addf %19, %21 : vector<256x1280xf32>
    %cst_14 = arith.constant 0.000000e+00 : f32
    %23 = vector.broadcast %cst_14 : f32 to vector<256x1280xf32>
    %24 = arith.subf %23, %22 : vector<256x1280xf32>
    %25 = math.exp %24 : vector<256x1280xf32>
    %cst_15 = arith.constant 1.000000e+00 : f32
    %26 = vector.broadcast %cst_15 : f32 to vector<256x1280xf32>
    %27 = arith.addf %26, %25 : vector<256x1280xf32>
    %28 = tpu.reciprocal %27 {approx = true} : vector<256x1280xf32> -> vector<256x1280xf32>
    %29 = arith.mulf %22, %28 : vector<256x1280xf32>
    %c0_16 = arith.constant 0 : index
    %c0_17 = arith.constant 0 : index
    %30 = vector.load %arg10[%c0_16, %c0_17] : memref<1x1280xf32, #tpu.memory_space<vmem>>, vector<1x1280xf32>
    %cst_18 = arith.constant dense<0.000000e+00> : vector<1280xf32>
    %31 = vector.multi_reduction <add>, %29, %cst_18 [0] : vector<256x1280xf32> to vector<1280xf32>
    %32 = vector.shape_cast %31 : vector<1280xf32> to vector<1x1280xf32>
    %33 = arith.addf %30, %32 : vector<1x1280xf32>
    %c0_19 = arith.constant 0 : index
    %c0_20 = arith.constant 0 : index
    %34 = vector.load %arg10[%c0_19, %c0_20] : memref<1x1280xf32, #tpu.memory_space<vmem>>, vector<1x1280xf32>
    tpu.vector_store %arg10[%c0_19, %c0_20], %33 {strides = array<i32>} : memref<1x1280xf32, #tpu.memory_space<vmem>>, vector<1x1280xf32>,
    %c0_i32_21 = arith.constant 0 : i32
    %35 = arith.cmpi eq, %arg1, %c0_i32_21 : i32
    %36 = arith.extui %35 : i1 to i32
    %c0_i32_22 = arith.constant 0 : i32
    %37 = arith.cmpi ne, %36, %c0_i32_22 : i32
    scf.if %37 {
      %c0_23 = arith.constant 0 : index
      %c0_24 = arith.constant 0 : index
      %38 = vector.load %arg10[%c0_23, %c0_24] : memref<1x1280xf32, #tpu.memory_space<vmem>>, vector<1x1280xf32>
      %cst_25 = arith.constant 3.906250e-03 : f32
      %39 = vector.broadcast %cst_25 : f32 to vector<1x1280xf32>
      %40 = arith.mulf %38, %39 : vector<1x1280xf32>
      %c0_26 = arith.constant 0 : index
      %c0_27 = arith.constant 0 : index
      %41 = vector.load %arg7[%c0_26, %c0_27] : memref<1280x2xf32, #tpu.memory_space<vmem>>, vector<1280x2xf32>
      %cst_28 = arith.constant dense<0.000000e+00> : vector<1x2xf32>
      %42 = tpu.matmul %40, %41, %cst_28 {dimension_numbers = #tpu.dot_dimension_numbers<[1], [0], [0], [1], [0, 0, 1, 1], [], []>} : vector<1x1280xf32>, vector<1280x2xf32>, vector<1x2xf32> -> vector<1x2xf32>
      %c0_29 = arith.constant 0 : index
      %c0_30 = arith.constant 0 : index
      %43 = vector.load %arg8[%c0_29, %c0_30] : memref<1x2xf32, #tpu.memory_space<vmem>>, vector<1x2xf32>
      %44 = arith.addf %42, %43 : vector<1x2xf32>
      %cst_31 = arith.constant 6.000000e-01 : f32
      %45 = vector.broadcast %cst_31 : f32 to vector<1x2xf32>
      %46 = arith.mulf %44, %45 : vector<1x2xf32>
      %c0_32 = arith.constant 0 : index
      %c0_33 = arith.constant 0 : index
      %c0_34 = arith.constant 0 : index
      %47 = vector.load %arg9[%c0_32, %c0_33, %c0_34] : memref<1x1x2xf32, #tpu.memory_space<vmem>>, vector<1x1x2xf32>
      %48 = vector.shape_cast %47 : vector<1x1x2xf32> to vector<1x2xf32>
      %49 = vector.shape_cast %46 : vector<1x2xf32> to vector<1x1x2xf32>
      tpu.vector_store %arg9[%c0_32, %c0_33, %c0_34], %49 {strides = array<i32>} : memref<1x1x2xf32, #tpu.memory_space<vmem>>, vector<1x1x2xf32>,
    } else {
    }
    return
  }
  func.func @transform_0(%arg0: i32, %arg1: i32) -> (i32, i32, i32) {
    %c0_i32 = arith.constant 0 : i32
    %c0_i32_0 = arith.constant 0 : i32
    return %arg0, %arg1, %c0_i32 : i32, i32, i32
  }
  func.func @transform_1(%arg0: i32, %arg1: i32) -> (i32, i32) {
    %c0_i32 = arith.constant 0 : i32
    %c0_i32_0 = arith.constant 0 : i32
    %c0_i32_1 = arith.constant 0 : i32
    return %c0_i32, %c0_i32_0 : i32, i32
  }
  func.func @transform_2(%arg0: i32, %arg1: i32) -> (i32, i32) {
    %c0_i32 = arith.constant 0 : i32
    %c0_i32_0 = arith.constant 0 : i32
    %c0_i32_1 = arith.constant 0 : i32
    return %c0_i32, %c0_i32_0 : i32, i32
  }
  func.func @transform_3(%arg0: i32, %arg1: i32) -> (i32, i32) {
    %c0_i32 = arith.constant 0 : i32
    %c0_i32_0 = arith.constant 0 : i32
    %c0_i32_1 = arith.constant 0 : i32
    return %c0_i32, %c0_i32_0 : i32, i32
  }
  func.func @transform_4(%arg0: i32, %arg1: i32) -> (i32, i32) {
    %c0_i32 = arith.constant 0 : i32
    %c0_i32_0 = arith.constant 0 : i32
    %c0_i32_1 = arith.constant 0 : i32
    return %c0_i32, %c0_i32_0 : i32, i32
  }
  func.func @transform_5(%arg0: i32, %arg1: i32) -> (i32, i32) {
    %c0_i32 = arith.constant 0 : i32
    %c0_i32_0 = arith.constant 0 : i32
    %c0_i32_1 = arith.constant 0 : i32
    return %c0_i32, %c0_i32_0 : i32, i32
  }
  func.func @transform_6(%arg0: i32, %arg1: i32) -> (i32, i32) {
    %c0_i32 = arith.constant 0 : i32
    %c0_i32_0 = arith.constant 0 : i32
    %c0_i32_1 = arith.constant 0 : i32
    return %c0_i32, %c0_i32_0 : i32, i32
  }
  func.func @transform_7(%arg0: i32, %arg1: i32) -> (i32, i32, i32) {
    %c0_i32 = arith.constant 0 : i32
    %c0_i32_0 = arith.constant 0 : i32
    %c0_i32_1 = arith.constant 0 : i32
    return %arg0, %c0_i32, %c0_i32_0 : i32, i32, i32
  }
}

module attributes {stable_mosaic.version = 11 : i64} {
  func.func @_branch_kernel(%arg0: i32, %arg1: i32, %arg2: memref<1x256x147xbf16, #tpu.memory_space<vmem>>, %arg3: memref<147x64xbf16, #tpu.memory_space<vmem>>, %arg4: memref<1x64xf32, #tpu.memory_space<vmem>>, %arg5: memref<64x1024xbf16, #tpu.memory_space<vmem>>, %arg6: memref<1x1024xf32, #tpu.memory_space<vmem>>, %arg7: memref<1024x2xf32, #tpu.memory_space<vmem>>, %arg8: memref<1x2xf32, #tpu.memory_space<vmem>>, %arg9: memref<1x1x2xf32, #tpu.memory_space<vmem>>, %arg10: memref<1x1x2xf32, #tpu.memory_space<vmem>>, %arg11: memref<1x1024xf32, #tpu.memory_space<vmem>>) attributes {dimension_semantics = [#tpu.dimension_semantics<parallel>, #tpu.dimension_semantics<arbitrary>], iteration_bounds = array<i64: 2, 1>, scalar_prefetch = 0 : i64, scratch_operands = 1 : i64, tpu.core_type = #tpu.core_type<tc>, window_params = [{transform_indices = @transform_0, window_bounds = array<i64: 1, 256, 147>}, {pipeline_mode = #tpu.pipeline_mode<synchronous>, transform_indices = @transform_1, window_bounds = array<i64: 147, 64>}, {pipeline_mode = #tpu.pipeline_mode<synchronous>, transform_indices = @transform_2, window_bounds = array<i64: 1, 64>}, {pipeline_mode = #tpu.pipeline_mode<synchronous>, transform_indices = @transform_3, window_bounds = array<i64: 64, 1024>}, {pipeline_mode = #tpu.pipeline_mode<synchronous>, transform_indices = @transform_4, window_bounds = array<i64: 1, 1024>}, {pipeline_mode = #tpu.pipeline_mode<synchronous>, transform_indices = @transform_5, window_bounds = array<i64: 1024, 2>}, {pipeline_mode = #tpu.pipeline_mode<synchronous>, transform_indices = @transform_6, window_bounds = array<i64: 1, 2>}, {transform_indices = @transform_7, window_bounds = array<i64: 1, 1, 2>}, {transform_indices = @transform_8, window_bounds = array<i64: 1, 1, 2>}]} {
    %c0_i32 = arith.constant 0 : i32
    %0 = arith.cmpi eq, %arg1, %c0_i32 : i32
    %1 = arith.extui %0 : i1 to i32
    %c0_i32_0 = arith.constant 0 : i32
    %2 = arith.cmpi ne, %1, %c0_i32_0 : i32
    scf.if %2 {
      %cst_21 = arith.constant 0.000000e+00 : f32
      %28 = vector.broadcast %cst_21 : f32 to vector<1x1024xf32>
      %c0_22 = arith.constant 0 : index
      %c0_23 = arith.constant 0 : index
      %29 = vector.load %arg11[%c0_22, %c0_23] : memref<1x1024xf32, #tpu.memory_space<vmem>>, vector<1x1024xf32>
      tpu.vector_store %arg11[%c0_22, %c0_23], %28 {strides = array<i32>} : memref<1x1024xf32, #tpu.memory_space<vmem>>, vector<1x1024xf32>,
    } else {
    }
    %c0 = arith.constant 0 : index
    %c0_1 = arith.constant 0 : index
    %c0_2 = arith.constant 0 : index
    %3 = vector.load %arg2[%c0, %c0_1, %c0_2] : memref<1x256x147xbf16, #tpu.memory_space<vmem>>, vector<1x256x147xbf16>
    %4 = vector.shape_cast %3 : vector<1x256x147xbf16> to vector<256x147xbf16>
    %c0_3 = arith.constant 0 : index
    %c0_4 = arith.constant 0 : index
    %5 = vector.load %arg3[%c0_3, %c0_4] : memref<147x64xbf16, #tpu.memory_space<vmem>>, vector<147x64xbf16>
    %cst = arith.constant dense<0.000000e+00> : vector<256x64xf32>
    %6 = tpu.matmul %4, %5, %cst {dimension_numbers = #tpu.dot_dimension_numbers<[1], [0], [0], [1], [0, 0, 1, 1], [], []>} : vector<256x147xbf16>, vector<147x64xbf16>, vector<256x64xf32> -> vector<256x64xf32>
    %c0_5 = arith.constant 0 : index
    %c0_6 = arith.constant 0 : index
    %7 = vector.load %arg4[%c0_5, %c0_6] : memref<1x64xf32, #tpu.memory_space<vmem>>, vector<1x64xf32>
    %8 = vector.broadcast %7 : vector<1x64xf32> to vector<256x64xf32>
    %9 = arith.addf %6, %8 : vector<256x64xf32>
    %cst_7 = arith.constant 0.000000e+00 : f32
    %10 = vector.broadcast %cst_7 : f32 to vector<256x64xf32>
    %11 = arith.maximumf %9, %10 : vector<256x64xf32>
    %12 = arith.truncf %11 : vector<256x64xf32> to vector<256x64xbf16>
    %c0_8 = arith.constant 0 : index
    %c0_9 = arith.constant 0 : index
    %13 = vector.load %arg5[%c0_8, %c0_9] : memref<64x1024xbf16, #tpu.memory_space<vmem>>, vector<64x1024xbf16>
    %cst_10 = arith.constant dense<0.000000e+00> : vector<256x1024xf32>
    %14 = tpu.matmul %12, %13, %cst_10 {dimension_numbers = #tpu.dot_dimension_numbers<[1], [0], [0], [1], [0, 0, 1, 1], [], []>} : vector<256x64xbf16>, vector<64x1024xbf16>, vector<256x1024xf32> -> vector<256x1024xf32>
    %c0_11 = arith.constant 0 : index
    %c0_12 = arith.constant 0 : index
    %15 = vector.load %arg6[%c0_11, %c0_12] : memref<1x1024xf32, #tpu.memory_space<vmem>>, vector<1x1024xf32>
    %16 = vector.broadcast %15 : vector<1x1024xf32> to vector<256x1024xf32>
    %17 = arith.addf %14, %16 : vector<256x1024xf32>
    %cst_13 = arith.constant 0.000000e+00 : f32
    %18 = vector.broadcast %cst_13 : f32 to vector<256x1024xf32>
    %19 = arith.maximumf %17, %18 : vector<256x1024xf32>
    %c0_14 = arith.constant 0 : index
    %c0_15 = arith.constant 0 : index
    %20 = vector.load %arg11[%c0_14, %c0_15] : memref<1x1024xf32, #tpu.memory_space<vmem>>, vector<1x1024xf32>
    %cst_16 = arith.constant dense<0.000000e+00> : vector<1024xf32>
    %21 = vector.multi_reduction <add>, %19, %cst_16 [0] : vector<256x1024xf32> to vector<1024xf32>
    %22 = vector.shape_cast %21 : vector<1024xf32> to vector<1x1024xf32>
    %23 = arith.addf %20, %22 : vector<1x1024xf32>
    %c0_17 = arith.constant 0 : index
    %c0_18 = arith.constant 0 : index
    %24 = vector.load %arg11[%c0_17, %c0_18] : memref<1x1024xf32, #tpu.memory_space<vmem>>, vector<1x1024xf32>
    tpu.vector_store %arg11[%c0_17, %c0_18], %23 {strides = array<i32>} : memref<1x1024xf32, #tpu.memory_space<vmem>>, vector<1x1024xf32>,
    %c0_i32_19 = arith.constant 0 : i32
    %25 = arith.cmpi eq, %arg1, %c0_i32_19 : i32
    %26 = arith.extui %25 : i1 to i32
    %c0_i32_20 = arith.constant 0 : i32
    %27 = arith.cmpi ne, %26, %c0_i32_20 : i32
    scf.if %27 {
      %c0_21 = arith.constant 0 : index
      %c0_22 = arith.constant 0 : index
      %28 = vector.load %arg11[%c0_21, %c0_22] : memref<1x1024xf32, #tpu.memory_space<vmem>>, vector<1x1024xf32>
      %cst_23 = arith.constant 3.906250e-03 : f32
      %29 = vector.broadcast %cst_23 : f32 to vector<1x1024xf32>
      %30 = arith.mulf %28, %29 : vector<1x1024xf32>
      %c0_24 = arith.constant 0 : index
      %c0_25 = arith.constant 0 : index
      %31 = vector.load %arg7[%c0_24, %c0_25] : memref<1024x2xf32, #tpu.memory_space<vmem>>, vector<1024x2xf32>
      %cst_26 = arith.constant dense<0.000000e+00> : vector<1x2xf32>
      %32 = tpu.matmul %30, %31, %cst_26 {dimension_numbers = #tpu.dot_dimension_numbers<[1], [0], [0], [1], [0, 0, 1, 1], [], []>} : vector<1x1024xf32>, vector<1024x2xf32>, vector<1x2xf32> -> vector<1x2xf32>
      %c0_27 = arith.constant 0 : index
      %c0_28 = arith.constant 0 : index
      %33 = vector.load %arg8[%c0_27, %c0_28] : memref<1x2xf32, #tpu.memory_space<vmem>>, vector<1x2xf32>
      %34 = arith.addf %32, %33 : vector<1x2xf32>
      %cst_29 = arith.constant 4.000000e-01 : f32
      %35 = vector.broadcast %cst_29 : f32 to vector<1x2xf32>
      %36 = arith.mulf %34, %35 : vector<1x2xf32>
      %c0_30 = arith.constant 0 : index
      %c0_31 = arith.constant 0 : index
      %c0_32 = arith.constant 0 : index
      %37 = vector.load %arg9[%c0_30, %c0_31, %c0_32] : memref<1x1x2xf32, #tpu.memory_space<vmem>>, vector<1x1x2xf32>
      %38 = vector.shape_cast %37 : vector<1x1x2xf32> to vector<1x2xf32>
      %39 = arith.addf %36, %38 : vector<1x2xf32>
      %c0_33 = arith.constant 0 : index
      %c0_34 = arith.constant 0 : index
      %c0_35 = arith.constant 0 : index
      %40 = vector.load %arg10[%c0_33, %c0_34, %c0_35] : memref<1x1x2xf32, #tpu.memory_space<vmem>>, vector<1x1x2xf32>
      %41 = vector.shape_cast %40 : vector<1x1x2xf32> to vector<1x2xf32>
      %42 = vector.shape_cast %39 : vector<1x2xf32> to vector<1x1x2xf32>
      tpu.vector_store %arg10[%c0_33, %c0_34, %c0_35], %42 {strides = array<i32>} : memref<1x1x2xf32, #tpu.memory_space<vmem>>, vector<1x1x2xf32>,
    } else {
    }
    return
  }
  func.func @transform_0(%arg0: i32, %arg1: i32) -> (i32, i32, i32) {
    %c0_i32 = arith.constant 0 : i32
    %c0_i32_0 = arith.constant 0 : i32
    return %arg0, %arg1, %c0_i32 : i32, i32, i32
  }
  func.func @transform_1(%arg0: i32, %arg1: i32) -> (i32, i32) {
    %c0_i32 = arith.constant 0 : i32
    %c0_i32_0 = arith.constant 0 : i32
    %c0_i32_1 = arith.constant 0 : i32
    return %c0_i32, %c0_i32_0 : i32, i32
  }
  func.func @transform_2(%arg0: i32, %arg1: i32) -> (i32, i32) {
    %c0_i32 = arith.constant 0 : i32
    %c0_i32_0 = arith.constant 0 : i32
    %c0_i32_1 = arith.constant 0 : i32
    return %c0_i32, %c0_i32_0 : i32, i32
  }
  func.func @transform_3(%arg0: i32, %arg1: i32) -> (i32, i32) {
    %c0_i32 = arith.constant 0 : i32
    %c0_i32_0 = arith.constant 0 : i32
    %c0_i32_1 = arith.constant 0 : i32
    return %c0_i32, %c0_i32_0 : i32, i32
  }
  func.func @transform_4(%arg0: i32, %arg1: i32) -> (i32, i32) {
    %c0_i32 = arith.constant 0 : i32
    %c0_i32_0 = arith.constant 0 : i32
    %c0_i32_1 = arith.constant 0 : i32
    return %c0_i32, %c0_i32_0 : i32, i32
  }
  func.func @transform_5(%arg0: i32, %arg1: i32) -> (i32, i32) {
    %c0_i32 = arith.constant 0 : i32
    %c0_i32_0 = arith.constant 0 : i32
    %c0_i32_1 = arith.constant 0 : i32
    return %c0_i32, %c0_i32_0 : i32, i32
  }
  func.func @transform_6(%arg0: i32, %arg1: i32) -> (i32, i32) {
    %c0_i32 = arith.constant 0 : i32
    %c0_i32_0 = arith.constant 0 : i32
    %c0_i32_1 = arith.constant 0 : i32
    return %c0_i32, %c0_i32_0 : i32, i32
  }
  func.func @transform_7(%arg0: i32, %arg1: i32) -> (i32, i32, i32) {
    %c0_i32 = arith.constant 0 : i32
    %c0_i32_0 = arith.constant 0 : i32
    %c0_i32_1 = arith.constant 0 : i32
    return %arg0, %c0_i32, %c0_i32_0 : i32, i32, i32
  }
  func.func @transform_8(%arg0: i32, %arg1: i32) -> (i32, i32, i32) {
    %c0_i32 = arith.constant 0 : i32
    %c0_i32_0 = arith.constant 0 : i32
    %c0_i32_1 = arith.constant 0 : i32
    return %arg0, %c0_i32, %c0_i32_0 : i32, i32, i32
  }
}

</mosaic_0001>

<llo_original>
// kernel: konet_forward.3
$region0: #{konet_forward.3}
  #allocation0 [shape = 'u32[]', space=smem, size = 0x4, offset = 0x4, fixed_abs, tag = 'smem constant byte address 0x4 - core index']
  #allocation1 [shape = 'u32[144,128]{1,0:T(1,128)}', space=vmem, size = 0x12000, scoped, tag = 'internal scratch']
  #allocation2 [shape = 'f32[1,1024]{1,0:T(1,128)}', space=vmem, size = 0x1000, scoped, tag = 'scratch operand']
  %s0 = inlined_call_operand.vmem [shape: bf16[2,256,147], index: 0, kind: input, shape index: {}]
  %s1 = inlined_call_operand.vmem [shape: bf16[147,64], index: 1, kind: input, shape index: {}]
  %s2 = inlined_call_operand.vmem [shape: f32[1,64], index: 2, kind: input, shape index: {}]
  %s3 = inlined_call_operand.vmem [shape: bf16[64,1024], index: 3, kind: input, shape index: {}]
  %s4 = inlined_call_operand.vmem [shape: f32[1,1024], index: 4, kind: input, shape index: {}]
  %s5 = inlined_call_operand.vmem [shape: f32[1024,2], index: 5, kind: input, shape index: {}]
  %s6 = inlined_call_operand.vmem [shape: f32[1,2], index: 6, kind: input, shape index: {}]
  %s7 = inlined_call_operand.vmem [shape: f32[2,1,2], index: 7, kind: input, shape index: {}]
  %s8 = inlined_call_operand.hbm [shape: f32[2,1,2], index: 8, kind: output, shape index: {}]
  %s9 = sld [smem:[#allocation0]]
  $region73: #{konet_forward.3} parent=0
    _
  %s11 = ssub.s32 1, %s9
  %s12 = scalar_select 0, %s11, %s9
  $region1: #{konet_forward.3} parent=0
    #allocation3 [shape = 'u8[1024]{0}', space=vmem, size = 0x400, scoped, tag = 'output window, operand 0']
    #allocation4 [shape = 's32[2]{0}', space=sflag, size = 0x8, scoped, tag = 'scoped memory for konet_forward.3']
    %13 = vsyncpa [#allocation4], 0
    %s14 = scalar_lea.sflag [#allocation4], 1
    %15 = vsyncpa %s14, 0
    loop: start=0, step=1, limit=4
    $region2: #{konet_forward.3} parent=1 // loop_pre_header
      _
    $region3: #{konet_forward.3} parent=1 // loop_header
      %s17 = sphi 0, %s21
      %p18 = scmp.ge.s32.totalorder %s17, 4
      %s24 = sphi 0, %s36
      %s25 = sphi 0, %s32
      %s26 = sphi 0, %s24
      %s27 = sphi 0, %s25
      %s28 = sphi 0, %s26
      %s29 = sphi 0, %s27
      %s41 = sphi 0, %s43
      %s44 = sphi 0, %s41
      %s45 = sphi 0, %s44
      %s61 = sphi 0, %s45
      %s65 = sphi 0, %s65
      %s67 = sphi 0, %s65
      %s68 = sphi 0, %s67
      %s82 = sphi 0, %s68
      %s86 = sphi 0, %s86
      %s88 = sphi 0, %s86
      %s89 = sphi 0, %s88
      %s103 = sphi 0, %s89
      %s107 = sphi 0, %s107
      %s109 = sphi 0, %s107
      %s110 = sphi 0, %s109
      %s124 = sphi 0, %s110
      %s128 = sphi 0, %s128
      %s130 = sphi 0, %s128
      %s131 = sphi 0, %s130
      %s145 = sphi 0, %s131
      %s149 = sphi 0, %s149
      %s151 = sphi 0, %s149
      %s152 = sphi 0, %s151
      %s166 = sphi 0, %s152
      %s170 = sphi 0, %s170
      %s172 = sphi 0, %s170
      %s173 = sphi 0, %s172
      %s187 = sphi 0, %s173
      %s193 = sphi 0, %s195
      %s196 = sphi 0, %s193
      %s197 = sphi 0, %s196
      %s213 = sphi 0, %s197
      %s219 = sphi 0, %s221
      %s222 = sphi 0, %s219
      %s223 = sphi 0, %s222
      %s239 = sphi 0, %s223
    $region4: #{konet_forward.3} parent=1 // loop_header_branch
      %20 = sbr.rel (%p18) target = $region8
    $region5: #{konet_forward.3} parent=1 // loop_body
      %s22 = ssub.s32 %s17, 1
      %s23 = ssub.s32 %s17, 2
      %s30 = sadd.s32 1, %s25
      %p31 = scmp.ge.s32.totalorder %s30, 1
      %s32 = scalar_select %p31, 0, %s30
      %s33 = sadd.s32 1, %s24
      %s34 = scalar_select %p31, %s33, %s24
      %p35 = scmp.ge.s32.totalorder %s34, 2
      %s36 = scalar_select %p35, 0, %s34
      %s37 = ssub.s32 %s24, %s36
      %s38 = ssub.s32 %s25, %s32
      %s39 = sor.u32 %s37, %s38
      %p40 = scmp.eq.s32.totalorder %s39, 0
      %s42 = sadd.s32 %s41, 1
      %s43 = scalar_select %p40, %s41, %s42
      %p46 = pneg %p40
      %p47 = scmp.eq.s32.totalorder %s17, 1
      %p48 = por %p46, %p47
      %p49 = scmp.ne.s32.totalorder %s41, %s44
      %p50 = scmp.eq.s32.totalorder %s17, 0
      %p51 = por %p49, %p50
      %p52 = scmp.ne.s32.totalorder %s41, %s44
      %p53 = scmp.eq.s32.totalorder %s22, 1
      %p54 = por %p52, %p53
      %p55 = scmp.ne.s32.totalorder %s44, %s45
      %p56 = scmp.eq.s32.totalorder %s22, 0
      %p57 = por %p55, %p56
      %p58 = scmp.ne.s32.totalorder %s44, %s45
      %p59 = scmp.eq.s32.totalorder %s23, 1
      %p60 = por %p58, %p59
      %p62 = scmp.ne.s32.totalorder %s45, %s61
      %p63 = scmp.eq.s32.totalorder %s23, 0
      %p64 = por %p62, %p63
      %s66 = sadd.s32 %s65, 1
      %p69 = scmp.eq.s32.totalorder %s17, 1
      %p70 = scmp.ne.s32.totalorder %s65, %s67
      %p71 = scmp.eq.s32.totalorder %s17, 0
      %p72 = por %p70, %p71
      %p73 = scmp.ne.s32.totalorder %s65, %s67
      %p74 = scmp.eq.s32.totalorder %s22, 1
      %p75 = por %p73, %p74
      %p76 = scmp.ne.s32.totalorder %s67, %s68
      %p77 = scmp.eq.s32.totalorder %s22, 0
      %p78 = por %p76, %p77
      %p79 = scmp.ne.s32.totalorder %s67, %s68
      %p80 = scmp.eq.s32.totalorder %s23, 1
      %p81 = por %p79, %p80
      %p83 = scmp.ne.s32.totalorder %s68, %s82
      %p84 = scmp.eq.s32.totalorder %s23, 0
      %p85 = por %p83, %p84
      %s87 = sadd.s32 %s86, 1
      %p90 = scmp.eq.s32.totalorder %s17, 1
      %p91 = scmp.ne.s32.totalorder %s86, %s88
      %p92 = scmp.eq.s32.totalorder %s17, 0
      %p93 = por %p91, %p92
      %p94 = scmp.ne.s32.totalorder %s86, %s88
      %p95 = scmp.eq.s32.totalorder %s22, 1
      %p96 = por %p94, %p95
      %p97 = scmp.ne.s32.totalorder %s88, %s89
      %p98 = scmp.eq.s32.totalorder %s22, 0
      %p99 = por %p97, %p98
      %p100 = scmp.ne.s32.totalorder %s88, %s89
      %p101 = scmp.eq.s32.totalorder %s23, 1
      %p102 = por %p100, %p101
      %p104 = scmp.ne.s32.totalorder %s89, %s103
      %p105 = scmp.eq.s32.totalorder %s23, 0
      %p106 = por %p104, %p105
      %s108 = sadd.s32 %s107, 1
      %p111 = scmp.eq.s32.totalorder %s17, 1
      %p112 = scmp.ne.s32.totalorder %s107, %s109
      %p113 = scmp.eq.s32.totalorder %s17, 0
      %p114 = por %p112, %p113
      %p115 = scmp.ne.s32.totalorder %s107, %s109
      %p116 = scmp.eq.s32.totalorder %s22, 1
      %p117 = por %p115, %p116
      %p118 = scmp.ne.s32.totalorder %s109, %s110
      %p119 = scmp.eq.s32.totalorder %s22, 0
      %p120 = por %p118, %p119
      %p121 = scmp.ne.s32.totalorder %s109, %s110
      %p122 = scmp.eq.s32.totalorder %s23, 1
      %p123 = por %p121, %p122
      %p125 = scmp.ne.s32.totalorder %s110, %s124
      %p126 = scmp.eq.s32.totalorder %s23, 0
      %p127 = por %p125, %p126
      %s129 = sadd.s32 %s128, 1
      %p132 = scmp.eq.s32.totalorder %s17, 1
      %p133 = scmp.ne.s32.totalorder %s128, %s130
      %p134 = scmp.eq.s32.totalorder %s17, 0
      %p135 = por %p133, %p134
      %p136 = scmp.ne.s32.totalorder %s128, %s130
      %p137 = scmp.eq.s32.totalorder %s22, 1
      %p138 = por %p136, %p137
      %p139 = scmp.ne.s32.totalorder %s130, %s131
      %p140 = scmp.eq.s32.totalorder %s22, 0
      %p141 = por %p139, %p140
      %p142 = scmp.ne.s32.totalorder %s130, %s131
      %p143 = scmp.eq.s32.totalorder %s23, 1
      %p144 = por %p142, %p143
      %p146 = scmp.ne.s32.totalorder %s131, %s145
      %p147 = scmp.eq.s32.totalorder %s23, 0
      %p148 = por %p146, %p147
      %s150 = sadd.s32 %s149, 1
      %p153 = scmp.eq.s32.totalorder %s17, 1
      %p154 = scmp.ne.s32.totalorder %s149, %s151
      %p155 = scmp.eq.s32.totalorder %s17, 0
      %p156 = por %p154, %p155
      %p157 = scmp.ne.s32.totalorder %s149, %s151
      %p158 = scmp.eq.s32.totalorder %s22, 1
      %p159 = por %p157, %p158
      %p160 = scmp.ne.s32.totalorder %s151, %s152
      %p161 = scmp.eq.s32.totalorder %s22, 0
      %p162 = por %p160, %p161
      %p163 = scmp.ne.s32.totalorder %s151, %s152
      %p164 = scmp.eq.s32.totalorder %s23, 1
      %p165 = por %p163, %p164
      %p167 = scmp.ne.s32.totalorder %s152, %s166
      %p168 = scmp.eq.s32.totalorder %s23, 0
      %p169 = por %p167, %p168
      %s171 = sadd.s32 %s170, 1
      %p174 = scmp.eq.s32.totalorder %s17, 1
      %p175 = scmp.ne.s32.totalorder %s170, %s172
      %p176 = scmp.eq.s32.totalorder %s17, 0
      %p177 = por %p175, %p176
      %p178 = scmp.ne.s32.totalorder %s170, %s172
      %p179 = scmp.eq.s32.totalorder %s22, 1
      %p180 = por %p178, %p179
      %p181 = scmp.ne.s32.totalorder %s172, %s173
      %p182 = scmp.eq.s32.totalorder %s22, 0
      %p183 = por %p181, %p182
      %p184 = scmp.ne.s32.totalorder %s172, %s173
      %p185 = scmp.eq.s32.totalorder %s23, 1
      %p186 = por %p184, %p185
      %p188 = scmp.ne.s32.totalorder %s173, %s187
      %p189 = scmp.eq.s32.totalorder %s23, 0
      %p190 = por %p188, %p189
      %s191 = ssub.s32 %s24, %s36
      %p192 = scmp.eq.s32.totalorder %s191, 0
      %s194 = sadd.s32 %s193, 1
      %s195 = scalar_select %p192, %s193, %s194
      %p198 = pneg %p192
      %p199 = scmp.eq.s32.totalorder %s17, 1
      %p200 = por %p198, %p199
      %p201 = scmp.ne.s32.totalorder %s193, %s196
      %p202 = scmp.eq.s32.totalorder %s17, 0
      %p203 = por %p201, %p202
      %p204 = scmp.ne.s32.totalorder %s193, %s196
      %p205 = scmp.eq.s32.totalorder %s22, 1
      %p206 = por %p204, %p205
      %p207 = scmp.ne.s32.totalorder %s196, %s197
      %p208 = scmp.eq.s32.totalorder %s22, 0
      %p209 = por %p207, %p208
      %p210 = scmp.ne.s32.totalorder %s196, %s197
      %p211 = scmp.eq.s32.totalorder %s23, 1
      %p212 = por %p210, %p211
      %p214 = scmp.ne.s32.totalorder %s197, %s213
      %p215 = scmp.eq.s32.totalorder %s23, 0
      %p216 = por %p214, %p215
      %s217 = ssub.s32 %s24, %s36
      %p218 = scmp.eq.s32.totalorder %s217, 0
      %s220 = sadd.s32 %s219, 1
      %s221 = scalar_select %p218, %s219, %s220
      %p224 = pneg %p218
      %p225 = scmp.eq.s32.totalorder %s17, 1
      %p226 = por %p224, %p225
      %p227 = scmp.ne.s32.totalorder %s219, %s222
      %p228 = scmp.eq.s32.totalorder %s17, 0
      %p229 = por %p227, %p228
      %p230 = scmp.ne.s32.totalorder %s219, %s222
      %p231 = scmp.eq.s32.totalorder %s22, 1
      %p232 = por %p230, %p231
      %p233 = scmp.ne.s32.totalorder %s222, %s223
      %p234 = scmp.eq.s32.totalorder %s22, 0
      %p235 = por %p233, %p234
      %p236 = scmp.ne.s32.totalorder %s222, %s223
      %p237 = scmp.eq.s32.totalorder %s23, 1
      %p238 = por %p236, %p237
      %p240 = scmp.ne.s32.totalorder %s223, %s239
      %p241 = scmp.eq.s32.totalorder %s23, 0
      %p242 = por %p240, %p241
      %p243 = scmp.le.s32.totalorder 1, %s17
      %p244 = scmp.lt.s32.totalorder %s17, 3
      %p245 = pnand %p243, %p244
      %p246 = pneg %p245
      // Predicated region
      $region9: #{konet_forward.3} parent=5 // pred_check
        _
      $region10: #{konet_forward.3} parent=5 // pred_check_branch
        %248 = sbr.rel (%p245) target = $region12
      $region11: #{konet_forward.3} parent=5 // pred_region
        %s249 = ssub.s32 %s17, 1
        // Predicated region
        $region13: #{konet_forward.3} parent=11 // pred_check
          %p250 = pneg %p78
        $region14: #{konet_forward.3} parent=11 // pred_check_branch
          %252 = sbr.rel (%p250) target = $region16
        $region15: #{konet_forward.3} parent=11 // pred_region
          _
        $region16: #{konet_forward.3} parent=11 // pred_fallthru
          _
        // Predicated region
        $region17: #{konet_forward.3} parent=11 // pred_check
          %p253 = pneg %p99
        $region18: #{konet_forward.3} parent=11 // pred_check_branch
          %255 = sbr.rel (%p253) target = $region20
        $region19: #{konet_forward.3} parent=11 // pred_region
          _
        $region20: #{konet_forward.3} parent=11 // pred_fallthru
          _
        // Predicated region
        $region21: #{konet_forward.3} parent=11 // pred_check
          %p256 = pneg %p120
        $region22: #{konet_forward.3} parent=11 // pred_check_branch
          %258 = sbr.rel (%p256) target = $region24
        $region23: #{konet_forward.3} parent=11 // pred_region
          _
        $region24: #{konet_forward.3} parent=11 // pred_fallthru
          _
        // Predicated region
        $region25: #{konet_forward.3} parent=11 // pred_check
          %p259 = pneg %p141
        $region26: #{konet_forward.3} parent=11 // pred_check_branch
          %261 = sbr.rel (%p259) target = $region28
        $region27: #{konet_forward.3} parent=11 // pred_region
          _
        $region28: #{konet_forward.3} parent=11 // pred_fallthru
          _
        // Predicated region
        $region29: #{konet_forward.3} parent=11 // pred_check
          %p262 = pneg %p162
        $region30: #{konet_forward.3} parent=11 // pred_check_branch
          %264 = sbr.rel (%p262) target = $region32
        $region31: #{konet_forward.3} parent=11 // pred_region
          _
        $region32: #{konet_forward.3} parent=11 // pred_fallthru
          _
        // Predicated region
        $region33: #{konet_forward.3} parent=11 // pred_check
          %p265 = pneg %p183
        $region34: #{konet_forward.3} parent=11 // pred_check_branch
          %267 = sbr.rel (%p265) target = $region36
        $region35: #{konet_forward.3} parent=11 // pred_region
          _
        $region36: #{konet_forward.3} parent=11 // pred_fallthru
          _
      $region12: #{konet_forward.3} parent=5 // pred_fallthru
        _
      %p268 = scmp.lt.s32.totalorder %s17, 2
      // Predicated region
      $region37: #{konet_forward.3} parent=5 // pred_check
        %p269 = pneg %p268
      $region38: #{konet_forward.3} parent=5 // pred_check_branch
        %271 = sbr.rel (%p269) target = $region40
      $region39: #{konet_forward.3} parent=5 // pred_region
        // Predicated region
        $region41: #{konet_forward.3} parent=39 // pred_check
          %p272 = pneg %p51
        $region42: #{konet_forward.3} parent=39 // pred_check_branch
          %274 = sbr.rel (%p272) target = $region44
        $region43: #{konet_forward.3} parent=39 // pred_region
          %s275 = smul.u32 32, %s25
          %p276 = scmp.lt.s32.totalorder %s24, 1
          %s277 = scalar_select %p276, %s24, 1
          %p278 = scmp.lt.s32.totalorder %s275, 31
          %s279 = scalar_select %p278, %s275, 31
          %s280 = smul.addr %s279, 2
          %s281 = smul.addr %s277, 64
          %s282 = sadd.s32 %s280, %s281
          %s283 = smul.addr %s282, 4
          %s284 = scalar_lea.vmem %s0, %s283
          %s285 = smul.u32 32, %s25
        $region44: #{konet_forward.3} parent=39 // pred_fallthru
          _
        // Predicated region
        $region45: #{konet_forward.3} parent=39 // pred_check
          %p286 = pneg %p203
        $region46: #{konet_forward.3} parent=39 // pred_check_branch
          %288 = sbr.rel (%p286) target = $region48
        $region47: #{konet_forward.3} parent=39 // pred_region
          %p289 = scmp.lt.s32.totalorder %s24, 1
          %s290 = scalar_select %p289, %s24, 1
          %s291 = scalar_lea.vmem %s7, %s290
        $region48: #{konet_forward.3} parent=39 // pred_fallthru
          _
      $region40: #{konet_forward.3} parent=5 // pred_fallthru
        _
      %p292 = scmp.le.s32.totalorder 1, %s17
      %p293 = scmp.lt.s32.totalorder %s17, 3
      %p294 = pnand %p292, %p293
      %p295 = pneg %p294
      // Predicated region
      $region49: #{konet_forward.3} parent=5 // pred_check
        _
      $region50: #{konet_forward.3} parent=5 // pred_check_branch
        %297 = sbr.rel (%p294) target = $region52
      $region51: #{konet_forward.3} parent=5 // pred_region
        %s298 = ssub.s32 %s17, 1
        %s299 = smul.u32 32, %s27
        %p300 = scmp.lt.s32.totalorder %s26, 1
        %s301 = scalar_select %p300, %s26, 1
        %p302 = scmp.lt.s32.totalorder %s299, 31
        %s303 = scalar_select %p302, %s299, 31
        %s304 = smul.addr %s303, 2
        %s305 = smul.addr %s301, 64
        %s306 = sadd.s32 %s304, %s305
        %s307 = smul.addr %s306, 4
        %s308 = scalar_lea.vmem %s0, %s307
        %p309 = pneg %p57
        %p310 = pneg %p54
        %p311 = pneg %p78
        %p312 = pneg %p75
        %p313 = pneg %p99
        %p314 = pneg %p96
        %p315 = pneg %p120
        %p316 = pneg %p117
        %p317 = pneg %p141
        %p318 = pneg %p138
        %p319 = pneg %p162
        %p320 = pneg %p159
        %p321 = pneg %p183
        %p322 = pneg %p180
        %p323 = scmp.lt.s32.totalorder %s26, 1
        %s324 = scalar_select %p323, %s26, 1
        %s325 = scalar_lea.vmem %s7, %s324
        %p326 = pneg %p209
        %p327 = pneg %p206
        %p328 = pneg %p235
        %p329 = pneg %p232
        %s330 = sand.u32 %s222, 1
        %s331 = scalar_lea.sflag [#allocation4], %s330
        %s332 = sand.u32 %s222, 1
        %s333 = scalar_lea.vmem [#allocation3], %s332
        %s334 = smul.u32 32, %s27
        %p335 = scmp.lt.s32.totalorder %s26, 1
        %s336 = scalar_select %p335, %s26, 1
        %p337 = scmp.lt.s32.totalorder %s334, 31
        %s338 = scalar_select %p337, %s334, 31
        %s339 = smul.addr %s338, 2
        %s340 = smul.addr %s336, 64
        %s341 = sadd.s32 %s339, %s340
        %s342 = smul.addr %s341, 4
        %s343 = scalar_lea.vmem %s0, %s342
        %s344 = smul.u32 32, %s27
        %p345 = scmp.lt.s32.totalorder %s26, 1
        %s346 = scalar_select %p345, %s26, 1
        %s347 = scalar_lea.vmem %s7, %s346
        %p349 = scmp.eq.s32.totalorder %s27, 0
        // Predicated region
        $region53: #{konet_forward.3} parent=51 // pred_check
          %p350 = pneg %p349
        $region54: #{konet_forward.3} parent=51 // pred_check_branch
          %352 = sbr.rel (%p350) target = $region56
        $region55: #{konet_forward.3} parent=51 // pred_region
          %353 = vst [vmem:[#allocation2] sm:$0xff] 0.0
        $region56: #{konet_forward.3} parent=51 // pred_fallthru
          _
        %v354 = vld [vmem:[%s343] sm:$0xff]
        %v355 = vld [vmem:[%s343 + $0x8] sm:$0xff]
        %v356 = vld [vmem:[%s343 + $0x10] sm:$0xff]
        %v357 = vld [vmem:[%s343 + $0x18] sm:$0xff]
        %v358 = vld [vmem:[%s343 + $0x20] sm:$0xff]
        %v359 = vld [vmem:[%s343 + $0x28] sm:$0xff]
        %v360 = vld [vmem:[%s343 + $0x30] sm:$0xff]
        %v361 = vld [vmem:[%s343 + $0x38] sm:$0xff]
        %v362 = vld [vmem:[%s343 + $0x40] sm:$0xff]
        %v363 = vld [vmem:[%s343 + $0x48] sm:$0xff]
        %v364 = vld [vmem:[%s343 + $0x50] sm:$0xff]
        %v365 = vld [vmem:[%s343 + $0x58] sm:$0xff]
        %v366 = vld [vmem:[%s343 + $0x60] sm:$0xff]
        %v367 = vld [vmem:[%s343 + $0x68] sm:$0xff]
        %v368 = vld [vmem:[%s343 + $0x70] sm:$0xff]
        %v369 = vld [vmem:[%s343 + $0x78] sm:$0xff]
        %v370 = vld [vmem:[%s343 + $0x80] sm:$0xff]
        %v371 = vld [vmem:[%s343 + $0x88] sm:$0xff]
        %v372 = vld [vmem:[%s343 + $0x90] sm:$0xff]
        %v373 = vld [vmem:[%s343 + $0x98] sm:$0xff]
        %v374 = vld [vmem:[%s343 + $0xa0] sm:$0xff]
        %v375 = vld [vmem:[%s343 + $0xa8] sm:$0xff]
        %v376 = vld [vmem:[%s343 + $0xb0] sm:$0xff]
        %v377 = vld [vmem:[%s343 + $0xb8] sm:$0xff]
        %v378 = vld [vmem:[%s343 + $0xc0] sm:$0xff]
        %v379 = vld [vmem:[%s343 + $0xc8] sm:$0xff]
        %v380 = vld [vmem:[%s343 + $0xd0] sm:$0xff]
        %v381 = vld [vmem:[%s343 + $0xd8] sm:$0xff]
        %v382 = vld [vmem:[%s343 + $0xe0] sm:$0xff]
        %v383 = vld [vmem:[%s343 + $0xe8] sm:$0xff]
        %v384 = vld [vmem:[%s343 + $0xf0] sm:$0xff]
        %v385 = vld [vmem:[%s343 + $0xf8] sm:$0xff]
        %v386 = vld [vmem:[%s1] sm:$0xf]
        %v387 = vld [vmem:[%s1 + $0x4] sm:$0xf]
        %v388 = vld [vmem:[%s1 + $0x8] sm:$0xf]
        %v389 = vld [vmem:[%s1 + $0xc] sm:$0xf]
        %v390 = vld [vmem:[%s1 + $0x10] sm:$0xf]
        %v391 = vld [vmem:[%s1 + $0x14] sm:$0xf]
        %v392 = vld [vmem:[%s1 + $0x18] sm:$0xf]
        %v393 = vld [vmem:[%s1 + $0x1c] sm:$0xf]
        %v394 = vld [vmem:[%s1 + $0x20] sm:$0xf]
        %v395 = vld [vmem:[%s1 + $0x24] sm:$0xf]
        %v396 = vld [vmem:[%s1 + $0x28] sm:$0xf]
        %v397 = vld [vmem:[%s1 + $0x2c] sm:$0xf]
        %v398 = vld [vmem:[%s1 + $0x30] sm:$0xf]
        %v399 = vld [vmem:[%s1 + $0x34] sm:$0xf]
        %v400 = vld [vmem:[%s1 + $0x38] sm:$0xf]
        %v401 = vld [vmem:[%s1 + $0x3c] sm:$0xf]
        %v402 = vld [vmem:[%s1 + $0x40] sm:$0xf]
        %v403 = vld [vmem:[%s1 + $0x44] sm:$0xf]
        %v404 = vld [vmem:[%s1 + $0x48] sm:$0x3]
        %v405 = vld [vmem:[%s2] sm:$0x1]
        %v407 = vlaneseq
        %v408 = vshrl.u32 %v407, 7
        %v409 = vsub.s32 0, %v408
        %v410 = vrot.slane %v405, %v409
        %v444 = vunpack.c.l.b16 %v354
        %v445 = vunpack.c.h.b16 %v354
        %v446 = vunpack.c.l.b16 %v355
        %v447 = vunpack.c.h.b16 %v355
        %v448 = vunpack.c.l.b16 %v356
        %v449 = vunpack.c.h.b16 %v356
        %v450 = vunpack.c.l.b16 %v357
        %v451 = vunpack.c.h.b16 %v357
        %v452 = vunpack.c.l.b16 %v358
        %v453 = vunpack.c.h.b16 %v358
        %v454 = vunpack.c.l.b16 %v359
        %v455 = vunpack.c.h.b16 %v359
        %v456 = vunpack.c.l.b16 %v360
        %v457 = vunpack.c.h.b16 %v360
        %v458 = vunpack.c.l.b16 %v361
        %v459 = vunpack.c.h.b16 %v361
        %v460 = vunpack.c.l.b16 %v362
        %v461 = vunpack.c.h.b16 %v362
        %v462 = vunpack.c.l.b16 %v363
        %v463 = vunpack.c.h.b16 %v363
        %v464 = vunpack.c.l.b16 %v364
        %v465 = vunpack.c.h.b16 %v364
        %v466 = vunpack.c.l.b16 %v365
        %v467 = vunpack.c.h.b16 %v365
        %v468 = vunpack.c.l.b16 %v366
        %v469 = vunpack.c.h.b16 %v366
        %v470 = vunpack.c.l.b16 %v367
        %v471 = vunpack.c.h.b16 %v367
        %v472 = vunpack.c.l.b16 %v368
        %v473 = vunpack.c.h.b16 %v368
        %v474 = vunpack.c.l.b16 %v369
        %v475 = vunpack.c.h.b16 %v369
        %v476 = vunpack.c.l.b16 %v370
        %v477 = vunpack.c.h.b16 %v370
        %v478 = vunpack.c.l.b16 %v371
        %v479 = vunpack.c.h.b16 %v371
        %v480 = vunpack.c.l.b16 %v372
        %v481 = vunpack.c.h.b16 %v372
        %v482 = vunpack.c.l.b16 %v373
        %v483 = vunpack.c.h.b16 %v373
        %v484 = vunpack.c.l.b16 %v374
        %v485 = vunpack.c.h.b16 %v374
        %v486 = vunpack.c.l.b16 %v375
        %v487 = vunpack.c.h.b16 %v375
        %v488 = vunpack.c.l.b16 %v376
        %v489 = vunpack.c.h.b16 %v376
        %v490 = vunpack.c.l.b16 %v377
        %v491 = vunpack.c.h.b16 %v377
        %v492 = vunpack.c.l.b16 %v378
        %v493 = vunpack.c.h.b16 %v378
        %v494 = vunpack.c.l.b16 %v379
        %v495 = vunpack.c.h.b16 %v379
        %v496 = vunpack.c.l.b16 %v380
        %v497 = vunpack.c.h.b16 %v380
        %v498 = vunpack.c.l.b16 %v381
        %v499 = vunpack.c.h.b16 %v381
        %v500 = vunpack.c.l.b16 %v382
        %v501 = vunpack.c.h.b16 %v382
        %v502 = vunpack.c.l.b16 %v383
        %v503 = vunpack.c.h.b16 %v383
        %v504 = vunpack.c.l.b16 %v384
        %v505 = vunpack.c.h.b16 %v384
        %v506 = vunpack.c.l.b16 %v385
        %v507 = vunpack.c.h.b16 %v385
        %v508 = vpack.c.b16 %v446, %v444
        %v509 = vpack.c.b16 %v447, %v445
        %v510 = vpack.c.b16 %v450, %v448
        %v511 = vpack.c.b16 %v451, %v449
        %v512 = vpack.c.b16 %v454, %v452
        %v513 = vpack.c.b16 %v455, %v453
        %v514 = vpack.c.b16 %v458, %v456
        %v515 = vpack.c.b16 %v459, %v457
        %v516 = vpack.c.b16 %v462, %v460
        %v517 = vpack.c.b16 %v463, %v461
        %v518 = vpack.c.b16 %v466, %v464
        %v519 = vpack.c.b16 %v467, %v465
        %v520 = vpack.c.b16 %v470, %v468
        %v521 = vpack.c.b16 %v471, %v469
        %v522 = vpack.c.b16 %v474, %v472
        %v523 = vpack.c.b16 %v475, %v473
        %v524 = vpack.c.b16 %v478, %v476
        %v525 = vpack.c.b16 %v479, %v477
        %v526 = vpack.c.b16 %v482, %v480
        %v527 = vpack.c.b16 %v483, %v481
        %v528 = vpack.c.b16 %v486, %v484
        %v529 = vpack.c.b16 %v487, %v485
        %v530 = vpack.c.b16 %v490, %v488
        %v531 = vpack.c.b16 %v491, %v489
        %v532 = vpack.c.b16 %v494, %v492
        %v533 = vpack.c.b16 %v495, %v493
        %v534 = vpack.c.b16 %v498, %v496
        %v535 = vpack.c.b16 %v499, %v497
        %v536 = vpack.c.b16 %v502, %v500
        %v537 = vpack.c.b16 %v503, %v501
        %v538 = vpack.c.b16 %v506, %v504
        %v539 = vpack.c.b16 %v507, %v505
        %v575 = vunpack.c.l.b16 %v386
        %v576 = vunpack.c.l.b16 %v387
        %v577 = vunpack.c.l.b16 %v388
        %v578 = vunpack.c.l.b16 %v389
        %v579 = vunpack.c.l.b16 %v390
        %v580 = vunpack.c.l.b16 %v391
        %v581 = vunpack.c.l.b16 %v392
        %v582 = vunpack.c.l.b16 %v393
        %v583 = vunpack.c.l.b16 %v394
        %v584 = vunpack.c.l.b16 %v395
        %v585 = vunpack.c.l.b16 %v396
        %v586 = vunpack.c.l.b16 %v397
        %v587 = vunpack.c.l.b16 %v398
        %v588 = vunpack.c.l.b16 %v399
        %v589 = vunpack.c.l.b16 %v400
        %v590 = vunpack.c.l.b16 %v401
        %v591 = vunpack.c.l.b16 %v402
        %v592 = vunpack.c.l.b16 %v403
        %v593 = vunpack.c.l.b16 %v404
        %v594 = vpack.c.b16 %v576, %v575
        %v595 = vpack.c.b16 %v578, %v577
        %v596 = vpack.c.b16 %v580, %v579
        %v597 = vpack.c.b16 %v582, %v581
        %v598 = vpack.c.b16 %v584, %v583
        %v599 = vpack.c.b16 %v586, %v585
        %v600 = vpack.c.b16 %v588, %v587
        %v601 = vpack.c.b16 %v590, %v589
        %v602 = vpack.c.b16 %v592, %v591
        %v603 = vpack.c.b16 %v593, %v593
        %vm613 = vcmask 154624
        %v615 = vsel %vm613, %v509, 0
        %v618 = vsel %vm613, %v511, 0
        %v621 = vsel %vm613, %v513, 0
        %v624 = vsel %vm613, %v515, 0
        %v627 = vsel %vm613, %v517, 0
        %v630 = vsel %vm613, %v519, 0
        %v633 = vsel %vm613, %v521, 0
        %v636 = vsel %vm613, %v523, 0
        %v639 = vsel %vm613, %v525, 0
        %v642 = vsel %vm613, %v527, 0
        %v645 = vsel %vm613, %v529, 0
        %v648 = vsel %vm613, %v531, 0
        %v651 = vsel %vm613, %v533, 0
        %v654 = vsel %vm613, %v535, 0
        %v657 = vsel %vm613, %v537, 0
        %v660 = vsel %vm613, %v539, 0
        %vm662 = vcmask 1040384
        %vm663 = vcmask 1041408
        %v664 = vsel %vm662, 4294967295, 65535
        %v665 = vsel %vm663, %v664, 0
        %v667 = vand.u32 %v603, %v665
        %669 = vmatprep.subr.bf16.mxu0 0
        %670 = vmatpush1.bf16.msra.mxu0 %v594
        %671 = vmatprep.subr.bf16.mxu0 0
        %672 = vmatpush1.bf16.msra.mxu0 %v595
        %673 = vmatprep.subr.bf16.mxu0 0
        %674 = vmatpush1.bf16.msra.mxu0 %v596
        %675 = vmatprep.subr.bf16.mxu0 0
        %676 = vmatpush1.bf16.msra.mxu0 %v597
        %677 = vmatprep.subr.bf16.mxu0 0
        %678 = vmatpush1.bf16.msra.mxu0 %v598
        %679 = vmatprep.subr.bf16.mxu0 0
        %680 = vmatpush1.bf16.msra.mxu0 %v599
        %681 = vmatprep.subr.bf16.mxu0 0
        %682 = vmatpush1.bf16.msra.mxu0 %v600
        %683 = vmatprep.subr.bf16.mxu0 0
        %684 = vmatpush1.bf16.msra.mxu0 %v601
        %685 = vmatprep.subr.bf16.mxu0 0
        %686 = vmatpush1.bf16.msra.mxu0 %v602
        %687 = vmatprep.subr.bf16.mxu0 0
        %688 = vmatpush1.bf16.msra.mxu0 %v667
        %689 = vmatprep.subr.bf16.mxu0 0
        %690 = vmatpush1.bf16.msra.mxu0 0
        %691 = vmatprep.subr.bf16.mxu0 0
        %692 = vmatpush1.bf16.msra.mxu0 0
        %693 = vmatprep.subr.bf16.mxu0 0
        %694 = vmatpush1.bf16.msra.mxu0 0
        %695 = vmatprep.subr.bf16.mxu0 0
        %696 = vmatpush1.bf16.msra.mxu0 0
        %697 = vmatprep.subr.bf16.mxu0 0
        %698 = vmatpush1.bf16.msra.mxu0 0
        %699 = vmatprep.subr.bf16.mxu0 0
        %700 = vmatpush1.bf16.msra.mxu0 0
        %701 = vmatprep.mubr.bf16.mxu0 %v615
        %702 = vmatmul.mubr.bf16.gmra.mrb[0].mxu0 %v508
        %v703 = vpop.f32.mrb[0].mxu0
        %v704 = vadd.f32 %v410, %v703
        %v705 = vpop.f32.mrb[0].mxu0
        %v706 = vpop.f32.mrb[0].mxu0
        %v707 = vadd.f32 %v410, %v706
        %v708 = vpop.f32.mrb[0].mxu0
        %709 = vmatprep.mubr.bf16.mxu0 %v618
        %710 = vmatmul.mubr.bf16.gmra.mrb[0].mxu0 %v510
        %v711 = vpop.f32.mrb[0].mxu0
        %v712 = vadd.f32 %v410, %v711
        %v713 = vpop.f32.mrb[0].mxu0
        %v714 = vpop.f32.mrb[0].mxu0
        %v715 = vadd.f32 %v410, %v714
        %v716 = vpop.f32.mrb[0].mxu0
        %717 = vmatprep.mubr.bf16.mxu0 %v621
        %718 = vmatmul.mubr.bf16.gmra.mrb[0].mxu0 %v512
        %v719 = vpop.f32.mrb[0].mxu0
        %v720 = vadd.f32 %v410, %v719
        %v721 = vpop.f32.mrb[0].mxu0
        %v722 = vpop.f32.mrb[0].mxu0
        %v723 = vadd.f32 %v410, %v722
        %v724 = vpop.f32.mrb[0].mxu0
        %725 = vmatprep.mubr.bf16.mxu0 %v624
        %726 = vmatmul.mubr.bf16.gmra.mrb[0].mxu0 %v514
        %v727 = vpop.f32.mrb[0].mxu0
        %v728 = vadd.f32 %v410, %v727
        %v729 = vpop.f32.mrb[0].mxu0
        %v730 = vpop.f32.mrb[0].mxu0
        %v731 = vadd.f32 %v410, %v730
        %v732 = vpop.f32.mrb[0].mxu0
        %733 = vmatprep.mubr.bf16.mxu0 %v627
        %734 = vmatmul.mubr.bf16.gmra.mrb[0].mxu0 %v516
        %v735 = vpop.f32.mrb[0].mxu0
        %v736 = vadd.f32 %v410, %v735
        %v737 = vpop.f32.mrb[0].mxu0
        %v738 = vpop.f32.mrb[0].mxu0
        %v739 = vadd.f32 %v410, %v738
        %v740 = vpop.f32.mrb[0].mxu0
        %741 = vmatprep.mubr.bf16.mxu0 %v630
        %742 = vmatmul.mubr.bf16.gmra.mrb[0].mxu0 %v518
        %v743 = vpop.f32.mrb[0].mxu0
        %v744 = vadd.f32 %v410, %v743
        %v745 = vpop.f32.mrb[0].mxu0
        %v746 = vpop.f32.mrb[0].mxu0
        %v747 = vadd.f32 %v410, %v746
        %v748 = vpop.f32.mrb[0].mxu0
        %749 = vmatprep.mubr.bf16.mxu0 %v633
        %750 = vmatmul.mubr.bf16.gmra.mrb[0].mxu0 %v520
        %v751 = vpop.f32.mrb[0].mxu0
        %v752 = vadd.f32 %v410, %v751
        %v753 = vpop.f32.mrb[0].mxu0
        %v754 = vpop.f32.mrb[0].mxu0
        %v755 = vadd.f32 %v410, %v754
        %v756 = vpop.f32.mrb[0].mxu0
        %757 = vmatprep.mubr.bf16.mxu0 %v636
        %758 = vmatmul.mubr.bf16.gmra.mrb[0].mxu0 %v522
        %v759 = vpop.f32.mrb[0].mxu0
        %v760 = vadd.f32 %v410, %v759
        %v761 = vpop.f32.mrb[0].mxu0
        %v762 = vpop.f32.mrb[0].mxu0
        %v763 = vadd.f32 %v410, %v762
        %v764 = vpop.f32.mrb[0].mxu0
        %765 = vmatprep.mubr.bf16.mxu0 %v639
        %766 = vmatmul.mubr.bf16.gmra.mrb[0].mxu0 %v524
        %v767 = vpop.f32.mrb[0].mxu0
        %v768 = vadd.f32 %v410, %v767
        %v769 = vpop.f32.mrb[0].mxu0
        %v770 = vpop.f32.mrb[0].mxu0
        %v771 = vadd.f32 %v410, %v770
        %v772 = vpop.f32.mrb[0].mxu0
        %773 = vmatprep.mubr.bf16.mxu0 %v642
        %774 = vmatmul.mubr.bf16.gmra.mrb[0].mxu0 %v526
        %v775 = vpop.f32.mrb[0].mxu0
        %v776 = vadd.f32 %v410, %v775
        %v777 = vpop.f32.mrb[0].mxu0
        %v778 = vpop.f32.mrb[0].mxu0
        %v779 = vadd.f32 %v410, %v778
        %v780 = vpop.f32.mrb[0].mxu0
        %781 = vmatprep.mubr.bf16.mxu0 %v645
        %782 = vmatmul.mubr.bf16.gmra.mrb[0].mxu0 %v528
        %v783 = vpop.f32.mrb[0].mxu0
        %v784 = vadd.f32 %v410, %v783
        %v785 = vpop.f32.mrb[0].mxu0
        %v786 = vpop.f32.mrb[0].mxu0
        %v787 = vadd.f32 %v410, %v786
        %v788 = vpop.f32.mrb[0].mxu0
        %789 = vmatprep.mubr.bf16.mxu0 %v648
        %790 = vmatmul.mubr.bf16.gmra.mrb[0].mxu0 %v530
        %v791 = vpop.f32.mrb[0].mxu0
        %v792 = vadd.f32 %v410, %v791
        %v793 = vpop.f32.mrb[0].mxu0
        %v794 = vpop.f32.mrb[0].mxu0
        %v795 = vadd.f32 %v410, %v794
        %v796 = vpop.f32.mrb[0].mxu0
        %797 = vmatprep.mubr.bf16.mxu0 %v651
        %798 = vmatmul.mubr.bf16.gmra.mrb[0].mxu0 %v532
        %v799 = vpop.f32.mrb[0].mxu0
        %v800 = vadd.f32 %v410, %v799
        %v801 = vpop.f32.mrb[0].mxu0
        %v802 = vpop.f32.mrb[0].mxu0
        %v803 = vadd.f32 %v410, %v802
        %v804 = vpop.f32.mrb[0].mxu0
        %805 = vmatprep.mubr.bf16.mxu0 %v654
        %806 = vmatmul.mubr.bf16.gmra.mrb[0].mxu0 %v534
        %v807 = vpop.f32.mrb[0].mxu0
        %v808 = vadd.f32 %v410, %v807
        %v809 = vpop.f32.mrb[0].mxu0
        %v810 = vpop.f32.mrb[0].mxu0
        %v811 = vadd.f32 %v410, %v810
        %v812 = vpop.f32.mrb[0].mxu0
        %813 = vmatprep.mubr.bf16.mxu0 %v657
        %814 = vmatmul.mubr.bf16.gmra.mrb[0].mxu0 %v536
        %v815 = vpop.f32.mrb[0].mxu0
        %v816 = vadd.f32 %v410, %v815
        %v817 = vpop.f32.mrb[0].mxu0
        %v818 = vpop.f32.mrb[0].mxu0
        %v819 = vadd.f32 %v410, %v818
        %v820 = vpop.f32.mrb[0].mxu0
        %821 = vmatprep.mubr.bf16.mxu0 %v660
        %822 = vmatmul.mubr.bf16.gmra.mrb[0].mxu0 %v538
        %v823 = vpop.f32.mrb[0].mxu0
        %v824 = vadd.f32 %v410, %v823
        %v825 = vpop.f32.mrb[0].mxu0
        %v826 = vpop.f32.mrb[0].mxu0
        %v827 = vadd.f32 %v410, %v826
        %v828 = vpop.f32.mrb[0].mxu0
        %829 = vdwg.mxu0
        %v830 = vmax.f32 %v704, 0.0
        %v831 = vmax.f32 %v707, 0.0
        %v832 = vmax.f32 %v712, 0.0
        %v833 = vmax.f32 %v715, 0.0
        %v834 = vmax.f32 %v720, 0.0
        %v835 = vmax.f32 %v723, 0.0
        %v836 = vmax.f32 %v728, 0.0
        %v837 = vmax.f32 %v731, 0.0
        %v838 = vmax.f32 %v736, 0.0
        %v839 = vmax.f32 %v739, 0.0
        %v840 = vmax.f32 %v744, 0.0
        %v841 = vmax.f32 %v747, 0.0
        %v842 = vmax.f32 %v752, 0.0
        %v843 = vmax.f32 %v755, 0.0
        %v844 = vmax.f32 %v760, 0.0
        %v845 = vmax.f32 %v763, 0.0
        %v846 = vmax.f32 %v768, 0.0
        %v847 = vmax.f32 %v771, 0.0
        %v848 = vmax.f32 %v776, 0.0
        %v849 = vmax.f32 %v779, 0.0
        %v850 = vmax.f32 %v784, 0.0
        %v851 = vmax.f32 %v787, 0.0
        %v852 = vmax.f32 %v792, 0.0
        %v853 = vmax.f32 %v795, 0.0
        %v854 = vmax.f32 %v800, 0.0
        %v855 = vmax.f32 %v803, 0.0
        %v856 = vmax.f32 %v808, 0.0
        %v857 = vmax.f32 %v811, 0.0
        %v858 = vmax.f32 %v816, 0.0
        %v859 = vmax.f32 %v819, 0.0
        %v860 = vmax.f32 %v824, 0.0
        %v861 = vmax.f32 %v827, 0.0
        %v862 = vpack.c.bf16 %v831, %v830
        %v863 = vpack.c.bf16 %v833, %v832
        %v864 = vpack.c.bf16 %v835, %v834
        %v865 = vpack.c.bf16 %v837, %v836
        %v866 = vpack.c.bf16 %v839, %v838
        %v867 = vpack.c.bf16 %v841, %v840
        %v868 = vpack.c.bf16 %v843, %v842
        %v869 = vpack.c.bf16 %v845, %v844
        %v870 = vpack.c.bf16 %v847, %v846
        %v871 = vpack.c.bf16 %v849, %v848
        %v872 = vpack.c.bf16 %v851, %v850
        %v873 = vpack.c.bf16 %v853, %v852
        %v874 = vpack.c.bf16 %v855, %v854
        %v875 = vpack.c.bf16 %v857, %v856
        %v876 = vpack.c.bf16 %v859, %v858
        %v877 = vpack.c.bf16 %v861, %v860
        %v878 = vld [vmem:[%s3] sm:$0xff]
        %v879 = vld [vmem:[%s3 + $0x8] sm:$0xff]
        %v880 = vld [vmem:[%s3 + $0x10] sm:$0xff]
        %v881 = vld [vmem:[%s3 + $0x18] sm:$0xff]
        %v882 = vld [vmem:[%s3 + $0x20] sm:$0xff]
        %v883 = vld [vmem:[%s3 + $0x28] sm:$0xff]
        %v884 = vld [vmem:[%s3 + $0x30] sm:$0xff]
        %v885 = vld [vmem:[%s3 + $0x38] sm:$0xff]
        %v886 = vld [vmem:[%s3 + $0x40] sm:$0xff]
        %v887 = vld [vmem:[%s3 + $0x48] sm:$0xff]
        %v888 = vld [vmem:[%s3 + $0x50] sm:$0xff]
        %v889 = vld [vmem:[%s3 + $0x58] sm:$0xff]
        %v890 = vld [vmem:[%s3 + $0x60] sm:$0xff]
        %v891 = vld [vmem:[%s3 + $0x68] sm:$0xff]
        %v892 = vld [vmem:[%s3 + $0x70] sm:$0xff]
        %v893 = vld [vmem:[%s3 + $0x78] sm:$0xff]
        %v894 = vld [vmem:[%s3 + $0x80] sm:$0xff]
        %v895 = vld [vmem:[%s3 + $0x88] sm:$0xff]
        %v896 = vld [vmem:[%s3 + $0x90] sm:$0xff]
        %v897 = vld [vmem:[%s3 + $0x98] sm:$0xff]
        %v898 = vld [vmem:[%s3 + $0xa0] sm:$0xff]
        %v899 = vld [vmem:[%s3 + $0xa8] sm:$0xff]
        %v900 = vld [vmem:[%s3 + $0xb0] sm:$0xff]
        %v901 = vld [vmem:[%s3 + $0xb8] sm:$0xff]
        %v902 = vld [vmem:[%s3 + $0xc0] sm:$0xff]
        %v903 = vld [vmem:[%s3 + $0xc8] sm:$0xff]
        %v904 = vld [vmem:[%s3 + $0xd0] sm:$0xff]
        %v905 = vld [vmem:[%s3 + $0xd8] sm:$0xff]
        %v906 = vld [vmem:[%s3 + $0xe0] sm:$0xff]
        %v907 = vld [vmem:[%s3 + $0xe8] sm:$0xff]
        %v908 = vld [vmem:[%s3 + $0xf0] sm:$0xff]
        %v909 = vld [vmem:[%s3 + $0xf8] sm:$0xff]
        %v910 = vld [vmem:[%s4] sm:$0xff]
        %v912 = vlaneseq
        %v913 = vshrl.u32 %v912, 7
        %v914 = vsub.s32 0, %v913
        %v915 = vrot.slane %v910, %v914
        %v916 = vlaneseq
        %v917 = vshrl.u32 %v916, 7
        %v918 = vsub.s32 1, %v917
        %v919 = vrot.slane %v910, %v918
        %v920 = vlaneseq
        %v921 = vshrl.u32 %v920, 7
        %v922 = vsub.s32 2, %v921
        %v923 = vrot.slane %v910, %v922
        %v924 = vlaneseq
        %v925 = vshrl.u32 %v924, 7
        %v926 = vsub.s32 3, %v925
        %v927 = vrot.slane %v910, %v926
        %v928 = vlaneseq
        %v929 = vshrl.u32 %v928, 7
        %v930 = vsub.s32 4, %v929
        %v931 = vrot.slane %v910, %v930
        %v932 = vlaneseq
        %v933 = vshrl.u32 %v932, 7
        %v934 = vsub.s32 5, %v933
        %v935 = vrot.slane %v910, %v934
        %v936 = vlaneseq
        %v937 = vshrl.u32 %v936, 7
        %v938 = vsub.s32 6, %v937
        %v939 = vrot.slane %v910, %v938
        %v940 = vlaneseq
        %v941 = vshrl.u32 %v940, 7
        %v942 = vsub.s32 7, %v941
        %v943 = vrot.slane %v910, %v942
        %v984 = vunpack.c.l.b16 %v878
        %v985 = vunpack.c.h.b16 %v878
        %v986 = vunpack.c.l.b16 %v879
        %v987 = vunpack.c.h.b16 %v879
        %v988 = vunpack.c.l.b16 %v880
        %v989 = vunpack.c.h.b16 %v880
        %v990 = vunpack.c.l.b16 %v881
        %v991 = vunpack.c.h.b16 %v881
        %v992 = vunpack.c.l.b16 %v882
        %v993 = vunpack.c.h.b16 %v882
        %v994 = vunpack.c.l.b16 %v883
        %v995 = vunpack.c.h.b16 %v883
        %v996 = vunpack.c.l.b16 %v884
        %v997 = vunpack.c.h.b16 %v884
        %v998 = vunpack.c.l.b16 %v885
        %v999 = vunpack.c.h.b16 %v885
        %v1000 = vunpack.c.l.b16 %v886
        %v1001 = vunpack.c.h.b16 %v886
        %v1002 = vunpack.c.l.b16 %v887
        %v1003 = vunpack.c.h.b16 %v887
        %v1004 = vunpack.c.l.b16 %v888
        %v1005 = vunpack.c.h.b16 %v888
        %v1006 = vunpack.c.l.b16 %v889
        %v1007 = vunpack.c.h.b16 %v889
        %v1008 = vunpack.c.l.b16 %v890
        %v1009 = vunpack.c.h.b16 %v890
        %v1010 = vunpack.c.l.b16 %v891
        %v1011 = vunpack.c.h.b16 %v891
        %v1012 = vunpack.c.l.b16 %v892
        %v1013 = vunpack.c.h.b16 %v892
        %v1014 = vunpack.c.l.b16 %v893
        %v1015 = vunpack.c.h.b16 %v893
        %v1016 = vunpack.c.l.b16 %v894
        %v1017 = vunpack.c.h.b16 %v894
        %v1018 = vunpack.c.l.b16 %v895
        %v1019 = vunpack.c.h.b16 %v895
        %v1020 = vunpack.c.l.b16 %v896
        %v1021 = vunpack.c.h.b16 %v896
        %v1022 = vunpack.c.l.b16 %v897
        %v1023 = vunpack.c.h.b16 %v897
        %v1024 = vunpack.c.l.b16 %v898
        %v1025 = vunpack.c.h.b16 %v898
        %v1026 = vunpack.c.l.b16 %v899
        %v1027 = vunpack.c.h.b16 %v899
        %v1028 = vunpack.c.l.b16 %v900
        %v1029 = vunpack.c.h.b16 %v900
        %v1030 = vunpack.c.l.b16 %v901
        %v1031 = vunpack.c.h.b16 %v901
        %v1032 = vunpack.c.l.b16 %v902
        %v1033 = vunpack.c.h.b16 %v902
        %v1034 = vunpack.c.l.b16 %v903
        %v1035 = vunpack.c.h.b16 %v903
        %v1036 = vunpack.c.l.b16 %v904
        %v1037 = vunpack.c.h.b16 %v904
        %v1038 = vunpack.c.l.b16 %v905
        %v1039 = vunpack.c.h.b16 %v905
        %v1040 = vunpack.c.l.b16 %v906
        %v1041 = vunpack.c.h.b16 %v906
        %v1042 = vunpack.c.l.b16 %v907
        %v1043 = vunpack.c.h.b16 %v907
        %v1044 = vunpack.c.l.b16 %v908
        %v1045 = vunpack.c.h.b16 %v908
        %v1046 = vunpack.c.l.b16 %v909
        %v1047 = vunpack.c.h.b16 %v909
        %v1048 = vpack.c.b16 %v992, %v984
        %v1049 = vpack.c.b16 %v993, %v985
        %v1050 = vpack.c.b16 %v994, %v986
        %v1051 = vpack.c.b16 %v995, %v987
        %v1052 = vpack.c.b16 %v996, %v988
        %v1053 = vpack.c.b16 %v997, %v989
        %v1054 = vpack.c.b16 %v998, %v990
        %v1055 = vpack.c.b16 %v999, %v991
        %v1056 = vpack.c.b16 %v1008, %v1000
        %v1057 = vpack.c.b16 %v1009, %v1001
        %v1058 = vpack.c.b16 %v1010, %v1002
        %v1059 = vpack.c.b16 %v1011, %v1003
        %v1060 = vpack.c.b16 %v1012, %v1004
        %v1061 = vpack.c.b16 %v1013, %v1005
        %v1062 = vpack.c.b16 %v1014, %v1006
        %v1063 = vpack.c.b16 %v1015, %v1007
        %v1064 = vpack.c.b16 %v1024, %v1016
        %v1065 = vpack.c.b16 %v1025, %v1017
        %v1066 = vpack.c.b16 %v1026, %v1018
        %v1067 = vpack.c.b16 %v1027, %v1019
        %v1068 = vpack.c.b16 %v1028, %v1020
        %v1069 = vpack.c.b16 %v1029, %v1021
        %v1070 = vpack.c.b16 %v1030, %v1022
        %v1071 = vpack.c.b16 %v1031, %v1023
        %v1072 = vpack.c.b16 %v1040, %v1032
        %v1073 = vpack.c.b16 %v1041, %v1033
        %v1074 = vpack.c.b16 %v1042, %v1034
        %v1075 = vpack.c.b16 %v1043, %v1035
        %v1076 = vpack.c.b16 %v1044, %v1036
        %v1077 = vpack.c.b16 %v1045, %v1037
        %v1078 = vpack.c.b16 %v1046, %v1038
        %v1079 = vpack.c.b16 %v1047, %v1039
        %vm1112 = vcmask 523264
        %v1114 = vsel %vm1112, %v862, 0
        %v1117 = vsel %vm1112, %v863, 0
        %v1120 = vsel %vm1112, %v864, 0
        %v1123 = vsel %vm1112, %v865, 0
        %v1126 = vsel %vm1112, %v866, 0
        %v1129 = vsel %vm1112, %v867, 0
        %v1132 = vsel %vm1112, %v868, 0
        %v1135 = vsel %vm1112, %v869, 0
        %v1138 = vsel %vm1112, %v870, 0
        %v1141 = vsel %vm1112, %v871, 0
        %v1144 = vsel %vm1112, %v872, 0
        %v1147 = vsel %vm1112, %v873, 0
        %v1150 = vsel %vm1112, %v874, 0
        %v1153 = vsel %vm1112, %v875, 0
        %v1156 = vsel %vm1112, %v876, 0
        %v1159 = vsel %vm1112, %v877, 0
        %1161 = vmatprep.subr.bf16.mxu0 %v1049
        %1162 = vmatpush1.bf16.msra.mxu0 %v1048
        %1163 = vmatprep.subr.bf16.mxu0 %v1057
        %1164 = vmatpush1.bf16.msra.mxu0 %v1056
        %1165 = vmatprep.subr.bf16.mxu0 %v1065
        %1166 = vmatpush1.bf16.msra.mxu0 %v1064
        %1167 = vmatprep.subr.bf16.mxu0 %v1073
        %1168 = vmatpush1.bf16.msra.mxu0 %v1072
        %1169 = vmatprep.subr.bf16.mxu0 0
        %1170 = vmatpush1.bf16.msra.mxu0 0
        %1171 = vmatprep.subr.bf16.mxu0 0
        %1172 = vmatpush1.bf16.msra.mxu0 0
        %1173 = vmatprep.subr.bf16.mxu0 0
        %1174 = vmatpush1.bf16.msra.mxu0 0
        %1175 = vmatprep.subr.bf16.mxu0 0
        %1176 = vmatpush1.bf16.msra.mxu0 0
        %1177 = vmatprep.subr.bf16.mxu0 0
        %1178 = vmatpush1.bf16.msra.mxu0 0
        %1179 = vmatprep.subr.bf16.mxu0 0
        %1180 = vmatpush1.bf16.msra.mxu0 0
        %1181 = vmatprep.subr.bf16.mxu0 0
        %1182 = vmatpush1.bf16.msra.mxu0 0
        %1183 = vmatprep.subr.bf16.mxu0 0
        %1184 = vmatpush1.bf16.msra.mxu0 0
        %1185 = vmatprep.subr.bf16.mxu0 0
        %1186 = vmatpush1.bf16.msra.mxu0 0
        %1187 = vmatprep.subr.bf16.mxu0 0
        %1188 = vmatpush1.bf16.msra.mxu0 0
        %1189 = vmatprep.subr.bf16.mxu0 0
        %1190 = vmatpush1.bf16.msra.mxu0 0
        %1191 = vmatprep.subr.bf16.mxu0 0
        %1192 = vmatpush1.bf16.msra.mxu0 0
        %1193 = vmatprep.mubr.bf16.mxu0 0
        %1194 = vmatmul.mubr.bf16.gmra.mrb[0].mxu0 %v1114
        %v1195 = vpop.f32.mrb[0].mxu0
        %v1196 = vadd.f32 %v915, %v1195
        %v1197 = vpop.f32.mrb[0].mxu0
        %v1198 = vadd.f32 %v919, %v1197
        %v1199 = vpop.f32.mrb[0].mxu0
        %v1200 = vadd.f32 %v915, %v1199
        %v1201 = vpop.f32.mrb[0].mxu0
        %v1202 = vadd.f32 %v919, %v1201
        %1203 = vmatprep.mubr.bf16.mxu0 0
        %1204 = vmatmul.mubr.bf16.gmra.mrb[0].mxu0 %v1117
        %v1205 = vpop.f32.mrb[0].mxu0
        %v1206 = vadd.f32 %v915, %v1205
        %v1207 = vpop.f32.mrb[0].mxu0
        %v1208 = vadd.f32 %v919, %v1207
        %v1209 = vpop.f32.mrb[0].mxu0
        %v1210 = vadd.f32 %v915, %v1209
        %v1211 = vpop.f32.mrb[0].mxu0
        %v1212 = vadd.f32 %v919, %v1211
        %1213 = vmatprep.mubr.bf16.mxu0 0
        %1214 = vmatmul.mubr.bf16.gmra.mrb[0].mxu0 %v1120
        %v1215 = vpop.f32.mrb[0].mxu0
        %v1216 = vadd.f32 %v915, %v1215
        %v1217 = vpop.f32.mrb[0].mxu0
        %v1218 = vadd.f32 %v919, %v1217
        %v1219 = vpop.f32.mrb[0].mxu0
        %v1220 = vadd.f32 %v915, %v1219
        %v1221 = vpop.f32.mrb[0].mxu0
        %v1222 = vadd.f32 %v919, %v1221
        %1223 = vmatprep.mubr.bf16.mxu0 0
        %1224 = vmatmul.mubr.bf16.gmra.mrb[0].mxu0 %v1123
        %v1225 = vpop.f32.mrb[0].mxu0
        %v1226 = vadd.f32 %v915, %v1225
        %v1227 = vpop.f32.mrb[0].mxu0
        %v1228 = vadd.f32 %v919, %v1227
        %v1229 = vpop.f32.mrb[0].mxu0
        %v1230 = vadd.f32 %v915, %v1229
        %v1231 = vpop.f32.mrb[0].mxu0
        %v1232 = vadd.f32 %v919, %v1231
        %1233 = vmatprep.mubr.bf16.mxu0 0
        %1234 = vmatmul.mubr.bf16.gmra.mrb[0].mxu0 %v1126
        %v1235 = vpop.f32.mrb[0].mxu0
        %v1236 = vadd.f32 %v915, %v1235
        %v1237 = vpop.f32.mrb[0].mxu0
        %v1238 = vadd.f32 %v919, %v1237
        %v1239 = vpop.f32.mrb[0].mxu0
        %v1240 = vadd.f32 %v915, %v1239
        %v1241 = vpop.f32.mrb[0].mxu0
        %v1242 = vadd.f32 %v919, %v1241
        %1243 = vmatprep.mubr.bf16.mxu0 0
        %1244 = vmatmul.mubr.bf16.gmra.mrb[0].mxu0 %v1129
        %v1245 = vpop.f32.mrb[0].mxu0
        %v1246 = vadd.f32 %v915, %v1245
        %v1247 = vpop.f32.mrb[0].mxu0
        %v1248 = vadd.f32 %v919, %v1247
        %v1249 = vpop.f32.mrb[0].mxu0
        %v1250 = vadd.f32 %v915, %v1249
        %v1251 = vpop.f32.mrb[0].mxu0
        %v1252 = vadd.f32 %v919, %v1251
        %1253 = vmatprep.mubr.bf16.mxu0 0
        %1254 = vmatmul.mubr.bf16.gmra.mrb[0].mxu0 %v1132
        %v1255 = vpop.f32.mrb[0].mxu0
        %v1256 = vadd.f32 %v915, %v1255
        %v1257 = vpop.f32.mrb[0].mxu0
        %v1258 = vadd.f32 %v919, %v1257
        %v1259 = vpop.f32.mrb[0].mxu0
        %v1260 = vadd.f32 %v915, %v1259
        %v1261 = vpop.f32.mrb[0].mxu0
        %v1262 = vadd.f32 %v919, %v1261
        %1263 = vmatprep.mubr.bf16.mxu0 0
        %1264 = vmatmul.mubr.bf16.gmra.mrb[0].mxu0 %v1135
        %v1265 = vpop.f32.mrb[0].mxu0
        %v1266 = vadd.f32 %v915, %v1265
        %v1267 = vpop.f32.mrb[0].mxu0
        %v1268 = vadd.f32 %v919, %v1267
        %v1269 = vpop.f32.mrb[0].mxu0
        %v1270 = vadd.f32 %v915, %v1269
        %v1271 = vpop.f32.mrb[0].mxu0
        %v1272 = vadd.f32 %v919, %v1271
        %1273 = vmatprep.mubr.bf16.mxu0 0
        %1274 = vmatmul.mubr.bf16.gmra.mrb[0].mxu0 %v1138
        %v1275 = vpop.f32.mrb[0].mxu0
        %v1276 = vadd.f32 %v915, %v1275
        %v1277 = vpop.f32.mrb[0].mxu0
        %v1278 = vadd.f32 %v919, %v1277
        %v1279 = vpop.f32.mrb[0].mxu0
        %v1280 = vadd.f32 %v915, %v1279
        %v1281 = vpop.f32.mrb[0].mxu0
        %v1282 = vadd.f32 %v919, %v1281
        %1283 = vmatprep.mubr.bf16.mxu0 0
        %1284 = vmatmul.mubr.bf16.gmra.mrb[0].mxu0 %v1141
        %v1285 = vpop.f32.mrb[0].mxu0
        %v1286 = vadd.f32 %v915, %v1285
        %v1287 = vpop.f32.mrb[0].mxu0
        %v1288 = vadd.f32 %v919, %v1287
        %v1289 = vpop.f32.mrb[0].mxu0
        %v1290 = vadd.f32 %v915, %v1289
        %v1291 = vpop.f32.mrb[0].mxu0
        %v1292 = vadd.f32 %v919, %v1291
        %1293 = vmatprep.mubr.bf16.mxu0 0
        %1294 = vmatmul.mubr.bf16.gmra.mrb[0].mxu0 %v1144
        %v1295 = vpop.f32.mrb[0].mxu0
        %v1296 = vadd.f32 %v915, %v1295
        %v1297 = vpop.f32.mrb[0].mxu0
        %v1298 = vadd.f32 %v919, %v1297
        %v1299 = vpop.f32.mrb[0].mxu0
        %v1300 = vadd.f32 %v915, %v1299
        %v1301 = vpop.f32.mrb[0].mxu0
        %v1302 = vadd.f32 %v919, %v1301
        %1303 = vmatprep.mubr.bf16.mxu0 0
        %1304 = vmatmul.mubr.bf16.gmra.mrb[0].mxu0 %v1147
        %v1305 = vpop.f32.mrb[0].mxu0
        %v1306 = vadd.f32 %v915, %v1305
        %v1307 = vpop.f32.mrb[0].mxu0
        %v1308 = vadd.f32 %v919, %v1307
        %v1309 = vpop.f32.mrb[0].mxu0
        %v1310 = vadd.f32 %v915, %v1309
        %v1311 = vpop.f32.mrb[0].mxu0
        %v1312 = vadd.f32 %v919, %v1311
        %1313 = vmatprep.mubr.bf16.mxu0 0
        %1314 = vmatmul.mubr.bf16.gmra.mrb[0].mxu0 %v1150
        %v1315 = vpop.f32.mrb[0].mxu0
        %v1316 = vadd.f32 %v915, %v1315
        %v1317 = vpop.f32.mrb[0].mxu0
        %v1318 = vadd.f32 %v919, %v1317
        %v1319 = vpop.f32.mrb[0].mxu0
        %v1320 = vadd.f32 %v915, %v1319
        %v1321 = vpop.f32.mrb[0].mxu0
        %v1322 = vadd.f32 %v919, %v1321
        %1323 = vmatprep.mubr.bf16.mxu0 0
        %1324 = vmatmul.mubr.bf16.gmra.mrb[0].mxu0 %v1153
        %v1325 = vpop.f32.mrb[0].mxu0
        %v1326 = vadd.f32 %v915, %v1325
        %v1327 = vpop.f32.mrb[0].mxu0
        %v1328 = vadd.f32 %v919, %v1327
        %v1329 = vpop.f32.mrb[0].mxu0
        %v1330 = vadd.f32 %v915, %v1329
        %v1331 = vpop.f32.mrb[0].mxu0
        %v1332 = vadd.f32 %v919, %v1331
        %1333 = vmatprep.mubr.bf16.mxu0 0
        %1334 = vmatmul.mubr.bf16.gmra.mrb[0].mxu0 %v1156
        %v1335 = vpop.f32.mrb[0].mxu0
        %v1336 = vadd.f32 %v915, %v1335
        %v1337 = vpop.f32.mrb[0].mxu0
        %v1338 = vadd.f32 %v919, %v1337
        %v1339 = vpop.f32.mrb[0].mxu0
        %v1340 = vadd.f32 %v915, %v1339
        %v1341 = vpop.f32.mrb[0].mxu0
        %v1342 = vadd.f32 %v919, %v1341
        %1343 = vmatprep.mubr.bf16.mxu0 0
        %1344 = vmatmul.mubr.bf16.gmra.mrb[0].mxu0 %v1159
        %v1345 = vpop.f32.mrb[0].mxu0
        %v1346 = vadd.f32 %v915, %v1345
        %v1347 = vpop.f32.mrb[0].mxu0
        %v1348 = vadd.f32 %v919, %v1347
        %v1349 = vpop.f32.mrb[0].mxu0
        %v1350 = vadd.f32 %v915, %v1349
        %v1351 = vpop.f32.mrb[0].mxu0
        %v1352 = vadd.f32 %v919, %v1351
        %1353 = vdwg.mxu0
        %1354 = vmatprep.subr.bf16.mxu0 %v1051
        %1355 = vmatpush1.bf16.msra.mxu0 %v1050
        %1356 = vmatprep.subr.bf16.mxu0 %v1059
        %1357 = vmatpush1.bf16.msra.mxu0 %v1058
        %1358 = vmatprep.subr.bf16.mxu0 %v1067
        %1359 = vmatpush1.bf16.msra.mxu0 %v1066
        %1360 = vmatprep.subr.bf16.mxu0 %v1075
        %1361 = vmatpush1.bf16.msra.mxu0 %v1074
        %1362 = vmatprep.subr.bf16.mxu0 0
        %1363 = vmatpush1.bf16.msra.mxu0 0
        %1364 = vmatprep.subr.bf16.mxu0 0
        %1365 = vmatpush1.bf16.msra.mxu0 0
        %1366 = vmatprep.subr.bf16.mxu0 0
        %1367 = vmatpush1.bf16.msra.mxu0 0
        %1368 = vmatprep.subr.bf16.mxu0 0
        %1369 = vmatpush1.bf16.msra.mxu0 0
        %1370 = vmatprep.subr.bf16.mxu0 0
        %1371 = vmatpush1.bf16.msra.mxu0 0
        %1372 = vmatprep.subr.bf16.mxu0 0
        %1373 = vmatpush1.bf16.msra.mxu0 0
        %1374 = vmatprep.subr.bf16.mxu0 0
        %1375 = vmatpush1.bf16.msra.mxu0 0
        %1376 = vmatprep.subr.bf16.mxu0 0
        %1377 = vmatpush1.bf16.msra.mxu0 0
        %1378 = vmatprep.subr.bf16.mxu0 0
        %1379 = vmatpush1.bf16.msra.mxu0 0
        %1380 = vmatprep.subr.bf16.mxu0 0
        %1381 = vmatpush1.bf16.msra.mxu0 0
        %1382 = vmatprep.subr.bf16.mxu0 0
        %1383 = vmatpush1.bf16.msra.mxu0 0
        %1384 = vmatprep.subr.bf16.mxu0 0
        %1385 = vmatpush1.bf16.msra.mxu0 0
        %1386 = vmatprep.mubr.bf16.mxu0 0
        %1387 = vmatmul.mubr.bf16.gmra.mrb[0].mxu0 %v1114
        %v1388 = vpop.f32.mrb[0].mxu0
        %v1389 = vadd.f32 %v923, %v1388
        %v1390 = vpop.f32.mrb[0].mxu0
        %v1391 = vadd.f32 %v927, %v1390
        %v1392 = vpop.f32.mrb[0].mxu0
        %v1393 = vadd.f32 %v923, %v1392
        %v1394 = vpop.f32.mrb[0].mxu0
        %v1395 = vadd.f32 %v927, %v1394
        %1396 = vmatprep.mubr.bf16.mxu0 0
        %1397 = vmatmul.mubr.bf16.gmra.mrb[0].mxu0 %v1117
        %v1398 = vpop.f32.mrb[0].mxu0
        %v1399 = vadd.f32 %v923, %v1398
        %v1400 = vpop.f32.mrb[0].mxu0
        %v1401 = vadd.f32 %v927, %v1400
        %v1402 = vpop.f32.mrb[0].mxu0
        %v1403 = vadd.f32 %v923, %v1402
        %v1404 = vpop.f32.mrb[0].mxu0
        %v1405 = vadd.f32 %v927, %v1404
        %1406 = vmatprep.mubr.bf16.mxu0 0
        %1407 = vmatmul.mubr.bf16.gmra.mrb[0].mxu0 %v1120
        %v1408 = vpop.f32.mrb[0].mxu0
        %v1409 = vadd.f32 %v923, %v1408
        %v1410 = vpop.f32.mrb[0].mxu0
        %v1411 = vadd.f32 %v927, %v1410
        %v1412 = vpop.f32.mrb[0].mxu0
        %v1413 = vadd.f32 %v923, %v1412
        %v1414 = vpop.f32.mrb[0].mxu0
        %v1415 = vadd.f32 %v927, %v1414
        %1416 = vmatprep.mubr.bf16.mxu0 0
        %1417 = vmatmul.mubr.bf16.gmra.mrb[0].mxu0 %v1123
        %v1418 = vpop.f32.mrb[0].mxu0
        %v1419 = vadd.f32 %v923, %v1418
        %v1420 = vpop.f32.mrb[0].mxu0
        %v1421 = vadd.f32 %v927, %v1420
        %v1422 = vpop.f32.mrb[0].mxu0
        %v1423 = vadd.f32 %v923, %v1422
        %v1424 = vpop.f32.mrb[0].mxu0
        %v1425 = vadd.f32 %v927, %v1424
        %1426 = vmatprep.mubr.bf16.mxu0 0
        %1427 = vmatmul.mubr.bf16.gmra.mrb[0].mxu0 %v1126
        %v1428 = vpop.f32.mrb[0].mxu0
        %v1429 = vadd.f32 %v923, %v1428
        %v1430 = vpop.f32.mrb[0].mxu0
        %v1431 = vadd.f32 %v927, %v1430
        %v1432 = vpop.f32.mrb[0].mxu0
        %v1433 = vadd.f32 %v923, %v1432
        %v1434 = vpop.f32.mrb[0].mxu0
        %v1435 = vadd.f32 %v927, %v1434
        %1436 = vmatprep.mubr.bf16.mxu0 0
        %1437 = vmatmul.mubr.bf16.gmra.mrb[0].mxu0 %v1129
        %v1438 = vpop.f32.mrb[0].mxu0
        %v1439 = vadd.f32 %v923, %v1438
        %v1440 = vpop.f32.mrb[0].mxu0
        %v1441 = vadd.f32 %v927, %v1440
        %v1442 = vpop.f32.mrb[0].mxu0
        %v1443 = vadd.f32 %v923, %v1442
        %v1444 = vpop.f32.mrb[0].mxu0
        %v1445 = vadd.f32 %v927, %v1444
        %1446 = vmatprep.mubr.bf16.mxu0 0
        %1447 = vmatmul.mubr.bf16.gmra.mrb[0].mxu0 %v1132
        %v1448 = vpop.f32.mrb[0].mxu0
        %v1449 = vadd.f32 %v923, %v1448
        %v1450 = vpop.f32.mrb[0].mxu0
        %v1451 = vadd.f32 %v927, %v1450
        %v1452 = vpop.f32.mrb[0].mxu0
        %v1453 = vadd.f32 %v923, %v1452
        %v1454 = vpop.f32.mrb[0].mxu0
        %v1455 = vadd.f32 %v927, %v1454
        %1456 = vmatprep.mubr.bf16.mxu0 0
        %1457 = vmatmul.mubr.bf16.gmra.mrb[0].mxu0 %v1135
        %v1458 = vpop.f32.mrb[0].mxu0
        %v1459 = vadd.f32 %v923, %v1458
        %v1460 = vpop.f32.mrb[0].mxu0
        %v1461 = vadd.f32 %v927, %v1460
        %v1462 = vpop.f32.mrb[0].mxu0
        %v1463 = vadd.f32 %v923, %v1462
        %v1464 = vpop.f32.mrb[0].mxu0
        %v1465 = vadd.f32 %v927, %v1464
        %1466 = vmatprep.mubr.bf16.mxu0 0
        %1467 = vmatmul.mubr.bf16.gmra.mrb[0].mxu0 %v1138
        %v1468 = vpop.f32.mrb[0].mxu0
        %v1469 = vadd.f32 %v923, %v1468
        %v1470 = vpop.f32.mrb[0].mxu0
        %v1471 = vadd.f32 %v927, %v1470
        %v1472 = vpop.f32.mrb[0].mxu0
        %v1473 = vadd.f32 %v923, %v1472
        %v1474 = vpop.f32.mrb[0].mxu0
        %v1475 = vadd.f32 %v927, %v1474
        %1476 = vmatprep.mubr.bf16.mxu0 0
        %1477 = vmatmul.mubr.bf16.gmra.mrb[0].mxu0 %v1141
        %v1478 = vpop.f32.mrb[0].mxu0
        %v1479 = vadd.f32 %v923, %v1478
        %v1480 = vpop.f32.mrb[0].mxu0
        %v1481 = vadd.f32 %v927, %v1480
        %v1482 = vpop.f32.mrb[0].mxu0
        %v1483 = vadd.f32 %v923, %v1482
        %v1484 = vpop.f32.mrb[0].mxu0
        %v1485 = vadd.f32 %v927, %v1484
        %1486 = vmatprep.mubr.bf16.mxu0 0
        %1487 = vmatmul.mubr.bf16.gmra.mrb[0].mxu0 %v1144
        %v1488 = vpop.f32.mrb[0].mxu0
        %v1489 = vadd.f32 %v923, %v1488
        %v1490 = vpop.f32.mrb[0].mxu0
        %v1491 = vadd.f32 %v927, %v1490
        %v1492 = vpop.f32.mrb[0].mxu0
        %v1493 = vadd.f32 %v923, %v1492
        %v1494 = vpop.f32.mrb[0].mxu0
        %v1495 = vadd.f32 %v927, %v1494
        %1496 = vmatprep.mubr.bf16.mxu0 0
        %1497 = vmatmul.mubr.bf16.gmra.mrb[0].mxu0 %v1147
        %v1498 = vpop.f32.mrb[0].mxu0
        %v1499 = vadd.f32 %v923, %v1498
        %v1500 = vpop.f32.mrb[0].mxu0
        %v1501 = vadd.f32 %v927, %v1500
        %v1502 = vpop.f32.mrb[0].mxu0
        %v1503 = vadd.f32 %v923, %v1502
        %v1504 = vpop.f32.mrb[0].mxu0
        %v1505 = vadd.f32 %v927, %v1504
        %1506 = vmatprep.mubr.bf16.mxu0 0
        %1507 = vmatmul.mubr.bf16.gmra.mrb[0].mxu0 %v1150
        %v1508 = vpop.f32.mrb[0].mxu0
        %v1509 = vadd.f32 %v923, %v1508
        %v1510 = vpop.f32.mrb[0].mxu0
        %v1511 = vadd.f32 %v927, %v1510
        %v1512 = vpop.f32.mrb[0].mxu0
        %v1513 = vadd.f32 %v923, %v1512
        %v1514 = vpop.f32.mrb[0].mxu0
        %v1515 = vadd.f32 %v927, %v1514
        %1516 = vmatprep.mubr.bf16.mxu0 0
        %1517 = vmatmul.mubr.bf16.gmra.mrb[0].mxu0 %v1153
        %v1518 = vpop.f32.mrb[0].mxu0
        %v1519 = vadd.f32 %v923, %v1518
        %v1520 = vpop.f32.mrb[0].mxu0
        %v1521 = vadd.f32 %v927, %v1520
        %v1522 = vpop.f32.mrb[0].mxu0
        %v1523 = vadd.f32 %v923, %v1522
        %v1524 = vpop.f32.mrb[0].mxu0
        %v1525 = vadd.f32 %v927, %v1524
        %1526 = vmatprep.mubr.bf16.mxu0 0
        %1527 = vmatmul.mubr.bf16.gmra.mrb[0].mxu0 %v1156
        %v1528 = vpop.f32.mrb[0].mxu0
        %v1529 = vadd.f32 %v923, %v1528
        %v1530 = vpop.f32.mrb[0].mxu0
        %v1531 = vadd.f32 %v927, %v1530
        %v1532 = vpop.f32.mrb[0].mxu0
        %v1533 = vadd.f32 %v923, %v1532
        %v1534 = vpop.f32.mrb[0].mxu0
        %v1535 = vadd.f32 %v927, %v1534
        %1536 = vmatprep.mubr.bf16.mxu0 0
        %1537 = vmatmul.mubr.bf16.gmra.mrb[0].mxu0 %v1159
        %v1538 = vpop.f32.mrb[0].mxu0
        %v1539 = vadd.f32 %v923, %v1538
        %v1540 = vpop.f32.mrb[0].mxu0
        %v1541 = vadd.f32 %v927, %v1540
        %v1542 = vpop.f32.mrb[0].mxu0
        %v1543 = vadd.f32 %v923, %v1542
        %v1544 = vpop.f32.mrb[0].mxu0
        %v1545 = vadd.f32 %v927, %v1544
        %1546 = vdwg.mxu0
        %1547 = vmatprep.subr.bf16.mxu0 %v1053
        %1548 = vmatpush1.bf16.msra.mxu0 %v1052
        %1549 = vmatprep.subr.bf16.mxu0 %v1061
        %1550 = vmatpush1.bf16.msra.mxu0 %v1060
        %1551 = vmatprep.subr.bf16.mxu0 %v1069
        %1552 = vmatpush1.bf16.msra.mxu0 %v1068
        %1553 = vmatprep.subr.bf16.mxu0 %v1077
        %1554 = vmatpush1.bf16.msra.mxu0 %v1076
        %1555 = vmatprep.subr.bf16.mxu0 0
        %1556 = vmatpush1.bf16.msra.mxu0 0
        %1557 = vmatprep.subr.bf16.mxu0 0
        %1558 = vmatpush1.bf16.msra.mxu0 0
        %1559 = vmatprep.subr.bf16.mxu0 0
        %1560 = vmatpush1.bf16.msra.mxu0 0
        %1561 = vmatprep.subr.bf16.mxu0 0
        %1562 = vmatpush1.bf16.msra.mxu0 0
        %1563 = vmatprep.subr.bf16.mxu0 0
        %1564 = vmatpush1.bf16.msra.mxu0 0
        %1565 = vmatprep.subr.bf16.mxu0 0
        %1566 = vmatpush1.bf16.msra.mxu0 0
        %1567 = vmatprep.subr.bf16.mxu0 0
        %1568 = vmatpush1.bf16.msra.mxu0 0
        %1569 = vmatprep.subr.bf16.mxu0 0
        %1570 = vmatpush1.bf16.msra.mxu0 0
        %1571 = vmatprep.subr.bf16.mxu0 0
        %1572 = vmatpush1.bf16.msra.mxu0 0
        %1573 = vmatprep.subr.bf16.mxu0 0
        %1574 = vmatpush1.bf16.msra.mxu0 0
        %1575 = vmatprep.subr.bf16.mxu0 0
        %1576 = vmatpush1.bf16.msra.mxu0 0
        %1577 = vmatprep.subr.bf16.mxu0 0
        %1578 = vmatpush1.bf16.msra.mxu0 0
        %1579 = vmatprep.mubr.bf16.mxu0 0
        %1580 = vmatmul.mubr.bf16.gmra.mrb[0].mxu0 %v1114
        %v1581 = vpop.f32.mrb[0].mxu0
        %v1582 = vadd.f32 %v931, %v1581
        %v1583 = vpop.f32.mrb[0].mxu0
        %v1584 = vadd.f32 %v935, %v1583
        %v1585 = vpop.f32.mrb[0].mxu0
        %v1586 = vadd.f32 %v931, %v1585
        %v1587 = vpop.f32.mrb[0].mxu0
        %v1588 = vadd.f32 %v935, %v1587
        %1589 = vmatprep.mubr.bf16.mxu0 0
        %1590 = vmatmul.mubr.bf16.gmra.mrb[0].mxu0 %v1117
        %v1591 = vpop.f32.mrb[0].mxu0
        %v1592 = vadd.f32 %v931, %v1591
        %v1593 = vpop.f32.mrb[0].mxu0
        %v1594 = vadd.f32 %v935, %v1593
        %v1595 = vpop.f32.mrb[0].mxu0
        %v1596 = vadd.f32 %v931, %v1595
        %v1597 = vpop.f32.mrb[0].mxu0
        %v1598 = vadd.f32 %v935, %v1597
        %1599 = vmatprep.mubr.bf16.mxu0 0
        %1600 = vmatmul.mubr.bf16.gmra.mrb[0].mxu0 %v1120
        %v1601 = vpop.f32.mrb[0].mxu0
        %v1602 = vadd.f32 %v931, %v1601
        %v1603 = vpop.f32.mrb[0].mxu0
        %v1604 = vadd.f32 %v935, %v1603
        %v1605 = vpop.f32.mrb[0].mxu0
        %v1606 = vadd.f32 %v931, %v1605
        %v1607 = vpop.f32.mrb[0].mxu0
        %v1608 = vadd.f32 %v935, %v1607
        %1609 = vmatprep.mubr.bf16.mxu0 0
        %1610 = vmatmul.mubr.bf16.gmra.mrb[0].mxu0 %v1123
        %v1611 = vpop.f32.mrb[0].mxu0
        %v1612 = vadd.f32 %v931, %v1611
        %v1613 = vpop.f32.mrb[0].mxu0
        %v1614 = vadd.f32 %v935, %v1613
        %v1615 = vpop.f32.mrb[0].mxu0
        %v1616 = vadd.f32 %v931, %v1615
        %v1617 = vpop.f32.mrb[0].mxu0
        %v1618 = vadd.f32 %v935, %v1617
        %1619 = vmatprep.mubr.bf16.mxu0 0
        %1620 = vmatmul.mubr.bf16.gmra.mrb[0].mxu0 %v1126
        %v1621 = vpop.f32.mrb[0].mxu0
        %v1622 = vadd.f32 %v931, %v1621
        %v1623 = vpop.f32.mrb[0].mxu0
        %v1624 = vadd.f32 %v935, %v1623
        %v1625 = vpop.f32.mrb[0].mxu0
        %v1626 = vadd.f32 %v931, %v1625
        %v1627 = vpop.f32.mrb[0].mxu0
        %v1628 = vadd.f32 %v935, %v1627
        %1629 = vmatprep.mubr.bf16.mxu0 0
        %1630 = vmatmul.mubr.bf16.gmra.mrb[0].mxu0 %v1129
        %v1631 = vpop.f32.mrb[0].mxu0
        %v1632 = vadd.f32 %v931, %v1631
        %v1633 = vpop.f32.mrb[0].mxu0
        %v1634 = vadd.f32 %v935, %v1633
        %v1635 = vpop.f32.mrb[0].mxu0
        %v1636 = vadd.f32 %v931, %v1635
        %v1637 = vpop.f32.mrb[0].mxu0
        %v1638 = vadd.f32 %v935, %v1637
        %1639 = vmatprep.mubr.bf16.mxu0 0
        %1640 = vmatmul.mubr.bf16.gmra.mrb[0].mxu0 %v1132
        %v1641 = vpop.f32.mrb[0].mxu0
        %v1642 = vadd.f32 %v931, %v1641
        %v1643 = vpop.f32.mrb[0].mxu0
        %v1644 = vadd.f32 %v935, %v1643
        %v1645 = vpop.f32.mrb[0].mxu0
        %v1646 = vadd.f32 %v931, %v1645
        %v1647 = vpop.f32.mrb[0].mxu0
        %v1648 = vadd.f32 %v935, %v1647
        %1649 = vmatprep.mubr.bf16.mxu0 0
        %1650 = vmatmul.mubr.bf16.gmra.mrb[0].mxu0 %v1135
        %v1651 = vpop.f32.mrb[0].mxu0
        %v1652 = vadd.f32 %v931, %v1651
        %v1653 = vpop.f32.mrb[0].mxu0
        %v1654 = vadd.f32 %v935, %v1653
        %v1655 = vpop.f32.mrb[0].mxu0
        %v1656 = vadd.f32 %v931, %v1655
        %v1657 = vpop.f32.mrb[0].mxu0
        %v1658 = vadd.f32 %v935, %v1657
        %1659 = vmatprep.mubr.bf16.mxu0 0
        %1660 = vmatmul.mubr.bf16.gmra.mrb[0].mxu0 %v1138
        %v1661 = vpop.f32.mrb[0].mxu0
        %v1662 = vadd.f32 %v931, %v1661
        %v1663 = vpop.f32.mrb[0].mxu0
        %v1664 = vadd.f32 %v935, %v1663
        %v1665 = vpop.f32.mrb[0].mxu0
        %v1666 = vadd.f32 %v931, %v1665
        %v1667 = vpop.f32.mrb[0].mxu0
        %v1668 = vadd.f32 %v935, %v1667
        %1669 = vmatprep.mubr.bf16.mxu0 0
        %1670 = vmatmul.mubr.bf16.gmra.mrb[0].mxu0 %v1141
        %v1671 = vpop.f32.mrb[0].mxu0
        %v1672 = vadd.f32 %v931, %v1671
        %v1673 = vpop.f32.mrb[0].mxu0
        %v1674 = vadd.f32 %v935, %v1673
        %v1675 = vpop.f32.mrb[0].mxu0
        %v1676 = vadd.f32 %v931, %v1675
        %v1677 = vpop.f32.mrb[0].mxu0
        %v1678 = vadd.f32 %v935, %v1677
        %1679 = vmatprep.mubr.bf16.mxu0 0
        %1680 = vmatmul.mubr.bf16.gmra.mrb[0].mxu0 %v1144
        %v1681 = vpop.f32.mrb[0].mxu0
        %v1682 = vadd.f32 %v931, %v1681
        %v1683 = vpop.f32.mrb[0].mxu0
        %v1684 = vadd.f32 %v935, %v1683
        %v1685 = vpop.f32.mrb[0].mxu0
        %v1686 = vadd.f32 %v931, %v1685
        %v1687 = vpop.f32.mrb[0].mxu0
        %v1688 = vadd.f32 %v935, %v1687
        %1689 = vmatprep.mubr.bf16.mxu0 0
        %1690 = vmatmul.mubr.bf16.gmra.mrb[0].mxu0 %v1147
        %v1691 = vpop.f32.mrb[0].mxu0
        %v1692 = vadd.f32 %v931, %v1691
        %v1693 = vpop.f32.mrb[0].mxu0
        %v1694 = vadd.f32 %v935, %v1693
        %v1695 = vpop.f32.mrb[0].mxu0
        %v1696 = vadd.f32 %v931, %v1695
        %v1697 = vpop.f32.mrb[0].mxu0
        %v1698 = vadd.f32 %v935, %v1697
        %1699 = vmatprep.mubr.bf16.mxu0 0
        %1700 = vmatmul.mubr.bf16.gmra.mrb[0].mxu0 %v1150
        %v1701 = vpop.f32.mrb[0].mxu0
        %v1702 = vadd.f32 %v931, %v1701
        %v1703 = vpop.f32.mrb[0].mxu0
        %v1704 = vadd.f32 %v935, %v1703
        %v1705 = vpop.f32.mrb[0].mxu0
        %v1706 = vadd.f32 %v931, %v1705
        %v1707 = vpop.f32.mrb[0].mxu0
        %v1708 = vadd.f32 %v935, %v1707
        %1709 = vmatprep.mubr.bf16.mxu0 0
        %1710 = vmatmul.mubr.bf16.gmra.mrb[0].mxu0 %v1153
        %v1711 = vpop.f32.mrb[0].mxu0
        %v1712 = vadd.f32 %v931, %v1711
        %v1713 = vpop.f32.mrb[0].mxu0
        %v1714 = vadd.f32 %v935, %v1713
        %v1715 = vpop.f32.mrb[0].mxu0
        %v1716 = vadd.f32 %v931, %v1715
        %v1717 = vpop.f32.mrb[0].mxu0
        %v1718 = vadd.f32 %v935, %v1717
        %1719 = vmatprep.mubr.bf16.mxu0 0
        %1720 = vmatmul.mubr.bf16.gmra.mrb[0].mxu0 %v1156
        %v1721 = vpop.f32.mrb[0].mxu0
        %v1722 = vadd.f32 %v931, %v1721
        %v1723 = vpop.f32.mrb[0].mxu0
        %v1724 = vadd.f32 %v935, %v1723
        %v1725 = vpop.f32.mrb[0].mxu0
        %v1726 = vadd.f32 %v931, %v1725
        %v1727 = vpop.f32.mrb[0].mxu0
        %v1728 = vadd.f32 %v935, %v1727
        %1729 = vmatprep.mubr.bf16.mxu0 0
        %1730 = vmatmul.mubr.bf16.gmra.mrb[0].mxu0 %v1159
        %v1731 = vpop.f32.mrb[0].mxu0
        %v1732 = vadd.f32 %v931, %v1731
        %v1733 = vpop.f32.mrb[0].mxu0
        %v1734 = vadd.f32 %v935, %v1733
        %v1735 = vpop.f32.mrb[0].mxu0
        %v1736 = vadd.f32 %v931, %v1735
        %v1737 = vpop.f32.mrb[0].mxu0
        %v1738 = vadd.f32 %v935, %v1737
        %1739 = vdwg.mxu0
        %1740 = vmatprep.subr.bf16.mxu0 %v1055
        %1741 = vmatpush1.bf16.msra.mxu0 %v1054
        %1742 = vmatprep.subr.bf16.mxu0 %v1063
        %1743 = vmatpush1.bf16.msra.mxu0 %v1062
        %1744 = vmatprep.subr.bf16.mxu0 %v1071
        %1745 = vmatpush1.bf16.msra.mxu0 %v1070
        %1746 = vmatprep.subr.bf16.mxu0 %v1079
        %1747 = vmatpush1.bf16.msra.mxu0 %v1078
        %1748 = vmatprep.subr.bf16.mxu0 0
        %1749 = vmatpush1.bf16.msra.mxu0 0
        %1750 = vmatprep.subr.bf16.mxu0 0
        %1751 = vmatpush1.bf16.msra.mxu0 0
        %1752 = vmatprep.subr.bf16.mxu0 0
        %1753 = vmatpush1.bf16.msra.mxu0 0
        %1754 = vmatprep.subr.bf16.mxu0 0
        %1755 = vmatpush1.bf16.msra.mxu0 0
        %1756 = vmatprep.subr.bf16.mxu0 0
        %1757 = vmatpush1.bf16.msra.mxu0 0
        %1758 = vmatprep.subr.bf16.mxu0 0
        %1759 = vmatpush1.bf16.msra.mxu0 0
        %1760 = vmatprep.subr.bf16.mxu0 0
        %1761 = vmatpush1.bf16.msra.mxu0 0
        %1762 = vmatprep.subr.bf16.mxu0 0
        %1763 = vmatpush1.bf16.msra.mxu0 0
        %1764 = vmatprep.subr.bf16.mxu0 0
        %1765 = vmatpush1.bf16.msra.mxu0 0
        %1766 = vmatprep.subr.bf16.mxu0 0
        %1767 = vmatpush1.bf16.msra.mxu0 0
        %1768 = vmatprep.subr.bf16.mxu0 0
        %1769 = vmatpush1.bf16.msra.mxu0 0
        %1770 = vmatprep.subr.bf16.mxu0 0
        %1771 = vmatpush1.bf16.msra.mxu0 0
        %1772 = vmatprep.mubr.bf16.mxu0 0
        %1773 = vmatmul.mubr.bf16.gmra.mrb[0].mxu0 %v1114
        %v1774 = vpop.f32.mrb[0].mxu0
        %v1775 = vadd.f32 %v939, %v1774
        %v1776 = vpop.f32.mrb[0].mxu0
        %v1777 = vadd.f32 %v943, %v1776
        %v1778 = vpop.f32.mrb[0].mxu0
        %v1779 = vadd.f32 %v939, %v1778
        %v1780 = vpop.f32.mrb[0].mxu0
        %v1781 = vadd.f32 %v943, %v1780
        %1782 = vmatprep.mubr.bf16.mxu0 0
        %1783 = vmatmul.mubr.bf16.gmra.mrb[0].mxu0 %v1117
        %v1784 = vpop.f32.mrb[0].mxu0
        %v1785 = vadd.f32 %v939, %v1784
        %v1786 = vpop.f32.mrb[0].mxu0
        %v1787 = vadd.f32 %v943, %v1786
        %v1788 = vpop.f32.mrb[0].mxu0
        %v1789 = vadd.f32 %v939, %v1788
        %v1790 = vpop.f32.mrb[0].mxu0
        %v1791 = vadd.f32 %v943, %v1790
        %1792 = vmatprep.mubr.bf16.mxu0 0
        %1793 = vmatmul.mubr.bf16.gmra.mrb[0].mxu0 %v1120
        %v1794 = vpop.f32.mrb[0].mxu0
        %v1795 = vadd.f32 %v939, %v1794
        %v1796 = vpop.f32.mrb[0].mxu0
        %v1797 = vadd.f32 %v943, %v1796
        %v1798 = vpop.f32.mrb[0].mxu0
        %v1799 = vadd.f32 %v939, %v1798
        %v1800 = vpop.f32.mrb[0].mxu0
        %v1801 = vadd.f32 %v943, %v1800
        %1802 = vmatprep.mubr.bf16.mxu0 0
        %1803 = vmatmul.mubr.bf16.gmra.mrb[0].mxu0 %v1123
        %v1804 = vpop.f32.mrb[0].mxu0
        %v1805 = vadd.f32 %v939, %v1804
        %v1806 = vpop.f32.mrb[0].mxu0
        %v1807 = vadd.f32 %v943, %v1806
        %v1808 = vpop.f32.mrb[0].mxu0
        %v1809 = vadd.f32 %v939, %v1808
        %v1810 = vpop.f32.mrb[0].mxu0
        %v1811 = vadd.f32 %v943, %v1810
        %1812 = vmatprep.mubr.bf16.mxu0 0
        %1813 = vmatmul.mubr.bf16.gmra.mrb[0].mxu0 %v1126
        %v1814 = vpop.f32.mrb[0].mxu0
        %v1815 = vadd.f32 %v939, %v1814
        %v1816 = vpop.f32.mrb[0].mxu0
        %v1817 = vadd.f32 %v943, %v1816
        %v1818 = vpop.f32.mrb[0].mxu0
        %v1819 = vadd.f32 %v939, %v1818
        %v1820 = vpop.f32.mrb[0].mxu0
        %v1821 = vadd.f32 %v943, %v1820
        %1822 = vmatprep.mubr.bf16.mxu0 0
        %1823 = vmatmul.mubr.bf16.gmra.mrb[0].mxu0 %v1129
        %v1824 = vpop.f32.mrb[0].mxu0
        %v1825 = vadd.f32 %v939, %v1824
        %v1826 = vpop.f32.mrb[0].mxu0
        %v1827 = vadd.f32 %v943, %v1826
        %v1828 = vpop.f32.mrb[0].mxu0
        %v1829 = vadd.f32 %v939, %v1828
        %v1830 = vpop.f32.mrb[0].mxu0
        %v1831 = vadd.f32 %v943, %v1830
        %1832 = vmatprep.mubr.bf16.mxu0 0
        %1833 = vmatmul.mubr.bf16.gmra.mrb[0].mxu0 %v1132
        %v1834 = vpop.f32.mrb[0].mxu0
        %v1835 = vadd.f32 %v939, %v1834
        %v1836 = vpop.f32.mrb[0].mxu0
        %v1837 = vadd.f32 %v943, %v1836
        %v1838 = vpop.f32.mrb[0].mxu0
        %v1839 = vadd.f32 %v939, %v1838
        %v1840 = vpop.f32.mrb[0].mxu0
        %v1841 = vadd.f32 %v943, %v1840
        %1842 = vmatprep.mubr.bf16.mxu0 0
        %1843 = vmatmul.mubr.bf16.gmra.mrb[0].mxu0 %v1135
        %v1844 = vpop.f32.mrb[0].mxu0
        %v1845 = vadd.f32 %v939, %v1844
        %v1846 = vpop.f32.mrb[0].mxu0
        %v1847 = vadd.f32 %v943, %v1846
        %v1848 = vpop.f32.mrb[0].mxu0
        %v1849 = vadd.f32 %v939, %v1848
        %v1850 = vpop.f32.mrb[0].mxu0
        %v1851 = vadd.f32 %v943, %v1850
        %1852 = vmatprep.mubr.bf16.mxu0 0
        %1853 = vmatmul.mubr.bf16.gmra.mrb[0].mxu0 %v1138
        %v1854 = vpop.f32.mrb[0].mxu0
        %v1855 = vadd.f32 %v939, %v1854
        %v1856 = vpop.f32.mrb[0].mxu0
        %v1857 = vadd.f32 %v943, %v1856
        %v1858 = vpop.f32.mrb[0].mxu0
        %v1859 = vadd.f32 %v939, %v1858
        %v1860 = vpop.f32.mrb[0].mxu0
        %v1861 = vadd.f32 %v943, %v1860
        %1862 = vmatprep.mubr.bf16.mxu0 0
        %1863 = vmatmul.mubr.bf16.gmra.mrb[0].mxu0 %v1141
        %v1864 = vpop.f32.mrb[0].mxu0
        %v1865 = vadd.f32 %v939, %v1864
        %v1866 = vpop.f32.mrb[0].mxu0
        %v1867 = vadd.f32 %v943, %v1866
        %v1868 = vpop.f32.mrb[0].mxu0
        %v1869 = vadd.f32 %v939, %v1868
        %v1870 = vpop.f32.mrb[0].mxu0
        %v1871 = vadd.f32 %v943, %v1870
        %1872 = vmatprep.mubr.bf16.mxu0 0
        %1873 = vmatmul.mubr.bf16.gmra.mrb[0].mxu0 %v1144
        %v1874 = vpop.f32.mrb[0].mxu0
        %v1875 = vadd.f32 %v939, %v1874
        %v1876 = vpop.f32.mrb[0].mxu0
        %v1877 = vadd.f32 %v943, %v1876
        %v1878 = vpop.f32.mrb[0].mxu0
        %v1879 = vadd.f32 %v939, %v1878
        %v1880 = vpop.f32.mrb[0].mxu0
        %v1881 = vadd.f32 %v943, %v1880
        %1882 = vmatprep.mubr.bf16.mxu0 0
        %1883 = vmatmul.mubr.bf16.gmra.mrb[0].mxu0 %v1147
        %v1884 = vpop.f32.mrb[0].mxu0
        %v1885 = vadd.f32 %v939, %v1884
        %v1886 = vpop.f32.mrb[0].mxu0
        %v1887 = vadd.f32 %v943, %v1886
        %v1888 = vpop.f32.mrb[0].mxu0
        %v1889 = vadd.f32 %v939, %v1888
        %v1890 = vpop.f32.mrb[0].mxu0
        %v1891 = vadd.f32 %v943, %v1890
        %1892 = vmatprep.mubr.bf16.mxu0 0
        %1893 = vmatmul.mubr.bf16.gmra.mrb[0].mxu0 %v1150
        %v1894 = vpop.f32.mrb[0].mxu0
        %v1895 = vadd.f32 %v939, %v1894
        %v1896 = vpop.f32.mrb[0].mxu0
        %v1897 = vadd.f32 %v943, %v1896
        %v1898 = vpop.f32.mrb[0].mxu0
        %v1899 = vadd.f32 %v939, %v1898
        %v1900 = vpop.f32.mrb[0].mxu0
        %v1901 = vadd.f32 %v943, %v1900
        %1902 = vmatprep.mubr.bf16.mxu0 0
        %1903 = vmatmul.mubr.bf16.gmra.mrb[0].mxu0 %v1153
        %v1904 = vpop.f32.mrb[0].mxu0
        %v1905 = vadd.f32 %v939, %v1904
        %v1906 = vpop.f32.mrb[0].mxu0
        %v1907 = vadd.f32 %v943, %v1906
        %v1908 = vpop.f32.mrb[0].mxu0
        %v1909 = vadd.f32 %v939, %v1908
        %v1910 = vpop.f32.mrb[0].mxu0
        %v1911 = vadd.f32 %v943, %v1910
        %1912 = vmatprep.mubr.bf16.mxu0 0
        %1913 = vmatmul.mubr.bf16.gmra.mrb[0].mxu0 %v1156
        %v1914 = vpop.f32.mrb[0].mxu0
        %v1915 = vadd.f32 %v939, %v1914
        %v1916 = vpop.f32.mrb[0].mxu0
        %v1917 = vadd.f32 %v943, %v1916
        %v1918 = vpop.f32.mrb[0].mxu0
        %v1919 = vadd.f32 %v939, %v1918
        %v1920 = vpop.f32.mrb[0].mxu0
        %v1921 = vadd.f32 %v943, %v1920
        %1922 = vmatprep.mubr.bf16.mxu0 0
        %1923 = vmatmul.mubr.bf16.gmra.mrb[0].mxu0 %v1159
        %v1924 = vpop.f32.mrb[0].mxu0
        %v1925 = vadd.f32 %v939, %v1924
        %v1926 = vpop.f32.mrb[0].mxu0
        %v1927 = vadd.f32 %v943, %v1926
        %v1928 = vpop.f32.mrb[0].mxu0
        %v1929 = vadd.f32 %v939, %v1928
        %v1930 = vpop.f32.mrb[0].mxu0
        %v1931 = vadd.f32 %v943, %v1930
        %1932 = vdwg.mxu0
        %v1933 = vmax.f32 %v1196, 0.0
        %v1934 = vmax.f32 %v1198, 0.0
        %v1935 = vmax.f32 %v1389, 0.0
        %v1936 = vmax.f32 %v1391, 0.0
        %v1937 = vmax.f32 %v1582, 0.0
        %v1938 = vmax.f32 %v1584, 0.0
        %v1939 = vmax.f32 %v1775, 0.0
        %v1940 = vmax.f32 %v1777, 0.0
        %v1941 = vmax.f32 %v1200, 0.0
        %v1942 = vmax.f32 %v1202, 0.0
        %v1943 = vmax.f32 %v1393, 0.0
        %v1944 = vmax.f32 %v1395, 0.0
        %v1945 = vmax.f32 %v1586, 0.0
        %v1946 = vmax.f32 %v1588, 0.0
        %v1947 = vmax.f32 %v1779, 0.0
        %v1948 = vmax.f32 %v1781, 0.0
        %v1949 = vmax.f32 %v1206, 0.0
        %v1950 = vmax.f32 %v1208, 0.0
        %v1951 = vmax.f32 %v1399, 0.0
        %v1952 = vmax.f32 %v1401, 0.0
        %v1953 = vmax.f32 %v1592, 0.0
        %v1954 = vmax.f32 %v1594, 0.0
        %v1955 = vmax.f32 %v1785, 0.0
        %v1956 = vmax.f32 %v1787, 0.0
        %v1957 = vmax.f32 %v1210, 0.0
        %v1958 = vmax.f32 %v1212, 0.0
        %v1959 = vmax.f32 %v1403, 0.0
        %v1960 = vmax.f32 %v1405, 0.0
        %v1961 = vmax.f32 %v1596, 0.0
        %v1962 = vmax.f32 %v1598, 0.0
        %v1963 = vmax.f32 %v1789, 0.0
        %v1964 = vmax.f32 %v1791, 0.0
        %v1965 = vmax.f32 %v1216, 0.0
        %v1966 = vmax.f32 %v1218, 0.0
        %v1967 = vmax.f32 %v1409, 0.0
        %v1968 = vmax.f32 %v1411, 0.0
        %v1969 = vmax.f32 %v1602, 0.0
        %v1970 = vmax.f32 %v1604, 0.0
        %v1971 = vmax.f32 %v1795, 0.0
        %v1972 = vmax.f32 %v1797, 0.0
        %v1973 = vmax.f32 %v1220, 0.0
        %v1974 = vmax.f32 %v1222, 0.0
        %v1975 = vmax.f32 %v1413, 0.0
        %v1976 = vmax.f32 %v1415, 0.0
        %v1977 = vmax.f32 %v1606, 0.0
        %v1978 = vmax.f32 %v1608, 0.0
        %v1979 = vmax.f32 %v1799, 0.0
        %v1980 = vmax.f32 %v1801, 0.0
        %v1981 = vmax.f32 %v1226, 0.0
        %v1982 = vmax.f32 %v1228, 0.0
        %v1983 = vmax.f32 %v1419, 0.0
        %v1984 = vmax.f32 %v1421, 0.0
        %v1985 = vmax.f32 %v1612, 0.0
        %v1986 = vmax.f32 %v1614, 0.0
        %v1987 = vmax.f32 %v1805, 0.0
        %v1988 = vmax.f32 %v1807, 0.0
        %v1989 = vmax.f32 %v1230, 0.0
        %v1990 = vmax.f32 %v1232, 0.0
        %v1991 = vmax.f32 %v1423, 0.0
        %v1992 = vmax.f32 %v1425, 0.0
        %v1993 = vmax.f32 %v1616, 0.0
        %v1994 = vmax.f32 %v1618, 0.0
        %v1995 = vmax.f32 %v1809, 0.0
        %v1996 = vmax.f32 %v1811, 0.0
        %v1997 = vmax.f32 %v1236, 0.0
        %v1998 = vmax.f32 %v1238, 0.0
        %v1999 = vmax.f32 %v1429, 0.0
        %v2000 = vmax.f32 %v1431, 0.0
        %v2001 = vmax.f32 %v1622, 0.0
        %v2002 = vmax.f32 %v1624, 0.0
        %v2003 = vmax.f32 %v1815, 0.0
        %v2004 = vmax.f32 %v1817, 0.0
        %v2005 = vmax.f32 %v1240, 0.0
        %v2006 = vmax.f32 %v1242, 0.0
        %v2007 = vmax.f32 %v1433, 0.0
        %v2008 = vmax.f32 %v1435, 0.0
        %v2009 = vmax.f32 %v1626, 0.0
        %v2010 = vmax.f32 %v1628, 0.0
        %v2011 = vmax.f32 %v1819, 0.0
        %v2012 = vmax.f32 %v1821, 0.0
        %v2013 = vmax.f32 %v1246, 0.0
        %v2014 = vmax.f32 %v1248, 0.0
        %v2015 = vmax.f32 %v1439, 0.0
        %v2016 = vmax.f32 %v1441, 0.0
        %v2017 = vmax.f32 %v1632, 0.0
        %v2018 = vmax.f32 %v1634, 0.0
        %v2019 = vmax.f32 %v1825, 0.0
        %v2020 = vmax.f32 %v1827, 0.0
        %v2021 = vmax.f32 %v1250, 0.0
        %v2022 = vmax.f32 %v1252, 0.0
        %v2023 = vmax.f32 %v1443, 0.0
        %v2024 = vmax.f32 %v1445, 0.0
        %v2025 = vmax.f32 %v1636, 0.0
        %v2026 = vmax.f32 %v1638, 0.0
        %v2027 = vmax.f32 %v1829, 0.0
        %v2028 = vmax.f32 %v1831, 0.0
        %v2029 = vmax.f32 %v1256, 0.0
        %v2030 = vmax.f32 %v1258, 0.0
        %v2031 = vmax.f32 %v1449, 0.0
        %v2032 = vmax.f32 %v1451, 0.0
        %v2033 = vmax.f32 %v1642, 0.0
        %v2034 = vmax.f32 %v1644, 0.0
        %v2035 = vmax.f32 %v1835, 0.0
        %v2036 = vmax.f32 %v1837, 0.0
        %v2037 = vmax.f32 %v1260, 0.0
        %v2038 = vmax.f32 %v1262, 0.0
        %v2039 = vmax.f32 %v1453, 0.0
        %v2040 = vmax.f32 %v1455, 0.0
        %v2041 = vmax.f32 %v1646, 0.0
        %v2042 = vmax.f32 %v1648, 0.0
        %v2043 = vmax.f32 %v1839, 0.0
        %v2044 = vmax.f32 %v1841, 0.0
        %v2045 = vmax.f32 %v1266, 0.0
        %v2046 = vmax.f32 %v1268, 0.0
        %v2047 = vmax.f32 %v1459, 0.0
        %v2048 = vmax.f32 %v1461, 0.0
        %v2049 = vmax.f32 %v1652, 0.0
        %v2050 = vmax.f32 %v1654, 0.0
        %v2051 = vmax.f32 %v1845, 0.0
        %v2052 = vmax.f32 %v1847, 0.0
        %v2053 = vmax.f32 %v1270, 0.0
        %v2054 = vmax.f32 %v1272, 0.0
        %v2055 = vmax.f32 %v1463, 0.0
        %v2056 = vmax.f32 %v1465, 0.0
        %v2057 = vmax.f32 %v1656, 0.0
        %v2058 = vmax.f32 %v1658, 0.0
        %v2059 = vmax.f32 %v1849, 0.0
        %v2060 = vmax.f32 %v1851, 0.0
        %v2061 = vmax.f32 %v1276, 0.0
        %v2062 = vmax.f32 %v1278, 0.0
        %v2063 = vmax.f32 %v1469, 0.0
        %v2064 = vmax.f32 %v1471, 0.0
        %v2065 = vmax.f32 %v1662, 0.0
        %v2066 = vmax.f32 %v1664, 0.0
        %v2067 = vmax.f32 %v1855, 0.0
        %v2068 = vmax.f32 %v1857, 0.0
        %v2069 = vmax.f32 %v1280, 0.0
        %v2070 = vmax.f32 %v1282, 0.0
        %v2071 = vmax.f32 %v1473, 0.0
        %v2072 = vmax.f32 %v1475, 0.0
        %v2073 = vmax.f32 %v1666, 0.0
        %v2074 = vmax.f32 %v1668, 0.0
        %v2075 = vmax.f32 %v1859, 0.0
        %v2076 = vmax.f32 %v1861, 0.0
        %v2077 = vmax.f32 %v1286, 0.0
        %v2078 = vmax.f32 %v1288, 0.0
        %v2079 = vmax.f32 %v1479, 0.0
        %v2080 = vmax.f32 %v1481, 0.0
        %v2081 = vmax.f32 %v1672, 0.0
        %v2082 = vmax.f32 %v1674, 0.0
        %v2083 = vmax.f32 %v1865, 0.0
        %v2084 = vmax.f32 %v1867, 0.0
        %v2085 = vmax.f32 %v1290, 0.0
        %v2086 = vmax.f32 %v1292, 0.0
        %v2087 = vmax.f32 %v1483, 0.0
        %v2088 = vmax.f32 %v1485, 0.0
        %v2089 = vmax.f32 %v1676, 0.0
        %v2090 = vmax.f32 %v1678, 0.0
        %v2091 = vmax.f32 %v1869, 0.0
        %v2092 = vmax.f32 %v1871, 0.0
        %v2093 = vmax.f32 %v1296, 0.0
        %v2094 = vmax.f32 %v1298, 0.0
        %v2095 = vmax.f32 %v1489, 0.0
        %v2096 = vmax.f32 %v1491, 0.0
        %v2097 = vmax.f32 %v1682, 0.0
        %v2098 = vmax.f32 %v1684, 0.0
        %v2099 = vmax.f32 %v1875, 0.0
        %v2100 = vmax.f32 %v1877, 0.0
        %v2101 = vmax.f32 %v1300, 0.0
        %v2102 = vmax.f32 %v1302, 0.0
        %v2103 = vmax.f32 %v1493, 0.0
        %v2104 = vmax.f32 %v1495, 0.0
        %v2105 = vmax.f32 %v1686, 0.0
        %v2106 = vmax.f32 %v1688, 0.0
        %v2107 = vmax.f32 %v1879, 0.0
        %v2108 = vmax.f32 %v1881, 0.0
        %v2109 = vmax.f32 %v1306, 0.0
        %v2110 = vmax.f32 %v1308, 0.0
        %v2111 = vmax.f32 %v1499, 0.0
        %v2112 = vmax.f32 %v1501, 0.0
        %v2113 = vmax.f32 %v1692, 0.0
        %v2114 = vmax.f32 %v1694, 0.0
        %v2115 = vmax.f32 %v1885, 0.0
        %v2116 = vmax.f32 %v1887, 0.0
        %v2117 = vmax.f32 %v1310, 0.0
        %v2118 = vmax.f32 %v1312, 0.0
        %v2119 = vmax.f32 %v1503, 0.0
        %v2120 = vmax.f32 %v1505, 0.0
        %v2121 = vmax.f32 %v1696, 0.0
        %v2122 = vmax.f32 %v1698, 0.0
        %v2123 = vmax.f32 %v1889, 0.0
        %v2124 = vmax.f32 %v1891, 0.0
        %v2125 = vmax.f32 %v1316, 0.0
        %v2126 = vmax.f32 %v1318, 0.0
        %v2127 = vmax.f32 %v1509, 0.0
        %v2128 = vmax.f32 %v1511, 0.0
        %v2129 = vmax.f32 %v1702, 0.0
        %v2130 = vmax.f32 %v1704, 0.0
        %v2131 = vmax.f32 %v1895, 0.0
        %v2132 = vmax.f32 %v1897, 0.0
        %v2133 = vmax.f32 %v1320, 0.0
        %v2134 = vmax.f32 %v1322, 0.0
        %v2135 = vmax.f32 %v1513, 0.0
        %v2136 = vmax.f32 %v1515, 0.0
        %v2137 = vmax.f32 %v1706, 0.0
        %v2138 = vmax.f32 %v1708, 0.0
        %v2139 = vmax.f32 %v1899, 0.0
        %v2140 = vmax.f32 %v1901, 0.0
        %v2141 = vmax.f32 %v1326, 0.0
        %v2142 = vmax.f32 %v1328, 0.0
        %v2143 = vmax.f32 %v1519, 0.0
        %v2144 = vmax.f32 %v1521, 0.0
        %v2145 = vmax.f32 %v1712, 0.0
        %v2146 = vmax.f32 %v1714, 0.0
        %v2147 = vmax.f32 %v1905, 0.0
        %v2148 = vmax.f32 %v1907, 0.0
        %v2149 = vmax.f32 %v1330, 0.0
        %v2150 = vmax.f32 %v1332, 0.0
        %v2151 = vmax.f32 %v1523, 0.0
        %v2152 = vmax.f32 %v1525, 0.0
        %v2153 = vmax.f32 %v1716, 0.0
        %v2154 = vmax.f32 %v1718, 0.0
        %v2155 = vmax.f32 %v1909, 0.0
        %v2156 = vmax.f32 %v1911, 0.0
        %v2157 = vmax.f32 %v1336, 0.0
        %v2158 = vmax.f32 %v1338, 0.0
        %v2159 = vmax.f32 %v1529, 0.0
        %v2160 = vmax.f32 %v1531, 0.0
        %v2161 = vmax.f32 %v1722, 0.0
        %v2162 = vmax.f32 %v1724, 0.0
        %v2163 = vmax.f32 %v1915, 0.0
        %v2164 = vmax.f32 %v1917, 0.0
        %v2165 = vmax.f32 %v1340, 0.0
        %v2166 = vmax.f32 %v1342, 0.0
        %v2167 = vmax.f32 %v1533, 0.0
        %v2168 = vmax.f32 %v1535, 0.0
        %v2169 = vmax.f32 %v1726, 0.0
        %v2170 = vmax.f32 %v1728, 0.0
        %v2171 = vmax.f32 %v1919, 0.0
        %v2172 = vmax.f32 %v1921, 0.0
        %v2173 = vmax.f32 %v1346, 0.0
        %v2174 = vmax.f32 %v1348, 0.0
        %v2175 = vmax.f32 %v1539, 0.0
        %v2176 = vmax.f32 %v1541, 0.0
        %v2177 = vmax.f32 %v1732, 0.0
        %v2178 = vmax.f32 %v1734, 0.0
        %v2179 = vmax.f32 %v1925, 0.0
        %v2180 = vmax.f32 %v1927, 0.0
        %v2181 = vmax.f32 %v1350, 0.0
        %v2182 = vmax.f32 %v1352, 0.0
        %v2183 = vmax.f32 %v1543, 0.0
        %v2184 = vmax.f32 %v1545, 0.0
        %v2185 = vmax.f32 %v1736, 0.0
        %v2186 = vmax.f32 %v1738, 0.0
        %v2187 = vmax.f32 %v1929, 0.0
        %v2188 = vmax.f32 %v1931, 0.0
        %v2189 = vld [vmem:[#allocation2] sm:$0xff]
        %v2190 = vadd.f32 %v1933, %v1941
        %v2191 = vadd.f32 %v2190, %v1949
        %v2192 = vadd.f32 %v2191, %v1957
        %v2193 = vadd.f32 %v2192, %v1965
        %v2194 = vadd.f32 %v2193, %v1973
        %v2195 = vadd.f32 %v2194, %v1981
        %v2196 = vadd.f32 %v2195, %v1989
        %v2197 = vadd.f32 %v2196, %v1997
        %v2198 = vadd.f32 %v2197, %v2005
        %v2199 = vadd.f32 %v2198, %v2013
        %v2200 = vadd.f32 %v2199, %v2021
        %v2201 = vadd.f32 %v2200, %v2029
        %v2202 = vadd.f32 %v2201, %v2037
        %v2203 = vadd.f32 %v2202, %v2045
        %v2204 = vadd.f32 %v2203, %v2053
        %v2205 = vadd.f32 %v2204, %v2061
        %v2206 = vadd.f32 %v2205, %v2069
        %v2207 = vadd.f32 %v2206, %v2077
        %v2208 = vadd.f32 %v2207, %v2085
        %v2209 = vadd.f32 %v2208, %v2093
        %v2210 = vadd.f32 %v2209, %v2101
        %v2211 = vadd.f32 %v2210, %v2109
        %v2212 = vadd.f32 %v2211, %v2117
        %v2213 = vadd.f32 %v2212, %v2125
        %v2214 = vadd.f32 %v2213, %v2133
        %v2215 = vadd.f32 %v2214, %v2141
        %v2216 = vadd.f32 %v2215, %v2149
        %v2217 = vadd.f32 %v2216, %v2157
        %v2218 = vadd.f32 %v2217, %v2165
        %v2219 = vadd.f32 %v2218, %v2173
        %v2220 = vadd.f32 %v2219, %v2181
        %v2221 = vrot.slane %v2220, 4
        %v2222 = vadd.f32 %v2220, %v2221
        %v2223 = vrot.slane %v2222, 2
        %v2224 = vadd.f32 %v2222, %v2223
        %v2225 = vrot.slane %v2224, 1
        %v2226 = vadd.f32 %v2224, %v2225
        %v2227 = vadd.f32 %v1934, %v1942
        %v2228 = vadd.f32 %v2227, %v1950
        %v2229 = vadd.f32 %v2228, %v1958
        %v2230 = vadd.f32 %v2229, %v1966
        %v2231 = vadd.f32 %v2230, %v1974
        %v2232 = vadd.f32 %v2231, %v1982
        %v2233 = vadd.f32 %v2232, %v1990
        %v2234 = vadd.f32 %v2233, %v1998
        %v2235 = vadd.f32 %v2234, %v2006
        %v2236 = vadd.f32 %v2235, %v2014
        %v2237 = vadd.f32 %v2236, %v2022
        %v2238 = vadd.f32 %v2237, %v2030
        %v2239 = vadd.f32 %v2238, %v2038
        %v2240 = vadd.f32 %v2239, %v2046
        %v2241 = vadd.f32 %v2240, %v2054
        %v2242 = vadd.f32 %v2241, %v2062
        %v2243 = vadd.f32 %v2242, %v2070
        %v2244 = vadd.f32 %v2243, %v2078
        %v2245 = vadd.f32 %v2244, %v2086
        %v2246 = vadd.f32 %v2245, %v2094
        %v2247 = vadd.f32 %v2246, %v2102
        %v2248 = vadd.f32 %v2247, %v2110
        %v2249 = vadd.f32 %v2248, %v2118
        %v2250 = vadd.f32 %v2249, %v2126
        %v2251 = vadd.f32 %v2250, %v2134
        %v2252 = vadd.f32 %v2251, %v2142
        %v2253 = vadd.f32 %v2252, %v2150
        %v2254 = vadd.f32 %v2253, %v2158
        %v2255 = vadd.f32 %v2254, %v2166
        %v2256 = vadd.f32 %v2255, %v2174
        %v2257 = vadd.f32 %v2256, %v2182
        %v2258 = vrot.slane %v2257, 4
        %v2259 = vadd.f32 %v2257, %v2258
        %v2260 = vrot.slane %v2259, 2
        %v2261 = vadd.f32 %v2259, %v2260
        %v2262 = vrot.slane %v2261, 1
        %v2263 = vadd.f32 %v2261, %v2262
        %v2264 = vadd.f32 %v1935, %v1943
        %v2265 = vadd.f32 %v2264, %v1951
        %v2266 = vadd.f32 %v2265, %v1959
        %v2267 = vadd.f32 %v2266, %v1967
        %v2268 = vadd.f32 %v2267, %v1975
        %v2269 = vadd.f32 %v2268, %v1983
        %v2270 = vadd.f32 %v2269, %v1991
        %v2271 = vadd.f32 %v2270, %v1999
        %v2272 = vadd.f32 %v2271, %v2007
        %v2273 = vadd.f32 %v2272, %v2015
        %v2274 = vadd.f32 %v2273, %v2023
        %v2275 = vadd.f32 %v2274, %v2031
        %v2276 = vadd.f32 %v2275, %v2039
        %v2277 = vadd.f32 %v2276, %v2047
        %v2278 = vadd.f32 %v2277, %v2055
        %v2279 = vadd.f32 %v2278, %v2063
        %v2280 = vadd.f32 %v2279, %v2071
        %v2281 = vadd.f32 %v2280, %v2079
        %v2282 = vadd.f32 %v2281, %v2087
        %v2283 = vadd.f32 %v2282, %v2095
        %v2284 = vadd.f32 %v2283, %v2103
        %v2285 = vadd.f32 %v2284, %v2111
        %v2286 = vadd.f32 %v2285, %v2119
        %v2287 = vadd.f32 %v2286, %v2127
        %v2288 = vadd.f32 %v2287, %v2135
        %v2289 = vadd.f32 %v2288, %v2143
        %v2290 = vadd.f32 %v2289, %v2151
        %v2291 = vadd.f32 %v2290, %v2159
        %v2292 = vadd.f32 %v2291, %v2167
        %v2293 = vadd.f32 %v2292, %v2175
        %v2294 = vadd.f32 %v2293, %v2183
        %v2295 = vrot.slane %v2294, 4
        %v2296 = vadd.f32 %v2294, %v2295
        %v2297 = vrot.slane %v2296, 2
        %v2298 = vadd.f32 %v2296, %v2297
        %v2299 = vrot.slane %v2298, 1
        %v2300 = vadd.f32 %v2298, %v2299
        %v2301 = vadd.f32 %v1936, %v1944
        %v2302 = vadd.f32 %v2301, %v1952
        %v2303 = vadd.f32 %v2302, %v1960
        %v2304 = vadd.f32 %v2303, %v1968
        %v2305 = vadd.f32 %v2304, %v1976
        %v2306 = vadd.f32 %v2305, %v1984
        %v2307 = vadd.f32 %v2306, %v1992
        %v2308 = vadd.f32 %v2307, %v2000
        %v2309 = vadd.f32 %v2308, %v2008
        %v2310 = vadd.f32 %v2309, %v2016
        %v2311 = vadd.f32 %v2310, %v2024
        %v2312 = vadd.f32 %v2311, %v2032
        %v2313 = vadd.f32 %v2312, %v2040
        %v2314 = vadd.f32 %v2313, %v2048
        %v2315 = vadd.f32 %v2314, %v2056
        %v2316 = vadd.f32 %v2315, %v2064
        %v2317 = vadd.f32 %v2316, %v2072
        %v2318 = vadd.f32 %v2317, %v2080
        %v2319 = vadd.f32 %v2318, %v2088
        %v2320 = vadd.f32 %v2319, %v2096
        %v2321 = vadd.f32 %v2320, %v2104
        %v2322 = vadd.f32 %v2321, %v2112
        %v2323 = vadd.f32 %v2322, %v2120
        %v2324 = vadd.f32 %v2323, %v2128
        %v2325 = vadd.f32 %v2324, %v2136
        %v2326 = vadd.f32 %v2325, %v2144
        %v2327 = vadd.f32 %v2326, %v2152
        %v2328 = vadd.f32 %v2327, %v2160
        %v2329 = vadd.f32 %v2328, %v2168
        %v2330 = vadd.f32 %v2329, %v2176
        %v2331 = vadd.f32 %v2330, %v2184
        %v2332 = vrot.slane %v2331, 4
        %v2333 = vadd.f32 %v2331, %v2332
        %v2334 = vrot.slane %v2333, 2
        %v2335 = vadd.f32 %v2333, %v2334
        %v2336 = vrot.slane %v2335, 1
        %v2337 = vadd.f32 %v2335, %v2336
        %v2338 = vadd.f32 %v1937, %v1945
        %v2339 = vadd.f32 %v2338, %v1953
        %v2340 = vadd.f32 %v2339, %v1961
        %v2341 = vadd.f32 %v2340, %v1969
        %v2342 = vadd.f32 %v2341, %v1977
        %v2343 = vadd.f32 %v2342, %v1985
        %v2344 = vadd.f32 %v2343, %v1993
        %v2345 = vadd.f32 %v2344, %v2001
        %v2346 = vadd.f32 %v2345, %v2009
        %v2347 = vadd.f32 %v2346, %v2017
        %v2348 = vadd.f32 %v2347, %v2025
        %v2349 = vadd.f32 %v2348, %v2033
        %v2350 = vadd.f32 %v2349, %v2041
        %v2351 = vadd.f32 %v2350, %v2049
        %v2352 = vadd.f32 %v2351, %v2057
        %v2353 = vadd.f32 %v2352, %v2065
        %v2354 = vadd.f32 %v2353, %v2073
        %v2355 = vadd.f32 %v2354, %v2081
        %v2356 = vadd.f32 %v2355, %v2089
        %v2357 = vadd.f32 %v2356, %v2097
        %v2358 = vadd.f32 %v2357, %v2105
        %v2359 = vadd.f32 %v2358, %v2113
        %v2360 = vadd.f32 %v2359, %v2121
        %v2361 = vadd.f32 %v2360, %v2129
        %v2362 = vadd.f32 %v2361, %v2137
        %v2363 = vadd.f32 %v2362, %v2145
        %v2364 = vadd.f32 %v2363, %v2153
        %v2365 = vadd.f32 %v2364, %v2161
        %v2366 = vadd.f32 %v2365, %v2169
        %v2367 = vadd.f32 %v2366, %v2177
        %v2368 = vadd.f32 %v2367, %v2185
        %v2369 = vrot.slane %v2368, 4
        %v2370 = vadd.f32 %v2368, %v2369
        %v2371 = vrot.slane %v2370, 2
        %v2372 = vadd.f32 %v2370, %v2371
        %v2373 = vrot.slane %v2372, 1
        %v2374 = vadd.f32 %v2372, %v2373
        %v2375 = vadd.f32 %v1938, %v1946
        %v2376 = vadd.f32 %v2375, %v1954
        %v2377 = vadd.f32 %v2376, %v1962
        %v2378 = vadd.f32 %v2377, %v1970
        %v2379 = vadd.f32 %v2378, %v1978
        %v2380 = vadd.f32 %v2379, %v1986
        %v2381 = vadd.f32 %v2380, %v1994
        %v2382 = vadd.f32 %v2381, %v2002
        %v2383 = vadd.f32 %v2382, %v2010
        %v2384 = vadd.f32 %v2383, %v2018
        %v2385 = vadd.f32 %v2384, %v2026
        %v2386 = vadd.f32 %v2385, %v2034
        %v2387 = vadd.f32 %v2386, %v2042
        %v2388 = vadd.f32 %v2387, %v2050
        %v2389 = vadd.f32 %v2388, %v2058
        %v2390 = vadd.f32 %v2389, %v2066
        %v2391 = vadd.f32 %v2390, %v2074
        %v2392 = vadd.f32 %v2391, %v2082
        %v2393 = vadd.f32 %v2392, %v2090
        %v2394 = vadd.f32 %v2393, %v2098
        %v2395 = vadd.f32 %v2394, %v2106
        %v2396 = vadd.f32 %v2395, %v2114
        %v2397 = vadd.f32 %v2396, %v2122
        %v2398 = vadd.f32 %v2397, %v2130
        %v2399 = vadd.f32 %v2398, %v2138
        %v2400 = vadd.f32 %v2399, %v2146
        %v2401 = vadd.f32 %v2400, %v2154
        %v2402 = vadd.f32 %v2401, %v2162
        %v2403 = vadd.f32 %v2402, %v2170
        %v2404 = vadd.f32 %v2403, %v2178
        %v2405 = vadd.f32 %v2404, %v2186
        %v2406 = vrot.slane %v2405, 4
        %v2407 = vadd.f32 %v2405, %v2406
        %v2408 = vrot.slane %v2407, 2
        %v2409 = vadd.f32 %v2407, %v2408
        %v2410 = vrot.slane %v2409, 1
        %v2411 = vadd.f32 %v2409, %v2410
        %v2412 = vadd.f32 %v1939, %v1947
        %v2413 = vadd.f32 %v2412, %v1955
        %v2414 = vadd.f32 %v2413, %v1963
        %v2415 = vadd.f32 %v2414, %v1971
        %v2416 = vadd.f32 %v2415, %v1979
        %v2417 = vadd.f32 %v2416, %v1987
        %v2418 = vadd.f32 %v2417, %v1995
        %v2419 = vadd.f32 %v2418, %v2003
        %v2420 = vadd.f32 %v2419, %v2011
        %v2421 = vadd.f32 %v2420, %v2019
        %v2422 = vadd.f32 %v2421, %v2027
        %v2423 = vadd.f32 %v2422, %v2035
        %v2424 = vadd.f32 %v2423, %v2043
        %v2425 = vadd.f32 %v2424, %v2051
        %v2426 = vadd.f32 %v2425, %v2059
        %v2427 = vadd.f32 %v2426, %v2067
        %v2428 = vadd.f32 %v2427, %v2075
        %v2429 = vadd.f32 %v2428, %v2083
        %v2430 = vadd.f32 %v2429, %v2091
        %v2431 = vadd.f32 %v2430, %v2099
        %v2432 = vadd.f32 %v2431, %v2107
        %v2433 = vadd.f32 %v2432, %v2115
        %v2434 = vadd.f32 %v2433, %v2123
        %v2435 = vadd.f32 %v2434, %v2131
        %v2436 = vadd.f32 %v2435, %v2139
        %v2437 = vadd.f32 %v2436, %v2147
        %v2438 = vadd.f32 %v2437, %v2155
        %v2439 = vadd.f32 %v2438, %v2163
        %v2440 = vadd.f32 %v2439, %v2171
        %v2441 = vadd.f32 %v2440, %v2179
        %v2442 = vadd.f32 %v2441, %v2187
        %v2443 = vrot.slane %v2442, 4
        %v2444 = vadd.f32 %v2442, %v2443
        %v2445 = vrot.slane %v2444, 2
        %v2446 = vadd.f32 %v2444, %v2445
        %v2447 = vrot.slane %v2446, 1
        %v2448 = vadd.f32 %v2446, %v2447
        %v2449 = vadd.f32 %v1940, %v1948
        %v2450 = vadd.f32 %v2449, %v1956
        %v2451 = vadd.f32 %v2450, %v1964
        %v2452 = vadd.f32 %v2451, %v1972
        %v2453 = vadd.f32 %v2452, %v1980
        %v2454 = vadd.f32 %v2453, %v1988
        %v2455 = vadd.f32 %v2454, %v1996
        %v2456 = vadd.f32 %v2455, %v2004
        %v2457 = vadd.f32 %v2456, %v2012
        %v2458 = vadd.f32 %v2457, %v2020
        %v2459 = vadd.f32 %v2458, %v2028
        %v2460 = vadd.f32 %v2459, %v2036
        %v2461 = vadd.f32 %v2460, %v2044
        %v2462 = vadd.f32 %v2461, %v2052
        %v2463 = vadd.f32 %v2462, %v2060
        %v2464 = vadd.f32 %v2463, %v2068
        %v2465 = vadd.f32 %v2464, %v2076
        %v2466 = vadd.f32 %v2465, %v2084
        %v2467 = vadd.f32 %v2466, %v2092
        %v2468 = vadd.f32 %v2467, %v2100
        %v2469 = vadd.f32 %v2468, %v2108
        %v2470 = vadd.f32 %v2469, %v2116
        %v2471 = vadd.f32 %v2470, %v2124
        %v2472 = vadd.f32 %v2471, %v2132
        %v2473 = vadd.f32 %v2472, %v2140
        %v2474 = vadd.f32 %v2473, %v2148
        %v2475 = vadd.f32 %v2474, %v2156
        %v2476 = vadd.f32 %v2475, %v2164
        %v2477 = vadd.f32 %v2476, %v2172
        %v2478 = vadd.f32 %v2477, %v2180
        %v2479 = vadd.f32 %v2478, %v2188
        %v2480 = vrot.slane %v2479, 4
        %v2481 = vadd.f32 %v2479, %v2480
        %v2482 = vrot.slane %v2481, 2
        %v2483 = vadd.f32 %v2481, %v2482
        %v2484 = vrot.slane %v2483, 1
        %v2485 = vadd.f32 %v2483, %v2484
        %v2494 = vcombine.low %v2226, %v2263
        %v2495 = vcombine.low %v2300, %v2337
        %v2496 = vcombine.low %v2374, %v2411
        %v2497 = vcombine.low %v2448, %v2485
        %v2499 = vunpack.c.l.s4 1966171168
        %v2500 = vunpack.c.0.s8 %v2499
        %v2501 = vlaneseq
        %v2502 = vshrl.u32 %v2501, 7
        %v2503 = vsub.s32 %v2500, %v2502
        %v2504 = vrot.slane %v2494, %v2503
        %v2506 = vunpack.c.l.s4 1966171168
        %v2507 = vunpack.c.0.s8 %v2506
        %v2508 = vlaneseq
        %v2509 = vshrl.u32 %v2508, 7
        %v2510 = vsub.s32 %v2507, %v2509
        %v2511 = vrot.slane %v2495, %v2510
        %v2513 = vunpack.c.l.s4 1966171168
        %v2514 = vunpack.c.0.s8 %v2513
        %v2515 = vlaneseq
        %v2516 = vshrl.u32 %v2515, 7
        %v2517 = vsub.s32 %v2514, %v2516
        %v2518 = vrot.slane %v2496, %v2517
        %v2520 = vunpack.c.l.s4 1966171168
        %v2521 = vunpack.c.0.s8 %v2520
        %v2522 = vlaneseq
        %v2523 = vshrl.u32 %v2522, 7
        %v2524 = vsub.s32 %v2521, %v2523
        %v2525 = vrot.slane %v2497, %v2524
        %v2526 = vcombine.low %v2504, %v2511
        %v2527 = vcombine.low %v2518, %v2525
        %v2529 = vunpack.c.l.s4 1966171168
        %v2530 = vunpack.c.0.s8 %v2529
        %v2531 = vlaneseq
        %v2532 = vshrl.u32 %v2531, 7
        %v2533 = vsub.s32 %v2530, %v2532
        %v2534 = vrot.slane %v2526, %v2533
        %v2536 = vunpack.c.l.s4 1966171168
        %v2537 = vunpack.c.0.s8 %v2536
        %v2538 = vlaneseq
        %v2539 = vshrl.u32 %v2538, 7
        %v2540 = vsub.s32 %v2537, %v2539
        %v2541 = vrot.slane %v2527, %v2540
        %v2542 = vcombine.low %v2534, %v2541
        %v2544 = vadd.f32 %v2189, %v2542
        %2545 = vst [vmem:[#allocation2] sm:$0xff] %v2544
        // Predicated region
        $region57: #{konet_forward.3} parent=51 // pred_check
          %p2546 = pneg %p349
        $region58: #{konet_forward.3} parent=51 // pred_check_branch
          %2548 = sbr.rel (%p2546) target = $region60
        $region59: #{konet_forward.3} parent=51 // pred_region
          %v2549 = vld [vmem:[#allocation2] sm:$0xff]
          %v2550 = vmul.f32 %v2549, 0.00390625
          %v2551 = vld [vmem:[%s5] sm:$0xff]
          %v2552 = vld [vmem:[%s5 + $0x8] sm:$0xff]
          %v2553 = vld [vmem:[%s5 + $0x10] sm:$0xff]
          %v2554 = vld [vmem:[%s5 + $0x18] sm:$0xff]
          %v2555 = vld [vmem:[%s5 + $0x20] sm:$0xff]
          %v2556 = vld [vmem:[%s5 + $0x28] sm:$0xff]
          %v2557 = vld [vmem:[%s5 + $0x30] sm:$0xff]
          %v2558 = vld [vmem:[%s5 + $0x38] sm:$0xff]
          %v2559 = vld [vmem:[%s5 + $0x40] sm:$0xff]
          %v2560 = vld [vmem:[%s5 + $0x48] sm:$0xff]
          %v2561 = vld [vmem:[%s5 + $0x50] sm:$0xff]
          %v2562 = vld [vmem:[%s5 + $0x58] sm:$0xff]
          %v2563 = vld [vmem:[%s5 + $0x60] sm:$0xff]
          %v2564 = vld [vmem:[%s5 + $0x68] sm:$0xff]
          %v2565 = vld [vmem:[%s5 + $0x70] sm:$0xff]
          %v2566 = vld [vmem:[%s5 + $0x78] sm:$0xff]
          %v2567 = vld [vmem:[%s5 + $0x80] sm:$0xff]
          %v2568 = vld [vmem:[%s5 + $0x88] sm:$0xff]
          %v2569 = vld [vmem:[%s5 + $0x90] sm:$0xff]
          %v2570 = vld [vmem:[%s5 + $0x98] sm:$0xff]
          %v2571 = vld [vmem:[%s5 + $0xa0] sm:$0xff]
          %v2572 = vld [vmem:[%s5 + $0xa8] sm:$0xff]
          %v2573 = vld [vmem:[%s5 + $0xb0] sm:$0xff]
          %v2574 = vld [vmem:[%s5 + $0xb8] sm:$0xff]
          %v2575 = vld [vmem:[%s5 + $0xc0] sm:$0xff]
          %v2576 = vld [vmem:[%s5 + $0xc8] sm:$0xff]
          %v2577 = vld [vmem:[%s5 + $0xd0] sm:$0xff]
          %v2578 = vld [vmem:[%s5 + $0xd8] sm:$0xff]
          %v2579 = vld [vmem:[%s5 + $0xe0] sm:$0xff]
          %v2580 = vld [vmem:[%s5 + $0xe8] sm:$0xff]
          %v2581 = vld [vmem:[%s5 + $0xf0] sm:$0xff]
          %v2582 = vld [vmem:[%s5 + $0xf8] sm:$0xff]
          %v2583 = vld [vmem:[%s5 + $0x100] sm:$0xff]
          %v2584 = vld [vmem:[%s5 + $0x108] sm:$0xff]
          %v2585 = vld [vmem:[%s5 + $0x110] sm:$0xff]
          %v2586 = vld [vmem:[%s5 + $0x118] sm:$0xff]
          %v2587 = vld [vmem:[%s5 + $0x120] sm:$0xff]
          %v2588 = vld [vmem:[%s5 + $0x128] sm:$0xff]
          %v2589 = vld [vmem:[%s5 + $0x130] sm:$0xff]
          %v2590 = vld [vmem:[%s5 + $0x138] sm:$0xff]
          %v2591 = vld [vmem:[%s5 + $0x140] sm:$0xff]
          %v2592 = vld [vmem:[%s5 + $0x148] sm:$0xff]
          %v2593 = vld [vmem:[%s5 + $0x150] sm:$0xff]
          %v2594 = vld [vmem:[%s5 + $0x158] sm:$0xff]
          %v2595 = vld [vmem:[%s5 + $0x160] sm:$0xff]
          %v2596 = vld [vmem:[%s5 + $0x168] sm:$0xff]
          %v2597 = vld [vmem:[%s5 + $0x170] sm:$0xff]
          %v2598 = vld [vmem:[%s5 + $0x178] sm:$0xff]
          %v2599 = vld [vmem:[%s5 + $0x180] sm:$0xff]
          %v2600 = vld [vmem:[%s5 + $0x188] sm:$0xff]
          %v2601 = vld [vmem:[%s5 + $0x190] sm:$0xff]
          %v2602 = vld [vmem:[%s5 + $0x198] sm:$0xff]
          %v2603 = vld [vmem:[%s5 + $0x1a0] sm:$0xff]
          %v2604 = vld [vmem:[%s5 + $0x1a8] sm:$0xff]
          %v2605 = vld [vmem:[%s5 + $0x1b0] sm:$0xff]
          %v2606 = vld [vmem:[%s5 + $0x1b8] sm:$0xff]
          %v2607 = vld [vmem:[%s5 + $0x1c0] sm:$0xff]
          %v2608 = vld [vmem:[%s5 + $0x1c8] sm:$0xff]
          %v2609 = vld [vmem:[%s5 + $0x1d0] sm:$0xff]
          %v2610 = vld [vmem:[%s5 + $0x1d8] sm:$0xff]
          %v2611 = vld [vmem:[%s5 + $0x1e0] sm:$0xff]
          %v2612 = vld [vmem:[%s5 + $0x1e8] sm:$0xff]
          %v2613 = vld [vmem:[%s5 + $0x1f0] sm:$0xff]
          %v2614 = vld [vmem:[%s5 + $0x1f8] sm:$0xff]
          %v2615 = vld [vmem:[%s5 + $0x200] sm:$0xff]
          %v2616 = vld [vmem:[%s5 + $0x208] sm:$0xff]
          %v2617 = vld [vmem:[%s5 + $0x210] sm:$0xff]
          %v2618 = vld [vmem:[%s5 + $0x218] sm:$0xff]
          %v2619 = vld [vmem:[%s5 + $0x220] sm:$0xff]
          %v2620 = vld [vmem:[%s5 + $0x228] sm:$0xff]
          %v2621 = vld [vmem:[%s5 + $0x230] sm:$0xff]
          %v2622 = vld [vmem:[%s5 + $0x238] sm:$0xff]
          %v2623 = vld [vmem:[%s5 + $0x240] sm:$0xff]
          %v2624 = vld [vmem:[%s5 + $0x248] sm:$0xff]
          %v2625 = vld [vmem:[%s5 + $0x250] sm:$0xff]
          %v2626 = vld [vmem:[%s5 + $0x258] sm:$0xff]
          %v2627 = vld [vmem:[%s5 + $0x260] sm:$0xff]
          %v2628 = vld [vmem:[%s5 + $0x268] sm:$0xff]
          %v2629 = vld [vmem:[%s5 + $0x270] sm:$0xff]
          %v2630 = vld [vmem:[%s5 + $0x278] sm:$0xff]
          %v2631 = vld [vmem:[%s5 + $0x280] sm:$0xff]
          %v2632 = vld [vmem:[%s5 + $0x288] sm:$0xff]
          %v2633 = vld [vmem:[%s5 + $0x290] sm:$0xff]
          %v2634 = vld [vmem:[%s5 + $0x298] sm:$0xff]
          %v2635 = vld [vmem:[%s5 + $0x2a0] sm:$0xff]
          %v2636 = vld [vmem:[%s5 + $0x2a8] sm:$0xff]
          %v2637 = vld [vmem:[%s5 + $0x2b0] sm:$0xff]
          %v2638 = vld [vmem:[%s5 + $0x2b8] sm:$0xff]
          %v2639 = vld [vmem:[%s5 + $0x2c0] sm:$0xff]
          %v2640 = vld [vmem:[%s5 + $0x2c8] sm:$0xff]
          %v2641 = vld [vmem:[%s5 + $0x2d0] sm:$0xff]
          %v2642 = vld [vmem:[%s5 + $0x2d8] sm:$0xff]
          %v2643 = vld [vmem:[%s5 + $0x2e0] sm:$0xff]
          %v2644 = vld [vmem:[%s5 + $0x2e8] sm:$0xff]
          %v2645 = vld [vmem:[%s5 + $0x2f0] sm:$0xff]
          %v2646 = vld [vmem:[%s5 + $0x2f8] sm:$0xff]
          %v2647 = vld [vmem:[%s5 + $0x300] sm:$0xff]
          %v2648 = vld [vmem:[%s5 + $0x308] sm:$0xff]
          %v2649 = vld [vmem:[%s5 + $0x310] sm:$0xff]
          %v2650 = vld [vmem:[%s5 + $0x318] sm:$0xff]
          %v2651 = vld [vmem:[%s5 + $0x320] sm:$0xff]
          %v2652 = vld [vmem:[%s5 + $0x328] sm:$0xff]
          %v2653 = vld [vmem:[%s5 + $0x330] sm:$0xff]
          %v2654 = vld [vmem:[%s5 + $0x338] sm:$0xff]
          %v2655 = vld [vmem:[%s5 + $0x340] sm:$0xff]
          %v2656 = vld [vmem:[%s5 + $0x348] sm:$0xff]
          %v2657 = vld [vmem:[%s5 + $0x350] sm:$0xff]
          %v2658 = vld [vmem:[%s5 + $0x358] sm:$0xff]
          %v2659 = vld [vmem:[%s5 + $0x360] sm:$0xff]
          %v2660 = vld [vmem:[%s5 + $0x368] sm:$0xff]
          %v2661 = vld [vmem:[%s5 + $0x370] sm:$0xff]
          %v2662 = vld [vmem:[%s5 + $0x378] sm:$0xff]
          %v2663 = vld [vmem:[%s5 + $0x380] sm:$0xff]
          %v2664 = vld [vmem:[%s5 + $0x388] sm:$0xff]
          %v2665 = vld [vmem:[%s5 + $0x390] sm:$0xff]
          %v2666 = vld [vmem:[%s5 + $0x398] sm:$0xff]
          %v2667 = vld [vmem:[%s5 + $0x3a0] sm:$0xff]
          %v2668 = vld [vmem:[%s5 + $0x3a8] sm:$0xff]
          %v2669 = vld [vmem:[%s5 + $0x3b0] sm:$0xff]
          %v2670 = vld [vmem:[%s5 + $0x3b8] sm:$0xff]
          %v2671 = vld [vmem:[%s5 + $0x3c0] sm:$0xff]
          %v2672 = vld [vmem:[%s5 + $0x3c8] sm:$0xff]
          %v2673 = vld [vmem:[%s5 + $0x3d0] sm:$0xff]
          %v2674 = vld [vmem:[%s5 + $0x3d8] sm:$0xff]
          %v2675 = vld [vmem:[%s5 + $0x3e0] sm:$0xff]
          %v2676 = vld [vmem:[%s5 + $0x3e8] sm:$0xff]
          %v2677 = vld [vmem:[%s5 + $0x3f0] sm:$0xff]
          %v2678 = vld [vmem:[%s5 + $0x3f8] sm:$0xff]
          %v2679 = vld [vmem:[%s6] sm:$0x1]
          %v2681 = vlaneseq
          %v2682 = vshrl.u32 %v2681, 7
          %v2683 = vsub.s32 0, %v2682
          %v2684 = vrot.slane %v2550, %v2683
          %v2685 = vlaneseq
          %v2686 = vshrl.u32 %v2685, 7
          %v2687 = vsub.s32 1, %v2686
          %v2688 = vrot.slane %v2550, %v2687
          %v2689 = vlaneseq
          %v2690 = vshrl.u32 %v2689, 7
          %v2691 = vsub.s32 2, %v2690
          %v2692 = vrot.slane %v2550, %v2691
          %v2693 = vlaneseq
          %v2694 = vshrl.u32 %v2693, 7
          %v2695 = vsub.s32 3, %v2694
          %v2696 = vrot.slane %v2550, %v2695
          %v2697 = vlaneseq
          %v2698 = vshrl.u32 %v2697, 7
          %v2699 = vsub.s32 4, %v2698
          %v2700 = vrot.slane %v2550, %v2699
          %v2701 = vlaneseq
          %v2702 = vshrl.u32 %v2701, 7
          %v2703 = vsub.s32 5, %v2702
          %v2704 = vrot.slane %v2550, %v2703
          %v2705 = vlaneseq
          %v2706 = vshrl.u32 %v2705, 7
          %v2707 = vsub.s32 6, %v2706
          %v2708 = vrot.slane %v2550, %v2707
          %v2709 = vlaneseq
          %v2710 = vshrl.u32 %v2709, 7
          %v2711 = vsub.s32 7, %v2710
          %v2712 = vrot.slane %v2550, %v2711
          %2721 = vmatprep.subr.mxu0 0.0
          %2722 = vmatpush1.msra.mxu0 %v2551
          %2723 = vmatprep.subr.mxu0 0.0
          %2724 = vmatpush1.msra.mxu0 %v2552
          %2725 = vmatprep.subr.mxu0 0.0
          %2726 = vmatpush1.msra.mxu0 %v2553
          %2727 = vmatprep.subr.mxu0 0.0
          %2728 = vmatpush1.msra.mxu0 %v2554
          %2729 = vmatprep.subr.mxu0 0.0
          %2730 = vmatpush1.msra.mxu0 %v2555
          %2731 = vmatprep.subr.mxu0 0.0
          %2732 = vmatpush1.msra.mxu0 %v2556
          %2733 = vmatprep.subr.mxu0 0.0
          %2734 = vmatpush1.msra.mxu0 %v2557
          %2735 = vmatprep.subr.mxu0 0.0
          %2736 = vmatpush1.msra.mxu0 %v2558
          %2737 = vmatprep.subr.mxu0 0.0
          %2738 = vmatpush1.msra.mxu0 %v2559
          %2739 = vmatprep.subr.mxu0 0.0
          %2740 = vmatpush1.msra.mxu0 %v2560
          %2741 = vmatprep.subr.mxu0 0.0
          %2742 = vmatpush1.msra.mxu0 %v2561
          %2743 = vmatprep.subr.mxu0 0.0
          %2744 = vmatpush1.msra.mxu0 %v2562
          %2745 = vmatprep.subr.mxu0 0.0
          %2746 = vmatpush1.msra.mxu0 %v2563
          %2747 = vmatprep.subr.mxu0 0.0
          %2748 = vmatpush1.msra.mxu0 %v2564
          %2749 = vmatprep.subr.mxu0 0.0
          %2750 = vmatpush1.msra.mxu0 %v2565
          %2751 = vmatprep.subr.mxu0 0.0
          %2752 = vmatpush1.msra.mxu0 %v2566
          %2753 = vmatprep.subr.mxu0 0.0
          %2754 = vmatpush1.msra.mxu0 %v2567
          %2755 = vmatprep.subr.mxu0 0.0
          %2756 = vmatpush1.msra.mxu0 %v2568
          %2757 = vmatprep.subr.mxu0 0.0
          %2758 = vmatpush1.msra.mxu0 %v2569
          %2759 = vmatprep.subr.mxu0 0.0
          %2760 = vmatpush1.msra.mxu0 %v2570
          %2761 = vmatprep.subr.mxu0 0.0
          %2762 = vmatpush1.msra.mxu0 %v2571
          %2763 = vmatprep.subr.mxu0 0.0
          %2764 = vmatpush1.msra.mxu0 %v2572
          %2765 = vmatprep.subr.mxu0 0.0
          %2766 = vmatpush1.msra.mxu0 %v2573
          %2767 = vmatprep.subr.mxu0 0.0
          %2768 = vmatpush1.msra.mxu0 %v2574
          %2769 = vmatprep.subr.mxu0 0.0
          %2770 = vmatpush1.msra.mxu0 %v2575
          %2771 = vmatprep.subr.mxu0 0.0
          %2772 = vmatpush1.msra.mxu0 %v2576
          %2773 = vmatprep.subr.mxu0 0.0
          %2774 = vmatpush1.msra.mxu0 %v2577
          %2775 = vmatprep.subr.mxu0 0.0
          %2776 = vmatpush1.msra.mxu0 %v2578
          %2777 = vmatprep.subr.mxu0 0.0
          %2778 = vmatpush1.msra.mxu0 %v2579
          %2779 = vmatprep.subr.mxu0 0.0
          %2780 = vmatpush1.msra.mxu0 %v2580
          %2781 = vmatprep.subr.mxu0 0.0
          %2782 = vmatpush1.msra.mxu0 %v2581
          %2783 = vmatprep.subr.mxu0 0.0
          %2784 = vmatpush1.msra.mxu0 %v2582
          %2785 = vmatprep.mubr.f32.mxu0 %v2688
          %2786 = vmatmul.mubr.f32.gmra.mrb[0].mxu0 %v2684
          %v2787 = vpop.f32.mrb[0].mxu0
          %v2788 = vadd.f32 %v2679, %v2787
          %v2789 = vpop.f32.mrb[0].mxu0
          %2790 = vdwg.mxu0
          %2791 = vmatprep.subr.mxu0 0.0
          %2792 = vmatpush1.msra.mxu0 %v2583
          %2793 = vmatprep.subr.mxu0 0.0
          %2794 = vmatpush1.msra.mxu0 %v2584
          %2795 = vmatprep.subr.mxu0 0.0
          %2796 = vmatpush1.msra.mxu0 %v2585
          %2797 = vmatprep.subr.mxu0 0.0
          %2798 = vmatpush1.msra.mxu0 %v2586
          %2799 = vmatprep.subr.mxu0 0.0
          %2800 = vmatpush1.msra.mxu0 %v2587
          %2801 = vmatprep.subr.mxu0 0.0
          %2802 = vmatpush1.msra.mxu0 %v2588
          %2803 = vmatprep.subr.mxu0 0.0
          %2804 = vmatpush1.msra.mxu0 %v2589
          %2805 = vmatprep.subr.mxu0 0.0
          %2806 = vmatpush1.msra.mxu0 %v2590
          %2807 = vmatprep.subr.mxu0 0.0
          %2808 = vmatpush1.msra.mxu0 %v2591
          %2809 = vmatprep.subr.mxu0 0.0
          %2810 = vmatpush1.msra.mxu0 %v2592
          %2811 = vmatprep.subr.mxu0 0.0
          %2812 = vmatpush1.msra.mxu0 %v2593
          %2813 = vmatprep.subr.mxu0 0.0
          %2814 = vmatpush1.msra.mxu0 %v2594
          %2815 = vmatprep.subr.mxu0 0.0
          %2816 = vmatpush1.msra.mxu0 %v2595
          %2817 = vmatprep.subr.mxu0 0.0
          %2818 = vmatpush1.msra.mxu0 %v2596
          %2819 = vmatprep.subr.mxu0 0.0
          %2820 = vmatpush1.msra.mxu0 %v2597
          %2821 = vmatprep.subr.mxu0 0.0
          %2822 = vmatpush1.msra.mxu0 %v2598
          %2823 = vmatprep.subr.mxu0 0.0
          %2824 = vmatpush1.msra.mxu0 %v2599
          %2825 = vmatprep.subr.mxu0 0.0
          %2826 = vmatpush1.msra.mxu0 %v2600
          %2827 = vmatprep.subr.mxu0 0.0
          %2828 = vmatpush1.msra.mxu0 %v2601
          %2829 = vmatprep.subr.mxu0 0.0
          %2830 = vmatpush1.msra.mxu0 %v2602
          %2831 = vmatprep.subr.mxu0 0.0
          %2832 = vmatpush1.msra.mxu0 %v2603
          %2833 = vmatprep.subr.mxu0 0.0
          %2834 = vmatpush1.msra.mxu0 %v2604
          %2835 = vmatprep.subr.mxu0 0.0
          %2836 = vmatpush1.msra.mxu0 %v2605
          %2837 = vmatprep.subr.mxu0 0.0
          %2838 = vmatpush1.msra.mxu0 %v2606
          %2839 = vmatprep.subr.mxu0 0.0
          %2840 = vmatpush1.msra.mxu0 %v2607
          %2841 = vmatprep.subr.mxu0 0.0
          %2842 = vmatpush1.msra.mxu0 %v2608
          %2843 = vmatprep.subr.mxu0 0.0
          %2844 = vmatpush1.msra.mxu0 %v2609
          %2845 = vmatprep.subr.mxu0 0.0
          %2846 = vmatpush1.msra.mxu0 %v2610
          %2847 = vmatprep.subr.mxu0 0.0
          %2848 = vmatpush1.msra.mxu0 %v2611
          %2849 = vmatprep.subr.mxu0 0.0
          %2850 = vmatpush1.msra.mxu0 %v2612
          %2851 = vmatprep.subr.mxu0 0.0
          %2852 = vmatpush1.msra.mxu0 %v2613
          %2853 = vmatprep.subr.mxu0 0.0
          %2854 = vmatpush1.msra.mxu0 %v2614
          %2855 = vmatprep.mubr.f32.mxu0 %v2696
          %2856 = vmatmul.mubr.f32.gmra.mrb[0].mxu0 %v2692
          %v2857 = vpop.f32.mrb[0].mxu0
          %v2858 = vadd.f32 %v2788, %v2857
          %v2859 = vpop.f32.mrb[0].mxu0
          %2860 = vdwg.mxu0
          %2861 = vmatprep.subr.mxu0 0.0
          %2862 = vmatpush1.msra.mxu0 %v2615
          %2863 = vmatprep.subr.mxu0 0.0
          %2864 = vmatpush1.msra.mxu0 %v2616
          %2865 = vmatprep.subr.mxu0 0.0
          %2866 = vmatpush1.msra.mxu0 %v2617
          %2867 = vmatprep.subr.mxu0 0.0
          %2868 = vmatpush1.msra.mxu0 %v2618
          %2869 = vmatprep.subr.mxu0 0.0
          %2870 = vmatpush1.msra.mxu0 %v2619
          %2871 = vmatprep.subr.mxu0 0.0
          %2872 = vmatpush1.msra.mxu0 %v2620
          %2873 = vmatprep.subr.mxu0 0.0
          %2874 = vmatpush1.msra.mxu0 %v2621
          %2875 = vmatprep.subr.mxu0 0.0
          %2876 = vmatpush1.msra.mxu0 %v2622
          %2877 = vmatprep.subr.mxu0 0.0
          %2878 = vmatpush1.msra.mxu0 %v2623
          %2879 = vmatprep.subr.mxu0 0.0
          %2880 = vmatpush1.msra.mxu0 %v2624
          %2881 = vmatprep.subr.mxu0 0.0
          %2882 = vmatpush1.msra.mxu0 %v2625
          %2883 = vmatprep.subr.mxu0 0.0
          %2884 = vmatpush1.msra.mxu0 %v2626
          %2885 = vmatprep.subr.mxu0 0.0
          %2886 = vmatpush1.msra.mxu0 %v2627
          %2887 = vmatprep.subr.mxu0 0.0
          %2888 = vmatpush1.msra.mxu0 %v2628
          %2889 = vmatprep.subr.mxu0 0.0
          %2890 = vmatpush1.msra.mxu0 %v2629
          %2891 = vmatprep.subr.mxu0 0.0
          %2892 = vmatpush1.msra.mxu0 %v2630
          %2893 = vmatprep.subr.mxu0 0.0
          %2894 = vmatpush1.msra.mxu0 %v2631
          %2895 = vmatprep.subr.mxu0 0.0
          %2896 = vmatpush1.msra.mxu0 %v2632
          %2897 = vmatprep.subr.mxu0 0.0
          %2898 = vmatpush1.msra.mxu0 %v2633
          %2899 = vmatprep.subr.mxu0 0.0
          %2900 = vmatpush1.msra.mxu0 %v2634
          %2901 = vmatprep.subr.mxu0 0.0
          %2902 = vmatpush1.msra.mxu0 %v2635
          %2903 = vmatprep.subr.mxu0 0.0
          %2904 = vmatpush1.msra.mxu0 %v2636
          %2905 = vmatprep.subr.mxu0 0.0
          %2906 = vmatpush1.msra.mxu0 %v2637
          %2907 = vmatprep.subr.mxu0 0.0
          %2908 = vmatpush1.msra.mxu0 %v2638
          %2909 = vmatprep.subr.mxu0 0.0
          %2910 = vmatpush1.msra.mxu0 %v2639
          %2911 = vmatprep.subr.mxu0 0.0
          %2912 = vmatpush1.msra.mxu0 %v2640
          %2913 = vmatprep.subr.mxu0 0.0
          %2914 = vmatpush1.msra.mxu0 %v2641
          %2915 = vmatprep.subr.mxu0 0.0
          %2916 = vmatpush1.msra.mxu0 %v2642
          %2917 = vmatprep.subr.mxu0 0.0
          %2918 = vmatpush1.msra.mxu0 %v2643
          %2919 = vmatprep.subr.mxu0 0.0
          %2920 = vmatpush1.msra.mxu0 %v2644
          %2921 = vmatprep.subr.mxu0 0.0
          %2922 = vmatpush1.msra.mxu0 %v2645
          %2923 = vmatprep.subr.mxu0 0.0
          %2924 = vmatpush1.msra.mxu0 %v2646
          %2925 = vmatprep.mubr.f32.mxu0 %v2704
          %2926 = vmatmul.mubr.f32.gmra.mrb[0].mxu0 %v2700
          %v2927 = vpop.f32.mrb[0].mxu0
          %v2928 = vadd.f32 %v2858, %v2927
          %v2929 = vpop.f32.mrb[0].mxu0
          %2930 = vdwg.mxu0
          %2931 = vmatprep.subr.mxu0 0.0
          %2932 = vmatpush1.msra.mxu0 %v2647
          %2933 = vmatprep.subr.mxu0 0.0
          %2934 = vmatpush1.msra.mxu0 %v2648
          %2935 = vmatprep.subr.mxu0 0.0
          %2936 = vmatpush1.msra.mxu0 %v2649
          %2937 = vmatprep.subr.mxu0 0.0
          %2938 = vmatpush1.msra.mxu0 %v2650
          %2939 = vmatprep.subr.mxu0 0.0
          %2940 = vmatpush1.msra.mxu0 %v2651
          %2941 = vmatprep.subr.mxu0 0.0
          %2942 = vmatpush1.msra.mxu0 %v2652
          %2943 = vmatprep.subr.mxu0 0.0
          %2944 = vmatpush1.msra.mxu0 %v2653
          %2945 = vmatprep.subr.mxu0 0.0
          %2946 = vmatpush1.msra.mxu0 %v2654
          %2947 = vmatprep.subr.mxu0 0.0
          %2948 = vmatpush1.msra.mxu0 %v2655
          %2949 = vmatprep.subr.mxu0 0.0
          %2950 = vmatpush1.msra.mxu0 %v2656
          %2951 = vmatprep.subr.mxu0 0.0
          %2952 = vmatpush1.msra.mxu0 %v2657
          %2953 = vmatprep.subr.mxu0 0.0
          %2954 = vmatpush1.msra.mxu0 %v2658
          %2955 = vmatprep.subr.mxu0 0.0
          %2956 = vmatpush1.msra.mxu0 %v2659
          %2957 = vmatprep.subr.mxu0 0.0
          %2958 = vmatpush1.msra.mxu0 %v2660
          %2959 = vmatprep.subr.mxu0 0.0
          %2960 = vmatpush1.msra.mxu0 %v2661
          %2961 = vmatprep.subr.mxu0 0.0
          %2962 = vmatpush1.msra.mxu0 %v2662
          %2963 = vmatprep.subr.mxu0 0.0
          %2964 = vmatpush1.msra.mxu0 %v2663
          %2965 = vmatprep.subr.mxu0 0.0
          %2966 = vmatpush1.msra.mxu0 %v2664
          %2967 = vmatprep.subr.mxu0 0.0
          %2968 = vmatpush1.msra.mxu0 %v2665
          %2969 = vmatprep.subr.mxu0 0.0
          %2970 = vmatpush1.msra.mxu0 %v2666
          %2971 = vmatprep.subr.mxu0 0.0
          %2972 = vmatpush1.msra.mxu0 %v2667
          %2973 = vmatprep.subr.mxu0 0.0
          %2974 = vmatpush1.msra.mxu0 %v2668
          %2975 = vmatprep.subr.mxu0 0.0
          %2976 = vmatpush1.msra.mxu0 %v2669
          %2977 = vmatprep.subr.mxu0 0.0
          %2978 = vmatpush1.msra.mxu0 %v2670
          %2979 = vmatprep.subr.mxu0 0.0
          %2980 = vmatpush1.msra.mxu0 %v2671
          %2981 = vmatprep.subr.mxu0 0.0
          %2982 = vmatpush1.msra.mxu0 %v2672
          %2983 = vmatprep.subr.mxu0 0.0
          %2984 = vmatpush1.msra.mxu0 %v2673
          %2985 = vmatprep.subr.mxu0 0.0
          %2986 = vmatpush1.msra.mxu0 %v2674
          %2987 = vmatprep.subr.mxu0 0.0
          %2988 = vmatpush1.msra.mxu0 %v2675
          %2989 = vmatprep.subr.mxu0 0.0
          %2990 = vmatpush1.msra.mxu0 %v2676
          %2991 = vmatprep.subr.mxu0 0.0
          %2992 = vmatpush1.msra.mxu0 %v2677
          %2993 = vmatprep.subr.mxu0 0.0
          %2994 = vmatpush1.msra.mxu0 %v2678
          %2995 = vmatprep.mubr.f32.mxu0 %v2712
          %2996 = vmatmul.mubr.f32.gmra.mrb[0].mxu0 %v2708
          %v2997 = vpop.f32.mrb[0].mxu0
          %v2998 = vadd.f32 %v2928, %v2997
          %v2999 = vpop.f32.mrb[0].mxu0
          %3000 = vdwg.mxu0
          %v3001 = vmul.f32 %v2998, 0.4
          %v3002 = vld [vmem:[%s347] sm:$0x1]
          %v3003 = vadd.f32 %v3001, %v3002
          %vm3004 = vcmask 8192
          %3005 = vst.msk [vmem:[%s333] sm:$0x1] %vm3004, %v3003
        $region60: #{konet_forward.3} parent=51 // pred_fallthru
          _
        %s3006 = sand.u32 %s222, 1
        %s3007 = scalar_lea.sflag [#allocation4], %s3006
        %s3008 = sand.u32 %s222, 1
        %s3009 = scalar_lea.vmem [#allocation3], %s3008
        // Predicated region
        $region61: #{konet_forward.3} parent=51 // pred_check
          %p3010 = pneg %p232
        $region62: #{konet_forward.3} parent=51 // pred_check_branch
          %3012 = sbr.rel (%p3010) target = $region64
        $region63: #{konet_forward.3} parent=51 // pred_region
          %s3014 = ssub.s32 16, 16
          %3015 = vsyncadd %s3007, %s3014
          %s3016 = smul.addr %s26, 16
          %s3017 = scalar_lea.hbm %s8, %s3016
          %s3019 = sshll.u32 %s3009, 4
          %s3020 = int_to_ptr.vmem [resolvable:$true] %s3019
          %3022 = dma.vmem_to_hbm [thread:$0]  %s3020, 16, %s3017, %s3007
        $region64: #{konet_forward.3} parent=51 // pred_fallthru
          _
      $region52: #{konet_forward.3} parent=5 // pred_fallthru
        _
      %p3023 = scmp.le.s32.totalorder 2, %s17
      // Predicated region
      $region65: #{konet_forward.3} parent=5 // pred_check
        %p3024 = pneg %p3023
      $region66: #{konet_forward.3} parent=5 // pred_check_branch
        %3026 = sbr.rel (%p3024) target = $region68
      $region67: #{konet_forward.3} parent=5 // pred_region
        %s3027 = ssub.s32 %s17, 2
        // Predicated region
        $region69: #{konet_forward.3} parent=67 // pred_check
          %p3028 = pneg %p238
        $region70: #{konet_forward.3} parent=67 // pred_check_branch
          %3030 = sbr.rel (%p3028) target = $region72
        $region71: #{konet_forward.3} parent=67 // pred_region
          %s3031 = sand.u32 %s223, 1
          %s3032 = scalar_lea.sflag [#allocation4], %s3031
          %s3033 = sand.u32 %s223, 1
          %s3034 = scalar_lea.vmem [#allocation3], %s3033
          %3035 = dma.done %s3032, 16
        $region72: #{konet_forward.3} parent=67 // pred_fallthru
          _
      $region68: #{konet_forward.3} parent=5 // pred_fallthru
        _
    $region6: #{konet_forward.3} parent=1 // loop_footer
      %s21 = sadd.s32 1, %s17
    $region7: #{konet_forward.3} parent=1 // loop_footer_branch
      %16 = sbr.rel target = $region3
    $region8: #{konet_forward.3} parent=1 // loop_exit
      _
    %3036 = vsyncpa [#allocation4], 1
    %s3037 = scalar_lea.sflag [#allocation4], 1
    %3038 = vsyncpa %s3037, 1

// kernel: konet_forward.2
$region0: #{konet_forward.2}
  #allocation0 [shape = 'u32[]', space=smem, size = 0x4, offset = 0x4, fixed_abs, tag = 'smem constant byte address 0x4 - core index']
  #allocation1 [shape = 'u32[144,128]{1,0:T(1,128)}', space=vmem, size = 0x12000, scoped, tag = 'internal scratch']
  #allocation2 [shape = 'f32[1,1280]{1,0:T(1,128)}', space=vmem, size = 0x1400, scoped, tag = 'scratch operand']
  %s0 = inlined_call_operand.vmem [shape: bf16[2,256,27], index: 0, kind: input, shape index: {}]
  %s1 = inlined_call_operand.vmem [shape: bf16[27,32], index: 1, kind: input, shape index: {}]
  %s2 = inlined_call_operand.vmem [shape: f32[1,32], index: 2, kind: input, shape index: {}]
  %s3 = inlined_call_operand.vmem [shape: bf16[32,1280], index: 3, kind: input, shape index: {}]
  %s4 = inlined_call_operand.vmem [shape: f32[1,1280], index: 4, kind: input, shape index: {}]
  %s5 = inlined_call_operand.vmem [shape: f32[1280,2], index: 5, kind: input, shape index: {}]
  %s6 = inlined_call_operand.vmem [shape: f32[1,2], index: 6, kind: input, shape index: {}]
  %s7 = inlined_call_operand.vmem [shape: f32[2,1,2], index: 7, kind: output, shape index: {}]
  %s8 = sld [smem:[#allocation0]]
  $region69: #{konet_forward.2} parent=0
    _
  %s10 = ssub.s32 1, %s8
  %s11 = scalar_select 0, %s10, %s8
  loop: start=0, step=1, limit=4
  $region2: #{konet_forward.2} parent=0 // loop_pre_header
    _
  $region3: #{konet_forward.2} parent=0 // loop_header
    %s13 = sphi 0, %s17
    %p14 = scmp.ge.s32.totalorder %s13, 4
    %s20 = sphi 0, %s32
    %s21 = sphi 0, %s28
    %s22 = sphi 0, %s20
    %s23 = sphi 0, %s21
    %s24 = sphi 0, %s22
    %s25 = sphi 0, %s23
    %s37 = sphi 0, %s39
    %s40 = sphi 0, %s37
    %s41 = sphi 0, %s40
    %s57 = sphi 0, %s41
    %s61 = sphi 0, %s61
    %s63 = sphi 0, %s61
    %s64 = sphi 0, %s63
    %s78 = sphi 0, %s64
    %s82 = sphi 0, %s82
    %s84 = sphi 0, %s82
    %s85 = sphi 0, %s84
    %s99 = sphi 0, %s85
    %s103 = sphi 0, %s103
    %s105 = sphi 0, %s103
    %s106 = sphi 0, %s105
    %s120 = sphi 0, %s106
    %s124 = sphi 0, %s124
    %s126 = sphi 0, %s124
    %s127 = sphi 0, %s126
    %s141 = sphi 0, %s127
    %s145 = sphi 0, %s145
    %s147 = sphi 0, %s145
    %s148 = sphi 0, %s147
    %s162 = sphi 0, %s148
    %s166 = sphi 0, %s166
    %s168 = sphi 0, %s166
    %s169 = sphi 0, %s168
    %s183 = sphi 0, %s169
    %s189 = sphi 0, %s191
    %s192 = sphi 0, %s189
    %s193 = sphi 0, %s192
    %s209 = sphi 0, %s193
  $region4: #{konet_forward.2} parent=0 // loop_header_branch
    %16 = sbr.rel (%p14) target = $region8
  $region5: #{konet_forward.2} parent=0 // loop_body
    %s18 = ssub.s32 %s13, 1
    %s19 = ssub.s32 %s13, 2
    %s26 = sadd.s32 1, %s21
    %p27 = scmp.ge.s32.totalorder %s26, 1
    %s28 = scalar_select %p27, 0, %s26
    %s29 = sadd.s32 1, %s20
    %s30 = scalar_select %p27, %s29, %s20
    %p31 = scmp.ge.s32.totalorder %s30, 2
    %s32 = scalar_select %p31, 0, %s30
    %s33 = ssub.s32 %s20, %s32
    %s34 = ssub.s32 %s21, %s28
    %s35 = sor.u32 %s33, %s34
    %p36 = scmp.eq.s32.totalorder %s35, 0
    %s38 = sadd.s32 %s37, 1
    %s39 = scalar_select %p36, %s37, %s38
    %p42 = pneg %p36
    %p43 = scmp.eq.s32.totalorder %s13, 1
    %p44 = por %p42, %p43
    %p45 = scmp.ne.s32.totalorder %s37, %s40
    %p46 = scmp.eq.s32.totalorder %s13, 0
    %p47 = por %p45, %p46
    %p48 = scmp.ne.s32.totalorder %s37, %s40
    %p49 = scmp.eq.s32.totalorder %s18, 1
    %p50 = por %p48, %p49
    %p51 = scmp.ne.s32.totalorder %s40, %s41
    %p52 = scmp.eq.s32.totalorder %s18, 0
    %p53 = por %p51, %p52
    %p54 = scmp.ne.s32.totalorder %s40, %s41
    %p55 = scmp.eq.s32.totalorder %s19, 1
    %p56 = por %p54, %p55
    %p58 = scmp.ne.s32.totalorder %s41, %s57
    %p59 = scmp.eq.s32.totalorder %s19, 0
    %p60 = por %p58, %p59
    %s62 = sadd.s32 %s61, 1
    %p65 = scmp.eq.s32.totalorder %s13, 1
    %p66 = scmp.ne.s32.totalorder %s61, %s63
    %p67 = scmp.eq.s32.totalorder %s13, 0
    %p68 = por %p66, %p67
    %p69 = scmp.ne.s32.totalorder %s61, %s63
    %p70 = scmp.eq.s32.totalorder %s18, 1
    %p71 = por %p69, %p70
    %p72 = scmp.ne.s32.totalorder %s63, %s64
    %p73 = scmp.eq.s32.totalorder %s18, 0
    %p74 = por %p72, %p73
    %p75 = scmp.ne.s32.totalorder %s63, %s64
    %p76 = scmp.eq.s32.totalorder %s19, 1
    %p77 = por %p75, %p76
    %p79 = scmp.ne.s32.totalorder %s64, %s78
    %p80 = scmp.eq.s32.totalorder %s19, 0
    %p81 = por %p79, %p80
    %s83 = sadd.s32 %s82, 1
    %p86 = scmp.eq.s32.totalorder %s13, 1
    %p87 = scmp.ne.s32.totalorder %s82, %s84
    %p88 = scmp.eq.s32.totalorder %s13, 0
    %p89 = por %p87, %p88
    %p90 = scmp.ne.s32.totalorder %s82, %s84
    %p91 = scmp.eq.s32.totalorder %s18, 1
    %p92 = por %p90, %p91
    %p93 = scmp.ne.s32.totalorder %s84, %s85
    %p94 = scmp.eq.s32.totalorder %s18, 0
    %p95 = por %p93, %p94
    %p96 = scmp.ne.s32.totalorder %s84, %s85
    %p97 = scmp.eq.s32.totalorder %s19, 1
    %p98 = por %p96, %p97
    %p100 = scmp.ne.s32.totalorder %s85, %s99
    %p101 = scmp.eq.s32.totalorder %s19, 0
    %p102 = por %p100, %p101
    %s104 = sadd.s32 %s103, 1
    %p107 = scmp.eq.s32.totalorder %s13, 1
    %p108 = scmp.ne.s32.totalorder %s103, %s105
    %p109 = scmp.eq.s32.totalorder %s13, 0
    %p110 = por %p108, %p109
    %p111 = scmp.ne.s32.totalorder %s103, %s105
    %p112 = scmp.eq.s32.totalorder %s18, 1
    %p113 = por %p111, %p112
    %p114 = scmp.ne.s32.totalorder %s105, %s106
    %p115 = scmp.eq.s32.totalorder %s18, 0
    %p116 = por %p114, %p115
    %p117 = scmp.ne.s32.totalorder %s105, %s106
    %p118 = scmp.eq.s32.totalorder %s19, 1
    %p119 = por %p117, %p118
    %p121 = scmp.ne.s32.totalorder %s106, %s120
    %p122 = scmp.eq.s32.totalorder %s19, 0
    %p123 = por %p121, %p122
    %s125 = sadd.s32 %s124, 1
    %p128 = scmp.eq.s32.totalorder %s13, 1
    %p129 = scmp.ne.s32.totalorder %s124, %s126
    %p130 = scmp.eq.s32.totalorder %s13, 0
    %p131 = por %p129, %p130
    %p132 = scmp.ne.s32.totalorder %s124, %s126
    %p133 = scmp.eq.s32.totalorder %s18, 1
    %p134 = por %p132, %p133
    %p135 = scmp.ne.s32.totalorder %s126, %s127
    %p136 = scmp.eq.s32.totalorder %s18, 0
    %p137 = por %p135, %p136
    %p138 = scmp.ne.s32.totalorder %s126, %s127
    %p139 = scmp.eq.s32.totalorder %s19, 1
    %p140 = por %p138, %p139
    %p142 = scmp.ne.s32.totalorder %s127, %s141
    %p143 = scmp.eq.s32.totalorder %s19, 0
    %p144 = por %p142, %p143
    %s146 = sadd.s32 %s145, 1
    %p149 = scmp.eq.s32.totalorder %s13, 1
    %p150 = scmp.ne.s32.totalorder %s145, %s147
    %p151 = scmp.eq.s32.totalorder %s13, 0
    %p152 = por %p150, %p151
    %p153 = scmp.ne.s32.totalorder %s145, %s147
    %p154 = scmp.eq.s32.totalorder %s18, 1
    %p155 = por %p153, %p154
    %p156 = scmp.ne.s32.totalorder %s147, %s148
    %p157 = scmp.eq.s32.totalorder %s18, 0
    %p158 = por %p156, %p157
    %p159 = scmp.ne.s32.totalorder %s147, %s148
    %p160 = scmp.eq.s32.totalorder %s19, 1
    %p161 = por %p159, %p160
    %p163 = scmp.ne.s32.totalorder %s148, %s162
    %p164 = scmp.eq.s32.totalorder %s19, 0
    %p165 = por %p163, %p164
    %s167 = sadd.s32 %s166, 1
    %p170 = scmp.eq.s32.totalorder %s13, 1
    %p171 = scmp.ne.s32.totalorder %s166, %s168
    %p172 = scmp.eq.s32.totalorder %s13, 0
    %p173 = por %p171, %p172
    %p174 = scmp.ne.s32.totalorder %s166, %s168
    %p175 = scmp.eq.s32.totalorder %s18, 1
    %p176 = por %p174, %p175
    %p177 = scmp.ne.s32.totalorder %s168, %s169
    %p178 = scmp.eq.s32.totalorder %s18, 0
    %p179 = por %p177, %p178
    %p180 = scmp.ne.s32.totalorder %s168, %s169
    %p181 = scmp.eq.s32.totalorder %s19, 1
    %p182 = por %p180, %p181
    %p184 = scmp.ne.s32.totalorder %s169, %s183
    %p185 = scmp.eq.s32.totalorder %s19, 0
    %p186 = por %p184, %p185
    %s187 = ssub.s32 %s20, %s32
    %p188 = scmp.eq.s32.totalorder %s187, 0
    %s190 = sadd.s32 %s189, 1
    %s191 = scalar_select %p188, %s189, %s190
    %p194 = pneg %p188
    %p195 = scmp.eq.s32.totalorder %s13, 1
    %p196 = por %p194, %p195
    %p197 = scmp.ne.s32.totalorder %s189, %s192
    %p198 = scmp.eq.s32.totalorder %s13, 0
    %p199 = por %p197, %p198
    %p200 = scmp.ne.s32.totalorder %s189, %s192
    %p201 = scmp.eq.s32.totalorder %s18, 1
    %p202 = por %p200, %p201
    %p203 = scmp.ne.s32.totalorder %s192, %s193
    %p204 = scmp.eq.s32.totalorder %s18, 0
    %p205 = por %p203, %p204
    %p206 = scmp.ne.s32.totalorder %s192, %s193
    %p207 = scmp.eq.s32.totalorder %s19, 1
    %p208 = por %p206, %p207
    %p210 = scmp.ne.s32.totalorder %s193, %s209
    %p211 = scmp.eq.s32.totalorder %s19, 0
    %p212 = por %p210, %p211
    %p213 = scmp.le.s32.totalorder 1, %s13
    %p214 = scmp.lt.s32.totalorder %s13, 3
    %p215 = pnand %p213, %p214
    %p216 = pneg %p215
    // Predicated region
    $region9: #{konet_forward.2} parent=5 // pred_check
      _
    $region10: #{konet_forward.2} parent=5 // pred_check_branch
      %218 = sbr.rel (%p215) target = $region12
    $region11: #{konet_forward.2} parent=5 // pred_region
      %s219 = ssub.s32 %s13, 1
      // Predicated region
      $region13: #{konet_forward.2} parent=11 // pred_check
        %p220 = pneg %p74
      $region14: #{konet_forward.2} parent=11 // pred_check_branch
        %222 = sbr.rel (%p220) target = $region16
      $region15: #{konet_forward.2} parent=11 // pred_region
        _
      $region16: #{konet_forward.2} parent=11 // pred_fallthru
        _
      // Predicated region
      $region17: #{konet_forward.2} parent=11 // pred_check
        %p223 = pneg %p95
      $region18: #{konet_forward.2} parent=11 // pred_check_branch
        %225 = sbr.rel (%p223) target = $region20
      $region19: #{konet_forward.2} parent=11 // pred_region
        _
      $region20: #{konet_forward.2} parent=11 // pred_fallthru
        _
      // Predicated region
      $region21: #{konet_forward.2} parent=11 // pred_check
        %p226 = pneg %p116
      $region22: #{konet_forward.2} parent=11 // pred_check_branch
        %228 = sbr.rel (%p226) target = $region24
      $region23: #{konet_forward.2} parent=11 // pred_region
        _
      $region24: #{konet_forward.2} parent=11 // pred_fallthru
        _
      // Predicated region
      $region25: #{konet_forward.2} parent=11 // pred_check
        %p229 = pneg %p137
      $region26: #{konet_forward.2} parent=11 // pred_check_branch
        %231 = sbr.rel (%p229) target = $region28
      $region27: #{konet_forward.2} parent=11 // pred_region
        _
      $region28: #{konet_forward.2} parent=11 // pred_fallthru
        _
      // Predicated region
      $region29: #{konet_forward.2} parent=11 // pred_check
        %p232 = pneg %p158
      $region30: #{konet_forward.2} parent=11 // pred_check_branch
        %234 = sbr.rel (%p232) target = $region32
      $region31: #{konet_forward.2} parent=11 // pred_region
        _
      $region32: #{konet_forward.2} parent=11 // pred_fallthru
        _
      // Predicated region
      $region33: #{konet_forward.2} parent=11 // pred_check
        %p235 = pneg %p179
      $region34: #{konet_forward.2} parent=11 // pred_check_branch
        %237 = sbr.rel (%p235) target = $region36
      $region35: #{konet_forward.2} parent=11 // pred_region
        _
      $region36: #{konet_forward.2} parent=11 // pred_fallthru
        _
    $region12: #{konet_forward.2} parent=5 // pred_fallthru
      _
    %p238 = scmp.lt.s32.totalorder %s13, 2
    // Predicated region
    $region37: #{konet_forward.2} parent=5 // pred_check
      %p239 = pneg %p238
    $region38: #{konet_forward.2} parent=5 // pred_check_branch
      %241 = sbr.rel (%p239) target = $region40
    $region39: #{konet_forward.2} parent=5 // pred_region
      // Predicated region
      $region41: #{konet_forward.2} parent=39 // pred_check
        %p242 = pneg %p47
      $region42: #{konet_forward.2} parent=39 // pred_check_branch
        %244 = sbr.rel (%p242) target = $region44
      $region43: #{konet_forward.2} parent=39 // pred_region
        %s245 = smul.u32 32, %s21
        %p246 = scmp.lt.s32.totalorder %s20, 1
        %s247 = scalar_select %p246, %s20, 1
        %p248 = scmp.lt.s32.totalorder %s245, 31
        %s249 = scalar_select %p248, %s245, 31
        %s250 = smul.addr %s247, 32
        %s251 = sadd.s32 %s249, %s250
        %s252 = smul.addr %s251, 4
        %s253 = scalar_lea.vmem %s0, %s252
        %s254 = smul.u32 32, %s21
      $region44: #{konet_forward.2} parent=39 // pred_fallthru
        _
    $region40: #{konet_forward.2} parent=5 // pred_fallthru
      _
    %p255 = scmp.le.s32.totalorder 1, %s13
    %p256 = scmp.lt.s32.totalorder %s13, 3
    %p257 = pnand %p255, %p256
    %p258 = pneg %p257
    // Predicated region
    $region45: #{konet_forward.2} parent=5 // pred_check
      _
    $region46: #{konet_forward.2} parent=5 // pred_check_branch
      %260 = sbr.rel (%p257) target = $region48
    $region47: #{konet_forward.2} parent=5 // pred_region
      %s261 = ssub.s32 %s13, 1
      %s262 = smul.u32 32, %s23
      %p263 = scmp.lt.s32.totalorder %s22, 1
      %s264 = scalar_select %p263, %s22, 1
      %p265 = scmp.lt.s32.totalorder %s262, 31
      %s266 = scalar_select %p265, %s262, 31
      %s267 = smul.addr %s264, 32
      %s268 = sadd.s32 %s266, %s267
      %s269 = smul.addr %s268, 4
      %s270 = scalar_lea.vmem %s0, %s269
      %p271 = pneg %p53
      %p272 = pneg %p50
      %p273 = pneg %p74
      %p274 = pneg %p71
      %p275 = pneg %p95
      %p276 = pneg %p92
      %p277 = pneg %p116
      %p278 = pneg %p113
      %p279 = pneg %p137
      %p280 = pneg %p134
      %p281 = pneg %p158
      %p282 = pneg %p155
      %p283 = pneg %p179
      %p284 = pneg %p176
      %p285 = pneg %p205
      %p286 = pneg %p202
      %p287 = scmp.lt.s32.totalorder %s22, 1
      %s288 = scalar_select %p287, %s22, 1
      %s289 = scalar_lea.vmem %s7, %s288
      %s290 = smul.u32 32, %s23
      %p291 = scmp.lt.s32.totalorder %s22, 1
      %s292 = scalar_select %p291, %s22, 1
      %p293 = scmp.lt.s32.totalorder %s290, 31
      %s294 = scalar_select %p293, %s290, 31
      %s295 = smul.addr %s292, 32
      %s296 = sadd.s32 %s294, %s295
      %s297 = smul.addr %s296, 4
      %s298 = scalar_lea.vmem %s0, %s297
      %s299 = smul.u32 32, %s23
      %p300 = scmp.lt.s32.totalorder %s22, 1
      %s301 = scalar_select %p300, %s22, 1
      %s302 = scalar_lea.vmem %s7, %s301
      %p304 = scmp.eq.s32.totalorder %s23, 0
      // Predicated region
      $region49: #{konet_forward.2} parent=47 // pred_check
        %p305 = pneg %p304
      $region50: #{konet_forward.2} parent=47 // pred_check_branch
        %307 = sbr.rel (%p305) target = $region52
      $region51: #{konet_forward.2} parent=47 // pred_region
        %308 = vst [vmem:[#allocation2] sm:$0xff] 0.0
        %v309 = vlaneseq
        %vm310 = vcmp.ge.s32.totalorder %v309, 0
        %vm311 = vcmp.lt.s32.totalorder %v309, 256
        %vm312 = vmand %vm310, %vm311
        %313 = vst.msk [vmem:[#allocation2 + $0x8] sm:$0x3] %vm312, 0.0
      $region52: #{konet_forward.2} parent=47 // pred_fallthru
        _
      %v314 = vld [vmem:[%s298] sm:$0xf]
      %v315 = vld [vmem:[%s298 + $0x4] sm:$0xf]
      %v316 = vld [vmem:[%s298 + $0x8] sm:$0xf]
      %v317 = vld [vmem:[%s298 + $0xc] sm:$0xf]
      %v318 = vld [vmem:[%s298 + $0x10] sm:$0xf]
      %v319 = vld [vmem:[%s298 + $0x14] sm:$0xf]
      %v320 = vld [vmem:[%s298 + $0x18] sm:$0xf]
      %v321 = vld [vmem:[%s298 + $0x1c] sm:$0xf]
      %v322 = vld [vmem:[%s298 + $0x20] sm:$0xf]
      %v323 = vld [vmem:[%s298 + $0x24] sm:$0xf]
      %v324 = vld [vmem:[%s298 + $0x28] sm:$0xf]
      %v325 = vld [vmem:[%s298 + $0x2c] sm:$0xf]
      %v326 = vld [vmem:[%s298 + $0x30] sm:$0xf]
      %v327 = vld [vmem:[%s298 + $0x34] sm:$0xf]
      %v328 = vld [vmem:[%s298 + $0x38] sm:$0xf]
      %v329 = vld [vmem:[%s298 + $0x3c] sm:$0xf]
      %v330 = vld [vmem:[%s298 + $0x40] sm:$0xf]
      %v331 = vld [vmem:[%s298 + $0x44] sm:$0xf]
      %v332 = vld [vmem:[%s298 + $0x48] sm:$0xf]
      %v333 = vld [vmem:[%s298 + $0x4c] sm:$0xf]
      %v334 = vld [vmem:[%s298 + $0x50] sm:$0xf]
      %v335 = vld [vmem:[%s298 + $0x54] sm:$0xf]
      %v336 = vld [vmem:[%s298 + $0x58] sm:$0xf]
      %v337 = vld [vmem:[%s298 + $0x5c] sm:$0xf]
      %v338 = vld [vmem:[%s298 + $0x60] sm:$0xf]
      %v339 = vld [vmem:[%s298 + $0x64] sm:$0xf]
      %v340 = vld [vmem:[%s298 + $0x68] sm:$0xf]
      %v341 = vld [vmem:[%s298 + $0x6c] sm:$0xf]
      %v342 = vld [vmem:[%s298 + $0x70] sm:$0xf]
      %v343 = vld [vmem:[%s298 + $0x74] sm:$0xf]
      %v344 = vld [vmem:[%s298 + $0x78] sm:$0xf]
      %v345 = vld [vmem:[%s298 + $0x7c] sm:$0xf]
      %v346 = vld [vmem:[%s1] sm:$0xf]
      %v347 = vld [vmem:[%s1 + $0x4] sm:$0xf]
      %v348 = vld [vmem:[%s1 + $0x8] sm:$0xf]
      %v349 = vld [vmem:[%s1 + $0xc] sm:$0x3]
      %v350 = vld [vmem:[%s2] sm:$0x1]
      %v352 = vlaneseq
      %v353 = vshrl.u32 %v352, 7
      %v354 = vsub.s32 0, %v353
      %v355 = vrot.slane %v350, %v354
      %v389 = vunpack.c.l.b16 %v314
      %v390 = vunpack.c.l.b16 %v315
      %v391 = vunpack.c.l.b16 %v316
      %v392 = vunpack.c.l.b16 %v317
      %v393 = vunpack.c.l.b16 %v318
      %v394 = vunpack.c.l.b16 %v319
      %v395 = vunpack.c.l.b16 %v320
      %v396 = vunpack.c.l.b16 %v321
      %v397 = vunpack.c.l.b16 %v322
      %v398 = vunpack.c.l.b16 %v323
      %v399 = vunpack.c.l.b16 %v324
      %v400 = vunpack.c.l.b16 %v325
      %v401 = vunpack.c.l.b16 %v326
      %v402 = vunpack.c.l.b16 %v327
      %v403 = vunpack.c.l.b16 %v328
      %v404 = vunpack.c.l.b16 %v329
      %v405 = vunpack.c.l.b16 %v330
      %v406 = vunpack.c.l.b16 %v331
      %v407 = vunpack.c.l.b16 %v332
      %v408 = vunpack.c.l.b16 %v333
      %v409 = vunpack.c.l.b16 %v334
      %v410 = vunpack.c.l.b16 %v335
      %v411 = vunpack.c.l.b16 %v336
      %v412 = vunpack.c.l.b16 %v337
      %v413 = vunpack.c.l.b16 %v338
      %v414 = vunpack.c.l.b16 %v339
      %v415 = vunpack.c.l.b16 %v340
      %v416 = vunpack.c.l.b16 %v341
      %v417 = vunpack.c.l.b16 %v342
      %v418 = vunpack.c.l.b16 %v343
      %v419 = vunpack.c.l.b16 %v344
      %v420 = vunpack.c.l.b16 %v345
      %v421 = vpack.c.b16 %v390, %v389
      %v422 = vpack.c.b16 %v392, %v391
      %v423 = vpack.c.b16 %v394, %v393
      %v424 = vpack.c.b16 %v396, %v395
      %v425 = vpack.c.b16 %v398, %v397
      %v426 = vpack.c.b16 %v400, %v399
      %v427 = vpack.c.b16 %v402, %v401
      %v428 = vpack.c.b16 %v404, %v403
      %v429 = vpack.c.b16 %v406, %v405
      %v430 = vpack.c.b16 %v408, %v407
      %v431 = vpack.c.b16 %v410, %v409
      %v432 = vpack.c.b16 %v412, %v411
      %v433 = vpack.c.b16 %v414, %v413
      %v434 = vpack.c.b16 %v416, %v415
      %v435 = vpack.c.b16 %v418, %v417
      %v436 = vpack.c.b16 %v420, %v419
      %v441 = vunpack.c.l.b16 %v346
      %v442 = vunpack.c.l.b16 %v347
      %v443 = vunpack.c.l.b16 %v348
      %v444 = vunpack.c.l.b16 %v349
      %v445 = vpack.c.b16 %v442, %v441
      %v446 = vpack.c.b16 %v444, %v443
      %vm448 = vcmask 220160
      %v450 = vsel %vm448, %v421, 0
      %v453 = vsel %vm448, %v422, 0
      %v456 = vsel %vm448, %v423, 0
      %v459 = vsel %vm448, %v424, 0
      %v462 = vsel %vm448, %v425, 0
      %v465 = vsel %vm448, %v426, 0
      %v468 = vsel %vm448, %v427, 0
      %v471 = vsel %vm448, %v428, 0
      %v474 = vsel %vm448, %v429, 0
      %v477 = vsel %vm448, %v430, 0
      %v480 = vsel %vm448, %v431, 0
      %v483 = vsel %vm448, %v432, 0
      %v486 = vsel %vm448, %v433, 0
      %v489 = vsel %vm448, %v434, 0
      %v492 = vsel %vm448, %v435, 0
      %v495 = vsel %vm448, %v436, 0
      %vm497 = vcmask 1044480
      %vm498 = vcmask 1045504
      %v499 = vsel %vm497, 4294967295, 65535
      %v500 = vsel %vm498, %v499, 0
      %v502 = vand.u32 %v446, %v500
      %504 = vmatprep.subr.bf16.mxu0 0
      %505 = vmatpush1.bf16.msra.mxu0 %v445
      %506 = vmatprep.subr.bf16.mxu0 0
      %507 = vmatpush1.bf16.msra.mxu0 %v502
      %508 = vmatprep.subr.bf16.mxu0 0
      %509 = vmatpush1.bf16.msra.mxu0 0
      %510 = vmatprep.subr.bf16.mxu0 0
      %511 = vmatpush1.bf16.msra.mxu0 0
      %512 = vmatprep.subr.bf16.mxu0 0
      %513 = vmatpush1.bf16.msra.mxu0 0
      %514 = vmatprep.subr.bf16.mxu0 0
      %515 = vmatpush1.bf16.msra.mxu0 0
      %516 = vmatprep.subr.bf16.mxu0 0
      %517 = vmatpush1.bf16.msra.mxu0 0
      %518 = vmatprep.subr.bf16.mxu0 0
      %519 = vmatpush1.bf16.msra.mxu0 0
      %520 = vmatprep.subr.bf16.mxu0 0
      %521 = vmatpush1.bf16.msra.mxu0 0
      %522 = vmatprep.subr.bf16.mxu0 0
      %523 = vmatpush1.bf16.msra.mxu0 0
      %524 = vmatprep.subr.bf16.mxu0 0
      %525 = vmatpush1.bf16.msra.mxu0 0
      %526 = vmatprep.subr.bf16.mxu0 0
      %527 = vmatpush1.bf16.msra.mxu0 0
      %528 = vmatprep.subr.bf16.mxu0 0
      %529 = vmatpush1.bf16.msra.mxu0 0
      %530 = vmatprep.subr.bf16.mxu0 0
      %531 = vmatpush1.bf16.msra.mxu0 0
      %532 = vmatprep.subr.bf16.mxu0 0
      %533 = vmatpush1.bf16.msra.mxu0 0
      %534 = vmatprep.subr.bf16.mxu0 0
      %535 = vmatpush1.bf16.msra.mxu0 0
      %536 = vmatprep.mubr.bf16.mxu0 0
      %537 = vmatmul.mubr.bf16.gmra.mrb[0].mxu0 %v450
      %v538 = vpop.f32.mrb[0].mxu0
      %v539 = vadd.f32 %v355, %v538
      %v540 = vpop.f32.mrb[0].mxu0
      %v541 = vpop.f32.mrb[0].mxu0
      %v542 = vadd.f32 %v355, %v541
      %v543 = vpop.f32.mrb[0].mxu0
      %544 = vmatprep.mubr.bf16.mxu0 0
      %545 = vmatmul.mubr.bf16.gmra.mrb[0].mxu0 %v453
      %v546 = vpop.f32.mrb[0].mxu0
      %v547 = vadd.f32 %v355, %v546
      %v548 = vpop.f32.mrb[0].mxu0
      %v549 = vpop.f32.mrb[0].mxu0
      %v550 = vadd.f32 %v355, %v549
      %v551 = vpop.f32.mrb[0].mxu0
      %552 = vmatprep.mubr.bf16.mxu0 0
      %553 = vmatmul.mubr.bf16.gmra.mrb[0].mxu0 %v456
      %v554 = vpop.f32.mrb[0].mxu0
      %v555 = vadd.f32 %v355, %v554
      %v556 = vpop.f32.mrb[0].mxu0
      %v557 = vpop.f32.mrb[0].mxu0
      %v558 = vadd.f32 %v355, %v557
      %v559 = vpop.f32.mrb[0].mxu0
      %560 = vmatprep.mubr.bf16.mxu0 0
      %561 = vmatmul.mubr.bf16.gmra.mrb[0].mxu0 %v459
      %v562 = vpop.f32.mrb[0].mxu0
      %v563 = vadd.f32 %v355, %v562
      %v564 = vpop.f32.mrb[0].mxu0
      %v565 = vpop.f32.mrb[0].mxu0
      %v566 = vadd.f32 %v355, %v565
      %v567 = vpop.f32.mrb[0].mxu0
      %568 = vmatprep.mubr.bf16.mxu0 0
      %569 = vmatmul.mubr.bf16.gmra.mrb[0].mxu0 %v462
      %v570 = vpop.f32.mrb[0].mxu0
      %v571 = vadd.f32 %v355, %v570
      %v572 = vpop.f32.mrb[0].mxu0
      %v573 = vpop.f32.mrb[0].mxu0
      %v574 = vadd.f32 %v355, %v573
      %v575 = vpop.f32.mrb[0].mxu0
      %576 = vmatprep.mubr.bf16.mxu0 0
      %577 = vmatmul.mubr.bf16.gmra.mrb[0].mxu0 %v465
      %v578 = vpop.f32.mrb[0].mxu0
      %v579 = vadd.f32 %v355, %v578
      %v580 = vpop.f32.mrb[0].mxu0
      %v581 = vpop.f32.mrb[0].mxu0
      %v582 = vadd.f32 %v355, %v581
      %v583 = vpop.f32.mrb[0].mxu0
      %584 = vmatprep.mubr.bf16.mxu0 0
      %585 = vmatmul.mubr.bf16.gmra.mrb[0].mxu0 %v468
      %v586 = vpop.f32.mrb[0].mxu0
      %v587 = vadd.f32 %v355, %v586
      %v588 = vpop.f32.mrb[0].mxu0
      %v589 = vpop.f32.mrb[0].mxu0
      %v590 = vadd.f32 %v355, %v589
      %v591 = vpop.f32.mrb[0].mxu0
      %592 = vmatprep.mubr.bf16.mxu0 0
      %593 = vmatmul.mubr.bf16.gmra.mrb[0].mxu0 %v471
      %v594 = vpop.f32.mrb[0].mxu0
      %v595 = vadd.f32 %v355, %v594
      %v596 = vpop.f32.mrb[0].mxu0
      %v597 = vpop.f32.mrb[0].mxu0
      %v598 = vadd.f32 %v355, %v597
      %v599 = vpop.f32.mrb[0].mxu0
      %600 = vmatprep.mubr.bf16.mxu0 0
      %601 = vmatmul.mubr.bf16.gmra.mrb[0].mxu0 %v474
      %v602 = vpop.f32.mrb[0].mxu0
      %v603 = vadd.f32 %v355, %v602
      %v604 = vpop.f32.mrb[0].mxu0
      %v605 = vpop.f32.mrb[0].mxu0
      %v606 = vadd.f32 %v355, %v605
      %v607 = vpop.f32.mrb[0].mxu0
      %608 = vmatprep.mubr.bf16.mxu0 0
      %609 = vmatmul.mubr.bf16.gmra.mrb[0].mxu0 %v477
      %v610 = vpop.f32.mrb[0].mxu0
      %v611 = vadd.f32 %v355, %v610
      %v612 = vpop.f32.mrb[0].mxu0
      %v613 = vpop.f32.mrb[0].mxu0
      %v614 = vadd.f32 %v355, %v613
      %v615 = vpop.f32.mrb[0].mxu0
      %616 = vmatprep.mubr.bf16.mxu0 0
      %617 = vmatmul.mubr.bf16.gmra.mrb[0].mxu0 %v480
      %v618 = vpop.f32.mrb[0].mxu0
      %v619 = vadd.f32 %v355, %v618
      %v620 = vpop.f32.mrb[0].mxu0
      %v621 = vpop.f32.mrb[0].mxu0
      %v622 = vadd.f32 %v355, %v621
      %v623 = vpop.f32.mrb[0].mxu0
      %624 = vmatprep.mubr.bf16.mxu0 0
      %625 = vmatmul.mubr.bf16.gmra.mrb[0].mxu0 %v483
      %v626 = vpop.f32.mrb[0].mxu0
      %v627 = vadd.f32 %v355, %v626
      %v628 = vpop.f32.mrb[0].mxu0
      %v629 = vpop.f32.mrb[0].mxu0
      %v630 = vadd.f32 %v355, %v629
      %v631 = vpop.f32.mrb[0].mxu0
      %632 = vmatprep.mubr.bf16.mxu0 0
      %633 = vmatmul.mubr.bf16.gmra.mrb[0].mxu0 %v486
      %v634 = vpop.f32.mrb[0].mxu0
      %v635 = vadd.f32 %v355, %v634
      %v636 = vpop.f32.mrb[0].mxu0
      %v637 = vpop.f32.mrb[0].mxu0
      %v638 = vadd.f32 %v355, %v637
      %v639 = vpop.f32.mrb[0].mxu0
      %640 = vmatprep.mubr.bf16.mxu0 0
      %641 = vmatmul.mubr.bf16.gmra.mrb[0].mxu0 %v489
      %v642 = vpop.f32.mrb[0].mxu0
      %v643 = vadd.f32 %v355, %v642
      %v644 = vpop.f32.mrb[0].mxu0
      %v645 = vpop.f32.mrb[0].mxu0
      %v646 = vadd.f32 %v355, %v645
      %v647 = vpop.f32.mrb[0].mxu0
      %648 = vmatprep.mubr.bf16.mxu0 0
      %649 = vmatmul.mubr.bf16.gmra.mrb[0].mxu0 %v492
      %v650 = vpop.f32.mrb[0].mxu0
      %v651 = vadd.f32 %v355, %v650
      %v652 = vpop.f32.mrb[0].mxu0
      %v653 = vpop.f32.mrb[0].mxu0
      %v654 = vadd.f32 %v355, %v653
      %v655 = vpop.f32.mrb[0].mxu0
      %656 = vmatprep.mubr.bf16.mxu0 0
      %657 = vmatmul.mubr.bf16.gmra.mrb[0].mxu0 %v495
      %v658 = vpop.f32.mrb[0].mxu0
      %v659 = vadd.f32 %v355, %v658
      %v660 = vpop.f32.mrb[0].mxu0
      %v661 = vpop.f32.mrb[0].mxu0
      %v662 = vadd.f32 %v355, %v661
      %v663 = vpop.f32.mrb[0].mxu0
      %664 = vdwg.mxu0
      %v665 = vsub.f32 0.0, %v539
      %v666 = vsub.f32 0.0, %v542
      %v667 = vsub.f32 0.0, %v547
      %v668 = vsub.f32 0.0, %v550
      %v669 = vsub.f32 0.0, %v555
      %v670 = vsub.f32 0.0, %v558
      %v671 = vsub.f32 0.0, %v563
      %v672 = vsub.f32 0.0, %v566
      %v673 = vsub.f32 0.0, %v571
      %v674 = vsub.f32 0.0, %v574
      %v675 = vsub.f32 0.0, %v579
      %v676 = vsub.f32 0.0, %v582
      %v677 = vsub.f32 0.0, %v587
      %v678 = vsub.f32 0.0, %v590
      %v679 = vsub.f32 0.0, %v595
      %v680 = vsub.f32 0.0, %v598
      %v681 = vsub.f32 0.0, %v603
      %v682 = vsub.f32 0.0, %v606
      %v683 = vsub.f32 0.0, %v611
      %v684 = vsub.f32 0.0, %v614
      %v685 = vsub.f32 0.0, %v619
      %v686 = vsub.f32 0.0, %v622
      %v687 = vsub.f32 0.0, %v627
      %v688 = vsub.f32 0.0, %v630
      %v689 = vsub.f32 0.0, %v635
      %v690 = vsub.f32 0.0, %v638
      %v691 = vsub.f32 0.0, %v643
      %v692 = vsub.f32 0.0, %v646
      %v693 = vsub.f32 0.0, %v651
      %v694 = vsub.f32 0.0, %v654
      %v695 = vsub.f32 0.0, %v659
      %v696 = vsub.f32 0.0, %v662
      %v697 = vmul.f32 %v665, 1.442695
      %v698 = vpow.pop %v697
      %v699 = vmul.f32 %v666, 1.442695
      %v700 = vpow.pop %v699
      %v701 = vmul.f32 %v667, 1.442695
      %v702 = vpow.pop %v701
      %v703 = vmul.f32 %v668, 1.442695
      %v704 = vpow.pop %v703
      %v705 = vmul.f32 %v669, 1.442695
      %v706 = vpow.pop %v705
      %v707 = vmul.f32 %v670, 1.442695
      %v708 = vpow.pop %v707
      %v709 = vmul.f32 %v671, 1.442695
      %v710 = vpow.pop %v709
      %v711 = vmul.f32 %v672, 1.442695
      %v712 = vpow.pop %v711
      %v713 = vmul.f32 %v673, 1.442695
      %v714 = vpow.pop %v713
      %v715 = vmul.f32 %v674, 1.442695
      %v716 = vpow.pop %v715
      %v717 = vmul.f32 %v675, 1.442695
      %v718 = vpow.pop %v717
      %v719 = vmul.f32 %v676, 1.442695
      %v720 = vpow.pop %v719
      %v721 = vmul.f32 %v677, 1.442695
      %v722 = vpow.pop %v721
      %v723 = vmul.f32 %v678, 1.442695
      %v724 = vpow.pop %v723
      %v725 = vmul.f32 %v679, 1.442695
      %v726 = vpow.pop %v725
      %v727 = vmul.f32 %v680, 1.442695
      %v728 = vpow.pop %v727
      %v729 = vmul.f32 %v681, 1.442695
      %v730 = vpow.pop %v729
      %v731 = vmul.f32 %v682, 1.442695
      %v732 = vpow.pop %v731
      %v733 = vmul.f32 %v683, 1.442695
      %v734 = vpow.pop %v733
      %v735 = vmul.f32 %v684, 1.442695
      %v736 = vpow.pop %v735
      %v737 = vmul.f32 %v685, 1.442695
      %v738 = vpow.pop %v737
      %v739 = vmul.f32 %v686, 1.442695
      %v740 = vpow.pop %v739
      %v741 = vmul.f32 %v687, 1.442695
      %v742 = vpow.pop %v741
      %v743 = vmul.f32 %v688, 1.442695
      %v744 = vpow.pop %v743
      %v745 = vmul.f32 %v689, 1.442695
      %v746 = vpow.pop %v745
      %v747 = vmul.f32 %v690, 1.442695
      %v748 = vpow.pop %v747
      %v749 = vmul.f32 %v691, 1.442695
      %v750 = vpow.pop %v749
      %v751 = vmul.f32 %v692, 1.442695
      %v752 = vpow.pop %v751
      %v753 = vmul.f32 %v693, 1.442695
      %v754 = vpow.pop %v753
      %v755 = vmul.f32 %v694, 1.442695
      %v756 = vpow.pop %v755
      %v757 = vmul.f32 %v695, 1.442695
      %v758 = vpow.pop %v757
      %v759 = vmul.f32 %v696, 1.442695
      %v760 = vpow.pop %v759
      %v761 = vadd.f32 %v698, 1.0
      %v762 = vadd.f32 %v700, 1.0
      %v763 = vadd.f32 %v702, 1.0
      %v764 = vadd.f32 %v704, 1.0
      %v765 = vadd.f32 %v706, 1.0
      %v766 = vadd.f32 %v708, 1.0
      %v767 = vadd.f32 %v710, 1.0
      %v768 = vadd.f32 %v712, 1.0
      %v769 = vadd.f32 %v714, 1.0
      %v770 = vadd.f32 %v716, 1.0
      %v771 = vadd.f32 %v718, 1.0
      %v772 = vadd.f32 %v720, 1.0
      %v773 = vadd.f32 %v722, 1.0
      %v774 = vadd.f32 %v724, 1.0
      %v775 = vadd.f32 %v726, 1.0
      %v776 = vadd.f32 %v728, 1.0
      %v777 = vadd.f32 %v730, 1.0
      %v778 = vadd.f32 %v732, 1.0
      %v779 = vadd.f32 %v734, 1.0
      %v780 = vadd.f32 %v736, 1.0
      %v781 = vadd.f32 %v738, 1.0
      %v782 = vadd.f32 %v740, 1.0
      %v783 = vadd.f32 %v742, 1.0
      %v784 = vadd.f32 %v744, 1.0
      %v785 = vadd.f32 %v746, 1.0
      %v786 = vadd.f32 %v748, 1.0
      %v787 = vadd.f32 %v750, 1.0
      %v788 = vadd.f32 %v752, 1.0
      %v789 = vadd.f32 %v754, 1.0
      %v790 = vadd.f32 %v756, 1.0
      %v791 = vadd.f32 %v758, 1.0
      %v792 = vadd.f32 %v760, 1.0
      %v793 = vrcp.pop %v761
      %v794 = vrcp.pop %v762
      %v795 = vrcp.pop %v763
      %v796 = vrcp.pop %v764
      %v797 = vrcp.pop %v765
      %v798 = vrcp.pop %v766
      %v799 = vrcp.pop %v767
      %v800 = vrcp.pop %v768
      %v801 = vrcp.pop %v769
      %v802 = vrcp.pop %v770
      %v803 = vrcp.pop %v771
      %v804 = vrcp.pop %v772
      %v805 = vrcp.pop %v773
      %v806 = vrcp.pop %v774
      %v807 = vrcp.pop %v775
      %v808 = vrcp.pop %v776
      %v809 = vrcp.pop %v777
      %v810 = vrcp.pop %v778
      %v811 = vrcp.pop %v779
      %v812 = vrcp.pop %v780
      %v813 = vrcp.pop %v781
      %v814 = vrcp.pop %v782
      %v815 = vrcp.pop %v783
      %v816 = vrcp.pop %v784
      %v817 = vrcp.pop %v785
      %v818 = vrcp.pop %v786
      %v819 = vrcp.pop %v787
      %v820 = vrcp.pop %v788
      %v821 = vrcp.pop %v789
      %v822 = vrcp.pop %v790
      %v823 = vrcp.pop %v791
      %v824 = vrcp.pop %v792
      %v825 = vmul.f32 %v539, %v793
      %v826 = vmul.f32 %v542, %v794
      %v827 = vmul.f32 %v547, %v795
      %v828 = vmul.f32 %v550, %v796
      %v829 = vmul.f32 %v555, %v797
      %v830 = vmul.f32 %v558, %v798
      %v831 = vmul.f32 %v563, %v799
      %v832 = vmul.f32 %v566, %v800
      %v833 = vmul.f32 %v571, %v801
      %v834 = vmul.f32 %v574, %v802
      %v835 = vmul.f32 %v579, %v803
      %v836 = vmul.f32 %v582, %v804
      %v837 = vmul.f32 %v587, %v805
      %v838 = vmul.f32 %v590, %v806
      %v839 = vmul.f32 %v595, %v807
      %v840 = vmul.f32 %v598, %v808
      %v841 = vmul.f32 %v603, %v809
      %v842 = vmul.f32 %v606, %v810
      %v843 = vmul.f32 %v611, %v811
      %v844 = vmul.f32 %v614, %v812
      %v845 = vmul.f32 %v619, %v813
      %v846 = vmul.f32 %v622, %v814
      %v847 = vmul.f32 %v627, %v815
      %v848 = vmul.f32 %v630, %v816
      %v849 = vmul.f32 %v635, %v817
      %v850 = vmul.f32 %v638, %v818
      %v851 = vmul.f32 %v643, %v819
      %v852 = vmul.f32 %v646, %v820
      %v853 = vmul.f32 %v651, %v821
      %v854 = vmul.f32 %v654, %v822
      %v855 = vmul.f32 %v659, %v823
      %v856 = vmul.f32 %v662, %v824
      %v857 = vpack.c.bf16 %v826, %v825
      %v858 = vpack.c.bf16 %v828, %v827
      %v859 = vpack.c.bf16 %v830, %v829
      %v860 = vpack.c.bf16 %v832, %v831
      %v861 = vpack.c.bf16 %v834, %v833
      %v862 = vpack.c.bf16 %v836, %v835
      %v863 = vpack.c.bf16 %v838, %v837
      %v864 = vpack.c.bf16 %v840, %v839
      %v865 = vpack.c.bf16 %v842, %v841
      %v866 = vpack.c.bf16 %v844, %v843
      %v867 = vpack.c.bf16 %v846, %v845
      %v868 = vpack.c.bf16 %v848, %v847
      %v869 = vpack.c.bf16 %v850, %v849
      %v870 = vpack.c.bf16 %v852, %v851
      %v871 = vpack.c.bf16 %v854, %v853
      %v872 = vpack.c.bf16 %v856, %v855
      %v873 = vld [vmem:[%s3] sm:$0xff]
      %v874 = vld [vmem:[%s3 + $0x8] sm:$0xff]
      %v875 = vld [vmem:[%s3 + $0x10] sm:$0xff]
      %v876 = vld [vmem:[%s3 + $0x18] sm:$0xff]
      %v877 = vld [vmem:[%s3 + $0x20] sm:$0xff]
      %v878 = vld [vmem:[%s3 + $0x28] sm:$0xff]
      %v879 = vld [vmem:[%s3 + $0x30] sm:$0xff]
      %v880 = vld [vmem:[%s3 + $0x38] sm:$0xff]
      %v881 = vld [vmem:[%s3 + $0x40] sm:$0xff]
      %v882 = vld [vmem:[%s3 + $0x48] sm:$0xff]
      %v883 = vld [vmem:[%s3 + $0x50] sm:$0xff]
      %v884 = vld [vmem:[%s3 + $0x58] sm:$0xff]
      %v885 = vld [vmem:[%s3 + $0x60] sm:$0xff]
      %v886 = vld [vmem:[%s3 + $0x68] sm:$0xff]
      %v887 = vld [vmem:[%s3 + $0x70] sm:$0xff]
      %v888 = vld [vmem:[%s3 + $0x78] sm:$0xff]
      %v889 = vld [vmem:[%s3 + $0x80] sm:$0xff]
      %v890 = vld [vmem:[%s3 + $0x88] sm:$0xff]
      %v891 = vld [vmem:[%s3 + $0x90] sm:$0xff]
      %v892 = vld [vmem:[%s3 + $0x98] sm:$0xff]
      %v893 = vld [vmem:[%s4] sm:$0xff]
      %v894 = vld [vmem:[%s4 + $0x8] sm:$0x3]
      %v897 = vlaneseq
      %v898 = vshrl.u32 %v897, 7
      %v899 = vsub.s32 0, %v898
      %v900 = vrot.slane %v893, %v899
      %v901 = vlaneseq
      %v902 = vshrl.u32 %v901, 7
      %v903 = vsub.s32 1, %v902
      %v904 = vrot.slane %v893, %v903
      %v905 = vlaneseq
      %v906 = vshrl.u32 %v905, 7
      %v907 = vsub.s32 2, %v906
      %v908 = vrot.slane %v893, %v907
      %v909 = vlaneseq
      %v910 = vshrl.u32 %v909, 7
      %v911 = vsub.s32 3, %v910
      %v912 = vrot.slane %v893, %v911
      %v913 = vlaneseq
      %v914 = vshrl.u32 %v913, 7
      %v915 = vsub.s32 4, %v914
      %v916 = vrot.slane %v893, %v915
      %v917 = vlaneseq
      %v918 = vshrl.u32 %v917, 7
      %v919 = vsub.s32 5, %v918
      %v920 = vrot.slane %v893, %v919
      %v921 = vlaneseq
      %v922 = vshrl.u32 %v921, 7
      %v923 = vsub.s32 6, %v922
      %v924 = vrot.slane %v893, %v923
      %v925 = vlaneseq
      %v926 = vshrl.u32 %v925, 7
      %v927 = vsub.s32 7, %v926
      %v928 = vrot.slane %v893, %v927
      %v929 = vlaneseq
      %v930 = vshrl.u32 %v929, 7
      %v931 = vsub.s32 0, %v930
      %v932 = vrot.slane %v894, %v931
      %v933 = vlaneseq
      %v934 = vshrl.u32 %v933, 7
      %v935 = vsub.s32 1, %v934
      %v936 = vrot.slane %v894, %v935
      %v967 = vunpack.c.l.b16 %v873
      %v968 = vunpack.c.h.b16 %v873
      %v969 = vunpack.c.l.b16 %v874
      %v970 = vunpack.c.h.b16 %v874
      %v971 = vunpack.c.l.b16 %v875
      %v972 = vunpack.c.h.b16 %v875
      %v973 = vunpack.c.l.b16 %v876
      %v974 = vunpack.c.h.b16 %v876
      %v975 = vunpack.c.l.b16 %v877
      %v976 = vunpack.c.h.b16 %v877
      %v977 = vunpack.c.l.b16 %v878
      %v978 = vunpack.c.h.b16 %v878
      %v979 = vunpack.c.l.b16 %v879
      %v980 = vunpack.c.h.b16 %v879
      %v981 = vunpack.c.l.b16 %v880
      %v982 = vunpack.c.h.b16 %v880
      %v983 = vunpack.c.l.b16 %v881
      %v984 = vunpack.c.h.b16 %v881
      %v985 = vunpack.c.l.b16 %v882
      %v986 = vunpack.c.h.b16 %v882
      %v987 = vunpack.c.l.b16 %v883
      %v988 = vunpack.c.h.b16 %v883
      %v989 = vunpack.c.l.b16 %v884
      %v990 = vunpack.c.h.b16 %v884
      %v991 = vunpack.c.l.b16 %v885
      %v992 = vunpack.c.h.b16 %v885
      %v993 = vunpack.c.l.b16 %v886
      %v994 = vunpack.c.h.b16 %v886
      %v995 = vunpack.c.l.b16 %v887
      %v996 = vunpack.c.h.b16 %v887
      %v997 = vunpack.c.l.b16 %v888
      %v998 = vunpack.c.h.b16 %v888
      %v999 = vunpack.c.l.b16 %v889
      %v1000 = vunpack.c.h.b16 %v889
      %v1001 = vunpack.c.l.b16 %v890
      %v1002 = vunpack.c.h.b16 %v890
      %v1003 = vunpack.c.l.b16 %v891
      %v1004 = vunpack.c.h.b16 %v891
      %v1005 = vunpack.c.l.b16 %v892
      %v1006 = vunpack.c.h.b16 %v892
      %v1007 = vpack.c.b16 %v977, %v967
      %v1008 = vpack.c.b16 %v978, %v968
      %v1009 = vpack.c.b16 %v979, %v969
      %v1010 = vpack.c.b16 %v980, %v970
      %v1011 = vpack.c.b16 %v981, %v971
      %v1012 = vpack.c.b16 %v982, %v972
      %v1013 = vpack.c.b16 %v983, %v973
      %v1014 = vpack.c.b16 %v984, %v974
      %v1015 = vpack.c.b16 %v985, %v975
      %v1016 = vpack.c.b16 %v986, %v976
      %v1017 = vpack.c.b16 %v997, %v987
      %v1018 = vpack.c.b16 %v998, %v988
      %v1019 = vpack.c.b16 %v999, %v989
      %v1020 = vpack.c.b16 %v1000, %v990
      %v1021 = vpack.c.b16 %v1001, %v991
      %v1022 = vpack.c.b16 %v1002, %v992
      %v1023 = vpack.c.b16 %v1003, %v993
      %v1024 = vpack.c.b16 %v1004, %v994
      %v1025 = vpack.c.b16 %v1005, %v995
      %v1026 = vpack.c.b16 %v1006, %v996
      %vm1047 = vcmask 261120
      %v1049 = vsel %vm1047, %v857, 0
      %v1052 = vsel %vm1047, %v858, 0
      %v1055 = vsel %vm1047, %v859, 0
      %v1058 = vsel %vm1047, %v860, 0
      %v1061 = vsel %vm1047, %v861, 0
      %v1064 = vsel %vm1047, %v862, 0
      %v1067 = vsel %vm1047, %v863, 0
      %v1070 = vsel %vm1047, %v864, 0
      %v1073 = vsel %vm1047, %v865, 0
      %v1076 = vsel %vm1047, %v866, 0
      %v1079 = vsel %vm1047, %v867, 0
      %v1082 = vsel %vm1047, %v868, 0
      %v1085 = vsel %vm1047, %v869, 0
      %v1088 = vsel %vm1047, %v870, 0
      %v1091 = vsel %vm1047, %v871, 0
      %v1094 = vsel %vm1047, %v872, 0
      %1096 = vmatprep.subr.bf16.mxu0 %v1008
      %1097 = vmatpush1.bf16.msra.mxu0 %v1007
      %1098 = vmatprep.subr.bf16.mxu0 %v1018
      %1099 = vmatpush1.bf16.msra.mxu0 %v1017
      %1100 = vmatprep.subr.bf16.mxu0 0
      %1101 = vmatpush1.bf16.msra.mxu0 0
      %1102 = vmatprep.subr.bf16.mxu0 0
      %1103 = vmatpush1.bf16.msra.mxu0 0
      %1104 = vmatprep.subr.bf16.mxu0 0
      %1105 = vmatpush1.bf16.msra.mxu0 0
      %1106 = vmatprep.subr.bf16.mxu0 0
      %1107 = vmatpush1.bf16.msra.mxu0 0
      %1108 = vmatprep.subr.bf16.mxu0 0
      %1109 = vmatpush1.bf16.msra.mxu0 0
      %1110 = vmatprep.subr.bf16.mxu0 0
      %1111 = vmatpush1.bf16.msra.mxu0 0
      %1112 = vmatprep.subr.bf16.mxu0 0
      %1113 = vmatpush1.bf16.msra.mxu0 0
      %1114 = vmatprep.subr.bf16.mxu0 0
      %1115 = vmatpush1.bf16.msra.mxu0 0
      %1116 = vmatprep.subr.bf16.mxu0 0
      %1117 = vmatpush1.bf16.msra.mxu0 0
      %1118 = vmatprep.subr.bf16.mxu0 0
      %1119 = vmatpush1.bf16.msra.mxu0 0
      %1120 = vmatprep.subr.bf16.mxu0 0
      %1121 = vmatpush1.bf16.msra.mxu0 0
      %1122 = vmatprep.subr.bf16.mxu0 0
      %1123 = vmatpush1.bf16.msra.mxu0 0
      %1124 = vmatprep.subr.bf16.mxu0 0
      %1125 = vmatpush1.bf16.msra.mxu0 0
      %1126 = vmatprep.subr.bf16.mxu0 0
      %1127 = vmatpush1.bf16.msra.mxu0 0
      %1128 = vmatprep.mubr.bf16.mxu0 0
      %1129 = vmatmul.mubr.bf16.gmra.mrb[0].mxu0 %v1049
      %v1130 = vpop.f32.mrb[0].mxu0
      %v1131 = vadd.f32 %v900, %v1130
      %v1132 = vpop.f32.mrb[0].mxu0
      %v1133 = vadd.f32 %v904, %v1132
      %v1134 = vpop.f32.mrb[0].mxu0
      %v1135 = vadd.f32 %v900, %v1134
      %v1136 = vpop.f32.mrb[0].mxu0
      %v1137 = vadd.f32 %v904, %v1136
      %1138 = vmatprep.mubr.bf16.mxu0 0
      %1139 = vmatmul.mubr.bf16.gmra.mrb[0].mxu0 %v1052
      %v1140 = vpop.f32.mrb[0].mxu0
      %v1141 = vadd.f32 %v900, %v1140
      %v1142 = vpop.f32.mrb[0].mxu0
      %v1143 = vadd.f32 %v904, %v1142
      %v1144 = vpop.f32.mrb[0].mxu0
      %v1145 = vadd.f32 %v900, %v1144
      %v1146 = vpop.f32.mrb[0].mxu0
      %v1147 = vadd.f32 %v904, %v1146
      %1148 = vmatprep.mubr.bf16.mxu0 0
      %1149 = vmatmul.mubr.bf16.gmra.mrb[0].mxu0 %v1055
      %v1150 = vpop.f32.mrb[0].mxu0
      %v1151 = vadd.f32 %v900, %v1150
      %v1152 = vpop.f32.mrb[0].mxu0
      %v1153 = vadd.f32 %v904, %v1152
      %v1154 = vpop.f32.mrb[0].mxu0
      %v1155 = vadd.f32 %v900, %v1154
      %v1156 = vpop.f32.mrb[0].mxu0
      %v1157 = vadd.f32 %v904, %v1156
      %1158 = vmatprep.mubr.bf16.mxu0 0
      %1159 = vmatmul.mubr.bf16.gmra.mrb[0].mxu0 %v1058
      %v1160 = vpop.f32.mrb[0].mxu0
      %v1161 = vadd.f32 %v900, %v1160
      %v1162 = vpop.f32.mrb[0].mxu0
      %v1163 = vadd.f32 %v904, %v1162
      %v1164 = vpop.f32.mrb[0].mxu0
      %v1165 = vadd.f32 %v900, %v1164
      %v1166 = vpop.f32.mrb[0].mxu0
      %v1167 = vadd.f32 %v904, %v1166
      %1168 = vmatprep.mubr.bf16.mxu0 0
      %1169 = vmatmul.mubr.bf16.gmra.mrb[0].mxu0 %v1061
      %v1170 = vpop.f32.mrb[0].mxu0
      %v1171 = vadd.f32 %v900, %v1170
      %v1172 = vpop.f32.mrb[0].mxu0
      %v1173 = vadd.f32 %v904, %v1172
      %v1174 = vpop.f32.mrb[0].mxu0
      %v1175 = vadd.f32 %v900, %v1174
      %v1176 = vpop.f32.mrb[0].mxu0
      %v1177 = vadd.f32 %v904, %v1176
      %1178 = vmatprep.mubr.bf16.mxu0 0
      %1179 = vmatmul.mubr.bf16.gmra.mrb[0].mxu0 %v1064
      %v1180 = vpop.f32.mrb[0].mxu0
      %v1181 = vadd.f32 %v900, %v1180
      %v1182 = vpop.f32.mrb[0].mxu0
      %v1183 = vadd.f32 %v904, %v1182
      %v1184 = vpop.f32.mrb[0].mxu0
      %v1185 = vadd.f32 %v900, %v1184
      %v1186 = vpop.f32.mrb[0].mxu0
      %v1187 = vadd.f32 %v904, %v1186
      %1188 = vmatprep.mubr.bf16.mxu0 0
      %1189 = vmatmul.mubr.bf16.gmra.mrb[0].mxu0 %v1067
      %v1190 = vpop.f32.mrb[0].mxu0
      %v1191 = vadd.f32 %v900, %v1190
      %v1192 = vpop.f32.mrb[0].mxu0
      %v1193 = vadd.f32 %v904, %v1192
      %v1194 = vpop.f32.mrb[0].mxu0
      %v1195 = vadd.f32 %v900, %v1194
      %v1196 = vpop.f32.mrb[0].mxu0
      %v1197 = vadd.f32 %v904, %v1196
      %1198 = vmatprep.mubr.bf16.mxu0 0
      %1199 = vmatmul.mubr.bf16.gmra.mrb[0].mxu0 %v1070
      %v1200 = vpop.f32.mrb[0].mxu0
      %v1201 = vadd.f32 %v900, %v1200
      %v1202 = vpop.f32.mrb[0].mxu0
      %v1203 = vadd.f32 %v904, %v1202
      %v1204 = vpop.f32.mrb[0].mxu0
      %v1205 = vadd.f32 %v900, %v1204
      %v1206 = vpop.f32.mrb[0].mxu0
      %v1207 = vadd.f32 %v904, %v1206
      %1208 = vmatprep.mubr.bf16.mxu0 0
      %1209 = vmatmul.mubr.bf16.gmra.mrb[0].mxu0 %v1073
      %v1210 = vpop.f32.mrb[0].mxu0
      %v1211 = vadd.f32 %v900, %v1210
      %v1212 = vpop.f32.mrb[0].mxu0
      %v1213 = vadd.f32 %v904, %v1212
      %v1214 = vpop.f32.mrb[0].mxu0
      %v1215 = vadd.f32 %v900, %v1214
      %v1216 = vpop.f32.mrb[0].mxu0
      %v1217 = vadd.f32 %v904, %v1216
      %1218 = vmatprep.mubr.bf16.mxu0 0
      %1219 = vmatmul.mubr.bf16.gmra.mrb[0].mxu0 %v1076
      %v1220 = vpop.f32.mrb[0].mxu0
      %v1221 = vadd.f32 %v900, %v1220
      %v1222 = vpop.f32.mrb[0].mxu0
      %v1223 = vadd.f32 %v904, %v1222
      %v1224 = vpop.f32.mrb[0].mxu0
      %v1225 = vadd.f32 %v900, %v1224
      %v1226 = vpop.f32.mrb[0].mxu0
      %v1227 = vadd.f32 %v904, %v1226
      %1228 = vmatprep.mubr.bf16.mxu0 0
      %1229 = vmatmul.mubr.bf16.gmra.mrb[0].mxu0 %v1079
      %v1230 = vpop.f32.mrb[0].mxu0
      %v1231 = vadd.f32 %v900, %v1230
      %v1232 = vpop.f32.mrb[0].mxu0
      %v1233 = vadd.f32 %v904, %v1232
      %v1234 = vpop.f32.mrb[0].mxu0
      %v1235 = vadd.f32 %v900, %v1234
      %v1236 = vpop.f32.mrb[0].mxu0
      %v1237 = vadd.f32 %v904, %v1236
      %1238 = vmatprep.mubr.bf16.mxu0 0
      %1239 = vmatmul.mubr.bf16.gmra.mrb[0].mxu0 %v1082
      %v1240 = vpop.f32.mrb[0].mxu0
      %v1241 = vadd.f32 %v900, %v1240
      %v1242 = vpop.f32.mrb[0].mxu0
      %v1243 = vadd.f32 %v904, %v1242
      %v1244 = vpop.f32.mrb[0].mxu0
      %v1245 = vadd.f32 %v900, %v1244
      %v1246 = vpop.f32.mrb[0].mxu0
      %v1247 = vadd.f32 %v904, %v1246
      %1248 = vmatprep.mubr.bf16.mxu0 0
      %1249 = vmatmul.mubr.bf16.gmra.mrb[0].mxu0 %v1085
      %v1250 = vpop.f32.mrb[0].mxu0
      %v1251 = vadd.f32 %v900, %v1250
      %v1252 = vpop.f32.mrb[0].mxu0
      %v1253 = vadd.f32 %v904, %v1252
      %v1254 = vpop.f32.mrb[0].mxu0
      %v1255 = vadd.f32 %v900, %v1254
      %v1256 = vpop.f32.mrb[0].mxu0
      %v1257 = vadd.f32 %v904, %v1256
      %1258 = vmatprep.mubr.bf16.mxu0 0
      %1259 = vmatmul.mubr.bf16.gmra.mrb[0].mxu0 %v1088
      %v1260 = vpop.f32.mrb[0].mxu0
      %v1261 = vadd.f32 %v900, %v1260
      %v1262 = vpop.f32.mrb[0].mxu0
      %v1263 = vadd.f32 %v904, %v1262
      %v1264 = vpop.f32.mrb[0].mxu0
      %v1265 = vadd.f32 %v900, %v1264
      %v1266 = vpop.f32.mrb[0].mxu0
      %v1267 = vadd.f32 %v904, %v1266
      %1268 = vmatprep.mubr.bf16.mxu0 0
      %1269 = vmatmul.mubr.bf16.gmra.mrb[0].mxu0 %v1091
      %v1270 = vpop.f32.mrb[0].mxu0
      %v1271 = vadd.f32 %v900, %v1270
      %v1272 = vpop.f32.mrb[0].mxu0
      %v1273 = vadd.f32 %v904, %v1272
      %v1274 = vpop.f32.mrb[0].mxu0
      %v1275 = vadd.f32 %v900, %v1274
      %v1276 = vpop.f32.mrb[0].mxu0
      %v1277 = vadd.f32 %v904, %v1276
      %1278 = vmatprep.mubr.bf16.mxu0 0
      %1279 = vmatmul.mubr.bf16.gmra.mrb[0].mxu0 %v1094
      %v1280 = vpop.f32.mrb[0].mxu0
      %v1281 = vadd.f32 %v900, %v1280
      %v1282 = vpop.f32.mrb[0].mxu0
      %v1283 = vadd.f32 %v904, %v1282
      %v1284 = vpop.f32.mrb[0].mxu0
      %v1285 = vadd.f32 %v900, %v1284
      %v1286 = vpop.f32.mrb[0].mxu0
      %v1287 = vadd.f32 %v904, %v1286
      %1288 = vdwg.mxu0
      %1289 = vmatprep.subr.bf16.mxu0 %v1010
      %1290 = vmatpush1.bf16.msra.mxu0 %v1009
      %1291 = vmatprep.subr.bf16.mxu0 %v1020
      %1292 = vmatpush1.bf16.msra.mxu0 %v1019
      %1293 = vmatprep.subr.bf16.mxu0 0
      %1294 = vmatpush1.bf16.msra.mxu0 0
      %1295 = vmatprep.subr.bf16.mxu0 0
      %1296 = vmatpush1.bf16.msra.mxu0 0
      %1297 = vmatprep.subr.bf16.mxu0 0
      %1298 = vmatpush1.bf16.msra.mxu0 0
      %1299 = vmatprep.subr.bf16.mxu0 0
      %1300 = vmatpush1.bf16.msra.mxu0 0
      %1301 = vmatprep.subr.bf16.mxu0 0
      %1302 = vmatpush1.bf16.msra.mxu0 0
      %1303 = vmatprep.subr.bf16.mxu0 0
      %1304 = vmatpush1.bf16.msra.mxu0 0
      %1305 = vmatprep.subr.bf16.mxu0 0
      %1306 = vmatpush1.bf16.msra.mxu0 0
      %1307 = vmatprep.subr.bf16.mxu0 0
      %1308 = vmatpush1.bf16.msra.mxu0 0
      %1309 = vmatprep.subr.bf16.mxu0 0
      %1310 = vmatpush1.bf16.msra.mxu0 0
      %1311 = vmatprep.subr.bf16.mxu0 0
      %1312 = vmatpush1.bf16.msra.mxu0 0
      %1313 = vmatprep.subr.bf16.mxu0 0
      %1314 = vmatpush1.bf16.msra.mxu0 0
      %1315 = vmatprep.subr.bf16.mxu0 0
      %1316 = vmatpush1.bf16.msra.mxu0 0
      %1317 = vmatprep.subr.bf16.mxu0 0
      %1318 = vmatpush1.bf16.msra.mxu0 0
      %1319 = vmatprep.subr.bf16.mxu0 0
      %1320 = vmatpush1.bf16.msra.mxu0 0
      %1321 = vmatprep.mubr.bf16.mxu0 0
      %1322 = vmatmul.mubr.bf16.gmra.mrb[0].mxu0 %v1049
      %v1323 = vpop.f32.mrb[0].mxu0
      %v1324 = vadd.f32 %v908, %v1323
      %v1325 = vpop.f32.mrb[0].mxu0
      %v1326 = vadd.f32 %v912, %v1325
      %v1327 = vpop.f32.mrb[0].mxu0
      %v1328 = vadd.f32 %v908, %v1327
      %v1329 = vpop.f32.mrb[0].mxu0
      %v1330 = vadd.f32 %v912, %v1329
      %1331 = vmatprep.mubr.bf16.mxu0 0
      %1332 = vmatmul.mubr.bf16.gmra.mrb[0].mxu0 %v1052
      %v1333 = vpop.f32.mrb[0].mxu0
      %v1334 = vadd.f32 %v908, %v1333
      %v1335 = vpop.f32.mrb[0].mxu0
      %v1336 = vadd.f32 %v912, %v1335
      %v1337 = vpop.f32.mrb[0].mxu0
      %v1338 = vadd.f32 %v908, %v1337
      %v1339 = vpop.f32.mrb[0].mxu0
      %v1340 = vadd.f32 %v912, %v1339
      %1341 = vmatprep.mubr.bf16.mxu0 0
      %1342 = vmatmul.mubr.bf16.gmra.mrb[0].mxu0 %v1055
      %v1343 = vpop.f32.mrb[0].mxu0
      %v1344 = vadd.f32 %v908, %v1343
      %v1345 = vpop.f32.mrb[0].mxu0
      %v1346 = vadd.f32 %v912, %v1345
      %v1347 = vpop.f32.mrb[0].mxu0
      %v1348 = vadd.f32 %v908, %v1347
      %v1349 = vpop.f32.mrb[0].mxu0
      %v1350 = vadd.f32 %v912, %v1349
      %1351 = vmatprep.mubr.bf16.mxu0 0
      %1352 = vmatmul.mubr.bf16.gmra.mrb[0].mxu0 %v1058
      %v1353 = vpop.f32.mrb[0].mxu0
      %v1354 = vadd.f32 %v908, %v1353
      %v1355 = vpop.f32.mrb[0].mxu0
      %v1356 = vadd.f32 %v912, %v1355
      %v1357 = vpop.f32.mrb[0].mxu0
      %v1358 = vadd.f32 %v908, %v1357
      %v1359 = vpop.f32.mrb[0].mxu0
      %v1360 = vadd.f32 %v912, %v1359
      %1361 = vmatprep.mubr.bf16.mxu0 0
      %1362 = vmatmul.mubr.bf16.gmra.mrb[0].mxu0 %v1061
      %v1363 = vpop.f32.mrb[0].mxu0
      %v1364 = vadd.f32 %v908, %v1363
      %v1365 = vpop.f32.mrb[0].mxu0
      %v1366 = vadd.f32 %v912, %v1365
      %v1367 = vpop.f32.mrb[0].mxu0
      %v1368 = vadd.f32 %v908, %v1367
      %v1369 = vpop.f32.mrb[0].mxu0
      %v1370 = vadd.f32 %v912, %v1369
      %1371 = vmatprep.mubr.bf16.mxu0 0
      %1372 = vmatmul.mubr.bf16.gmra.mrb[0].mxu0 %v1064
      %v1373 = vpop.f32.mrb[0].mxu0
      %v1374 = vadd.f32 %v908, %v1373
      %v1375 = vpop.f32.mrb[0].mxu0
      %v1376 = vadd.f32 %v912, %v1375
      %v1377 = vpop.f32.mrb[0].mxu0
      %v1378 = vadd.f32 %v908, %v1377
      %v1379 = vpop.f32.mrb[0].mxu0
      %v1380 = vadd.f32 %v912, %v1379
      %1381 = vmatprep.mubr.bf16.mxu0 0
      %1382 = vmatmul.mubr.bf16.gmra.mrb[0].mxu0 %v1067
      %v1383 = vpop.f32.mrb[0].mxu0
      %v1384 = vadd.f32 %v908, %v1383
      %v1385 = vpop.f32.mrb[0].mxu0
      %v1386 = vadd.f32 %v912, %v1385
      %v1387 = vpop.f32.mrb[0].mxu0
      %v1388 = vadd.f32 %v908, %v1387
      %v1389 = vpop.f32.mrb[0].mxu0
      %v1390 = vadd.f32 %v912, %v1389
      %1391 = vmatprep.mubr.bf16.mxu0 0
      %1392 = vmatmul.mubr.bf16.gmra.mrb[0].mxu0 %v1070
      %v1393 = vpop.f32.mrb[0].mxu0
      %v1394 = vadd.f32 %v908, %v1393
      %v1395 = vpop.f32.mrb[0].mxu0
      %v1396 = vadd.f32 %v912, %v1395
      %v1397 = vpop.f32.mrb[0].mxu0
      %v1398 = vadd.f32 %v908, %v1397
      %v1399 = vpop.f32.mrb[0].mxu0
      %v1400 = vadd.f32 %v912, %v1399
      %1401 = vmatprep.mubr.bf16.mxu0 0
      %1402 = vmatmul.mubr.bf16.gmra.mrb[0].mxu0 %v1073
      %v1403 = vpop.f32.mrb[0].mxu0
      %v1404 = vadd.f32 %v908, %v1403
      %v1405 = vpop.f32.mrb[0].mxu0
      %v1406 = vadd.f32 %v912, %v1405
      %v1407 = vpop.f32.mrb[0].mxu0
      %v1408 = vadd.f32 %v908, %v1407
      %v1409 = vpop.f32.mrb[0].mxu0
      %v1410 = vadd.f32 %v912, %v1409
      %1411 = vmatprep.mubr.bf16.mxu0 0
      %1412 = vmatmul.mubr.bf16.gmra.mrb[0].mxu0 %v1076
      %v1413 = vpop.f32.mrb[0].mxu0
      %v1414 = vadd.f32 %v908, %v1413
      %v1415 = vpop.f32.mrb[0].mxu0
      %v1416 = vadd.f32 %v912, %v1415
      %v1417 = vpop.f32.mrb[0].mxu0
      %v1418 = vadd.f32 %v908, %v1417
      %v1419 = vpop.f32.mrb[0].mxu0
      %v1420 = vadd.f32 %v912, %v1419
      %1421 = vmatprep.mubr.bf16.mxu0 0
      %1422 = vmatmul.mubr.bf16.gmra.mrb[0].mxu0 %v1079
      %v1423 = vpop.f32.mrb[0].mxu0
      %v1424 = vadd.f32 %v908, %v1423
      %v1425 = vpop.f32.mrb[0].mxu0
      %v1426 = vadd.f32 %v912, %v1425
      %v1427 = vpop.f32.mrb[0].mxu0
      %v1428 = vadd.f32 %v908, %v1427
      %v1429 = vpop.f32.mrb[0].mxu0
      %v1430 = vadd.f32 %v912, %v1429
      %1431 = vmatprep.mubr.bf16.mxu0 0
      %1432 = vmatmul.mubr.bf16.gmra.mrb[0].mxu0 %v1082
      %v1433 = vpop.f32.mrb[0].mxu0
      %v1434 = vadd.f32 %v908, %v1433
      %v1435 = vpop.f32.mrb[0].mxu0
      %v1436 = vadd.f32 %v912, %v1435
      %v1437 = vpop.f32.mrb[0].mxu0
      %v1438 = vadd.f32 %v908, %v1437
      %v1439 = vpop.f32.mrb[0].mxu0
      %v1440 = vadd.f32 %v912, %v1439
      %1441 = vmatprep.mubr.bf16.mxu0 0
      %1442 = vmatmul.mubr.bf16.gmra.mrb[0].mxu0 %v1085
      %v1443 = vpop.f32.mrb[0].mxu0
      %v1444 = vadd.f32 %v908, %v1443
      %v1445 = vpop.f32.mrb[0].mxu0
      %v1446 = vadd.f32 %v912, %v1445
      %v1447 = vpop.f32.mrb[0].mxu0
      %v1448 = vadd.f32 %v908, %v1447
      %v1449 = vpop.f32.mrb[0].mxu0
      %v1450 = vadd.f32 %v912, %v1449
      %1451 = vmatprep.mubr.bf16.mxu0 0
      %1452 = vmatmul.mubr.bf16.gmra.mrb[0].mxu0 %v1088
      %v1453 = vpop.f32.mrb[0].mxu0
      %v1454 = vadd.f32 %v908, %v1453
      %v1455 = vpop.f32.mrb[0].mxu0
      %v1456 = vadd.f32 %v912, %v1455
      %v1457 = vpop.f32.mrb[0].mxu0
      %v1458 = vadd.f32 %v908, %v1457
      %v1459 = vpop.f32.mrb[0].mxu0
      %v1460 = vadd.f32 %v912, %v1459
      %1461 = vmatprep.mubr.bf16.mxu0 0
      %1462 = vmatmul.mubr.bf16.gmra.mrb[0].mxu0 %v1091
      %v1463 = vpop.f32.mrb[0].mxu0
      %v1464 = vadd.f32 %v908, %v1463
      %v1465 = vpop.f32.mrb[0].mxu0
      %v1466 = vadd.f32 %v912, %v1465
      %v1467 = vpop.f32.mrb[0].mxu0
      %v1468 = vadd.f32 %v908, %v1467
      %v1469 = vpop.f32.mrb[0].mxu0
      %v1470 = vadd.f32 %v912, %v1469
      %1471 = vmatprep.mubr.bf16.mxu0 0
      %1472 = vmatmul.mubr.bf16.gmra.mrb[0].mxu0 %v1094
      %v1473 = vpop.f32.mrb[0].mxu0
      %v1474 = vadd.f32 %v908, %v1473
      %v1475 = vpop.f32.mrb[0].mxu0
      %v1476 = vadd.f32 %v912, %v1475
      %v1477 = vpop.f32.mrb[0].mxu0
      %v1478 = vadd.f32 %v908, %v1477
      %v1479 = vpop.f32.mrb[0].mxu0
      %v1480 = vadd.f32 %v912, %v1479
      %1481 = vdwg.mxu0
      %1482 = vmatprep.subr.bf16.mxu0 %v1012
      %1483 = vmatpush1.bf16.msra.mxu0 %v1011
      %1484 = vmatprep.subr.bf16.mxu0 %v1022
      %1485 = vmatpush1.bf16.msra.mxu0 %v1021
      %1486 = vmatprep.subr.bf16.mxu0 0
      %1487 = vmatpush1.bf16.msra.mxu0 0
      %1488 = vmatprep.subr.bf16.mxu0 0
      %1489 = vmatpush1.bf16.msra.mxu0 0
      %1490 = vmatprep.subr.bf16.mxu0 0
      %1491 = vmatpush1.bf16.msra.mxu0 0
      %1492 = vmatprep.subr.bf16.mxu0 0
      %1493 = vmatpush1.bf16.msra.mxu0 0
      %1494 = vmatprep.subr.bf16.mxu0 0
      %1495 = vmatpush1.bf16.msra.mxu0 0
      %1496 = vmatprep.subr.bf16.mxu0 0
      %1497 = vmatpush1.bf16.msra.mxu0 0
      %1498 = vmatprep.subr.bf16.mxu0 0
      %1499 = vmatpush1.bf16.msra.mxu0 0
      %1500 = vmatprep.subr.bf16.mxu0 0
      %1501 = vmatpush1.bf16.msra.mxu0 0
      %1502 = vmatprep.subr.bf16.mxu0 0
      %1503 = vmatpush1.bf16.msra.mxu0 0
      %1504 = vmatprep.subr.bf16.mxu0 0
      %1505 = vmatpush1.bf16.msra.mxu0 0
      %1506 = vmatprep.subr.bf16.mxu0 0
      %1507 = vmatpush1.bf16.msra.mxu0 0
      %1508 = vmatprep.subr.bf16.mxu0 0
      %1509 = vmatpush1.bf16.msra.mxu0 0
      %1510 = vmatprep.subr.bf16.mxu0 0
      %1511 = vmatpush1.bf16.msra.mxu0 0
      %1512 = vmatprep.subr.bf16.mxu0 0
      %1513 = vmatpush1.bf16.msra.mxu0 0
      %1514 = vmatprep.mubr.bf16.mxu0 0
      %1515 = vmatmul.mubr.bf16.gmra.mrb[0].mxu0 %v1049
      %v1516 = vpop.f32.mrb[0].mxu0
      %v1517 = vadd.f32 %v916, %v1516
      %v1518 = vpop.f32.mrb[0].mxu0
      %v1519 = vadd.f32 %v920, %v1518
      %v1520 = vpop.f32.mrb[0].mxu0
      %v1521 = vadd.f32 %v916, %v1520
      %v1522 = vpop.f32.mrb[0].mxu0
      %v1523 = vadd.f32 %v920, %v1522
      %1524 = vmatprep.mubr.bf16.mxu0 0
      %1525 = vmatmul.mubr.bf16.gmra.mrb[0].mxu0 %v1052
      %v1526 = vpop.f32.mrb[0].mxu0
      %v1527 = vadd.f32 %v916, %v1526
      %v1528 = vpop.f32.mrb[0].mxu0
      %v1529 = vadd.f32 %v920, %v1528
      %v1530 = vpop.f32.mrb[0].mxu0
      %v1531 = vadd.f32 %v916, %v1530
      %v1532 = vpop.f32.mrb[0].mxu0
      %v1533 = vadd.f32 %v920, %v1532
      %1534 = vmatprep.mubr.bf16.mxu0 0
      %1535 = vmatmul.mubr.bf16.gmra.mrb[0].mxu0 %v1055
      %v1536 = vpop.f32.mrb[0].mxu0
      %v1537 = vadd.f32 %v916, %v1536
      %v1538 = vpop.f32.mrb[0].mxu0
      %v1539 = vadd.f32 %v920, %v1538
      %v1540 = vpop.f32.mrb[0].mxu0
      %v1541 = vadd.f32 %v916, %v1540
      %v1542 = vpop.f32.mrb[0].mxu0
      %v1543 = vadd.f32 %v920, %v1542
      %1544 = vmatprep.mubr.bf16.mxu0 0
      %1545 = vmatmul.mubr.bf16.gmra.mrb[0].mxu0 %v1058
      %v1546 = vpop.f32.mrb[0].mxu0
      %v1547 = vadd.f32 %v916, %v1546
      %v1548 = vpop.f32.mrb[0].mxu0
      %v1549 = vadd.f32 %v920, %v1548
      %v1550 = vpop.f32.mrb[0].mxu0
      %v1551 = vadd.f32 %v916, %v1550
      %v1552 = vpop.f32.mrb[0].mxu0
      %v1553 = vadd.f32 %v920, %v1552
      %1554 = vmatprep.mubr.bf16.mxu0 0
      %1555 = vmatmul.mubr.bf16.gmra.mrb[0].mxu0 %v1061
      %v1556 = vpop.f32.mrb[0].mxu0
      %v1557 = vadd.f32 %v916, %v1556
      %v1558 = vpop.f32.mrb[0].mxu0
      %v1559 = vadd.f32 %v920, %v1558
      %v1560 = vpop.f32.mrb[0].mxu0
      %v1561 = vadd.f32 %v916, %v1560
      %v1562 = vpop.f32.mrb[0].mxu0
      %v1563 = vadd.f32 %v920, %v1562
      %1564 = vmatprep.mubr.bf16.mxu0 0
      %1565 = vmatmul.mubr.bf16.gmra.mrb[0].mxu0 %v1064
      %v1566 = vpop.f32.mrb[0].mxu0
      %v1567 = vadd.f32 %v916, %v1566
      %v1568 = vpop.f32.mrb[0].mxu0
      %v1569 = vadd.f32 %v920, %v1568
      %v1570 = vpop.f32.mrb[0].mxu0
      %v1571 = vadd.f32 %v916, %v1570
      %v1572 = vpop.f32.mrb[0].mxu0
      %v1573 = vadd.f32 %v920, %v1572
      %1574 = vmatprep.mubr.bf16.mxu0 0
      %1575 = vmatmul.mubr.bf16.gmra.mrb[0].mxu0 %v1067
      %v1576 = vpop.f32.mrb[0].mxu0
      %v1577 = vadd.f32 %v916, %v1576
      %v1578 = vpop.f32.mrb[0].mxu0
      %v1579 = vadd.f32 %v920, %v1578
      %v1580 = vpop.f32.mrb[0].mxu0
      %v1581 = vadd.f32 %v916, %v1580
      %v1582 = vpop.f32.mrb[0].mxu0
      %v1583 = vadd.f32 %v920, %v1582
      %1584 = vmatprep.mubr.bf16.mxu0 0
      %1585 = vmatmul.mubr.bf16.gmra.mrb[0].mxu0 %v1070
      %v1586 = vpop.f32.mrb[0].mxu0
      %v1587 = vadd.f32 %v916, %v1586
      %v1588 = vpop.f32.mrb[0].mxu0
      %v1589 = vadd.f32 %v920, %v1588
      %v1590 = vpop.f32.mrb[0].mxu0
      %v1591 = vadd.f32 %v916, %v1590
      %v1592 = vpop.f32.mrb[0].mxu0
      %v1593 = vadd.f32 %v920, %v1592
      %1594 = vmatprep.mubr.bf16.mxu0 0
      %1595 = vmatmul.mubr.bf16.gmra.mrb[0].mxu0 %v1073
      %v1596 = vpop.f32.mrb[0].mxu0
      %v1597 = vadd.f32 %v916, %v1596
      %v1598 = vpop.f32.mrb[0].mxu0
      %v1599 = vadd.f32 %v920, %v1598
      %v1600 = vpop.f32.mrb[0].mxu0
      %v1601 = vadd.f32 %v916, %v1600
      %v1602 = vpop.f32.mrb[0].mxu0
      %v1603 = vadd.f32 %v920, %v1602
      %1604 = vmatprep.mubr.bf16.mxu0 0
      %1605 = vmatmul.mubr.bf16.gmra.mrb[0].mxu0 %v1076
      %v1606 = vpop.f32.mrb[0].mxu0
      %v1607 = vadd.f32 %v916, %v1606
      %v1608 = vpop.f32.mrb[0].mxu0
      %v1609 = vadd.f32 %v920, %v1608
      %v1610 = vpop.f32.mrb[0].mxu0
      %v1611 = vadd.f32 %v916, %v1610
      %v1612 = vpop.f32.mrb[0].mxu0
      %v1613 = vadd.f32 %v920, %v1612
      %1614 = vmatprep.mubr.bf16.mxu0 0
      %1615 = vmatmul.mubr.bf16.gmra.mrb[0].mxu0 %v1079
      %v1616 = vpop.f32.mrb[0].mxu0
      %v1617 = vadd.f32 %v916, %v1616
      %v1618 = vpop.f32.mrb[0].mxu0
      %v1619 = vadd.f32 %v920, %v1618
      %v1620 = vpop.f32.mrb[0].mxu0
      %v1621 = vadd.f32 %v916, %v1620
      %v1622 = vpop.f32.mrb[0].mxu0
      %v1623 = vadd.f32 %v920, %v1622
      %1624 = vmatprep.mubr.bf16.mxu0 0
      %1625 = vmatmul.mubr.bf16.gmra.mrb[0].mxu0 %v1082
      %v1626 = vpop.f32.mrb[0].mxu0
      %v1627 = vadd.f32 %v916, %v1626
      %v1628 = vpop.f32.mrb[0].mxu0
      %v1629 = vadd.f32 %v920, %v1628
      %v1630 = vpop.f32.mrb[0].mxu0
      %v1631 = vadd.f32 %v916, %v1630
      %v1632 = vpop.f32.mrb[0].mxu0
      %v1633 = vadd.f32 %v920, %v1632
      %1634 = vmatprep.mubr.bf16.mxu0 0
      %1635 = vmatmul.mubr.bf16.gmra.mrb[0].mxu0 %v1085
      %v1636 = vpop.f32.mrb[0].mxu0
      %v1637 = vadd.f32 %v916, %v1636
      %v1638 = vpop.f32.mrb[0].mxu0
      %v1639 = vadd.f32 %v920, %v1638
      %v1640 = vpop.f32.mrb[0].mxu0
      %v1641 = vadd.f32 %v916, %v1640
      %v1642 = vpop.f32.mrb[0].mxu0
      %v1643 = vadd.f32 %v920, %v1642
      %1644 = vmatprep.mubr.bf16.mxu0 0
      %1645 = vmatmul.mubr.bf16.gmra.mrb[0].mxu0 %v1088
      %v1646 = vpop.f32.mrb[0].mxu0
      %v1647 = vadd.f32 %v916, %v1646
      %v1648 = vpop.f32.mrb[0].mxu0
      %v1649 = vadd.f32 %v920, %v1648
      %v1650 = vpop.f32.mrb[0].mxu0
      %v1651 = vadd.f32 %v916, %v1650
      %v1652 = vpop.f32.mrb[0].mxu0
      %v1653 = vadd.f32 %v920, %v1652
      %1654 = vmatprep.mubr.bf16.mxu0 0
      %1655 = vmatmul.mubr.bf16.gmra.mrb[0].mxu0 %v1091
      %v1656 = vpop.f32.mrb[0].mxu0
      %v1657 = vadd.f32 %v916, %v1656
      %v1658 = vpop.f32.mrb[0].mxu0
      %v1659 = vadd.f32 %v920, %v1658
      %v1660 = vpop.f32.mrb[0].mxu0
      %v1661 = vadd.f32 %v916, %v1660
      %v1662 = vpop.f32.mrb[0].mxu0
      %v1663 = vadd.f32 %v920, %v1662
      %1664 = vmatprep.mubr.bf16.mxu0 0
      %1665 = vmatmul.mubr.bf16.gmra.mrb[0].mxu0 %v1094
      %v1666 = vpop.f32.mrb[0].mxu0
      %v1667 = vadd.f32 %v916, %v1666
      %v1668 = vpop.f32.mrb[0].mxu0
      %v1669 = vadd.f32 %v920, %v1668
      %v1670 = vpop.f32.mrb[0].mxu0
      %v1671 = vadd.f32 %v916, %v1670
      %v1672 = vpop.f32.mrb[0].mxu0
      %v1673 = vadd.f32 %v920, %v1672
      %1674 = vdwg.mxu0
      %1675 = vmatprep.subr.bf16.mxu0 %v1014
      %1676 = vmatpush1.bf16.msra.mxu0 %v1013
      %1677 = vmatprep.subr.bf16.mxu0 %v1024
      %1678 = vmatpush1.bf16.msra.mxu0 %v1023
      %1679 = vmatprep.subr.bf16.mxu0 0
      %1680 = vmatpush1.bf16.msra.mxu0 0
      %1681 = vmatprep.subr.bf16.mxu0 0
      %1682 = vmatpush1.bf16.msra.mxu0 0
      %1683 = vmatprep.subr.bf16.mxu0 0
      %1684 = vmatpush1.bf16.msra.mxu0 0
      %1685 = vmatprep.subr.bf16.mxu0 0
      %1686 = vmatpush1.bf16.msra.mxu0 0
      %1687 = vmatprep.subr.bf16.mxu0 0
      %1688 = vmatpush1.bf16.msra.mxu0 0
      %1689 = vmatprep.subr.bf16.mxu0 0
      %1690 = vmatpush1.bf16.msra.mxu0 0
      %1691 = vmatprep.subr.bf16.mxu0 0
      %1692 = vmatpush1.bf16.msra.mxu0 0
      %1693 = vmatprep.subr.bf16.mxu0 0
      %1694 = vmatpush1.bf16.msra.mxu0 0
      %1695 = vmatprep.subr.bf16.mxu0 0
      %1696 = vmatpush1.bf16.msra.mxu0 0
      %1697 = vmatprep.subr.bf16.mxu0 0
      %1698 = vmatpush1.bf16.msra.mxu0 0
      %1699 = vmatprep.subr.bf16.mxu0 0
      %1700 = vmatpush1.bf16.msra.mxu0 0
      %1701 = vmatprep.subr.bf16.mxu0 0
      %1702 = vmatpush1.bf16.msra.mxu0 0
      %1703 = vmatprep.subr.bf16.mxu0 0
      %1704 = vmatpush1.bf16.msra.mxu0 0
      %1705 = vmatprep.subr.bf16.mxu0 0
      %1706 = vmatpush1.bf16.msra.mxu0 0
      %1707 = vmatprep.mubr.bf16.mxu0 0
      %1708 = vmatmul.mubr.bf16.gmra.mrb[0].mxu0 %v1049
      %v1709 = vpop.f32.mrb[0].mxu0
      %v1710 = vadd.f32 %v924, %v1709
      %v1711 = vpop.f32.mrb[0].mxu0
      %v1712 = vadd.f32 %v928, %v1711
      %v1713 = vpop.f32.mrb[0].mxu0
      %v1714 = vadd.f32 %v924, %v1713
      %v1715 = vpop.f32.mrb[0].mxu0
      %v1716 = vadd.f32 %v928, %v1715
      %1717 = vmatprep.mubr.bf16.mxu0 0
      %1718 = vmatmul.mubr.bf16.gmra.mrb[0].mxu0 %v1052
      %v1719 = vpop.f32.mrb[0].mxu0
      %v1720 = vadd.f32 %v924, %v1719
      %v1721 = vpop.f32.mrb[0].mxu0
      %v1722 = vadd.f32 %v928, %v1721
      %v1723 = vpop.f32.mrb[0].mxu0
      %v1724 = vadd.f32 %v924, %v1723
      %v1725 = vpop.f32.mrb[0].mxu0
      %v1726 = vadd.f32 %v928, %v1725
      %1727 = vmatprep.mubr.bf16.mxu0 0
      %1728 = vmatmul.mubr.bf16.gmra.mrb[0].mxu0 %v1055
      %v1729 = vpop.f32.mrb[0].mxu0
      %v1730 = vadd.f32 %v924, %v1729
      %v1731 = vpop.f32.mrb[0].mxu0
      %v1732 = vadd.f32 %v928, %v1731
      %v1733 = vpop.f32.mrb[0].mxu0
      %v1734 = vadd.f32 %v924, %v1733
      %v1735 = vpop.f32.mrb[0].mxu0
      %v1736 = vadd.f32 %v928, %v1735
      %1737 = vmatprep.mubr.bf16.mxu0 0
      %1738 = vmatmul.mubr.bf16.gmra.mrb[0].mxu0 %v1058
      %v1739 = vpop.f32.mrb[0].mxu0
      %v1740 = vadd.f32 %v924, %v1739
      %v1741 = vpop.f32.mrb[0].mxu0
      %v1742 = vadd.f32 %v928, %v1741
      %v1743 = vpop.f32.mrb[0].mxu0
      %v1744 = vadd.f32 %v924, %v1743
      %v1745 = vpop.f32.mrb[0].mxu0
      %v1746 = vadd.f32 %v928, %v1745
      %1747 = vmatprep.mubr.bf16.mxu0 0
      %1748 = vmatmul.mubr.bf16.gmra.mrb[0].mxu0 %v1061
      %v1749 = vpop.f32.mrb[0].mxu0
      %v1750 = vadd.f32 %v924, %v1749
      %v1751 = vpop.f32.mrb[0].mxu0
      %v1752 = vadd.f32 %v928, %v1751
      %v1753 = vpop.f32.mrb[0].mxu0
      %v1754 = vadd.f32 %v924, %v1753
      %v1755 = vpop.f32.mrb[0].mxu0
      %v1756 = vadd.f32 %v928, %v1755
      %1757 = vmatprep.mubr.bf16.mxu0 0
      %1758 = vmatmul.mubr.bf16.gmra.mrb[0].mxu0 %v1064
      %v1759 = vpop.f32.mrb[0].mxu0
      %v1760 = vadd.f32 %v924, %v1759
      %v1761 = vpop.f32.mrb[0].mxu0
      %v1762 = vadd.f32 %v928, %v1761
      %v1763 = vpop.f32.mrb[0].mxu0
      %v1764 = vadd.f32 %v924, %v1763
      %v1765 = vpop.f32.mrb[0].mxu0
      %v1766 = vadd.f32 %v928, %v1765
      %1767 = vmatprep.mubr.bf16.mxu0 0
      %1768 = vmatmul.mubr.bf16.gmra.mrb[0].mxu0 %v1067
      %v1769 = vpop.f32.mrb[0].mxu0
      %v1770 = vadd.f32 %v924, %v1769
      %v1771 = vpop.f32.mrb[0].mxu0
      %v1772 = vadd.f32 %v928, %v1771
      %v1773 = vpop.f32.mrb[0].mxu0
      %v1774 = vadd.f32 %v924, %v1773
      %v1775 = vpop.f32.mrb[0].mxu0
      %v1776 = vadd.f32 %v928, %v1775
      %1777 = vmatprep.mubr.bf16.mxu0 0
      %1778 = vmatmul.mubr.bf16.gmra.mrb[0].mxu0 %v1070
      %v1779 = vpop.f32.mrb[0].mxu0
      %v1780 = vadd.f32 %v924, %v1779
      %v1781 = vpop.f32.mrb[0].mxu0
      %v1782 = vadd.f32 %v928, %v1781
      %v1783 = vpop.f32.mrb[0].mxu0
      %v1784 = vadd.f32 %v924, %v1783
      %v1785 = vpop.f32.mrb[0].mxu0
      %v1786 = vadd.f32 %v928, %v1785
      %1787 = vmatprep.mubr.bf16.mxu0 0
      %1788 = vmatmul.mubr.bf16.gmra.mrb[0].mxu0 %v1073
      %v1789 = vpop.f32.mrb[0].mxu0
      %v1790 = vadd.f32 %v924, %v1789
      %v1791 = vpop.f32.mrb[0].mxu0
      %v1792 = vadd.f32 %v928, %v1791
      %v1793 = vpop.f32.mrb[0].mxu0
      %v1794 = vadd.f32 %v924, %v1793
      %v1795 = vpop.f32.mrb[0].mxu0
      %v1796 = vadd.f32 %v928, %v1795
      %1797 = vmatprep.mubr.bf16.mxu0 0
      %1798 = vmatmul.mubr.bf16.gmra.mrb[0].mxu0 %v1076
      %v1799 = vpop.f32.mrb[0].mxu0
      %v1800 = vadd.f32 %v924, %v1799
      %v1801 = vpop.f32.mrb[0].mxu0
      %v1802 = vadd.f32 %v928, %v1801
      %v1803 = vpop.f32.mrb[0].mxu0
      %v1804 = vadd.f32 %v924, %v1803
      %v1805 = vpop.f32.mrb[0].mxu0
      %v1806 = vadd.f32 %v928, %v1805
      %1807 = vmatprep.mubr.bf16.mxu0 0
      %1808 = vmatmul.mubr.bf16.gmra.mrb[0].mxu0 %v1079
      %v1809 = vpop.f32.mrb[0].mxu0
      %v1810 = vadd.f32 %v924, %v1809
      %v1811 = vpop.f32.mrb[0].mxu0
      %v1812 = vadd.f32 %v928, %v1811
      %v1813 = vpop.f32.mrb[0].mxu0
      %v1814 = vadd.f32 %v924, %v1813
      %v1815 = vpop.f32.mrb[0].mxu0
      %v1816 = vadd.f32 %v928, %v1815
      %1817 = vmatprep.mubr.bf16.mxu0 0
      %1818 = vmatmul.mubr.bf16.gmra.mrb[0].mxu0 %v1082
      %v1819 = vpop.f32.mrb[0].mxu0
      %v1820 = vadd.f32 %v924, %v1819
      %v1821 = vpop.f32.mrb[0].mxu0
      %v1822 = vadd.f32 %v928, %v1821
      %v1823 = vpop.f32.mrb[0].mxu0
      %v1824 = vadd.f32 %v924, %v1823
      %v1825 = vpop.f32.mrb[0].mxu0
      %v1826 = vadd.f32 %v928, %v1825
      %1827 = vmatprep.mubr.bf16.mxu0 0
      %1828 = vmatmul.mubr.bf16.gmra.mrb[0].mxu0 %v1085
      %v1829 = vpop.f32.mrb[0].mxu0
      %v1830 = vadd.f32 %v924, %v1829
      %v1831 = vpop.f32.mrb[0].mxu0
      %v1832 = vadd.f32 %v928, %v1831
      %v1833 = vpop.f32.mrb[0].mxu0
      %v1834 = vadd.f32 %v924, %v1833
      %v1835 = vpop.f32.mrb[0].mxu0
      %v1836 = vadd.f32 %v928, %v1835
      %1837 = vmatprep.mubr.bf16.mxu0 0
      %1838 = vmatmul.mubr.bf16.gmra.mrb[0].mxu0 %v1088
      %v1839 = vpop.f32.mrb[0].mxu0
      %v1840 = vadd.f32 %v924, %v1839
      %v1841 = vpop.f32.mrb[0].mxu0
      %v1842 = vadd.f32 %v928, %v1841
      %v1843 = vpop.f32.mrb[0].mxu0
      %v1844 = vadd.f32 %v924, %v1843
      %v1845 = vpop.f32.mrb[0].mxu0
      %v1846 = vadd.f32 %v928, %v1845
      %1847 = vmatprep.mubr.bf16.mxu0 0
      %1848 = vmatmul.mubr.bf16.gmra.mrb[0].mxu0 %v1091
      %v1849 = vpop.f32.mrb[0].mxu0
      %v1850 = vadd.f32 %v924, %v1849
      %v1851 = vpop.f32.mrb[0].mxu0
      %v1852 = vadd.f32 %v928, %v1851
      %v1853 = vpop.f32.mrb[0].mxu0
      %v1854 = vadd.f32 %v924, %v1853
      %v1855 = vpop.f32.mrb[0].mxu0
      %v1856 = vadd.f32 %v928, %v1855
      %1857 = vmatprep.mubr.bf16.mxu0 0
      %1858 = vmatmul.mubr.bf16.gmra.mrb[0].mxu0 %v1094
      %v1859 = vpop.f32.mrb[0].mxu0
      %v1860 = vadd.f32 %v924, %v1859
      %v1861 = vpop.f32.mrb[0].mxu0
      %v1862 = vadd.f32 %v928, %v1861
      %v1863 = vpop.f32.mrb[0].mxu0
      %v1864 = vadd.f32 %v924, %v1863
      %v1865 = vpop.f32.mrb[0].mxu0
      %v1866 = vadd.f32 %v928, %v1865
      %1867 = vdwg.mxu0
      %1868 = vmatprep.subr.bf16.mxu0 %v1016
      %1869 = vmatpush1.bf16.msra.mxu0 %v1015
      %1870 = vmatprep.subr.bf16.mxu0 %v1026
      %1871 = vmatpush1.bf16.msra.mxu0 %v1025
      %1872 = vmatprep.subr.bf16.mxu0 0
      %1873 = vmatpush1.bf16.msra.mxu0 0
      %1874 = vmatprep.subr.bf16.mxu0 0
      %1875 = vmatpush1.bf16.msra.mxu0 0
      %1876 = vmatprep.subr.bf16.mxu0 0
      %1877 = vmatpush1.bf16.msra.mxu0 0
      %1878 = vmatprep.subr.bf16.mxu0 0
      %1879 = vmatpush1.bf16.msra.mxu0 0
      %1880 = vmatprep.subr.bf16.mxu0 0
      %1881 = vmatpush1.bf16.msra.mxu0 0
      %1882 = vmatprep.subr.bf16.mxu0 0
      %1883 = vmatpush1.bf16.msra.mxu0 0
      %1884 = vmatprep.subr.bf16.mxu0 0
      %1885 = vmatpush1.bf16.msra.mxu0 0
      %1886 = vmatprep.subr.bf16.mxu0 0
      %1887 = vmatpush1.bf16.msra.mxu0 0
      %1888 = vmatprep.subr.bf16.mxu0 0
      %1889 = vmatpush1.bf16.msra.mxu0 0
      %1890 = vmatprep.subr.bf16.mxu0 0
      %1891 = vmatpush1.bf16.msra.mxu0 0
      %1892 = vmatprep.subr.bf16.mxu0 0
      %1893 = vmatpush1.bf16.msra.mxu0 0
      %1894 = vmatprep.subr.bf16.mxu0 0
      %1895 = vmatpush1.bf16.msra.mxu0 0
      %1896 = vmatprep.subr.bf16.mxu0 0
      %1897 = vmatpush1.bf16.msra.mxu0 0
      %1898 = vmatprep.subr.bf16.mxu0 0
      %1899 = vmatpush1.bf16.msra.mxu0 0
      %1900 = vmatprep.mubr.bf16.mxu0 0
      %1901 = vmatmul.mubr.bf16.gmra.mrb[0].mxu0 %v1049
      %v1902 = vpop.f32.mrb[0].mxu0
      %v1903 = vadd.f32 %v932, %v1902
      %v1904 = vpop.f32.mrb[0].mxu0
      %v1905 = vadd.f32 %v936, %v1904
      %v1906 = vpop.f32.mrb[0].mxu0
      %v1907 = vadd.f32 %v932, %v1906
      %v1908 = vpop.f32.mrb[0].mxu0
      %v1909 = vadd.f32 %v936, %v1908
      %1910 = vmatprep.mubr.bf16.mxu0 0
      %1911 = vmatmul.mubr.bf16.gmra.mrb[0].mxu0 %v1052
      %v1912 = vpop.f32.mrb[0].mxu0
      %v1913 = vadd.f32 %v932, %v1912
      %v1914 = vpop.f32.mrb[0].mxu0
      %v1915 = vadd.f32 %v936, %v1914
      %v1916 = vpop.f32.mrb[0].mxu0
      %v1917 = vadd.f32 %v932, %v1916
      %v1918 = vpop.f32.mrb[0].mxu0
      %v1919 = vadd.f32 %v936, %v1918
      %1920 = vmatprep.mubr.bf16.mxu0 0
      %1921 = vmatmul.mubr.bf16.gmra.mrb[0].mxu0 %v1055
      %v1922 = vpop.f32.mrb[0].mxu0
      %v1923 = vadd.f32 %v932, %v1922
      %v1924 = vpop.f32.mrb[0].mxu0
      %v1925 = vadd.f32 %v936, %v1924
      %v1926 = vpop.f32.mrb[0].mxu0
      %v1927 = vadd.f32 %v932, %v1926
      %v1928 = vpop.f32.mrb[0].mxu0
      %v1929 = vadd.f32 %v936, %v1928
      %1930 = vmatprep.mubr.bf16.mxu0 0
      %1931 = vmatmul.mubr.bf16.gmra.mrb[0].mxu0 %v1058
      %v1932 = vpop.f32.mrb[0].mxu0
      %v1933 = vadd.f32 %v932, %v1932
      %v1934 = vpop.f32.mrb[0].mxu0
      %v1935 = vadd.f32 %v936, %v1934
      %v1936 = vpop.f32.mrb[0].mxu0
      %v1937 = vadd.f32 %v932, %v1936
      %v1938 = vpop.f32.mrb[0].mxu0
      %v1939 = vadd.f32 %v936, %v1938
      %1940 = vmatprep.mubr.bf16.mxu0 0
      %1941 = vmatmul.mubr.bf16.gmra.mrb[0].mxu0 %v1061
      %v1942 = vpop.f32.mrb[0].mxu0
      %v1943 = vadd.f32 %v932, %v1942
      %v1944 = vpop.f32.mrb[0].mxu0
      %v1945 = vadd.f32 %v936, %v1944
      %v1946 = vpop.f32.mrb[0].mxu0
      %v1947 = vadd.f32 %v932, %v1946
      %v1948 = vpop.f32.mrb[0].mxu0
      %v1949 = vadd.f32 %v936, %v1948
      %1950 = vmatprep.mubr.bf16.mxu0 0
      %1951 = vmatmul.mubr.bf16.gmra.mrb[0].mxu0 %v1064
      %v1952 = vpop.f32.mrb[0].mxu0
      %v1953 = vadd.f32 %v932, %v1952
      %v1954 = vpop.f32.mrb[0].mxu0
      %v1955 = vadd.f32 %v936, %v1954
      %v1956 = vpop.f32.mrb[0].mxu0
      %v1957 = vadd.f32 %v932, %v1956
      %v1958 = vpop.f32.mrb[0].mxu0
      %v1959 = vadd.f32 %v936, %v1958
      %1960 = vmatprep.mubr.bf16.mxu0 0
      %1961 = vmatmul.mubr.bf16.gmra.mrb[0].mxu0 %v1067
      %v1962 = vpop.f32.mrb[0].mxu0
      %v1963 = vadd.f32 %v932, %v1962
      %v1964 = vpop.f32.mrb[0].mxu0
      %v1965 = vadd.f32 %v936, %v1964
      %v1966 = vpop.f32.mrb[0].mxu0
      %v1967 = vadd.f32 %v932, %v1966
      %v1968 = vpop.f32.mrb[0].mxu0
      %v1969 = vadd.f32 %v936, %v1968
      %1970 = vmatprep.mubr.bf16.mxu0 0
      %1971 = vmatmul.mubr.bf16.gmra.mrb[0].mxu0 %v1070
      %v1972 = vpop.f32.mrb[0].mxu0
      %v1973 = vadd.f32 %v932, %v1972
      %v1974 = vpop.f32.mrb[0].mxu0
      %v1975 = vadd.f32 %v936, %v1974
      %v1976 = vpop.f32.mrb[0].mxu0
      %v1977 = vadd.f32 %v932, %v1976
      %v1978 = vpop.f32.mrb[0].mxu0
      %v1979 = vadd.f32 %v936, %v1978
      %1980 = vmatprep.mubr.bf16.mxu0 0
      %1981 = vmatmul.mubr.bf16.gmra.mrb[0].mxu0 %v1073
      %v1982 = vpop.f32.mrb[0].mxu0
      %v1983 = vadd.f32 %v932, %v1982
      %v1984 = vpop.f32.mrb[0].mxu0
      %v1985 = vadd.f32 %v936, %v1984
      %v1986 = vpop.f32.mrb[0].mxu0
      %v1987 = vadd.f32 %v932, %v1986
      %v1988 = vpop.f32.mrb[0].mxu0
      %v1989 = vadd.f32 %v936, %v1988
      %1990 = vmatprep.mubr.bf16.mxu0 0
      %1991 = vmatmul.mubr.bf16.gmra.mrb[0].mxu0 %v1076
      %v1992 = vpop.f32.mrb[0].mxu0
      %v1993 = vadd.f32 %v932, %v1992
      %v1994 = vpop.f32.mrb[0].mxu0
      %v1995 = vadd.f32 %v936, %v1994
      %v1996 = vpop.f32.mrb[0].mxu0
      %v1997 = vadd.f32 %v932, %v1996
      %v1998 = vpop.f32.mrb[0].mxu0
      %v1999 = vadd.f32 %v936, %v1998
      %2000 = vmatprep.mubr.bf16.mxu0 0
      %2001 = vmatmul.mubr.bf16.gmra.mrb[0].mxu0 %v1079
      %v2002 = vpop.f32.mrb[0].mxu0
      %v2003 = vadd.f32 %v932, %v2002
      %v2004 = vpop.f32.mrb[0].mxu0
      %v2005 = vadd.f32 %v936, %v2004
      %v2006 = vpop.f32.mrb[0].mxu0
      %v2007 = vadd.f32 %v932, %v2006
      %v2008 = vpop.f32.mrb[0].mxu0
      %v2009 = vadd.f32 %v936, %v2008
      %2010 = vmatprep.mubr.bf16.mxu0 0
      %2011 = vmatmul.mubr.bf16.gmra.mrb[0].mxu0 %v1082
      %v2012 = vpop.f32.mrb[0].mxu0
      %v2013 = vadd.f32 %v932, %v2012
      %v2014 = vpop.f32.mrb[0].mxu0
      %v2015 = vadd.f32 %v936, %v2014
      %v2016 = vpop.f32.mrb[0].mxu0
      %v2017 = vadd.f32 %v932, %v2016
      %v2018 = vpop.f32.mrb[0].mxu0
      %v2019 = vadd.f32 %v936, %v2018
      %2020 = vmatprep.mubr.bf16.mxu0 0
      %2021 = vmatmul.mubr.bf16.gmra.mrb[0].mxu0 %v1085
      %v2022 = vpop.f32.mrb[0].mxu0
      %v2023 = vadd.f32 %v932, %v2022
      %v2024 = vpop.f32.mrb[0].mxu0
      %v2025 = vadd.f32 %v936, %v2024
      %v2026 = vpop.f32.mrb[0].mxu0
      %v2027 = vadd.f32 %v932, %v2026
      %v2028 = vpop.f32.mrb[0].mxu0
      %v2029 = vadd.f32 %v936, %v2028
      %2030 = vmatprep.mubr.bf16.mxu0 0
      %2031 = vmatmul.mubr.bf16.gmra.mrb[0].mxu0 %v1088
      %v2032 = vpop.f32.mrb[0].mxu0
      %v2033 = vadd.f32 %v932, %v2032
      %v2034 = vpop.f32.mrb[0].mxu0
      %v2035 = vadd.f32 %v936, %v2034
      %v2036 = vpop.f32.mrb[0].mxu0
      %v2037 = vadd.f32 %v932, %v2036
      %v2038 = vpop.f32.mrb[0].mxu0
      %v2039 = vadd.f32 %v936, %v2038
      %2040 = vmatprep.mubr.bf16.mxu0 0
      %2041 = vmatmul.mubr.bf16.gmra.mrb[0].mxu0 %v1091
      %v2042 = vpop.f32.mrb[0].mxu0
      %v2043 = vadd.f32 %v932, %v2042
      %v2044 = vpop.f32.mrb[0].mxu0
      %v2045 = vadd.f32 %v936, %v2044
      %v2046 = vpop.f32.mrb[0].mxu0
      %v2047 = vadd.f32 %v932, %v2046
      %v2048 = vpop.f32.mrb[0].mxu0
      %v2049 = vadd.f32 %v936, %v2048
      %2050 = vmatprep.mubr.bf16.mxu0 0
      %2051 = vmatmul.mubr.bf16.gmra.mrb[0].mxu0 %v1094
      %v2052 = vpop.f32.mrb[0].mxu0
      %v2053 = vadd.f32 %v932, %v2052
      %v2054 = vpop.f32.mrb[0].mxu0
      %v2055 = vadd.f32 %v936, %v2054
      %v2056 = vpop.f32.mrb[0].mxu0
      %v2057 = vadd.f32 %v932, %v2056
      %v2058 = vpop.f32.mrb[0].mxu0
      %v2059 = vadd.f32 %v936, %v2058
      %2060 = vdwg.mxu0
      %v2061 = vsub.f32 0.0, %v1131
      %v2062 = vsub.f32 0.0, %v1133
      %v2063 = vsub.f32 0.0, %v1324
      %v2064 = vsub.f32 0.0, %v1326
      %v2065 = vsub.f32 0.0, %v1517
      %v2066 = vsub.f32 0.0, %v1519
      %v2067 = vsub.f32 0.0, %v1710
      %v2068 = vsub.f32 0.0, %v1712
      %v2069 = vsub.f32 0.0, %v1903
      %v2070 = vsub.f32 0.0, %v1905
      %v2071 = vsub.f32 0.0, %v1135
      %v2072 = vsub.f32 0.0, %v1137
      %v2073 = vsub.f32 0.0, %v1328
      %v2074 = vsub.f32 0.0, %v1330
      %v2075 = vsub.f32 0.0, %v1521
      %v2076 = vsub.f32 0.0, %v1523
      %v2077 = vsub.f32 0.0, %v1714
      %v2078 = vsub.f32 0.0, %v1716
      %v2079 = vsub.f32 0.0, %v1907
      %v2080 = vsub.f32 0.0, %v1909
      %v2081 = vsub.f32 0.0, %v1141
      %v2082 = vsub.f32 0.0, %v1143
      %v2083 = vsub.f32 0.0, %v1334
      %v2084 = vsub.f32 0.0, %v1336
      %v2085 = vsub.f32 0.0, %v1527
      %v2086 = vsub.f32 0.0, %v1529
      %v2087 = vsub.f32 0.0, %v1720
      %v2088 = vsub.f32 0.0, %v1722
      %v2089 = vsub.f32 0.0, %v1913
      %v2090 = vsub.f32 0.0, %v1915
      %v2091 = vsub.f32 0.0, %v1145
      %v2092 = vsub.f32 0.0, %v1147
      %v2093 = vsub.f32 0.0, %v1338
      %v2094 = vsub.f32 0.0, %v1340
      %v2095 = vsub.f32 0.0, %v1531
      %v2096 = vsub.f32 0.0, %v1533
      %v2097 = vsub.f32 0.0, %v1724
      %v2098 = vsub.f32 0.0, %v1726
      %v2099 = vsub.f32 0.0, %v1917
      %v2100 = vsub.f32 0.0, %v1919
      %v2101 = vsub.f32 0.0, %v1151
      %v2102 = vsub.f32 0.0, %v1153
      %v2103 = vsub.f32 0.0, %v1344
      %v2104 = vsub.f32 0.0, %v1346
      %v2105 = vsub.f32 0.0, %v1537
      %v2106 = vsub.f32 0.0, %v1539
      %v2107 = vsub.f32 0.0, %v1730
      %v2108 = vsub.f32 0.0, %v1732
      %v2109 = vsub.f32 0.0, %v1923
      %v2110 = vsub.f32 0.0, %v1925
      %v2111 = vsub.f32 0.0, %v1155
      %v2112 = vsub.f32 0.0, %v1157
      %v2113 = vsub.f32 0.0, %v1348
      %v2114 = vsub.f32 0.0, %v1350
      %v2115 = vsub.f32 0.0, %v1541
      %v2116 = vsub.f32 0.0, %v1543
      %v2117 = vsub.f32 0.0, %v1734
      %v2118 = vsub.f32 0.0, %v1736
      %v2119 = vsub.f32 0.0, %v1927
      %v2120 = vsub.f32 0.0, %v1929
      %v2121 = vsub.f32 0.0, %v1161
      %v2122 = vsub.f32 0.0, %v1163
      %v2123 = vsub.f32 0.0, %v1354
      %v2124 = vsub.f32 0.0, %v1356
      %v2125 = vsub.f32 0.0, %v1547
      %v2126 = vsub.f32 0.0, %v1549
      %v2127 = vsub.f32 0.0, %v1740
      %v2128 = vsub.f32 0.0, %v1742
      %v2129 = vsub.f32 0.0, %v1933
      %v2130 = vsub.f32 0.0, %v1935
      %v2131 = vsub.f32 0.0, %v1165
      %v2132 = vsub.f32 0.0, %v1167
      %v2133 = vsub.f32 0.0, %v1358
      %v2134 = vsub.f32 0.0, %v1360
      %v2135 = vsub.f32 0.0, %v1551
      %v2136 = vsub.f32 0.0, %v1553
      %v2137 = vsub.f32 0.0, %v1744
      %v2138 = vsub.f32 0.0, %v1746
      %v2139 = vsub.f32 0.0, %v1937
      %v2140 = vsub.f32 0.0, %v1939
      %v2141 = vsub.f32 0.0, %v1171
      %v2142 = vsub.f32 0.0, %v1173
      %v2143 = vsub.f32 0.0, %v1364
      %v2144 = vsub.f32 0.0, %v1366
      %v2145 = vsub.f32 0.0, %v1557
      %v2146 = vsub.f32 0.0, %v1559
      %v2147 = vsub.f32 0.0, %v1750
      %v2148 = vsub.f32 0.0, %v1752
      %v2149 = vsub.f32 0.0, %v1943
      %v2150 = vsub.f32 0.0, %v1945
      %v2151 = vsub.f32 0.0, %v1175
      %v2152 = vsub.f32 0.0, %v1177
      %v2153 = vsub.f32 0.0, %v1368
      %v2154 = vsub.f32 0.0, %v1370
      %v2155 = vsub.f32 0.0, %v1561
      %v2156 = vsub.f32 0.0, %v1563
      %v2157 = vsub.f32 0.0, %v1754
      %v2158 = vsub.f32 0.0, %v1756
      %v2159 = vsub.f32 0.0, %v1947
      %v2160 = vsub.f32 0.0, %v1949
      %v2161 = vsub.f32 0.0, %v1181
      %v2162 = vsub.f32 0.0, %v1183
      %v2163 = vsub.f32 0.0, %v1374
      %v2164 = vsub.f32 0.0, %v1376
      %v2165 = vsub.f32 0.0, %v1567
      %v2166 = vsub.f32 0.0, %v1569
      %v2167 = vsub.f32 0.0, %v1760
      %v2168 = vsub.f32 0.0, %v1762
      %v2169 = vsub.f32 0.0, %v1953
      %v2170 = vsub.f32 0.0, %v1955
      %v2171 = vsub.f32 0.0, %v1185
      %v2172 = vsub.f32 0.0, %v1187
      %v2173 = vsub.f32 0.0, %v1378
      %v2174 = vsub.f32 0.0, %v1380
      %v2175 = vsub.f32 0.0, %v1571
      %v2176 = vsub.f32 0.0, %v1573
      %v2177 = vsub.f32 0.0, %v1764
      %v2178 = vsub.f32 0.0, %v1766
      %v2179 = vsub.f32 0.0, %v1957
      %v2180 = vsub.f32 0.0, %v1959
      %v2181 = vsub.f32 0.0, %v1191
      %v2182 = vsub.f32 0.0, %v1193
      %v2183 = vsub.f32 0.0, %v1384
      %v2184 = vsub.f32 0.0, %v1386
      %v2185 = vsub.f32 0.0, %v1577
      %v2186 = vsub.f32 0.0, %v1579
      %v2187 = vsub.f32 0.0, %v1770
      %v2188 = vsub.f32 0.0, %v1772
      %v2189 = vsub.f32 0.0, %v1963
      %v2190 = vsub.f32 0.0, %v1965
      %v2191 = vsub.f32 0.0, %v1195
      %v2192 = vsub.f32 0.0, %v1197
      %v2193 = vsub.f32 0.0, %v1388
      %v2194 = vsub.f32 0.0, %v1390
      %v2195 = vsub.f32 0.0, %v1581
      %v2196 = vsub.f32 0.0, %v1583
      %v2197 = vsub.f32 0.0, %v1774
      %v2198 = vsub.f32 0.0, %v1776
      %v2199 = vsub.f32 0.0, %v1967
      %v2200 = vsub.f32 0.0, %v1969
      %v2201 = vsub.f32 0.0, %v1201
      %v2202 = vsub.f32 0.0, %v1203
      %v2203 = vsub.f32 0.0, %v1394
      %v2204 = vsub.f32 0.0, %v1396
      %v2205 = vsub.f32 0.0, %v1587
      %v2206 = vsub.f32 0.0, %v1589
      %v2207 = vsub.f32 0.0, %v1780
      %v2208 = vsub.f32 0.0, %v1782
      %v2209 = vsub.f32 0.0, %v1973
      %v2210 = vsub.f32 0.0, %v1975
      %v2211 = vsub.f32 0.0, %v1205
      %v2212 = vsub.f32 0.0, %v1207
      %v2213 = vsub.f32 0.0, %v1398
      %v2214 = vsub.f32 0.0, %v1400
      %v2215 = vsub.f32 0.0, %v1591
      %v2216 = vsub.f32 0.0, %v1593
      %v2217 = vsub.f32 0.0, %v1784
      %v2218 = vsub.f32 0.0, %v1786
      %v2219 = vsub.f32 0.0, %v1977
      %v2220 = vsub.f32 0.0, %v1979
      %v2221 = vsub.f32 0.0, %v1211
      %v2222 = vsub.f32 0.0, %v1213
      %v2223 = vsub.f32 0.0, %v1404
      %v2224 = vsub.f32 0.0, %v1406
      %v2225 = vsub.f32 0.0, %v1597
      %v2226 = vsub.f32 0.0, %v1599
      %v2227 = vsub.f32 0.0, %v1790
      %v2228 = vsub.f32 0.0, %v1792
      %v2229 = vsub.f32 0.0, %v1983
      %v2230 = vsub.f32 0.0, %v1985
      %v2231 = vsub.f32 0.0, %v1215
      %v2232 = vsub.f32 0.0, %v1217
      %v2233 = vsub.f32 0.0, %v1408
      %v2234 = vsub.f32 0.0, %v1410
      %v2235 = vsub.f32 0.0, %v1601
      %v2236 = vsub.f32 0.0, %v1603
      %v2237 = vsub.f32 0.0, %v1794
      %v2238 = vsub.f32 0.0, %v1796
      %v2239 = vsub.f32 0.0, %v1987
      %v2240 = vsub.f32 0.0, %v1989
      %v2241 = vsub.f32 0.0, %v1221
      %v2242 = vsub.f32 0.0, %v1223
      %v2243 = vsub.f32 0.0, %v1414
      %v2244 = vsub.f32 0.0, %v1416
      %v2245 = vsub.f32 0.0, %v1607
      %v2246 = vsub.f32 0.0, %v1609
      %v2247 = vsub.f32 0.0, %v1800
      %v2248 = vsub.f32 0.0, %v1802
      %v2249 = vsub.f32 0.0, %v1993
      %v2250 = vsub.f32 0.0, %v1995
      %v2251 = vsub.f32 0.0, %v1225
      %v2252 = vsub.f32 0.0, %v1227
      %v2253 = vsub.f32 0.0, %v1418
      %v2254 = vsub.f32 0.0, %v1420
      %v2255 = vsub.f32 0.0, %v1611
      %v2256 = vsub.f32 0.0, %v1613
      %v2257 = vsub.f32 0.0, %v1804
      %v2258 = vsub.f32 0.0, %v1806
      %v2259 = vsub.f32 0.0, %v1997
      %v2260 = vsub.f32 0.0, %v1999
      %v2261 = vsub.f32 0.0, %v1231
      %v2262 = vsub.f32 0.0, %v1233
      %v2263 = vsub.f32 0.0, %v1424
      %v2264 = vsub.f32 0.0, %v1426
      %v2265 = vsub.f32 0.0, %v1617
      %v2266 = vsub.f32 0.0, %v1619
      %v2267 = vsub.f32 0.0, %v1810
      %v2268 = vsub.f32 0.0, %v1812
      %v2269 = vsub.f32 0.0, %v2003
      %v2270 = vsub.f32 0.0, %v2005
      %v2271 = vsub.f32 0.0, %v1235
      %v2272 = vsub.f32 0.0, %v1237
      %v2273 = vsub.f32 0.0, %v1428
      %v2274 = vsub.f32 0.0, %v1430
      %v2275 = vsub.f32 0.0, %v1621
      %v2276 = vsub.f32 0.0, %v1623
      %v2277 = vsub.f32 0.0, %v1814
      %v2278 = vsub.f32 0.0, %v1816
      %v2279 = vsub.f32 0.0, %v2007
      %v2280 = vsub.f32 0.0, %v2009
      %v2281 = vsub.f32 0.0, %v1241
      %v2282 = vsub.f32 0.0, %v1243
      %v2283 = vsub.f32 0.0, %v1434
      %v2284 = vsub.f32 0.0, %v1436
      %v2285 = vsub.f32 0.0, %v1627
      %v2286 = vsub.f32 0.0, %v1629
      %v2287 = vsub.f32 0.0, %v1820
      %v2288 = vsub.f32 0.0, %v1822
      %v2289 = vsub.f32 0.0, %v2013
      %v2290 = vsub.f32 0.0, %v2015
      %v2291 = vsub.f32 0.0, %v1245
      %v2292 = vsub.f32 0.0, %v1247
      %v2293 = vsub.f32 0.0, %v1438
      %v2294 = vsub.f32 0.0, %v1440
      %v2295 = vsub.f32 0.0, %v1631
      %v2296 = vsub.f32 0.0, %v1633
      %v2297 = vsub.f32 0.0, %v1824
      %v2298 = vsub.f32 0.0, %v1826
      %v2299 = vsub.f32 0.0, %v2017
      %v2300 = vsub.f32 0.0, %v2019
      %v2301 = vsub.f32 0.0, %v1251
      %v2302 = vsub.f32 0.0, %v1253
      %v2303 = vsub.f32 0.0, %v1444
      %v2304 = vsub.f32 0.0, %v1446
      %v2305 = vsub.f32 0.0, %v1637
      %v2306 = vsub.f32 0.0, %v1639
      %v2307 = vsub.f32 0.0, %v1830
      %v2308 = vsub.f32 0.0, %v1832
      %v2309 = vsub.f32 0.0, %v2023
      %v2310 = vsub.f32 0.0, %v2025
      %v2311 = vsub.f32 0.0, %v1255
      %v2312 = vsub.f32 0.0, %v1257
      %v2313 = vsub.f32 0.0, %v1448
      %v2314 = vsub.f32 0.0, %v1450
      %v2315 = vsub.f32 0.0, %v1641
      %v2316 = vsub.f32 0.0, %v1643
      %v2317 = vsub.f32 0.0, %v1834
      %v2318 = vsub.f32 0.0, %v1836
      %v2319 = vsub.f32 0.0, %v2027
      %v2320 = vsub.f32 0.0, %v2029
      %v2321 = vsub.f32 0.0, %v1261
      %v2322 = vsub.f32 0.0, %v1263
      %v2323 = vsub.f32 0.0, %v1454
      %v2324 = vsub.f32 0.0, %v1456
      %v2325 = vsub.f32 0.0, %v1647
      %v2326 = vsub.f32 0.0, %v1649
      %v2327 = vsub.f32 0.0, %v1840
      %v2328 = vsub.f32 0.0, %v1842
      %v2329 = vsub.f32 0.0, %v2033
      %v2330 = vsub.f32 0.0, %v2035
      %v2331 = vsub.f32 0.0, %v1265
      %v2332 = vsub.f32 0.0, %v1267
      %v2333 = vsub.f32 0.0, %v1458
      %v2334 = vsub.f32 0.0, %v1460
      %v2335 = vsub.f32 0.0, %v1651
      %v2336 = vsub.f32 0.0, %v1653
      %v2337 = vsub.f32 0.0, %v1844
      %v2338 = vsub.f32 0.0, %v1846
      %v2339 = vsub.f32 0.0, %v2037
      %v2340 = vsub.f32 0.0, %v2039
      %v2341 = vsub.f32 0.0, %v1271
      %v2342 = vsub.f32 0.0, %v1273
      %v2343 = vsub.f32 0.0, %v1464
      %v2344 = vsub.f32 0.0, %v1466
      %v2345 = vsub.f32 0.0, %v1657
      %v2346 = vsub.f32 0.0, %v1659
      %v2347 = vsub.f32 0.0, %v1850
      %v2348 = vsub.f32 0.0, %v1852
      %v2349 = vsub.f32 0.0, %v2043
      %v2350 = vsub.f32 0.0, %v2045
      %v2351 = vsub.f32 0.0, %v1275
      %v2352 = vsub.f32 0.0, %v1277
      %v2353 = vsub.f32 0.0, %v1468
      %v2354 = vsub.f32 0.0, %v1470
      %v2355 = vsub.f32 0.0, %v1661
      %v2356 = vsub.f32 0.0, %v1663
      %v2357 = vsub.f32 0.0, %v1854
      %v2358 = vsub.f32 0.0, %v1856
      %v2359 = vsub.f32 0.0, %v2047
      %v2360 = vsub.f32 0.0, %v2049
      %v2361 = vsub.f32 0.0, %v1281
      %v2362 = vsub.f32 0.0, %v1283
      %v2363 = vsub.f32 0.0, %v1474
      %v2364 = vsub.f32 0.0, %v1476
      %v2365 = vsub.f32 0.0, %v1667
      %v2366 = vsub.f32 0.0, %v1669
      %v2367 = vsub.f32 0.0, %v1860
      %v2368 = vsub.f32 0.0, %v1862
      %v2369 = vsub.f32 0.0, %v2053
      %v2370 = vsub.f32 0.0, %v2055
      %v2371 = vsub.f32 0.0, %v1285
      %v2372 = vsub.f32 0.0, %v1287
      %v2373 = vsub.f32 0.0, %v1478
      %v2374 = vsub.f32 0.0, %v1480
      %v2375 = vsub.f32 0.0, %v1671
      %v2376 = vsub.f32 0.0, %v1673
      %v2377 = vsub.f32 0.0, %v1864
      %v2378 = vsub.f32 0.0, %v1866
      %v2379 = vsub.f32 0.0, %v2057
      %v2380 = vsub.f32 0.0, %v2059
      %v2381 = vmul.f32 %v2061, 1.442695
      %v2382 = vpow.pop %v2381
      %v2383 = vmul.f32 %v2062, 1.442695
      %v2384 = vpow.pop %v2383
      %v2385 = vmul.f32 %v2063, 1.442695
      %v2386 = vpow.pop %v2385
      %v2387 = vmul.f32 %v2064, 1.442695
      %v2388 = vpow.pop %v2387
      %v2389 = vmul.f32 %v2065, 1.442695
      %v2390 = vpow.pop %v2389
      %v2391 = vmul.f32 %v2066, 1.442695
      %v2392 = vpow.pop %v2391
      %v2393 = vmul.f32 %v2067, 1.442695
      %v2394 = vpow.pop %v2393
      %v2395 = vmul.f32 %v2068, 1.442695
      %v2396 = vpow.pop %v2395
      %v2397 = vmul.f32 %v2069, 1.442695
      %v2398 = vpow.pop %v2397
      %v2399 = vmul.f32 %v2070, 1.442695
      %v2400 = vpow.pop %v2399
      %v2401 = vmul.f32 %v2071, 1.442695
      %v2402 = vpow.pop %v2401
      %v2403 = vmul.f32 %v2072, 1.442695
      %v2404 = vpow.pop %v2403
      %v2405 = vmul.f32 %v2073, 1.442695
      %v2406 = vpow.pop %v2405
      %v2407 = vmul.f32 %v2074, 1.442695
      %v2408 = vpow.pop %v2407
      %v2409 = vmul.f32 %v2075, 1.442695
      %v2410 = vpow.pop %v2409
      %v2411 = vmul.f32 %v2076, 1.442695
      %v2412 = vpow.pop %v2411
      %v2413 = vmul.f32 %v2077, 1.442695
      %v2414 = vpow.pop %v2413
      %v2415 = vmul.f32 %v2078, 1.442695
      %v2416 = vpow.pop %v2415
      %v2417 = vmul.f32 %v2079, 1.442695
      %v2418 = vpow.pop %v2417
      %v2419 = vmul.f32 %v2080, 1.442695
      %v2420 = vpow.pop %v2419
      %v2421 = vmul.f32 %v2081, 1.442695
      %v2422 = vpow.pop %v2421
      %v2423 = vmul.f32 %v2082, 1.442695
      %v2424 = vpow.pop %v2423
      %v2425 = vmul.f32 %v2083, 1.442695
      %v2426 = vpow.pop %v2425
      %v2427 = vmul.f32 %v2084, 1.442695
      %v2428 = vpow.pop %v2427
      %v2429 = vmul.f32 %v2085, 1.442695
      %v2430 = vpow.pop %v2429
      %v2431 = vmul.f32 %v2086, 1.442695
      %v2432 = vpow.pop %v2431
      %v2433 = vmul.f32 %v2087, 1.442695
      %v2434 = vpow.pop %v2433
      %v2435 = vmul.f32 %v2088, 1.442695
      %v2436 = vpow.pop %v2435
      %v2437 = vmul.f32 %v2089, 1.442695
      %v2438 = vpow.pop %v2437
      %v2439 = vmul.f32 %v2090, 1.442695
      %v2440 = vpow.pop %v2439
      %v2441 = vmul.f32 %v2091, 1.442695
      %v2442 = vpow.pop %v2441
      %v2443 = vmul.f32 %v2092, 1.442695
      %v2444 = vpow.pop %v2443
      %v2445 = vmul.f32 %v2093, 1.442695
      %v2446 = vpow.pop %v2445
      %v2447 = vmul.f32 %v2094, 1.442695
      %v2448 = vpow.pop %v2447
      %v2449 = vmul.f32 %v2095, 1.442695
      %v2450 = vpow.pop %v2449
      %v2451 = vmul.f32 %v2096, 1.442695
      %v2452 = vpow.pop %v2451
      %v2453 = vmul.f32 %v2097, 1.442695
      %v2454 = vpow.pop %v2453
      %v2455 = vmul.f32 %v2098, 1.442695
      %v2456 = vpow.pop %v2455
      %v2457 = vmul.f32 %v2099, 1.442695
      %v2458 = vpow.pop %v2457
      %v2459 = vmul.f32 %v2100, 1.442695
      %v2460 = vpow.pop %v2459
      %v2461 = vmul.f32 %v2101, 1.442695
      %v2462 = vpow.pop %v2461
      %v2463 = vmul.f32 %v2102, 1.442695
      %v2464 = vpow.pop %v2463
      %v2465 = vmul.f32 %v2103, 1.442695
      %v2466 = vpow.pop %v2465
      %v2467 = vmul.f32 %v2104, 1.442695
      %v2468 = vpow.pop %v2467
      %v2469 = vmul.f32 %v2105, 1.442695
      %v2470 = vpow.pop %v2469
      %v2471 = vmul.f32 %v2106, 1.442695
      %v2472 = vpow.pop %v2471
      %v2473 = vmul.f32 %v2107, 1.442695
      %v2474 = vpow.pop %v2473
      %v2475 = vmul.f32 %v2108, 1.442695
      %v2476 = vpow.pop %v2475
      %v2477 = vmul.f32 %v2109, 1.442695
      %v2478 = vpow.pop %v2477
      %v2479 = vmul.f32 %v2110, 1.442695
      %v2480 = vpow.pop %v2479
      %v2481 = vmul.f32 %v2111, 1.442695
      %v2482 = vpow.pop %v2481
      %v2483 = vmul.f32 %v2112, 1.442695
      %v2484 = vpow.pop %v2483
      %v2485 = vmul.f32 %v2113, 1.442695
      %v2486 = vpow.pop %v2485
      %v2487 = vmul.f32 %v2114, 1.442695
      %v2488 = vpow.pop %v2487
      %v2489 = vmul.f32 %v2115, 1.442695
      %v2490 = vpow.pop %v2489
      %v2491 = vmul.f32 %v2116, 1.442695
      %v2492 = vpow.pop %v2491
      %v2493 = vmul.f32 %v2117, 1.442695
      %v2494 = vpow.pop %v2493
      %v2495 = vmul.f32 %v2118, 1.442695
      %v2496 = vpow.pop %v2495
      %v2497 = vmul.f32 %v2119, 1.442695
      %v2498 = vpow.pop %v2497
      %v2499 = vmul.f32 %v2120, 1.442695
      %v2500 = vpow.pop %v2499
      %v2501 = vmul.f32 %v2121, 1.442695
      %v2502 = vpow.pop %v2501
      %v2503 = vmul.f32 %v2122, 1.442695
      %v2504 = vpow.pop %v2503
      %v2505 = vmul.f32 %v2123, 1.442695
      %v2506 = vpow.pop %v2505
      %v2507 = vmul.f32 %v2124, 1.442695
      %v2508 = vpow.pop %v2507
      %v2509 = vmul.f32 %v2125, 1.442695
      %v2510 = vpow.pop %v2509
      %v2511 = vmul.f32 %v2126, 1.442695
      %v2512 = vpow.pop %v2511
      %v2513 = vmul.f32 %v2127, 1.442695
      %v2514 = vpow.pop %v2513
      %v2515 = vmul.f32 %v2128, 1.442695
      %v2516 = vpow.pop %v2515
      %v2517 = vmul.f32 %v2129, 1.442695
      %v2518 = vpow.pop %v2517
      %v2519 = vmul.f32 %v2130, 1.442695
      %v2520 = vpow.pop %v2519
      %v2521 = vmul.f32 %v2131, 1.442695
      %v2522 = vpow.pop %v2521
      %v2523 = vmul.f32 %v2132, 1.442695
      %v2524 = vpow.pop %v2523
      %v2525 = vmul.f32 %v2133, 1.442695
      %v2526 = vpow.pop %v2525
      %v2527 = vmul.f32 %v2134, 1.442695
      %v2528 = vpow.pop %v2527
      %v2529 = vmul.f32 %v2135, 1.442695
      %v2530 = vpow.pop %v2529
      %v2531 = vmul.f32 %v2136, 1.442695
      %v2532 = vpow.pop %v2531
      %v2533 = vmul.f32 %v2137, 1.442695
      %v2534 = vpow.pop %v2533
      %v2535 = vmul.f32 %v2138, 1.442695
      %v2536 = vpow.pop %v2535
      %v2537 = vmul.f32 %v2139, 1.442695
      %v2538 = vpow.pop %v2537
      %v2539 = vmul.f32 %v2140, 1.442695
      %v2540 = vpow.pop %v2539
      %v2541 = vmul.f32 %v2141, 1.442695
      %v2542 = vpow.pop %v2541
      %v2543 = vmul.f32 %v2142, 1.442695
      %v2544 = vpow.pop %v2543
      %v2545 = vmul.f32 %v2143, 1.442695
      %v2546 = vpow.pop %v2545
      %v2547 = vmul.f32 %v2144, 1.442695
      %v2548 = vpow.pop %v2547
      %v2549 = vmul.f32 %v2145, 1.442695
      %v2550 = vpow.pop %v2549
      %v2551 = vmul.f32 %v2146, 1.442695
      %v2552 = vpow.pop %v2551
      %v2553 = vmul.f32 %v2147, 1.442695
      %v2554 = vpow.pop %v2553
      %v2555 = vmul.f32 %v2148, 1.442695
      %v2556 = vpow.pop %v2555
      %v2557 = vmul.f32 %v2149, 1.442695
      %v2558 = vpow.pop %v2557
      %v2559 = vmul.f32 %v2150, 1.442695
      %v2560 = vpow.pop %v2559
      %v2561 = vmul.f32 %v2151, 1.442695
      %v2562 = vpow.pop %v2561
      %v2563 = vmul.f32 %v2152, 1.442695
      %v2564 = vpow.pop %v2563
      %v2565 = vmul.f32 %v2153, 1.442695
      %v2566 = vpow.pop %v2565
      %v2567 = vmul.f32 %v2154, 1.442695
      %v2568 = vpow.pop %v2567
      %v2569 = vmul.f32 %v2155, 1.442695
      %v2570 = vpow.pop %v2569
      %v2571 = vmul.f32 %v2156, 1.442695
      %v2572 = vpow.pop %v2571
      %v2573 = vmul.f32 %v2157, 1.442695
      %v2574 = vpow.pop %v2573
      %v2575 = vmul.f32 %v2158, 1.442695
      %v2576 = vpow.pop %v2575
      %v2577 = vmul.f32 %v2159, 1.442695
      %v2578 = vpow.pop %v2577
      %v2579 = vmul.f32 %v2160, 1.442695
      %v2580 = vpow.pop %v2579
      %v2581 = vmul.f32 %v2161, 1.442695
      %v2582 = vpow.pop %v2581
      %v2583 = vmul.f32 %v2162, 1.442695
      %v2584 = vpow.pop %v2583
      %v2585 = vmul.f32 %v2163, 1.442695
      %v2586 = vpow.pop %v2585
      %v2587 = vmul.f32 %v2164, 1.442695
      %v2588 = vpow.pop %v2587
      %v2589 = vmul.f32 %v2165, 1.442695
      %v2590 = vpow.pop %v2589
      %v2591 = vmul.f32 %v2166, 1.442695
      %v2592 = vpow.pop %v2591
      %v2593 = vmul.f32 %v2167, 1.442695
      %v2594 = vpow.pop %v2593
      %v2595 = vmul.f32 %v2168, 1.442695
      %v2596 = vpow.pop %v2595
      %v2597 = vmul.f32 %v2169, 1.442695
      %v2598 = vpow.pop %v2597
      %v2599 = vmul.f32 %v2170, 1.442695
      %v2600 = vpow.pop %v2599
      %v2601 = vmul.f32 %v2171, 1.442695
      %v2602 = vpow.pop %v2601
      %v2603 = vmul.f32 %v2172, 1.442695
      %v2604 = vpow.pop %v2603
      %v2605 = vmul.f32 %v2173, 1.442695
      %v2606 = vpow.pop %v2605
      %v2607 = vmul.f32 %v2174, 1.442695
      %v2608 = vpow.pop %v2607
      %v2609 = vmul.f32 %v2175, 1.442695
      %v2610 = vpow.pop %v2609
      %v2611 = vmul.f32 %v2176, 1.442695
      %v2612 = vpow.pop %v2611
      %v2613 = vmul.f32 %v2177, 1.442695
      %v2614 = vpow.pop %v2613
      %v2615 = vmul.f32 %v2178, 1.442695
      %v2616 = vpow.pop %v2615
      %v2617 = vmul.f32 %v2179, 1.442695
      %v2618 = vpow.pop %v2617
      %v2619 = vmul.f32 %v2180, 1.442695
      %v2620 = vpow.pop %v2619
      %v2621 = vmul.f32 %v2181, 1.442695
      %v2622 = vpow.pop %v2621
      %v2623 = vmul.f32 %v2182, 1.442695
      %v2624 = vpow.pop %v2623
      %v2625 = vmul.f32 %v2183, 1.442695
      %v2626 = vpow.pop %v2625
      %v2627 = vmul.f32 %v2184, 1.442695
      %v2628 = vpow.pop %v2627
      %v2629 = vmul.f32 %v2185, 1.442695
      %v2630 = vpow.pop %v2629
      %v2631 = vmul.f32 %v2186, 1.442695
      %v2632 = vpow.pop %v2631
      %v2633 = vmul.f32 %v2187, 1.442695
      %v2634 = vpow.pop %v2633
      %v2635 = vmul.f32 %v2188, 1.442695
      %v2636 = vpow.pop %v2635
      %v2637 = vmul.f32 %v2189, 1.442695
      %v2638 = vpow.pop %v2637
      %v2639 = vmul.f32 %v2190, 1.442695
      %v2640 = vpow.pop %v2639
      %v2641 = vmul.f32 %v2191, 1.442695
      %v2642 = vpow.pop %v2641
      %v2643 = vmul.f32 %v2192, 1.442695
      %v2644 = vpow.pop %v2643
      %v2645 = vmul.f32 %v2193, 1.442695
      %v2646 = vpow.pop %v2645
      %v2647 = vmul.f32 %v2194, 1.442695
      %v2648 = vpow.pop %v2647
      %v2649 = vmul.f32 %v2195, 1.442695
      %v2650 = vpow.pop %v2649
      %v2651 = vmul.f32 %v2196, 1.442695
      %v2652 = vpow.pop %v2651
      %v2653 = vmul.f32 %v2197, 1.442695
      %v2654 = vpow.pop %v2653
      %v2655 = vmul.f32 %v2198, 1.442695
      %v2656 = vpow.pop %v2655
      %v2657 = vmul.f32 %v2199, 1.442695
      %v2658 = vpow.pop %v2657
      %v2659 = vmul.f32 %v2200, 1.442695
      %v2660 = vpow.pop %v2659
      %v2661 = vmul.f32 %v2201, 1.442695
      %v2662 = vpow.pop %v2661
      %v2663 = vmul.f32 %v2202, 1.442695
      %v2664 = vpow.pop %v2663
      %v2665 = vmul.f32 %v2203, 1.442695
      %v2666 = vpow.pop %v2665
      %v2667 = vmul.f32 %v2204, 1.442695
      %v2668 = vpow.pop %v2667
      %v2669 = vmul.f32 %v2205, 1.442695
      %v2670 = vpow.pop %v2669
      %v2671 = vmul.f32 %v2206, 1.442695
      %v2672 = vpow.pop %v2671
      %v2673 = vmul.f32 %v2207, 1.442695
      %v2674 = vpow.pop %v2673
      %v2675 = vmul.f32 %v2208, 1.442695
      %v2676 = vpow.pop %v2675
      %v2677 = vmul.f32 %v2209, 1.442695
      %v2678 = vpow.pop %v2677
      %v2679 = vmul.f32 %v2210, 1.442695
      %v2680 = vpow.pop %v2679
      %v2681 = vmul.f32 %v2211, 1.442695
      %v2682 = vpow.pop %v2681
      %v2683 = vmul.f32 %v2212, 1.442695
      %v2684 = vpow.pop %v2683
      %v2685 = vmul.f32 %v2213, 1.442695
      %v2686 = vpow.pop %v2685
      %v2687 = vmul.f32 %v2214, 1.442695
      %v2688 = vpow.pop %v2687
      %v2689 = vmul.f32 %v2215, 1.442695
      %v2690 = vpow.pop %v2689
      %v2691 = vmul.f32 %v2216, 1.442695
      %v2692 = vpow.pop %v2691
      %v2693 = vmul.f32 %v2217, 1.442695
      %v2694 = vpow.pop %v2693
      %v2695 = vmul.f32 %v2218, 1.442695
      %v2696 = vpow.pop %v2695
      %v2697 = vmul.f32 %v2219, 1.442695
      %v2698 = vpow.pop %v2697
      %v2699 = vmul.f32 %v2220, 1.442695
      %v2700 = vpow.pop %v2699
      %v2701 = vmul.f32 %v2221, 1.442695
      %v2702 = vpow.pop %v2701
      %v2703 = vmul.f32 %v2222, 1.442695
      %v2704 = vpow.pop %v2703
      %v2705 = vmul.f32 %v2223, 1.442695
      %v2706 = vpow.pop %v2705
      %v2707 = vmul.f32 %v2224, 1.442695
      %v2708 = vpow.pop %v2707
      %v2709 = vmul.f32 %v2225, 1.442695
      %v2710 = vpow.pop %v2709
      %v2711 = vmul.f32 %v2226, 1.442695
      %v2712 = vpow.pop %v2711
      %v2713 = vmul.f32 %v2227, 1.442695
      %v2714 = vpow.pop %v2713
      %v2715 = vmul.f32 %v2228, 1.442695
      %v2716 = vpow.pop %v2715
      %v2717 = vmul.f32 %v2229, 1.442695
      %v2718 = vpow.pop %v2717
      %v2719 = vmul.f32 %v2230, 1.442695
      %v2720 = vpow.pop %v2719
      %v2721 = vmul.f32 %v2231, 1.442695
      %v2722 = vpow.pop %v2721
      %v2723 = vmul.f32 %v2232, 1.442695
      %v2724 = vpow.pop %v2723
      %v2725 = vmul.f32 %v2233, 1.442695
      %v2726 = vpow.pop %v2725
      %v2727 = vmul.f32 %v2234, 1.442695
      %v2728 = vpow.pop %v2727
      %v2729 = vmul.f32 %v2235, 1.442695
      %v2730 = vpow.pop %v2729
      %v2731 = vmul.f32 %v2236, 1.442695
      %v2732 = vpow.pop %v2731
      %v2733 = vmul.f32 %v2237, 1.442695
      %v2734 = vpow.pop %v2733
      %v2735 = vmul.f32 %v2238, 1.442695
      %v2736 = vpow.pop %v2735
      %v2737 = vmul.f32 %v2239, 1.442695
      %v2738 = vpow.pop %v2737
      %v2739 = vmul.f32 %v2240, 1.442695
      %v2740 = vpow.pop %v2739
      %v2741 = vmul.f32 %v2241, 1.442695
      %v2742 = vpow.pop %v2741
      %v2743 = vmul.f32 %v2242, 1.442695
      %v2744 = vpow.pop %v2743
      %v2745 = vmul.f32 %v2243, 1.442695
      %v2746 = vpow.pop %v2745
      %v2747 = vmul.f32 %v2244, 1.442695
      %v2748 = vpow.pop %v2747
      %v2749 = vmul.f32 %v2245, 1.442695
      %v2750 = vpow.pop %v2749
      %v2751 = vmul.f32 %v2246, 1.442695
      %v2752 = vpow.pop %v2751
      %v2753 = vmul.f32 %v2247, 1.442695
      %v2754 = vpow.pop %v2753
      %v2755 = vmul.f32 %v2248, 1.442695
      %v2756 = vpow.pop %v2755
      %v2757 = vmul.f32 %v2249, 1.442695
      %v2758 = vpow.pop %v2757
      %v2759 = vmul.f32 %v2250, 1.442695
      %v2760 = vpow.pop %v2759
      %v2761 = vmul.f32 %v2251, 1.442695
      %v2762 = vpow.pop %v2761
      %v2763 = vmul.f32 %v2252, 1.442695
      %v2764 = vpow.pop %v2763
      %v2765 = vmul.f32 %v2253, 1.442695
      %v2766 = vpow.pop %v2765
      %v2767 = vmul.f32 %v2254, 1.442695
      %v2768 = vpow.pop %v2767
      %v2769 = vmul.f32 %v2255, 1.442695
      %v2770 = vpow.pop %v2769
      %v2771 = vmul.f32 %v2256, 1.442695
      %v2772 = vpow.pop %v2771
      %v2773 = vmul.f32 %v2257, 1.442695
      %v2774 = vpow.pop %v2773
      %v2775 = vmul.f32 %v2258, 1.442695
      %v2776 = vpow.pop %v2775
      %v2777 = vmul.f32 %v2259, 1.442695
      %v2778 = vpow.pop %v2777
      %v2779 = vmul.f32 %v2260, 1.442695
      %v2780 = vpow.pop %v2779
      %v2781 = vmul.f32 %v2261, 1.442695
      %v2782 = vpow.pop %v2781
      %v2783 = vmul.f32 %v2262, 1.442695
      %v2784 = vpow.pop %v2783
      %v2785 = vmul.f32 %v2263, 1.442695
      %v2786 = vpow.pop %v2785
      %v2787 = vmul.f32 %v2264, 1.442695
      %v2788 = vpow.pop %v2787
      %v2789 = vmul.f32 %v2265, 1.442695
      %v2790 = vpow.pop %v2789
      %v2791 = vmul.f32 %v2266, 1.442695
      %v2792 = vpow.pop %v2791
      %v2793 = vmul.f32 %v2267, 1.442695
      %v2794 = vpow.pop %v2793
      %v2795 = vmul.f32 %v2268, 1.442695
      %v2796 = vpow.pop %v2795
      %v2797 = vmul.f32 %v2269, 1.442695
      %v2798 = vpow.pop %v2797
      %v2799 = vmul.f32 %v2270, 1.442695
      %v2800 = vpow.pop %v2799
      %v2801 = vmul.f32 %v2271, 1.442695
      %v2802 = vpow.pop %v2801
      %v2803 = vmul.f32 %v2272, 1.442695
      %v2804 = vpow.pop %v2803
      %v2805 = vmul.f32 %v2273, 1.442695
      %v2806 = vpow.pop %v2805
      %v2807 = vmul.f32 %v2274, 1.442695
      %v2808 = vpow.pop %v2807
      %v2809 = vmul.f32 %v2275, 1.442695
      %v2810 = vpow.pop %v2809
      %v2811 = vmul.f32 %v2276, 1.442695
      %v2812 = vpow.pop %v2811
      %v2813 = vmul.f32 %v2277, 1.442695
      %v2814 = vpow.pop %v2813
      %v2815 = vmul.f32 %v2278, 1.442695
      %v2816 = vpow.pop %v2815
      %v2817 = vmul.f32 %v2279, 1.442695
      %v2818 = vpow.pop %v2817
      %v2819 = vmul.f32 %v2280, 1.442695
      %v2820 = vpow.pop %v2819
      %v2821 = vmul.f32 %v2281, 1.442695
      %v2822 = vpow.pop %v2821
      %v2823 = vmul.f32 %v2282, 1.442695
      %v2824 = vpow.pop %v2823
      %v2825 = vmul.f32 %v2283, 1.442695
      %v2826 = vpow.pop %v2825
      %v2827 = vmul.f32 %v2284, 1.442695
      %v2828 = vpow.pop %v2827
      %v2829 = vmul.f32 %v2285, 1.442695
      %v2830 = vpow.pop %v2829
      %v2831 = vmul.f32 %v2286, 1.442695
      %v2832 = vpow.pop %v2831
      %v2833 = vmul.f32 %v2287, 1.442695
      %v2834 = vpow.pop %v2833
      %v2835 = vmul.f32 %v2288, 1.442695
      %v2836 = vpow.pop %v2835
      %v2837 = vmul.f32 %v2289, 1.442695
      %v2838 = vpow.pop %v2837
      %v2839 = vmul.f32 %v2290, 1.442695
      %v2840 = vpow.pop %v2839
      %v2841 = vmul.f32 %v2291, 1.442695
      %v2842 = vpow.pop %v2841
      %v2843 = vmul.f32 %v2292, 1.442695
      %v2844 = vpow.pop %v2843
      %v2845 = vmul.f32 %v2293, 1.442695
      %v2846 = vpow.pop %v2845
      %v2847 = vmul.f32 %v2294, 1.442695
      %v2848 = vpow.pop %v2847
      %v2849 = vmul.f32 %v2295, 1.442695
      %v2850 = vpow.pop %v2849
      %v2851 = vmul.f32 %v2296, 1.442695
      %v2852 = vpow.pop %v2851
      %v2853 = vmul.f32 %v2297, 1.442695
      %v2854 = vpow.pop %v2853
      %v2855 = vmul.f32 %v2298, 1.442695
      %v2856 = vpow.pop %v2855
      %v2857 = vmul.f32 %v2299, 1.442695
      %v2858 = vpow.pop %v2857
      %v2859 = vmul.f32 %v2300, 1.442695
      %v2860 = vpow.pop %v2859
      %v2861 = vmul.f32 %v2301, 1.442695
      %v2862 = vpow.pop %v2861
      %v2863 = vmul.f32 %v2302, 1.442695
      %v2864 = vpow.pop %v2863
      %v2865 = vmul.f32 %v2303, 1.442695
      %v2866 = vpow.pop %v2865
      %v2867 = vmul.f32 %v2304, 1.442695
      %v2868 = vpow.pop %v2867
      %v2869 = vmul.f32 %v2305, 1.442695
      %v2870 = vpow.pop %v2869
      %v2871 = vmul.f32 %v2306, 1.442695
      %v2872 = vpow.pop %v2871
      %v2873 = vmul.f32 %v2307, 1.442695
      %v2874 = vpow.pop %v2873
      %v2875 = vmul.f32 %v2308, 1.442695
      %v2876 = vpow.pop %v2875
      %v2877 = vmul.f32 %v2309, 1.442695
      %v2878 = vpow.pop %v2877
      %v2879 = vmul.f32 %v2310, 1.442695
      %v2880 = vpow.pop %v2879
      %v2881 = vmul.f32 %v2311, 1.442695
      %v2882 = vpow.pop %v2881
      %v2883 = vmul.f32 %v2312, 1.442695
      %v2884 = vpow.pop %v2883
      %v2885 = vmul.f32 %v2313, 1.442695
      %v2886 = vpow.pop %v2885
      %v2887 = vmul.f32 %v2314, 1.442695
      %v2888 = vpow.pop %v2887
      %v2889 = vmul.f32 %v2315, 1.442695
      %v2890 = vpow.pop %v2889
      %v2891 = vmul.f32 %v2316, 1.442695
      %v2892 = vpow.pop %v2891
      %v2893 = vmul.f32 %v2317, 1.442695
      %v2894 = vpow.pop %v2893
      %v2895 = vmul.f32 %v2318, 1.442695
      %v2896 = vpow.pop %v2895
      %v2897 = vmul.f32 %v2319, 1.442695
      %v2898 = vpow.pop %v2897
      %v2899 = vmul.f32 %v2320, 1.442695
      %v2900 = vpow.pop %v2899
      %v2901 = vmul.f32 %v2321, 1.442695
      %v2902 = vpow.pop %v2901
      %v2903 = vmul.f32 %v2322, 1.442695
      %v2904 = vpow.pop %v2903
      %v2905 = vmul.f32 %v2323, 1.442695
      %v2906 = vpow.pop %v2905
      %v2907 = vmul.f32 %v2324, 1.442695
      %v2908 = vpow.pop %v2907
      %v2909 = vmul.f32 %v2325, 1.442695
      %v2910 = vpow.pop %v2909
      %v2911 = vmul.f32 %v2326, 1.442695
      %v2912 = vpow.pop %v2911
      %v2913 = vmul.f32 %v2327, 1.442695
      %v2914 = vpow.pop %v2913
      %v2915 = vmul.f32 %v2328, 1.442695
      %v2916 = vpow.pop %v2915
      %v2917 = vmul.f32 %v2329, 1.442695
      %v2918 = vpow.pop %v2917
      %v2919 = vmul.f32 %v2330, 1.442695
      %v2920 = vpow.pop %v2919
      %v2921 = vmul.f32 %v2331, 1.442695
      %v2922 = vpow.pop %v2921
      %v2923 = vmul.f32 %v2332, 1.442695
      %v2924 = vpow.pop %v2923
      %v2925 = vmul.f32 %v2333, 1.442695
      %v2926 = vpow.pop %v2925
      %v2927 = vmul.f32 %v2334, 1.442695
      %v2928 = vpow.pop %v2927
      %v2929 = vmul.f32 %v2335, 1.442695
      %v2930 = vpow.pop %v2929
      %v2931 = vmul.f32 %v2336, 1.442695
      %v2932 = vpow.pop %v2931
      %v2933 = vmul.f32 %v2337, 1.442695
      %v2934 = vpow.pop %v2933
      %v2935 = vmul.f32 %v2338, 1.442695
      %v2936 = vpow.pop %v2935
      %v2937 = vmul.f32 %v2339, 1.442695
      %v2938 = vpow.pop %v2937
      %v2939 = vmul.f32 %v2340, 1.442695
      %v2940 = vpow.pop %v2939
      %v2941 = vmul.f32 %v2341, 1.442695
      %v2942 = vpow.pop %v2941
      %v2943 = vmul.f32 %v2342, 1.442695
      %v2944 = vpow.pop %v2943
      %v2945 = vmul.f32 %v2343, 1.442695
      %v2946 = vpow.pop %v2945
      %v2947 = vmul.f32 %v2344, 1.442695
      %v2948 = vpow.pop %v2947
      %v2949 = vmul.f32 %v2345, 1.442695
      %v2950 = vpow.pop %v2949
      %v2951 = vmul.f32 %v2346, 1.442695
      %v2952 = vpow.pop %v2951
      %v2953 = vmul.f32 %v2347, 1.442695
      %v2954 = vpow.pop %v2953
      %v2955 = vmul.f32 %v2348, 1.442695
      %v2956 = vpow.pop %v2955
      %v2957 = vmul.f32 %v2349, 1.442695
      %v2958 = vpow.pop %v2957
      %v2959 = vmul.f32 %v2350, 1.442695
      %v2960 = vpow.pop %v2959
      %v2961 = vmul.f32 %v2351, 1.442695
      %v2962 = vpow.pop %v2961
      %v2963 = vmul.f32 %v2352, 1.442695
      %v2964 = vpow.pop %v2963
      %v2965 = vmul.f32 %v2353, 1.442695
      %v2966 = vpow.pop %v2965
      %v2967 = vmul.f32 %v2354, 1.442695
      %v2968 = vpow.pop %v2967
      %v2969 = vmul.f32 %v2355, 1.442695
      %v2970 = vpow.pop %v2969
      %v2971 = vmul.f32 %v2356, 1.442695
      %v2972 = vpow.pop %v2971
      %v2973 = vmul.f32 %v2357, 1.442695
      %v2974 = vpow.pop %v2973
      %v2975 = vmul.f32 %v2358, 1.442695
      %v2976 = vpow.pop %v2975
      %v2977 = vmul.f32 %v2359, 1.442695
      %v2978 = vpow.pop %v2977
      %v2979 = vmul.f32 %v2360, 1.442695
      %v2980 = vpow.pop %v2979
      %v2981 = vmul.f32 %v2361, 1.442695
      %v2982 = vpow.pop %v2981
      %v2983 = vmul.f32 %v2362, 1.442695
      %v2984 = vpow.pop %v2983
      %v2985 = vmul.f32 %v2363, 1.442695
      %v2986 = vpow.pop %v2985
      %v2987 = vmul.f32 %v2364, 1.442695
      %v2988 = vpow.pop %v2987
      %v2989 = vmul.f32 %v2365, 1.442695
      %v2990 = vpow.pop %v2989
      %v2991 = vmul.f32 %v2366, 1.442695
      %v2992 = vpow.pop %v2991
      %v2993 = vmul.f32 %v2367, 1.442695
      %v2994 = vpow.pop %v2993
      %v2995 = vmul.f32 %v2368, 1.442695
      %v2996 = vpow.pop %v2995
      %v2997 = vmul.f32 %v2369, 1.442695
      %v2998 = vpow.pop %v2997
      %v2999 = vmul.f32 %v2370, 1.442695
      %v3000 = vpow.pop %v2999
      %v3001 = vmul.f32 %v2371, 1.442695
      %v3002 = vpow.pop %v3001
      %v3003 = vmul.f32 %v2372, 1.442695
      %v3004 = vpow.pop %v3003
      %v3005 = vmul.f32 %v2373, 1.442695
      %v3006 = vpow.pop %v3005
      %v3007 = vmul.f32 %v2374, 1.442695
      %v3008 = vpow.pop %v3007
      %v3009 = vmul.f32 %v2375, 1.442695
      %v3010 = vpow.pop %v3009
      %v3011 = vmul.f32 %v2376, 1.442695
      %v3012 = vpow.pop %v3011
      %v3013 = vmul.f32 %v2377, 1.442695
      %v3014 = vpow.pop %v3013
      %v3015 = vmul.f32 %v2378, 1.442695
      %v3016 = vpow.pop %v3015
      %v3017 = vmul.f32 %v2379, 1.442695
      %v3018 = vpow.pop %v3017
      %v3019 = vmul.f32 %v2380, 1.442695
      %v3020 = vpow.pop %v3019
      %v3021 = vadd.f32 %v2382, 1.0
      %v3022 = vadd.f32 %v2384, 1.0
      %v3023 = vadd.f32 %v2386, 1.0
      %v3024 = vadd.f32 %v2388, 1.0
      %v3025 = vadd.f32 %v2390, 1.0
      %v3026 = vadd.f32 %v2392, 1.0
      %v3027 = vadd.f32 %v2394, 1.0
      %v3028 = vadd.f32 %v2396, 1.0
      %v3029 = vadd.f32 %v2398, 1.0
      %v3030 = vadd.f32 %v2400, 1.0
      %v3031 = vadd.f32 %v2402, 1.0
      %v3032 = vadd.f32 %v2404, 1.0
      %v3033 = vadd.f32 %v2406, 1.0
      %v3034 = vadd.f32 %v2408, 1.0
      %v3035 = vadd.f32 %v2410, 1.0
      %v3036 = vadd.f32 %v2412, 1.0
      %v3037 = vadd.f32 %v2414, 1.0
      %v3038 = vadd.f32 %v2416, 1.0
      %v3039 = vadd.f32 %v2418, 1.0
      %v3040 = vadd.f32 %v2420, 1.0
      %v3041 = vadd.f32 %v2422, 1.0
      %v3042 = vadd.f32 %v2424, 1.0
      %v3043 = vadd.f32 %v2426, 1.0
      %v3044 = vadd.f32 %v2428, 1.0
      %v3045 = vadd.f32 %v2430, 1.0
      %v3046 = vadd.f32 %v2432, 1.0
      %v3047 = vadd.f32 %v2434, 1.0
      %v3048 = vadd.f32 %v2436, 1.0
      %v3049 = vadd.f32 %v2438, 1.0
      %v3050 = vadd.f32 %v2440, 1.0
      %v3051 = vadd.f32 %v2442, 1.0
      %v3052 = vadd.f32 %v2444, 1.0
      %v3053 = vadd.f32 %v2446, 1.0
      %v3054 = vadd.f32 %v2448, 1.0
      %v3055 = vadd.f32 %v2450, 1.0
      %v3056 = vadd.f32 %v2452, 1.0
      %v3057 = vadd.f32 %v2454, 1.0
      %v3058 = vadd.f32 %v2456, 1.0
      %v3059 = vadd.f32 %v2458, 1.0
      %v3060 = vadd.f32 %v2460, 1.0
      %v3061 = vadd.f32 %v2462, 1.0
      %v3062 = vadd.f32 %v2464, 1.0
      %v3063 = vadd.f32 %v2466, 1.0
      %v3064 = vadd.f32 %v2468, 1.0
      %v3065 = vadd.f32 %v2470, 1.0
      %v3066 = vadd.f32 %v2472, 1.0
      %v3067 = vadd.f32 %v2474, 1.0
      %v3068 = vadd.f32 %v2476, 1.0
      %v3069 = vadd.f32 %v2478, 1.0
      %v3070 = vadd.f32 %v2480, 1.0
      %v3071 = vadd.f32 %v2482, 1.0
      %v3072 = vadd.f32 %v2484, 1.0
      %v3073 = vadd.f32 %v2486, 1.0
      %v3074 = vadd.f32 %v2488, 1.0
      %v3075 = vadd.f32 %v2490, 1.0
      %v3076 = vadd.f32 %v2492, 1.0
      %v3077 = vadd.f32 %v2494, 1.0
      %v3078 = vadd.f32 %v2496, 1.0
      %v3079 = vadd.f32 %v2498, 1.0
      %v3080 = vadd.f32 %v2500, 1.0
      %v3081 = vadd.f32 %v2502, 1.0
      %v3082 = vadd.f32 %v2504, 1.0
      %v3083 = vadd.f32 %v2506, 1.0
      %v3084 = vadd.f32 %v2508, 1.0
      %v3085 = vadd.f32 %v2510, 1.0
      %v3086 = vadd.f32 %v2512, 1.0
      %v3087 = vadd.f32 %v2514, 1.0
      %v3088 = vadd.f32 %v2516, 1.0
      %v3089 = vadd.f32 %v2518, 1.0
      %v3090 = vadd.f32 %v2520, 1.0
      %v3091 = vadd.f32 %v2522, 1.0
      %v3092 = vadd.f32 %v2524, 1.0
      %v3093 = vadd.f32 %v2526, 1.0
      %v3094 = vadd.f32 %v2528, 1.0
      %v3095 = vadd.f32 %v2530, 1.0
      %v3096 = vadd.f32 %v2532, 1.0
      %v3097 = vadd.f32 %v2534, 1.0
      %v3098 = vadd.f32 %v2536, 1.0
      %v3099 = vadd.f32 %v2538, 1.0
      %v3100 = vadd.f32 %v2540, 1.0
      %v3101 = vadd.f32 %v2542, 1.0
      %v3102 = vadd.f32 %v2544, 1.0
      %v3103 = vadd.f32 %v2546, 1.0
      %v3104 = vadd.f32 %v2548, 1.0
      %v3105 = vadd.f32 %v2550, 1.0
      %v3106 = vadd.f32 %v2552, 1.0
      %v3107 = vadd.f32 %v2554, 1.0
      %v3108 = vadd.f32 %v2556, 1.0
      %v3109 = vadd.f32 %v2558, 1.0
      %v3110 = vadd.f32 %v2560, 1.0
      %v3111 = vadd.f32 %v2562, 1.0
      %v3112 = vadd.f32 %v2564, 1.0
      %v3113 = vadd.f32 %v2566, 1.0
      %v3114 = vadd.f32 %v2568, 1.0
      %v3115 = vadd.f32 %v2570, 1.0
      %v3116 = vadd.f32 %v2572, 1.0
      %v3117 = vadd.f32 %v2574, 1.0
      %v3118 = vadd.f32 %v2576, 1.0
      %v3119 = vadd.f32 %v2578, 1.0
      %v3120 = vadd.f32 %v2580, 1.0
      %v3121 = vadd.f32 %v2582, 1.0
      %v3122 = vadd.f32 %v2584, 1.0
      %v3123 = vadd.f32 %v2586, 1.0
      %v3124 = vadd.f32 %v2588, 1.0
      %v3125 = vadd.f32 %v2590, 1.0
      %v3126 = vadd.f32 %v2592, 1.0
      %v3127 = vadd.f32 %v2594, 1.0
      %v3128 = vadd.f32 %v2596, 1.0
      %v3129 = vadd.f32 %v2598, 1.0
      %v3130 = vadd.f32 %v2600, 1.0
      %v3131 = vadd.f32 %v2602, 1.0
      %v3132 = vadd.f32 %v2604, 1.0
      %v3133 = vadd.f32 %v2606, 1.0
      %v3134 = vadd.f32 %v2608, 1.0
      %v3135 = vadd.f32 %v2610, 1.0
      %v3136 = vadd.f32 %v2612, 1.0
      %v3137 = vadd.f32 %v2614, 1.0
      %v3138 = vadd.f32 %v2616, 1.0
      %v3139 = vadd.f32 %v2618, 1.0
      %v3140 = vadd.f32 %v2620, 1.0
      %v3141 = vadd.f32 %v2622, 1.0
      %v3142 = vadd.f32 %v2624, 1.0
      %v3143 = vadd.f32 %v2626, 1.0
      %v3144 = vadd.f32 %v2628, 1.0
      %v3145 = vadd.f32 %v2630, 1.0
      %v3146 = vadd.f32 %v2632, 1.0
      %v3147 = vadd.f32 %v2634, 1.0
      %v3148 = vadd.f32 %v2636, 1.0
      %v3149 = vadd.f32 %v2638, 1.0
      %v3150 = vadd.f32 %v2640, 1.0
      %v3151 = vadd.f32 %v2642, 1.0
      %v3152 = vadd.f32 %v2644, 1.0
      %v3153 = vadd.f32 %v2646, 1.0
      %v3154 = vadd.f32 %v2648, 1.0
      %v3155 = vadd.f32 %v2650, 1.0
      %v3156 = vadd.f32 %v2652, 1.0
      %v3157 = vadd.f32 %v2654, 1.0
      %v3158 = vadd.f32 %v2656, 1.0
      %v3159 = vadd.f32 %v2658, 1.0
      %v3160 = vadd.f32 %v2660, 1.0
      %v3161 = vadd.f32 %v2662, 1.0
      %v3162 = vadd.f32 %v2664, 1.0
      %v3163 = vadd.f32 %v2666, 1.0
      %v3164 = vadd.f32 %v2668, 1.0
      %v3165 = vadd.f32 %v2670, 1.0
      %v3166 = vadd.f32 %v2672, 1.0
      %v3167 = vadd.f32 %v2674, 1.0
      %v3168 = vadd.f32 %v2676, 1.0
      %v3169 = vadd.f32 %v2678, 1.0
      %v3170 = vadd.f32 %v2680, 1.0
      %v3171 = vadd.f32 %v2682, 1.0
      %v3172 = vadd.f32 %v2684, 1.0
      %v3173 = vadd.f32 %v2686, 1.0
      %v3174 = vadd.f32 %v2688, 1.0
      %v3175 = vadd.f32 %v2690, 1.0
      %v3176 = vadd.f32 %v2692, 1.0
      %v3177 = vadd.f32 %v2694, 1.0
      %v3178 = vadd.f32 %v2696, 1.0
      %v3179 = vadd.f32 %v2698, 1.0
      %v3180 = vadd.f32 %v2700, 1.0
      %v3181 = vadd.f32 %v2702, 1.0
      %v3182 = vadd.f32 %v2704, 1.0
      %v3183 = vadd.f32 %v2706, 1.0
      %v3184 = vadd.f32 %v2708, 1.0
      %v3185 = vadd.f32 %v2710, 1.0
      %v3186 = vadd.f32 %v2712, 1.0
      %v3187 = vadd.f32 %v2714, 1.0
      %v3188 = vadd.f32 %v2716, 1.0
      %v3189 = vadd.f32 %v2718, 1.0
      %v3190 = vadd.f32 %v2720, 1.0
      %v3191 = vadd.f32 %v2722, 1.0
      %v3192 = vadd.f32 %v2724, 1.0
      %v3193 = vadd.f32 %v2726, 1.0
      %v3194 = vadd.f32 %v2728, 1.0
      %v3195 = vadd.f32 %v2730, 1.0
      %v3196 = vadd.f32 %v2732, 1.0
      %v3197 = vadd.f32 %v2734, 1.0
      %v3198 = vadd.f32 %v2736, 1.0
      %v3199 = vadd.f32 %v2738, 1.0
      %v3200 = vadd.f32 %v2740, 1.0
      %v3201 = vadd.f32 %v2742, 1.0
      %v3202 = vadd.f32 %v2744, 1.0
      %v3203 = vadd.f32 %v2746, 1.0
      %v3204 = vadd.f32 %v2748, 1.0
      %v3205 = vadd.f32 %v2750, 1.0
      %v3206 = vadd.f32 %v2752, 1.0
      %v3207 = vadd.f32 %v2754, 1.0
      %v3208 = vadd.f32 %v2756, 1.0
      %v3209 = vadd.f32 %v2758, 1.0
      %v3210 = vadd.f32 %v2760, 1.0
      %v3211 = vadd.f32 %v2762, 1.0
      %v3212 = vadd.f32 %v2764, 1.0
      %v3213 = vadd.f32 %v2766, 1.0
      %v3214 = vadd.f32 %v2768, 1.0
      %v3215 = vadd.f32 %v2770, 1.0
      %v3216 = vadd.f32 %v2772, 1.0
      %v3217 = vadd.f32 %v2774, 1.0
      %v3218 = vadd.f32 %v2776, 1.0
      %v3219 = vadd.f32 %v2778, 1.0
      %v3220 = vadd.f32 %v2780, 1.0
      %v3221 = vadd.f32 %v2782, 1.0
      %v3222 = vadd.f32 %v2784, 1.0
      %v3223 = vadd.f32 %v2786, 1.0
      %v3224 = vadd.f32 %v2788, 1.0
      %v3225 = vadd.f32 %v2790, 1.0
      %v3226 = vadd.f32 %v2792, 1.0
      %v3227 = vadd.f32 %v2794, 1.0
      %v3228 = vadd.f32 %v2796, 1.0
      %v3229 = vadd.f32 %v2798, 1.0
      %v3230 = vadd.f32 %v2800, 1.0
      %v3231 = vadd.f32 %v2802, 1.0
      %v3232 = vadd.f32 %v2804, 1.0
      %v3233 = vadd.f32 %v2806, 1.0
      %v3234 = vadd.f32 %v2808, 1.0
      %v3235 = vadd.f32 %v2810, 1.0
      %v3236 = vadd.f32 %v2812, 1.0
      %v3237 = vadd.f32 %v2814, 1.0
      %v3238 = vadd.f32 %v2816, 1.0
      %v3239 = vadd.f32 %v2818, 1.0
      %v3240 = vadd.f32 %v2820, 1.0
      %v3241 = vadd.f32 %v2822, 1.0
      %v3242 = vadd.f32 %v2824, 1.0
      %v3243 = vadd.f32 %v2826, 1.0
      %v3244 = vadd.f32 %v2828, 1.0
      %v3245 = vadd.f32 %v2830, 1.0
      %v3246 = vadd.f32 %v2832, 1.0
      %v3247 = vadd.f32 %v2834, 1.0
      %v3248 = vadd.f32 %v2836, 1.0
      %v3249 = vadd.f32 %v2838, 1.0
      %v3250 = vadd.f32 %v2840, 1.0
      %v3251 = vadd.f32 %v2842, 1.0
      %v3252 = vadd.f32 %v2844, 1.0
      %v3253 = vadd.f32 %v2846, 1.0
      %v3254 = vadd.f32 %v2848, 1.0
      %v3255 = vadd.f32 %v2850, 1.0
      %v3256 = vadd.f32 %v2852, 1.0
      %v3257 = vadd.f32 %v2854, 1.0
      %v3258 = vadd.f32 %v2856, 1.0
      %v3259 = vadd.f32 %v2858, 1.0
      %v3260 = vadd.f32 %v2860, 1.0
      %v3261 = vadd.f32 %v2862, 1.0
      %v3262 = vadd.f32 %v2864, 1.0
      %v3263 = vadd.f32 %v2866, 1.0
      %v3264 = vadd.f32 %v2868, 1.0
      %v3265 = vadd.f32 %v2870, 1.0
      %v3266 = vadd.f32 %v2872, 1.0
      %v3267 = vadd.f32 %v2874, 1.0
      %v3268 = vadd.f32 %v2876, 1.0
      %v3269 = vadd.f32 %v2878, 1.0
      %v3270 = vadd.f32 %v2880, 1.0
      %v3271 = vadd.f32 %v2882, 1.0
      %v3272 = vadd.f32 %v2884, 1.0
      %v3273 = vadd.f32 %v2886, 1.0
      %v3274 = vadd.f32 %v2888, 1.0
      %v3275 = vadd.f32 %v2890, 1.0
      %v3276 = vadd.f32 %v2892, 1.0
      %v3277 = vadd.f32 %v2894, 1.0
      %v3278 = vadd.f32 %v2896, 1.0
      %v3279 = vadd.f32 %v2898, 1.0
      %v3280 = vadd.f32 %v2900, 1.0
      %v3281 = vadd.f32 %v2902, 1.0
      %v3282 = vadd.f32 %v2904, 1.0
      %v3283 = vadd.f32 %v2906, 1.0
      %v3284 = vadd.f32 %v2908, 1.0
      %v3285 = vadd.f32 %v2910, 1.0
      %v3286 = vadd.f32 %v2912, 1.0
      %v3287 = vadd.f32 %v2914, 1.0
      %v3288 = vadd.f32 %v2916, 1.0
      %v3289 = vadd.f32 %v2918, 1.0
      %v3290 = vadd.f32 %v2920, 1.0
      %v3291 = vadd.f32 %v2922, 1.0
      %v3292 = vadd.f32 %v2924, 1.0
      %v3293 = vadd.f32 %v2926, 1.0
      %v3294 = vadd.f32 %v2928, 1.0
      %v3295 = vadd.f32 %v2930, 1.0
      %v3296 = vadd.f32 %v2932, 1.0
      %v3297 = vadd.f32 %v2934, 1.0
      %v3298 = vadd.f32 %v2936, 1.0
      %v3299 = vadd.f32 %v2938, 1.0
      %v3300 = vadd.f32 %v2940, 1.0
      %v3301 = vadd.f32 %v2942, 1.0
      %v3302 = vadd.f32 %v2944, 1.0
      %v3303 = vadd.f32 %v2946, 1.0
      %v3304 = vadd.f32 %v2948, 1.0
      %v3305 = vadd.f32 %v2950, 1.0
      %v3306 = vadd.f32 %v2952, 1.0
      %v3307 = vadd.f32 %v2954, 1.0
      %v3308 = vadd.f32 %v2956, 1.0
      %v3309 = vadd.f32 %v2958, 1.0
      %v3310 = vadd.f32 %v2960, 1.0
      %v3311 = vadd.f32 %v2962, 1.0
      %v3312 = vadd.f32 %v2964, 1.0
      %v3313 = vadd.f32 %v2966, 1.0
      %v3314 = vadd.f32 %v2968, 1.0
      %v3315 = vadd.f32 %v2970, 1.0
      %v3316 = vadd.f32 %v2972, 1.0
      %v3317 = vadd.f32 %v2974, 1.0
      %v3318 = vadd.f32 %v2976, 1.0
      %v3319 = vadd.f32 %v2978, 1.0
      %v3320 = vadd.f32 %v2980, 1.0
      %v3321 = vadd.f32 %v2982, 1.0
      %v3322 = vadd.f32 %v2984, 1.0
      %v3323 = vadd.f32 %v2986, 1.0
      %v3324 = vadd.f32 %v2988, 1.0
      %v3325 = vadd.f32 %v2990, 1.0
      %v3326 = vadd.f32 %v2992, 1.0
      %v3327 = vadd.f32 %v2994, 1.0
      %v3328 = vadd.f32 %v2996, 1.0
      %v3329 = vadd.f32 %v2998, 1.0
      %v3330 = vadd.f32 %v3000, 1.0
      %v3331 = vadd.f32 %v3002, 1.0
      %v3332 = vadd.f32 %v3004, 1.0
      %v3333 = vadd.f32 %v3006, 1.0
      %v3334 = vadd.f32 %v3008, 1.0
      %v3335 = vadd.f32 %v3010, 1.0
      %v3336 = vadd.f32 %v3012, 1.0
      %v3337 = vadd.f32 %v3014, 1.0
      %v3338 = vadd.f32 %v3016, 1.0
      %v3339 = vadd.f32 %v3018, 1.0
      %v3340 = vadd.f32 %v3020, 1.0
      %v3341 = vrcp.pop %v3021
      %v3342 = vrcp.pop %v3022
      %v3343 = vrcp.pop %v3023
      %v3344 = vrcp.pop %v3024
      %v3345 = vrcp.pop %v3025
      %v3346 = vrcp.pop %v3026
      %v3347 = vrcp.pop %v3027
      %v3348 = vrcp.pop %v3028
      %v3349 = vrcp.pop %v3029
      %v3350 = vrcp.pop %v3030
      %v3351 = vrcp.pop %v3031
      %v3352 = vrcp.pop %v3032
      %v3353 = vrcp.pop %v3033
      %v3354 = vrcp.pop %v3034
      %v3355 = vrcp.pop %v3035
      %v3356 = vrcp.pop %v3036
      %v3357 = vrcp.pop %v3037
      %v3358 = vrcp.pop %v3038
      %v3359 = vrcp.pop %v3039
      %v3360 = vrcp.pop %v3040
      %v3361 = vrcp.pop %v3041
      %v3362 = vrcp.pop %v3042
      %v3363 = vrcp.pop %v3043
      %v3364 = vrcp.pop %v3044
      %v3365 = vrcp.pop %v3045
      %v3366 = vrcp.pop %v3046
      %v3367 = vrcp.pop %v3047
      %v3368 = vrcp.pop %v3048
      %v3369 = vrcp.pop %v3049
      %v3370 = vrcp.pop %v3050
      %v3371 = vrcp.pop %v3051
      %v3372 = vrcp.pop %v3052
      %v3373 = vrcp.pop %v3053
      %v3374 = vrcp.pop %v3054
      %v3375 = vrcp.pop %v3055
      %v3376 = vrcp.pop %v3056
      %v3377 = vrcp.pop %v3057
      %v3378 = vrcp.pop %v3058
      %v3379 = vrcp.pop %v3059
      %v3380 = vrcp.pop %v3060
      %v3381 = vrcp.pop %v3061
      %v3382 = vrcp.pop %v3062
      %v3383 = vrcp.pop %v3063
      %v3384 = vrcp.pop %v3064
      %v3385 = vrcp.pop %v3065
      %v3386 = vrcp.pop %v3066
      %v3387 = vrcp.pop %v3067
      %v3388 = vrcp.pop %v3068
      %v3389 = vrcp.pop %v3069
      %v3390 = vrcp.pop %v3070
      %v3391 = vrcp.pop %v3071
      %v3392 = vrcp.pop %v3072
      %v3393 = vrcp.pop %v3073
      %v3394 = vrcp.pop %v3074
      %v3395 = vrcp.pop %v3075
      %v3396 = vrcp.pop %v3076
      %v3397 = vrcp.pop %v3077
      %v3398 = vrcp.pop %v3078
      %v3399 = vrcp.pop %v3079
      %v3400 = vrcp.pop %v3080
      %v3401 = vrcp.pop %v3081
      %v3402 = vrcp.pop %v3082
      %v3403 = vrcp.pop %v3083
      %v3404 = vrcp.pop %v3084
      %v3405 = vrcp.pop %v3085
      %v3406 = vrcp.pop %v3086
      %v3407 = vrcp.pop %v3087
      %v3408 = vrcp.pop %v3088
      %v3409 = vrcp.pop %v3089
      %v3410 = vrcp.pop %v3090
      %v3411 = vrcp.pop %v3091
      %v3412 = vrcp.pop %v3092
      %v3413 = vrcp.pop %v3093
      %v3414 = vrcp.pop %v3094
      %v3415 = vrcp.pop %v3095
      %v3416 = vrcp.pop %v3096
      %v3417 = vrcp.pop %v3097
      %v3418 = vrcp.pop %v3098
      %v3419 = vrcp.pop %v3099
      %v3420 = vrcp.pop %v3100
      %v3421 = vrcp.pop %v3101
      %v3422 = vrcp.pop %v3102
      %v3423 = vrcp.pop %v3103
      %v3424 = vrcp.pop %v3104
      %v3425 = vrcp.pop %v3105
      %v3426 = vrcp.pop %v3106
      %v3427 = vrcp.pop %v3107
      %v3428 = vrcp.pop %v3108
      %v3429 = vrcp.pop %v3109
      %v3430 = vrcp.pop %v3110
      %v3431 = vrcp.pop %v3111
      %v3432 = vrcp.pop %v3112
      %v3433 = vrcp.pop %v3113
      %v3434 = vrcp.pop %v3114
      %v3435 = vrcp.pop %v3115
      %v3436 = vrcp.pop %v3116
      %v3437 = vrcp.pop %v3117
      %v3438 = vrcp.pop %v3118
      %v3439 = vrcp.pop %v3119
      %v3440 = vrcp.pop %v3120
      %v3441 = vrcp.pop %v3121
      %v3442 = vrcp.pop %v3122
      %v3443 = vrcp.pop %v3123
      %v3444 = vrcp.pop %v3124
      %v3445 = vrcp.pop %v3125
      %v3446 = vrcp.pop %v3126
      %v3447 = vrcp.pop %v3127
      %v3448 = vrcp.pop %v3128
      %v3449 = vrcp.pop %v3129
      %v3450 = vrcp.pop %v3130
      %v3451 = vrcp.pop %v3131
      %v3452 = vrcp.pop %v3132
      %v3453 = vrcp.pop %v3133
      %v3454 = vrcp.pop %v3134
      %v3455 = vrcp.pop %v3135
      %v3456 = vrcp.pop %v3136
      %v3457 = vrcp.pop %v3137
      %v3458 = vrcp.pop %v3138
      %v3459 = vrcp.pop %v3139
      %v3460 = vrcp.pop %v3140
      %v3461 = vrcp.pop %v3141
      %v3462 = vrcp.pop %v3142
      %v3463 = vrcp.pop %v3143
      %v3464 = vrcp.pop %v3144
      %v3465 = vrcp.pop %v3145
      %v3466 = vrcp.pop %v3146
      %v3467 = vrcp.pop %v3147
      %v3468 = vrcp.pop %v3148
      %v3469 = vrcp.pop %v3149
      %v3470 = vrcp.pop %v3150
      %v3471 = vrcp.pop %v3151
      %v3472 = vrcp.pop %v3152
      %v3473 = vrcp.pop %v3153
      %v3474 = vrcp.pop %v3154
      %v3475 = vrcp.pop %v3155
      %v3476 = vrcp.pop %v3156
      %v3477 = vrcp.pop %v3157
      %v3478 = vrcp.pop %v3158
      %v3479 = vrcp.pop %v3159
      %v3480 = vrcp.pop %v3160
      %v3481 = vrcp.pop %v3161
      %v3482 = vrcp.pop %v3162
      %v3483 = vrcp.pop %v3163
      %v3484 = vrcp.pop %v3164
      %v3485 = vrcp.pop %v3165
      %v3486 = vrcp.pop %v3166
      %v3487 = vrcp.pop %v3167
      %v3488 = vrcp.pop %v3168
      %v3489 = vrcp.pop %v3169
      %v3490 = vrcp.pop %v3170
      %v3491 = vrcp.pop %v3171
      %v3492 = vrcp.pop %v3172
      %v3493 = vrcp.pop %v3173
      %v3494 = vrcp.pop %v3174
      %v3495 = vrcp.pop %v3175
      %v3496 = vrcp.pop %v3176
      %v3497 = vrcp.pop %v3177
      %v3498 = vrcp.pop %v3178
      %v3499 = vrcp.pop %v3179
      %v3500 = vrcp.pop %v3180
      %v3501 = vrcp.pop %v3181
      %v3502 = vrcp.pop %v3182
      %v3503 = vrcp.pop %v3183
      %v3504 = vrcp.pop %v3184
      %v3505 = vrcp.pop %v3185
      %v3506 = vrcp.pop %v3186
      %v3507 = vrcp.pop %v3187
      %v3508 = vrcp.pop %v3188
      %v3509 = vrcp.pop %v3189
      %v3510 = vrcp.pop %v3190
      %v3511 = vrcp.pop %v3191
      %v3512 = vrcp.pop %v3192
      %v3513 = vrcp.pop %v3193
      %v3514 = vrcp.pop %v3194
      %v3515 = vrcp.pop %v3195
      %v3516 = vrcp.pop %v3196
      %v3517 = vrcp.pop %v3197
      %v3518 = vrcp.pop %v3198
      %v3519 = vrcp.pop %v3199
      %v3520 = vrcp.pop %v3200
      %v3521 = vrcp.pop %v3201
      %v3522 = vrcp.pop %v3202
      %v3523 = vrcp.pop %v3203
      %v3524 = vrcp.pop %v3204
      %v3525 = vrcp.pop %v3205
      %v3526 = vrcp.pop %v3206
      %v3527 = vrcp.pop %v3207
      %v3528 = vrcp.pop %v3208
      %v3529 = vrcp.pop %v3209
      %v3530 = vrcp.pop %v3210
      %v3531 = vrcp.pop %v3211
      %v3532 = vrcp.pop %v3212
      %v3533 = vrcp.pop %v3213
      %v3534 = vrcp.pop %v3214
      %v3535 = vrcp.pop %v3215
      %v3536 = vrcp.pop %v3216
      %v3537 = vrcp.pop %v3217
      %v3538 = vrcp.pop %v3218
      %v3539 = vrcp.pop %v3219
      %v3540 = vrcp.pop %v3220
      %v3541 = vrcp.pop %v3221
      %v3542 = vrcp.pop %v3222
      %v3543 = vrcp.pop %v3223
      %v3544 = vrcp.pop %v3224
      %v3545 = vrcp.pop %v3225
      %v3546 = vrcp.pop %v3226
      %v3547 = vrcp.pop %v3227
      %v3548 = vrcp.pop %v3228
      %v3549 = vrcp.pop %v3229
      %v3550 = vrcp.pop %v3230
      %v3551 = vrcp.pop %v3231
      %v3552 = vrcp.pop %v3232
      %v3553 = vrcp.pop %v3233
      %v3554 = vrcp.pop %v3234
      %v3555 = vrcp.pop %v3235
      %v3556 = vrcp.pop %v3236
      %v3557 = vrcp.pop %v3237
      %v3558 = vrcp.pop %v3238
      %v3559 = vrcp.pop %v3239
      %v3560 = vrcp.pop %v3240
      %v3561 = vrcp.pop %v3241
      %v3562 = vrcp.pop %v3242
      %v3563 = vrcp.pop %v3243
      %v3564 = vrcp.pop %v3244
      %v3565 = vrcp.pop %v3245
      %v3566 = vrcp.pop %v3246
      %v3567 = vrcp.pop %v3247
      %v3568 = vrcp.pop %v3248
      %v3569 = vrcp.pop %v3249
      %v3570 = vrcp.pop %v3250
      %v3571 = vrcp.pop %v3251
      %v3572 = vrcp.pop %v3252
      %v3573 = vrcp.pop %v3253
      %v3574 = vrcp.pop %v3254
      %v3575 = vrcp.pop %v3255
      %v3576 = vrcp.pop %v3256
      %v3577 = vrcp.pop %v3257
      %v3578 = vrcp.pop %v3258
      %v3579 = vrcp.pop %v3259
      %v3580 = vrcp.pop %v3260
      %v3581 = vrcp.pop %v3261
      %v3582 = vrcp.pop %v3262
      %v3583 = vrcp.pop %v3263
      %v3584 = vrcp.pop %v3264
      %v3585 = vrcp.pop %v3265
      %v3586 = vrcp.pop %v3266
      %v3587 = vrcp.pop %v3267
      %v3588 = vrcp.pop %v3268
      %v3589 = vrcp.pop %v3269
      %v3590 = vrcp.pop %v3270
      %v3591 = vrcp.pop %v3271
      %v3592 = vrcp.pop %v3272
      %v3593 = vrcp.pop %v3273
      %v3594 = vrcp.pop %v3274
      %v3595 = vrcp.pop %v3275
      %v3596 = vrcp.pop %v3276
      %v3597 = vrcp.pop %v3277
      %v3598 = vrcp.pop %v3278
      %v3599 = vrcp.pop %v3279
      %v3600 = vrcp.pop %v3280
      %v3601 = vrcp.pop %v3281
      %v3602 = vrcp.pop %v3282
      %v3603 = vrcp.pop %v3283
      %v3604 = vrcp.pop %v3284
      %v3605 = vrcp.pop %v3285
      %v3606 = vrcp.pop %v3286
      %v3607 = vrcp.pop %v3287
      %v3608 = vrcp.pop %v3288
      %v3609 = vrcp.pop %v3289
      %v3610 = vrcp.pop %v3290
      %v3611 = vrcp.pop %v3291
      %v3612 = vrcp.pop %v3292
      %v3613 = vrcp.pop %v3293
      %v3614 = vrcp.pop %v3294
      %v3615 = vrcp.pop %v3295
      %v3616 = vrcp.pop %v3296
      %v3617 = vrcp.pop %v3297
      %v3618 = vrcp.pop %v3298
      %v3619 = vrcp.pop %v3299
      %v3620 = vrcp.pop %v3300
      %v3621 = vrcp.pop %v3301
      %v3622 = vrcp.pop %v3302
      %v3623 = vrcp.pop %v3303
      %v3624 = vrcp.pop %v3304
      %v3625 = vrcp.pop %v3305
      %v3626 = vrcp.pop %v3306
      %v3627 = vrcp.pop %v3307
      %v3628 = vrcp.pop %v3308
      %v3629 = vrcp.pop %v3309
      %v3630 = vrcp.pop %v3310
      %v3631 = vrcp.pop %v3311
      %v3632 = vrcp.pop %v3312
      %v3633 = vrcp.pop %v3313
      %v3634 = vrcp.pop %v3314
      %v3635 = vrcp.pop %v3315
      %v3636 = vrcp.pop %v3316
      %v3637 = vrcp.pop %v3317
      %v3638 = vrcp.pop %v3318
      %v3639 = vrcp.pop %v3319
      %v3640 = vrcp.pop %v3320
      %v3641 = vrcp.pop %v3321
      %v3642 = vrcp.pop %v3322
      %v3643 = vrcp.pop %v3323
      %v3644 = vrcp.pop %v3324
      %v3645 = vrcp.pop %v3325
      %v3646 = vrcp.pop %v3326
      %v3647 = vrcp.pop %v3327
      %v3648 = vrcp.pop %v3328
      %v3649 = vrcp.pop %v3329
      %v3650 = vrcp.pop %v3330
      %v3651 = vrcp.pop %v3331
      %v3652 = vrcp.pop %v3332
      %v3653 = vrcp.pop %v3333
      %v3654 = vrcp.pop %v3334
      %v3655 = vrcp.pop %v3335
      %v3656 = vrcp.pop %v3336
      %v3657 = vrcp.pop %v3337
      %v3658 = vrcp.pop %v3338
      %v3659 = vrcp.pop %v3339
      %v3660 = vrcp.pop %v3340
      %v3661 = vmul.f32 %v1131, %v3341
      %v3662 = vmul.f32 %v1133, %v3342
      %v3663 = vmul.f32 %v1324, %v3343
      %v3664 = vmul.f32 %v1326, %v3344
      %v3665 = vmul.f32 %v1517, %v3345
      %v3666 = vmul.f32 %v1519, %v3346
      %v3667 = vmul.f32 %v1710, %v3347
      %v3668 = vmul.f32 %v1712, %v3348
      %v3669 = vmul.f32 %v1903, %v3349
      %v3670 = vmul.f32 %v1905, %v3350
      %v3671 = vmul.f32 %v1135, %v3351
      %v3672 = vmul.f32 %v1137, %v3352
      %v3673 = vmul.f32 %v1328, %v3353
      %v3674 = vmul.f32 %v1330, %v3354
      %v3675 = vmul.f32 %v1521, %v3355
      %v3676 = vmul.f32 %v1523, %v3356
      %v3677 = vmul.f32 %v1714, %v3357
      %v3678 = vmul.f32 %v1716, %v3358
      %v3679 = vmul.f32 %v1907, %v3359
      %v3680 = vmul.f32 %v1909, %v3360
      %v3681 = vmul.f32 %v1141, %v3361
      %v3682 = vmul.f32 %v1143, %v3362
      %v3683 = vmul.f32 %v1334, %v3363
      %v3684 = vmul.f32 %v1336, %v3364
      %v3685 = vmul.f32 %v1527, %v3365
      %v3686 = vmul.f32 %v1529, %v3366
      %v3687 = vmul.f32 %v1720, %v3367
      %v3688 = vmul.f32 %v1722, %v3368
      %v3689 = vmul.f32 %v1913, %v3369
      %v3690 = vmul.f32 %v1915, %v3370
      %v3691 = vmul.f32 %v1145, %v3371
      %v3692 = vmul.f32 %v1147, %v3372
      %v3693 = vmul.f32 %v1338, %v3373
      %v3694 = vmul.f32 %v1340, %v3374
      %v3695 = vmul.f32 %v1531, %v3375
      %v3696 = vmul.f32 %v1533, %v3376
      %v3697 = vmul.f32 %v1724, %v3377
      %v3698 = vmul.f32 %v1726, %v3378
      %v3699 = vmul.f32 %v1917, %v3379
      %v3700 = vmul.f32 %v1919, %v3380
      %v3701 = vmul.f32 %v1151, %v3381
      %v3702 = vmul.f32 %v1153, %v3382
      %v3703 = vmul.f32 %v1344, %v3383
      %v3704 = vmul.f32 %v1346, %v3384
      %v3705 = vmul.f32 %v1537, %v3385
      %v3706 = vmul.f32 %v1539, %v3386
      %v3707 = vmul.f32 %v1730, %v3387
      %v3708 = vmul.f32 %v1732, %v3388
      %v3709 = vmul.f32 %v1923, %v3389
      %v3710 = vmul.f32 %v1925, %v3390
      %v3711 = vmul.f32 %v1155, %v3391
      %v3712 = vmul.f32 %v1157, %v3392
      %v3713 = vmul.f32 %v1348, %v3393
      %v3714 = vmul.f32 %v1350, %v3394
      %v3715 = vmul.f32 %v1541, %v3395
      %v3716 = vmul.f32 %v1543, %v3396
      %v3717 = vmul.f32 %v1734, %v3397
      %v3718 = vmul.f32 %v1736, %v3398
      %v3719 = vmul.f32 %v1927, %v3399
      %v3720 = vmul.f32 %v1929, %v3400
      %v3721 = vmul.f32 %v1161, %v3401
      %v3722 = vmul.f32 %v1163, %v3402
      %v3723 = vmul.f32 %v1354, %v3403
      %v3724 = vmul.f32 %v1356, %v3404
      %v3725 = vmul.f32 %v1547, %v3405
      %v3726 = vmul.f32 %v1549, %v3406
      %v3727 = vmul.f32 %v1740, %v3407
      %v3728 = vmul.f32 %v1742, %v3408
      %v3729 = vmul.f32 %v1933, %v3409
      %v3730 = vmul.f32 %v1935, %v3410
      %v3731 = vmul.f32 %v1165, %v3411
      %v3732 = vmul.f32 %v1167, %v3412
      %v3733 = vmul.f32 %v1358, %v3413
      %v3734 = vmul.f32 %v1360, %v3414
      %v3735 = vmul.f32 %v1551, %v3415
      %v3736 = vmul.f32 %v1553, %v3416
      %v3737 = vmul.f32 %v1744, %v3417
      %v3738 = vmul.f32 %v1746, %v3418
      %v3739 = vmul.f32 %v1937, %v3419
      %v3740 = vmul.f32 %v1939, %v3420
      %v3741 = vmul.f32 %v1171, %v3421
      %v3742 = vmul.f32 %v1173, %v3422
      %v3743 = vmul.f32 %v1364, %v3423
      %v3744 = vmul.f32 %v1366, %v3424
      %v3745 = vmul.f32 %v1557, %v3425
      %v3746 = vmul.f32 %v1559, %v3426
      %v3747 = vmul.f32 %v1750, %v3427
      %v3748 = vmul.f32 %v1752, %v3428
      %v3749 = vmul.f32 %v1943, %v3429
      %v3750 = vmul.f32 %v1945, %v3430
      %v3751 = vmul.f32 %v1175, %v3431
      %v3752 = vmul.f32 %v1177, %v3432
      %v3753 = vmul.f32 %v1368, %v3433
      %v3754 = vmul.f32 %v1370, %v3434
      %v3755 = vmul.f32 %v1561, %v3435
      %v3756 = vmul.f32 %v1563, %v3436
      %v3757 = vmul.f32 %v1754, %v3437
      %v3758 = vmul.f32 %v1756, %v3438
      %v3759 = vmul.f32 %v1947, %v3439
      %v3760 = vmul.f32 %v1949, %v3440
      %v3761 = vmul.f32 %v1181, %v3441
      %v3762 = vmul.f32 %v1183, %v3442
      %v3763 = vmul.f32 %v1374, %v3443
      %v3764 = vmul.f32 %v1376, %v3444
      %v3765 = vmul.f32 %v1567, %v3445
      %v3766 = vmul.f32 %v1569, %v3446
      %v3767 = vmul.f32 %v1760, %v3447
      %v3768 = vmul.f32 %v1762, %v3448
      %v3769 = vmul.f32 %v1953, %v3449
      %v3770 = vmul.f32 %v1955, %v3450
      %v3771 = vmul.f32 %v1185, %v3451
      %v3772 = vmul.f32 %v1187, %v3452
      %v3773 = vmul.f32 %v1378, %v3453
      %v3774 = vmul.f32 %v1380, %v3454
      %v3775 = vmul.f32 %v1571, %v3455
      %v3776 = vmul.f32 %v1573, %v3456
      %v3777 = vmul.f32 %v1764, %v3457
      %v3778 = vmul.f32 %v1766, %v3458
      %v3779 = vmul.f32 %v1957, %v3459
      %v3780 = vmul.f32 %v1959, %v3460
      %v3781 = vmul.f32 %v1191, %v3461
      %v3782 = vmul.f32 %v1193, %v3462
      %v3783 = vmul.f32 %v1384, %v3463
      %v3784 = vmul.f32 %v1386, %v3464
      %v3785 = vmul.f32 %v1577, %v3465
      %v3786 = vmul.f32 %v1579, %v3466
      %v3787 = vmul.f32 %v1770, %v3467
      %v3788 = vmul.f32 %v1772, %v3468
      %v3789 = vmul.f32 %v1963, %v3469
      %v3790 = vmul.f32 %v1965, %v3470
      %v3791 = vmul.f32 %v1195, %v3471
      %v3792 = vmul.f32 %v1197, %v3472
      %v3793 = vmul.f32 %v1388, %v3473
      %v3794 = vmul.f32 %v1390, %v3474
      %v3795 = vmul.f32 %v1581, %v3475
      %v3796 = vmul.f32 %v1583, %v3476
      %v3797 = vmul.f32 %v1774, %v3477
      %v3798 = vmul.f32 %v1776, %v3478
      %v3799 = vmul.f32 %v1967, %v3479
      %v3800 = vmul.f32 %v1969, %v3480
      %v3801 = vmul.f32 %v1201, %v3481
      %v3802 = vmul.f32 %v1203, %v3482
      %v3803 = vmul.f32 %v1394, %v3483
      %v3804 = vmul.f32 %v1396, %v3484
      %v3805 = vmul.f32 %v1587, %v3485
      %v3806 = vmul.f32 %v1589, %v3486
      %v3807 = vmul.f32 %v1780, %v3487
      %v3808 = vmul.f32 %v1782, %v3488
      %v3809 = vmul.f32 %v1973, %v3489
      %v3810 = vmul.f32 %v1975, %v3490
      %v3811 = vmul.f32 %v1205, %v3491
      %v3812 = vmul.f32 %v1207, %v3492
      %v3813 = vmul.f32 %v1398, %v3493
      %v3814 = vmul.f32 %v1400, %v3494
      %v3815 = vmul.f32 %v1591, %v3495
      %v3816 = vmul.f32 %v1593, %v3496
      %v3817 = vmul.f32 %v1784, %v3497
      %v3818 = vmul.f32 %v1786, %v3498
      %v3819 = vmul.f32 %v1977, %v3499
      %v3820 = vmul.f32 %v1979, %v3500
      %v3821 = vmul.f32 %v1211, %v3501
      %v3822 = vmul.f32 %v1213, %v3502
      %v3823 = vmul.f32 %v1404, %v3503
      %v3824 = vmul.f32 %v1406, %v3504
      %v3825 = vmul.f32 %v1597, %v3505
      %v3826 = vmul.f32 %v1599, %v3506
      %v3827 = vmul.f32 %v1790, %v3507
      %v3828 = vmul.f32 %v1792, %v3508
      %v3829 = vmul.f32 %v1983, %v3509
      %v3830 = vmul.f32 %v1985, %v3510
      %v3831 = vmul.f32 %v1215, %v3511
      %v3832 = vmul.f32 %v1217, %v3512
      %v3833 = vmul.f32 %v1408, %v3513
      %v3834 = vmul.f32 %v1410, %v3514
      %v3835 = vmul.f32 %v1601, %v3515
      %v3836 = vmul.f32 %v1603, %v3516
      %v3837 = vmul.f32 %v1794, %v3517
      %v3838 = vmul.f32 %v1796, %v3518
      %v3839 = vmul.f32 %v1987, %v3519
      %v3840 = vmul.f32 %v1989, %v3520
      %v3841 = vmul.f32 %v1221, %v3521
      %v3842 = vmul.f32 %v1223, %v3522
      %v3843 = vmul.f32 %v1414, %v3523
      %v3844 = vmul.f32 %v1416, %v3524
      %v3845 = vmul.f32 %v1607, %v3525
      %v3846 = vmul.f32 %v1609, %v3526
      %v3847 = vmul.f32 %v1800, %v3527
      %v3848 = vmul.f32 %v1802, %v3528
      %v3849 = vmul.f32 %v1993, %v3529
      %v3850 = vmul.f32 %v1995, %v3530
      %v3851 = vmul.f32 %v1225, %v3531
      %v3852 = vmul.f32 %v1227, %v3532
      %v3853 = vmul.f32 %v1418, %v3533
      %v3854 = vmul.f32 %v1420, %v3534
      %v3855 = vmul.f32 %v1611, %v3535
      %v3856 = vmul.f32 %v1613, %v3536
      %v3857 = vmul.f32 %v1804, %v3537
      %v3858 = vmul.f32 %v1806, %v3538
      %v3859 = vmul.f32 %v1997, %v3539
      %v3860 = vmul.f32 %v1999, %v3540
      %v3861 = vmul.f32 %v1231, %v3541
      %v3862 = vmul.f32 %v1233, %v3542
      %v3863 = vmul.f32 %v1424, %v3543
      %v3864 = vmul.f32 %v1426, %v3544
      %v3865 = vmul.f32 %v1617, %v3545
      %v3866 = vmul.f32 %v1619, %v3546
      %v3867 = vmul.f32 %v1810, %v3547
      %v3868 = vmul.f32 %v1812, %v3548
      %v3869 = vmul.f32 %v2003, %v3549
      %v3870 = vmul.f32 %v2005, %v3550
      %v3871 = vmul.f32 %v1235, %v3551
      %v3872 = vmul.f32 %v1237, %v3552
      %v3873 = vmul.f32 %v1428, %v3553
      %v3874 = vmul.f32 %v1430, %v3554
      %v3875 = vmul.f32 %v1621, %v3555
      %v3876 = vmul.f32 %v1623, %v3556
      %v3877 = vmul.f32 %v1814, %v3557
      %v3878 = vmul.f32 %v1816, %v3558
      %v3879 = vmul.f32 %v2007, %v3559
      %v3880 = vmul.f32 %v2009, %v3560
      %v3881 = vmul.f32 %v1241, %v3561
      %v3882 = vmul.f32 %v1243, %v3562
      %v3883 = vmul.f32 %v1434, %v3563
      %v3884 = vmul.f32 %v1436, %v3564
      %v3885 = vmul.f32 %v1627, %v3565
      %v3886 = vmul.f32 %v1629, %v3566
      %v3887 = vmul.f32 %v1820, %v3567
      %v3888 = vmul.f32 %v1822, %v3568
      %v3889 = vmul.f32 %v2013, %v3569
      %v3890 = vmul.f32 %v2015, %v3570
      %v3891 = vmul.f32 %v1245, %v3571
      %v3892 = vmul.f32 %v1247, %v3572
      %v3893 = vmul.f32 %v1438, %v3573
      %v3894 = vmul.f32 %v1440, %v3574
      %v3895 = vmul.f32 %v1631, %v3575
      %v3896 = vmul.f32 %v1633, %v3576
      %v3897 = vmul.f32 %v1824, %v3577
      %v3898 = vmul.f32 %v1826, %v3578
      %v3899 = vmul.f32 %v2017, %v3579
      %v3900 = vmul.f32 %v2019, %v3580
      %v3901 = vmul.f32 %v1251, %v3581
      %v3902 = vmul.f32 %v1253, %v3582
      %v3903 = vmul.f32 %v1444, %v3583
      %v3904 = vmul.f32 %v1446, %v3584
      %v3905 = vmul.f32 %v1637, %v3585
      %v3906 = vmul.f32 %v1639, %v3586
      %v3907 = vmul.f32 %v1830, %v3587
      %v3908 = vmul.f32 %v1832, %v3588
      %v3909 = vmul.f32 %v2023, %v3589
      %v3910 = vmul.f32 %v2025, %v3590
      %v3911 = vmul.f32 %v1255, %v3591
      %v3912 = vmul.f32 %v1257, %v3592
      %v3913 = vmul.f32 %v1448, %v3593
      %v3914 = vmul.f32 %v1450, %v3594
      %v3915 = vmul.f32 %v1641, %v3595
      %v3916 = vmul.f32 %v1643, %v3596
      %v3917 = vmul.f32 %v1834, %v3597
      %v3918 = vmul.f32 %v1836, %v3598
      %v3919 = vmul.f32 %v2027, %v3599
      %v3920 = vmul.f32 %v2029, %v3600
      %v3921 = vmul.f32 %v1261, %v3601
      %v3922 = vmul.f32 %v1263, %v3602
      %v3923 = vmul.f32 %v1454, %v3603
      %v3924 = vmul.f32 %v1456, %v3604
      %v3925 = vmul.f32 %v1647, %v3605
      %v3926 = vmul.f32 %v1649, %v3606
      %v3927 = vmul.f32 %v1840, %v3607
      %v3928 = vmul.f32 %v1842, %v3608
      %v3929 = vmul.f32 %v2033, %v3609
      %v3930 = vmul.f32 %v2035, %v3610
      %v3931 = vmul.f32 %v1265, %v3611
      %v3932 = vmul.f32 %v1267, %v3612
      %v3933 = vmul.f32 %v1458, %v3613
      %v3934 = vmul.f32 %v1460, %v3614
      %v3935 = vmul.f32 %v1651, %v3615
      %v3936 = vmul.f32 %v1653, %v3616
      %v3937 = vmul.f32 %v1844, %v3617
      %v3938 = vmul.f32 %v1846, %v3618
      %v3939 = vmul.f32 %v2037, %v3619
      %v3940 = vmul.f32 %v2039, %v3620
      %v3941 = vmul.f32 %v1271, %v3621
      %v3942 = vmul.f32 %v1273, %v3622
      %v3943 = vmul.f32 %v1464, %v3623
      %v3944 = vmul.f32 %v1466, %v3624
      %v3945 = vmul.f32 %v1657, %v3625
      %v3946 = vmul.f32 %v1659, %v3626
      %v3947 = vmul.f32 %v1850, %v3627
      %v3948 = vmul.f32 %v1852, %v3628
      %v3949 = vmul.f32 %v2043, %v3629
      %v3950 = vmul.f32 %v2045, %v3630
      %v3951 = vmul.f32 %v1275, %v3631
      %v3952 = vmul.f32 %v1277, %v3632
      %v3953 = vmul.f32 %v1468, %v3633
      %v3954 = vmul.f32 %v1470, %v3634
      %v3955 = vmul.f32 %v1661, %v3635
      %v3956 = vmul.f32 %v1663, %v3636
      %v3957 = vmul.f32 %v1854, %v3637
      %v3958 = vmul.f32 %v1856, %v3638
      %v3959 = vmul.f32 %v2047, %v3639
      %v3960 = vmul.f32 %v2049, %v3640
      %v3961 = vmul.f32 %v1281, %v3641
      %v3962 = vmul.f32 %v1283, %v3642
      %v3963 = vmul.f32 %v1474, %v3643
      %v3964 = vmul.f32 %v1476, %v3644
      %v3965 = vmul.f32 %v1667, %v3645
      %v3966 = vmul.f32 %v1669, %v3646
      %v3967 = vmul.f32 %v1860, %v3647
      %v3968 = vmul.f32 %v1862, %v3648
      %v3969 = vmul.f32 %v2053, %v3649
      %v3970 = vmul.f32 %v2055, %v3650
      %v3971 = vmul.f32 %v1285, %v3651
      %v3972 = vmul.f32 %v1287, %v3652
      %v3973 = vmul.f32 %v1478, %v3653
      %v3974 = vmul.f32 %v1480, %v3654
      %v3975 = vmul.f32 %v1671, %v3655
      %v3976 = vmul.f32 %v1673, %v3656
      %v3977 = vmul.f32 %v1864, %v3657
      %v3978 = vmul.f32 %v1866, %v3658
      %v3979 = vmul.f32 %v2057, %v3659
      %v3980 = vmul.f32 %v2059, %v3660
      %v3981 = vld [vmem:[#allocation2] sm:$0xff]
      %v3982 = vld [vmem:[#allocation2 + $0x8] sm:$0x3]
      %v3983 = vadd.f32 %v3661, %v3671
      %v3984 = vadd.f32 %v3983, %v3681
      %v3985 = vadd.f32 %v3984, %v3691
      %v3986 = vadd.f32 %v3985, %v3701
      %v3987 = vadd.f32 %v3986, %v3711
      %v3988 = vadd.f32 %v3987, %v3721
      %v3989 = vadd.f32 %v3988, %v3731
      %v3990 = vadd.f32 %v3989, %v3741
      %v3991 = vadd.f32 %v3990, %v3751
      %v3992 = vadd.f32 %v3991, %v3761
      %v3993 = vadd.f32 %v3992, %v3771
      %v3994 = vadd.f32 %v3993, %v3781
      %v3995 = vadd.f32 %v3994, %v3791
      %v3996 = vadd.f32 %v3995, %v3801
      %v3997 = vadd.f32 %v3996, %v3811
      %v3998 = vadd.f32 %v3997, %v3821
      %v3999 = vadd.f32 %v3998, %v3831
      %v4000 = vadd.f32 %v3999, %v3841
      %v4001 = vadd.f32 %v4000, %v3851
      %v4002 = vadd.f32 %v4001, %v3861
      %v4003 = vadd.f32 %v4002, %v3871
      %v4004 = vadd.f32 %v4003, %v3881
      %v4005 = vadd.f32 %v4004, %v3891
      %v4006 = vadd.f32 %v4005, %v3901
      %v4007 = vadd.f32 %v4006, %v3911
      %v4008 = vadd.f32 %v4007, %v3921
      %v4009 = vadd.f32 %v4008, %v3931
      %v4010 = vadd.f32 %v4009, %v3941
      %v4011 = vadd.f32 %v4010, %v3951
      %v4012 = vadd.f32 %v4011, %v3961
      %v4013 = vadd.f32 %v4012, %v3971
      %v4014 = vrot.slane %v4013, 4
      %v4015 = vadd.f32 %v4013, %v4014
      %v4016 = vrot.slane %v4015, 2
      %v4017 = vadd.f32 %v4015, %v4016
      %v4018 = vrot.slane %v4017, 1
      %v4019 = vadd.f32 %v4017, %v4018
      %v4020 = vadd.f32 %v3662, %v3672
      %v4021 = vadd.f32 %v4020, %v3682
      %v4022 = vadd.f32 %v4021, %v3692
      %v4023 = vadd.f32 %v4022, %v3702
      %v4024 = vadd.f32 %v4023, %v3712
      %v4025 = vadd.f32 %v4024, %v3722
      %v4026 = vadd.f32 %v4025, %v3732
      %v4027 = vadd.f32 %v4026, %v3742
      %v4028 = vadd.f32 %v4027, %v3752
      %v4029 = vadd.f32 %v4028, %v3762
      %v4030 = vadd.f32 %v4029, %v3772
      %v4031 = vadd.f32 %v4030, %v3782
      %v4032 = vadd.f32 %v4031, %v3792
      %v4033 = vadd.f32 %v4032, %v3802
      %v4034 = vadd.f32 %v4033, %v3812
      %v4035 = vadd.f32 %v4034, %v3822
      %v4036 = vadd.f32 %v4035, %v3832
      %v4037 = vadd.f32 %v4036, %v3842
      %v4038 = vadd.f32 %v4037, %v3852
      %v4039 = vadd.f32 %v4038, %v3862
      %v4040 = vadd.f32 %v4039, %v3872
      %v4041 = vadd.f32 %v4040, %v3882
      %v4042 = vadd.f32 %v4041, %v3892
      %v4043 = vadd.f32 %v4042, %v3902
      %v4044 = vadd.f32 %v4043, %v3912
      %v4045 = vadd.f32 %v4044, %v3922
      %v4046 = vadd.f32 %v4045, %v3932
      %v4047 = vadd.f32 %v4046, %v3942
      %v4048 = vadd.f32 %v4047, %v3952
      %v4049 = vadd.f32 %v4048, %v3962
      %v4050 = vadd.f32 %v4049, %v3972
      %v4051 = vrot.slane %v4050, 4
      %v4052 = vadd.f32 %v4050, %v4051
      %v4053 = vrot.slane %v4052, 2
      %v4054 = vadd.f32 %v4052, %v4053
      %v4055 = vrot.slane %v4054, 1
      %v4056 = vadd.f32 %v4054, %v4055
      %v4057 = vadd.f32 %v3663, %v3673
      %v4058 = vadd.f32 %v4057, %v3683
      %v4059 = vadd.f32 %v4058, %v3693
      %v4060 = vadd.f32 %v4059, %v3703
      %v4061 = vadd.f32 %v4060, %v3713
      %v4062 = vadd.f32 %v4061, %v3723
      %v4063 = vadd.f32 %v4062, %v3733
      %v4064 = vadd.f32 %v4063, %v3743
      %v4065 = vadd.f32 %v4064, %v3753
      %v4066 = vadd.f32 %v4065, %v3763
      %v4067 = vadd.f32 %v4066, %v3773
      %v4068 = vadd.f32 %v4067, %v3783
      %v4069 = vadd.f32 %v4068, %v3793
      %v4070 = vadd.f32 %v4069, %v3803
      %v4071 = vadd.f32 %v4070, %v3813
      %v4072 = vadd.f32 %v4071, %v3823
      %v4073 = vadd.f32 %v4072, %v3833
      %v4074 = vadd.f32 %v4073, %v3843
      %v4075 = vadd.f32 %v4074, %v3853
      %v4076 = vadd.f32 %v4075, %v3863
      %v4077 = vadd.f32 %v4076, %v3873
      %v4078 = vadd.f32 %v4077, %v3883
      %v4079 = vadd.f32 %v4078, %v3893
      %v4080 = vadd.f32 %v4079, %v3903
      %v4081 = vadd.f32 %v4080, %v3913
      %v4082 = vadd.f32 %v4081, %v3923
      %v4083 = vadd.f32 %v4082, %v3933
      %v4084 = vadd.f32 %v4083, %v3943
      %v4085 = vadd.f32 %v4084, %v3953
      %v4086 = vadd.f32 %v4085, %v3963
      %v4087 = vadd.f32 %v4086, %v3973
      %v4088 = vrot.slane %v4087, 4
      %v4089 = vadd.f32 %v4087, %v4088
      %v4090 = vrot.slane %v4089, 2
      %v4091 = vadd.f32 %v4089, %v4090
      %v4092 = vrot.slane %v4091, 1
      %v4093 = vadd.f32 %v4091, %v4092
      %v4094 = vadd.f32 %v3664, %v3674
      %v4095 = vadd.f32 %v4094, %v3684
      %v4096 = vadd.f32 %v4095, %v3694
      %v4097 = vadd.f32 %v4096, %v3704
      %v4098 = vadd.f32 %v4097, %v3714
      %v4099 = vadd.f32 %v4098, %v3724
      %v4100 = vadd.f32 %v4099, %v3734
      %v4101 = vadd.f32 %v4100, %v3744
      %v4102 = vadd.f32 %v4101, %v3754
      %v4103 = vadd.f32 %v4102, %v3764
      %v4104 = vadd.f32 %v4103, %v3774
      %v4105 = vadd.f32 %v4104, %v3784
      %v4106 = vadd.f32 %v4105, %v3794
      %v4107 = vadd.f32 %v4106, %v3804
      %v4108 = vadd.f32 %v4107, %v3814
      %v4109 = vadd.f32 %v4108, %v3824
      %v4110 = vadd.f32 %v4109, %v3834
      %v4111 = vadd.f32 %v4110, %v3844
      %v4112 = vadd.f32 %v4111, %v3854
      %v4113 = vadd.f32 %v4112, %v3864
      %v4114 = vadd.f32 %v4113, %v3874
      %v4115 = vadd.f32 %v4114, %v3884
      %v4116 = vadd.f32 %v4115, %v3894
      %v4117 = vadd.f32 %v4116, %v3904
      %v4118 = vadd.f32 %v4117, %v3914
      %v4119 = vadd.f32 %v4118, %v3924
      %v4120 = vadd.f32 %v4119, %v3934
      %v4121 = vadd.f32 %v4120, %v3944
      %v4122 = vadd.f32 %v4121, %v3954
      %v4123 = vadd.f32 %v4122, %v3964
      %v4124 = vadd.f32 %v4123, %v3974
      %v4125 = vrot.slane %v4124, 4
      %v4126 = vadd.f32 %v4124, %v4125
      %v4127 = vrot.slane %v4126, 2
      %v4128 = vadd.f32 %v4126, %v4127
      %v4129 = vrot.slane %v4128, 1
      %v4130 = vadd.f32 %v4128, %v4129
      %v4131 = vadd.f32 %v3665, %v3675
      %v4132 = vadd.f32 %v4131, %v3685
      %v4133 = vadd.f32 %v4132, %v3695
      %v4134 = vadd.f32 %v4133, %v3705
      %v4135 = vadd.f32 %v4134, %v3715
      %v4136 = vadd.f32 %v4135, %v3725
      %v4137 = vadd.f32 %v4136, %v3735
      %v4138 = vadd.f32 %v4137, %v3745
      %v4139 = vadd.f32 %v4138, %v3755
      %v4140 = vadd.f32 %v4139, %v3765
      %v4141 = vadd.f32 %v4140, %v3775
      %v4142 = vadd.f32 %v4141, %v3785
      %v4143 = vadd.f32 %v4142, %v3795
      %v4144 = vadd.f32 %v4143, %v3805
      %v4145 = vadd.f32 %v4144, %v3815
      %v4146 = vadd.f32 %v4145, %v3825
      %v4147 = vadd.f32 %v4146, %v3835
      %v4148 = vadd.f32 %v4147, %v3845
      %v4149 = vadd.f32 %v4148, %v3855
      %v4150 = vadd.f32 %v4149, %v3865
      %v4151 = vadd.f32 %v4150, %v3875
      %v4152 = vadd.f32 %v4151, %v3885
      %v4153 = vadd.f32 %v4152, %v3895
      %v4154 = vadd.f32 %v4153, %v3905
      %v4155 = vadd.f32 %v4154, %v3915
      %v4156 = vadd.f32 %v4155, %v3925
      %v4157 = vadd.f32 %v4156, %v3935
      %v4158 = vadd.f32 %v4157, %v3945
      %v4159 = vadd.f32 %v4158, %v3955
      %v4160 = vadd.f32 %v4159, %v3965
      %v4161 = vadd.f32 %v4160, %v3975
      %v4162 = vrot.slane %v4161, 4
      %v4163 = vadd.f32 %v4161, %v4162
      %v4164 = vrot.slane %v4163, 2
      %v4165 = vadd.f32 %v4163, %v4164
      %v4166 = vrot.slane %v4165, 1
      %v4167 = vadd.f32 %v4165, %v4166
      %v4168 = vadd.f32 %v3666, %v3676
      %v4169 = vadd.f32 %v4168, %v3686
      %v4170 = vadd.f32 %v4169, %v3696
      %v4171 = vadd.f32 %v4170, %v3706
      %v4172 = vadd.f32 %v4171, %v3716
      %v4173 = vadd.f32 %v4172, %v3726
      %v4174 = vadd.f32 %v4173, %v3736
      %v4175 = vadd.f32 %v4174, %v3746
      %v4176 = vadd.f32 %v4175, %v3756
      %v4177 = vadd.f32 %v4176, %v3766
      %v4178 = vadd.f32 %v4177, %v3776
      %v4179 = vadd.f32 %v4178, %v3786
      %v4180 = vadd.f32 %v4179, %v3796
      %v4181 = vadd.f32 %v4180, %v3806
      %v4182 = vadd.f32 %v4181, %v3816
      %v4183 = vadd.f32 %v4182, %v3826
      %v4184 = vadd.f32 %v4183, %v3836
      %v4185 = vadd.f32 %v4184, %v3846
      %v4186 = vadd.f32 %v4185, %v3856
      %v4187 = vadd.f32 %v4186, %v3866
      %v4188 = vadd.f32 %v4187, %v3876
      %v4189 = vadd.f32 %v4188, %v3886
      %v4190 = vadd.f32 %v4189, %v3896
      %v4191 = vadd.f32 %v4190, %v3906
      %v4192 = vadd.f32 %v4191, %v3916
      %v4193 = vadd.f32 %v4192, %v3926
      %v4194 = vadd.f32 %v4193, %v3936
      %v4195 = vadd.f32 %v4194, %v3946
      %v4196 = vadd.f32 %v4195, %v3956
      %v4197 = vadd.f32 %v4196, %v3966
      %v4198 = vadd.f32 %v4197, %v3976
      %v4199 = vrot.slane %v4198, 4
      %v4200 = vadd.f32 %v4198, %v4199
      %v4201 = vrot.slane %v4200, 2
      %v4202 = vadd.f32 %v4200, %v4201
      %v4203 = vrot.slane %v4202, 1
      %v4204 = vadd.f32 %v4202, %v4203
      %v4205 = vadd.f32 %v3667, %v3677
      %v4206 = vadd.f32 %v4205, %v3687
      %v4207 = vadd.f32 %v4206, %v3697
      %v4208 = vadd.f32 %v4207, %v3707
      %v4209 = vadd.f32 %v4208, %v3717
      %v4210 = vadd.f32 %v4209, %v3727
      %v4211 = vadd.f32 %v4210, %v3737
      %v4212 = vadd.f32 %v4211, %v3747
      %v4213 = vadd.f32 %v4212, %v3757
      %v4214 = vadd.f32 %v4213, %v3767
      %v4215 = vadd.f32 %v4214, %v3777
      %v4216 = vadd.f32 %v4215, %v3787
      %v4217 = vadd.f32 %v4216, %v3797
      %v4218 = vadd.f32 %v4217, %v3807
      %v4219 = vadd.f32 %v4218, %v3817
      %v4220 = vadd.f32 %v4219, %v3827
      %v4221 = vadd.f32 %v4220, %v3837
      %v4222 = vadd.f32 %v4221, %v3847
      %v4223 = vadd.f32 %v4222, %v3857
      %v4224 = vadd.f32 %v4223, %v3867
      %v4225 = vadd.f32 %v4224, %v3877
      %v4226 = vadd.f32 %v4225, %v3887
      %v4227 = vadd.f32 %v4226, %v3897
      %v4228 = vadd.f32 %v4227, %v3907
      %v4229 = vadd.f32 %v4228, %v3917
      %v4230 = vadd.f32 %v4229, %v3927
      %v4231 = vadd.f32 %v4230, %v3937
      %v4232 = vadd.f32 %v4231, %v3947
      %v4233 = vadd.f32 %v4232, %v3957
      %v4234 = vadd.f32 %v4233, %v3967
      %v4235 = vadd.f32 %v4234, %v3977
      %v4236 = vrot.slane %v4235, 4
      %v4237 = vadd.f32 %v4235, %v4236
      %v4238 = vrot.slane %v4237, 2
      %v4239 = vadd.f32 %v4237, %v4238
      %v4240 = vrot.slane %v4239, 1
      %v4241 = vadd.f32 %v4239, %v4240
      %v4242 = vadd.f32 %v3668, %v3678
      %v4243 = vadd.f32 %v4242, %v3688
      %v4244 = vadd.f32 %v4243, %v3698
      %v4245 = vadd.f32 %v4244, %v3708
      %v4246 = vadd.f32 %v4245, %v3718
      %v4247 = vadd.f32 %v4246, %v3728
      %v4248 = vadd.f32 %v4247, %v3738
      %v4249 = vadd.f32 %v4248, %v3748
      %v4250 = vadd.f32 %v4249, %v3758
      %v4251 = vadd.f32 %v4250, %v3768
      %v4252 = vadd.f32 %v4251, %v3778
      %v4253 = vadd.f32 %v4252, %v3788
      %v4254 = vadd.f32 %v4253, %v3798
      %v4255 = vadd.f32 %v4254, %v3808
      %v4256 = vadd.f32 %v4255, %v3818
      %v4257 = vadd.f32 %v4256, %v3828
      %v4258 = vadd.f32 %v4257, %v3838
      %v4259 = vadd.f32 %v4258, %v3848
      %v4260 = vadd.f32 %v4259, %v3858
      %v4261 = vadd.f32 %v4260, %v3868
      %v4262 = vadd.f32 %v4261, %v3878
      %v4263 = vadd.f32 %v4262, %v3888
      %v4264 = vadd.f32 %v4263, %v3898
      %v4265 = vadd.f32 %v4264, %v3908
      %v4266 = vadd.f32 %v4265, %v3918
      %v4267 = vadd.f32 %v4266, %v3928
      %v4268 = vadd.f32 %v4267, %v3938
      %v4269 = vadd.f32 %v4268, %v3948
      %v4270 = vadd.f32 %v4269, %v3958
      %v4271 = vadd.f32 %v4270, %v3968
      %v4272 = vadd.f32 %v4271, %v3978
      %v4273 = vrot.slane %v4272, 4
      %v4274 = vadd.f32 %v4272, %v4273
      %v4275 = vrot.slane %v4274, 2
      %v4276 = vadd.f32 %v4274, %v4275
      %v4277 = vrot.slane %v4276, 1
      %v4278 = vadd.f32 %v4276, %v4277
      %v4279 = vadd.f32 %v3669, %v3679
      %v4280 = vadd.f32 %v4279, %v3689
      %v4281 = vadd.f32 %v4280, %v3699
      %v4282 = vadd.f32 %v4281, %v3709
      %v4283 = vadd.f32 %v4282, %v3719
      %v4284 = vadd.f32 %v4283, %v3729
      %v4285 = vadd.f32 %v4284, %v3739
      %v4286 = vadd.f32 %v4285, %v3749
      %v4287 = vadd.f32 %v4286, %v3759
      %v4288 = vadd.f32 %v4287, %v3769
      %v4289 = vadd.f32 %v4288, %v3779
      %v4290 = vadd.f32 %v4289, %v3789
      %v4291 = vadd.f32 %v4290, %v3799
      %v4292 = vadd.f32 %v4291, %v3809
      %v4293 = vadd.f32 %v4292, %v3819
      %v4294 = vadd.f32 %v4293, %v3829
      %v4295 = vadd.f32 %v4294, %v3839
      %v4296 = vadd.f32 %v4295, %v3849
      %v4297 = vadd.f32 %v4296, %v3859
      %v4298 = vadd.f32 %v4297, %v3869
      %v4299 = vadd.f32 %v4298, %v3879
      %v4300 = vadd.f32 %v4299, %v3889
      %v4301 = vadd.f32 %v4300, %v3899
      %v4302 = vadd.f32 %v4301, %v3909
      %v4303 = vadd.f32 %v4302, %v3919
      %v4304 = vadd.f32 %v4303, %v3929
      %v4305 = vadd.f32 %v4304, %v3939
      %v4306 = vadd.f32 %v4305, %v3949
      %v4307 = vadd.f32 %v4306, %v3959
      %v4308 = vadd.f32 %v4307, %v3969
      %v4309 = vadd.f32 %v4308, %v3979
      %v4310 = vrot.slane %v4309, 4
      %v4311 = vadd.f32 %v4309, %v4310
      %v4312 = vrot.slane %v4311, 2
      %v4313 = vadd.f32 %v4311, %v4312
      %v4314 = vrot.slane %v4313, 1
      %v4315 = vadd.f32 %v4313, %v4314
      %v4316 = vadd.f32 %v3670, %v3680
      %v4317 = vadd.f32 %v4316, %v3690
      %v4318 = vadd.f32 %v4317, %v3700
      %v4319 = vadd.f32 %v4318, %v3710
      %v4320 = vadd.f32 %v4319, %v3720
      %v4321 = vadd.f32 %v4320, %v3730
      %v4322 = vadd.f32 %v4321, %v3740
      %v4323 = vadd.f32 %v4322, %v3750
      %v4324 = vadd.f32 %v4323, %v3760
      %v4325 = vadd.f32 %v4324, %v3770
      %v4326 = vadd.f32 %v4325, %v3780
      %v4327 = vadd.f32 %v4326, %v3790
      %v4328 = vadd.f32 %v4327, %v3800
      %v4329 = vadd.f32 %v4328, %v3810
      %v4330 = vadd.f32 %v4329, %v3820
      %v4331 = vadd.f32 %v4330, %v3830
      %v4332 = vadd.f32 %v4331, %v3840
      %v4333 = vadd.f32 %v4332, %v3850
      %v4334 = vadd.f32 %v4333, %v3860
      %v4335 = vadd.f32 %v4334, %v3870
      %v4336 = vadd.f32 %v4335, %v3880
      %v4337 = vadd.f32 %v4336, %v3890
      %v4338 = vadd.f32 %v4337, %v3900
      %v4339 = vadd.f32 %v4338, %v3910
      %v4340 = vadd.f32 %v4339, %v3920
      %v4341 = vadd.f32 %v4340, %v3930
      %v4342 = vadd.f32 %v4341, %v3940
      %v4343 = vadd.f32 %v4342, %v3950
      %v4344 = vadd.f32 %v4343, %v3960
      %v4345 = vadd.f32 %v4344, %v3970
      %v4346 = vadd.f32 %v4345, %v3980
      %v4347 = vrot.slane %v4346, 4
      %v4348 = vadd.f32 %v4346, %v4347
      %v4349 = vrot.slane %v4348, 2
      %v4350 = vadd.f32 %v4348, %v4349
      %v4351 = vrot.slane %v4350, 1
      %v4352 = vadd.f32 %v4350, %v4351
      %v4363 = vcombine.low %v4019, %v4056
      %v4364 = vcombine.low %v4093, %v4130
      %v4365 = vcombine.low %v4167, %v4204
      %v4366 = vcombine.low %v4241, %v4278
      %v4368 = vunpack.c.l.s4 1966171168
      %v4369 = vunpack.c.0.s8 %v4368
      %v4370 = vlaneseq
      %v4371 = vshrl.u32 %v4370, 7
      %v4372 = vsub.s32 %v4369, %v4371
      %v4373 = vrot.slane %v4363, %v4372
      %v4375 = vunpack.c.l.s4 1966171168
      %v4376 = vunpack.c.0.s8 %v4375
      %v4377 = vlaneseq
      %v4378 = vshrl.u32 %v4377, 7
      %v4379 = vsub.s32 %v4376, %v4378
      %v4380 = vrot.slane %v4364, %v4379
      %v4382 = vunpack.c.l.s4 1966171168
      %v4383 = vunpack.c.0.s8 %v4382
      %v4384 = vlaneseq
      %v4385 = vshrl.u32 %v4384, 7
      %v4386 = vsub.s32 %v4383, %v4385
      %v4387 = vrot.slane %v4365, %v4386
      %v4389 = vunpack.c.l.s4 1966171168
      %v4390 = vunpack.c.0.s8 %v4389
      %v4391 = vlaneseq
      %v4392 = vshrl.u32 %v4391, 7
      %v4393 = vsub.s32 %v4390, %v4392
      %v4394 = vrot.slane %v4366, %v4393
      %v4395 = vcombine.low %v4373, %v4380
      %v4396 = vcombine.low %v4387, %v4394
      %v4398 = vunpack.c.l.s4 1966171168
      %v4399 = vunpack.c.0.s8 %v4398
      %v4400 = vlaneseq
      %v4401 = vshrl.u32 %v4400, 7
      %v4402 = vsub.s32 %v4399, %v4401
      %v4403 = vrot.slane %v4395, %v4402
      %v4405 = vunpack.c.l.s4 1966171168
      %v4406 = vunpack.c.0.s8 %v4405
      %v4407 = vlaneseq
      %v4408 = vshrl.u32 %v4407, 7
      %v4409 = vsub.s32 %v4406, %v4408
      %v4410 = vrot.slane %v4396, %v4409
      %v4411 = vcombine.low %v4403, %v4410
      %v4412 = vcombine.low %v4315, %v4352
      %v4414 = vunpack.c.l.s4 1966171168
      %v4415 = vunpack.c.0.s8 %v4414
      %v4416 = vlaneseq
      %v4417 = vshrl.u32 %v4416, 7
      %v4418 = vsub.s32 %v4415, %v4417
      %v4419 = vrot.slane %v4412, %v4418
      %v4421 = vunpack.c.l.s4 1966171168
      %v4422 = vunpack.c.0.s8 %v4421
      %v4423 = vlaneseq
      %v4424 = vshrl.u32 %v4423, 7
      %v4425 = vsub.s32 %v4422, %v4424
      %v4426 = vrot.slane %v4419, %v4425
      %v4429 = vadd.f32 %v3981, %v4411
      %v4430 = vadd.f32 %v3982, %v4426
      %4431 = vst [vmem:[#allocation2] sm:$0xff] %v4429
      %v4432 = vlaneseq
      %vm4433 = vcmp.ge.s32.totalorder %v4432, 0
      %vm4434 = vcmp.lt.s32.totalorder %v4432, 256
      %vm4435 = vmand %vm4433, %vm4434
      %4436 = vst.msk [vmem:[#allocation2 + $0x8] sm:$0x3] %vm4435, %v4430
      // Predicated region
      $region53: #{konet_forward.2} parent=47 // pred_check
        %p4437 = pneg %p304
      $region54: #{konet_forward.2} parent=47 // pred_check_branch
        %4439 = sbr.rel (%p4437) target = $region56
      $region55: #{konet_forward.2} parent=47 // pred_region
        %v4440 = vld [vmem:[#allocation2] sm:$0xff]
        %v4441 = vld [vmem:[#allocation2 + $0x8] sm:$0x3]
        %v4442 = vmul.f32 %v4440, 0.00390625
        %v4443 = vmul.f32 %v4441, 0.00390625
        %v4444 = vld [vmem:[%s5] sm:$0xff]
        %v4445 = vld [vmem:[%s5 + $0x8] sm:$0xff]
        %v4446 = vld [vmem:[%s5 + $0x10] sm:$0xff]
        %v4447 = vld [vmem:[%s5 + $0x18] sm:$0xff]
        %v4448 = vld [vmem:[%s5 + $0x20] sm:$0xff]
        %v4449 = vld [vmem:[%s5 + $0x28] sm:$0xff]
        %v4450 = vld [vmem:[%s5 + $0x30] sm:$0xff]
        %v4451 = vld [vmem:[%s5 + $0x38] sm:$0xff]
        %v4452 = vld [vmem:[%s5 + $0x40] sm:$0xff]
        %v4453 = vld [vmem:[%s5 + $0x48] sm:$0xff]
        %v4454 = vld [vmem:[%s5 + $0x50] sm:$0xff]
        %v4455 = vld [vmem:[%s5 + $0x58] sm:$0xff]
        %v4456 = vld [vmem:[%s5 + $0x60] sm:$0xff]
        %v4457 = vld [vmem:[%s5 + $0x68] sm:$0xff]
        %v4458 = vld [vmem:[%s5 + $0x70] sm:$0xff]
        %v4459 = vld [vmem:[%s5 + $0x78] sm:$0xff]
        %v4460 = vld [vmem:[%s5 + $0x80] sm:$0xff]
        %v4461 = vld [vmem:[%s5 + $0x88] sm:$0xff]
        %v4462 = vld [vmem:[%s5 + $0x90] sm:$0xff]
        %v4463 = vld [vmem:[%s5 + $0x98] sm:$0xff]
        %v4464 = vld [vmem:[%s5 + $0xa0] sm:$0xff]
        %v4465 = vld [vmem:[%s5 + $0xa8] sm:$0xff]
        %v4466 = vld [vmem:[%s5 + $0xb0] sm:$0xff]
        %v4467 = vld [vmem:[%s5 + $0xb8] sm:$0xff]
        %v4468 = vld [vmem:[%s5 + $0xc0] sm:$0xff]
        %v4469 = vld [vmem:[%s5 + $0xc8] sm:$0xff]
        %v4470 = vld [vmem:[%s5 + $0xd0] sm:$0xff]
        %v4471 = vld [vmem:[%s5 + $0xd8] sm:$0xff]
        %v4472 = vld [vmem:[%s5 + $0xe0] sm:$0xff]
        %v4473 = vld [vmem:[%s5 + $0xe8] sm:$0xff]
        %v4474 = vld [vmem:[%s5 + $0xf0] sm:$0xff]
        %v4475 = vld [vmem:[%s5 + $0xf8] sm:$0xff]
        %v4476 = vld [vmem:[%s5 + $0x100] sm:$0xff]
        %v4477 = vld [vmem:[%s5 + $0x108] sm:$0xff]
        %v4478 = vld [vmem:[%s5 + $0x110] sm:$0xff]
        %v4479 = vld [vmem:[%s5 + $0x118] sm:$0xff]
        %v4480 = vld [vmem:[%s5 + $0x120] sm:$0xff]
        %v4481 = vld [vmem:[%s5 + $0x128] sm:$0xff]
        %v4482 = vld [vmem:[%s5 + $0x130] sm:$0xff]
        %v4483 = vld [vmem:[%s5 + $0x138] sm:$0xff]
        %v4484 = vld [vmem:[%s5 + $0x140] sm:$0xff]
        %v4485 = vld [vmem:[%s5 + $0x148] sm:$0xff]
        %v4486 = vld [vmem:[%s5 + $0x150] sm:$0xff]
        %v4487 = vld [vmem:[%s5 + $0x158] sm:$0xff]
        %v4488 = vld [vmem:[%s5 + $0x160] sm:$0xff]
        %v4489 = vld [vmem:[%s5 + $0x168] sm:$0xff]
        %v4490 = vld [vmem:[%s5 + $0x170] sm:$0xff]
        %v4491 = vld [vmem:[%s5 + $0x178] sm:$0xff]
        %v4492 = vld [vmem:[%s5 + $0x180] sm:$0xff]
        %v4493 = vld [vmem:[%s5 + $0x188] sm:$0xff]
        %v4494 = vld [vmem:[%s5 + $0x190] sm:$0xff]
        %v4495 = vld [vmem:[%s5 + $0x198] sm:$0xff]
        %v4496 = vld [vmem:[%s5 + $0x1a0] sm:$0xff]
        %v4497 = vld [vmem:[%s5 + $0x1a8] sm:$0xff]
        %v4498 = vld [vmem:[%s5 + $0x1b0] sm:$0xff]
        %v4499 = vld [vmem:[%s5 + $0x1b8] sm:$0xff]
        %v4500 = vld [vmem:[%s5 + $0x1c0] sm:$0xff]
        %v4501 = vld [vmem:[%s5 + $0x1c8] sm:$0xff]
        %v4502 = vld [vmem:[%s5 + $0x1d0] sm:$0xff]
        %v4503 = vld [vmem:[%s5 + $0x1d8] sm:$0xff]
        %v4504 = vld [vmem:[%s5 + $0x1e0] sm:$0xff]
        %v4505 = vld [vmem:[%s5 + $0x1e8] sm:$0xff]
        %v4506 = vld [vmem:[%s5 + $0x1f0] sm:$0xff]
        %v4507 = vld [vmem:[%s5 + $0x1f8] sm:$0xff]
        %v4508 = vld [vmem:[%s5 + $0x200] sm:$0xff]
        %v4509 = vld [vmem:[%s5 + $0x208] sm:$0xff]
        %v4510 = vld [vmem:[%s5 + $0x210] sm:$0xff]
        %v4511 = vld [vmem:[%s5 + $0x218] sm:$0xff]
        %v4512 = vld [vmem:[%s5 + $0x220] sm:$0xff]
        %v4513 = vld [vmem:[%s5 + $0x228] sm:$0xff]
        %v4514 = vld [vmem:[%s5 + $0x230] sm:$0xff]
        %v4515 = vld [vmem:[%s5 + $0x238] sm:$0xff]
        %v4516 = vld [vmem:[%s5 + $0x240] sm:$0xff]
        %v4517 = vld [vmem:[%s5 + $0x248] sm:$0xff]
        %v4518 = vld [vmem:[%s5 + $0x250] sm:$0xff]
        %v4519 = vld [vmem:[%s5 + $0x258] sm:$0xff]
        %v4520 = vld [vmem:[%s5 + $0x260] sm:$0xff]
        %v4521 = vld [vmem:[%s5 + $0x268] sm:$0xff]
        %v4522 = vld [vmem:[%s5 + $0x270] sm:$0xff]
        %v4523 = vld [vmem:[%s5 + $0x278] sm:$0xff]
        %v4524 = vld [vmem:[%s5 + $0x280] sm:$0xff]
        %v4525 = vld [vmem:[%s5 + $0x288] sm:$0xff]
        %v4526 = vld [vmem:[%s5 + $0x290] sm:$0xff]
        %v4527 = vld [vmem:[%s5 + $0x298] sm:$0xff]
        %v4528 = vld [vmem:[%s5 + $0x2a0] sm:$0xff]
        %v4529 = vld [vmem:[%s5 + $0x2a8] sm:$0xff]
        %v4530 = vld [vmem:[%s5 + $0x2b0] sm:$0xff]
        %v4531 = vld [vmem:[%s5 + $0x2b8] sm:$0xff]
        %v4532 = vld [vmem:[%s5 + $0x2c0] sm:$0xff]
        %v4533 = vld [vmem:[%s5 + $0x2c8] sm:$0xff]
        %v4534 = vld [vmem:[%s5 + $0x2d0] sm:$0xff]
        %v4535 = vld [vmem:[%s5 + $0x2d8] sm:$0xff]
        %v4536 = vld [vmem:[%s5 + $0x2e0] sm:$0xff]
        %v4537 = vld [vmem:[%s5 + $0x2e8] sm:$0xff]
        %v4538 = vld [vmem:[%s5 + $0x2f0] sm:$0xff]
        %v4539 = vld [vmem:[%s5 + $0x2f8] sm:$0xff]
        %v4540 = vld [vmem:[%s5 + $0x300] sm:$0xff]
        %v4541 = vld [vmem:[%s5 + $0x308] sm:$0xff]
        %v4542 = vld [vmem:[%s5 + $0x310] sm:$0xff]
        %v4543 = vld [vmem:[%s5 + $0x318] sm:$0xff]
        %v4544 = vld [vmem:[%s5 + $0x320] sm:$0xff]
        %v4545 = vld [vmem:[%s5 + $0x328] sm:$0xff]
        %v4546 = vld [vmem:[%s5 + $0x330] sm:$0xff]
        %v4547 = vld [vmem:[%s5 + $0x338] sm:$0xff]
        %v4548 = vld [vmem:[%s5 + $0x340] sm:$0xff]
        %v4549 = vld [vmem:[%s5 + $0x348] sm:$0xff]
        %v4550 = vld [vmem:[%s5 + $0x350] sm:$0xff]
        %v4551 = vld [vmem:[%s5 + $0x358] sm:$0xff]
        %v4552 = vld [vmem:[%s5 + $0x360] sm:$0xff]
        %v4553 = vld [vmem:[%s5 + $0x368] sm:$0xff]
        %v4554 = vld [vmem:[%s5 + $0x370] sm:$0xff]
        %v4555 = vld [vmem:[%s5 + $0x378] sm:$0xff]
        %v4556 = vld [vmem:[%s5 + $0x380] sm:$0xff]
        %v4557 = vld [vmem:[%s5 + $0x388] sm:$0xff]
        %v4558 = vld [vmem:[%s5 + $0x390] sm:$0xff]
        %v4559 = vld [vmem:[%s5 + $0x398] sm:$0xff]
        %v4560 = vld [vmem:[%s5 + $0x3a0] sm:$0xff]
        %v4561 = vld [vmem:[%s5 + $0x3a8] sm:$0xff]
        %v4562 = vld [vmem:[%s5 + $0x3b0] sm:$0xff]
        %v4563 = vld [vmem:[%s5 + $0x3b8] sm:$0xff]
        %v4564 = vld [vmem:[%s5 + $0x3c0] sm:$0xff]
        %v4565 = vld [vmem:[%s5 + $0x3c8] sm:$0xff]
        %v4566 = vld [vmem:[%s5 + $0x3d0] sm:$0xff]
        %v4567 = vld [vmem:[%s5 + $0x3d8] sm:$0xff]
        %v4568 = vld [vmem:[%s5 + $0x3e0] sm:$0xff]
        %v4569 = vld [vmem:[%s5 + $0x3e8] sm:$0xff]
        %v4570 = vld [vmem:[%s5 + $0x3f0] sm:$0xff]
        %v4571 = vld [vmem:[%s5 + $0x3f8] sm:$0xff]
        %v4572 = vld [vmem:[%s5 + $0x400] sm:$0xff]
        %v4573 = vld [vmem:[%s5 + $0x408] sm:$0xff]
        %v4574 = vld [vmem:[%s5 + $0x410] sm:$0xff]
        %v4575 = vld [vmem:[%s5 + $0x418] sm:$0xff]
        %v4576 = vld [vmem:[%s5 + $0x420] sm:$0xff]
        %v4577 = vld [vmem:[%s5 + $0x428] sm:$0xff]
        %v4578 = vld [vmem:[%s5 + $0x430] sm:$0xff]
        %v4579 = vld [vmem:[%s5 + $0x438] sm:$0xff]
        %v4580 = vld [vmem:[%s5 + $0x440] sm:$0xff]
        %v4581 = vld [vmem:[%s5 + $0x448] sm:$0xff]
        %v4582 = vld [vmem:[%s5 + $0x450] sm:$0xff]
        %v4583 = vld [vmem:[%s5 + $0x458] sm:$0xff]
        %v4584 = vld [vmem:[%s5 + $0x460] sm:$0xff]
        %v4585 = vld [vmem:[%s5 + $0x468] sm:$0xff]
        %v4586 = vld [vmem:[%s5 + $0x470] sm:$0xff]
        %v4587 = vld [vmem:[%s5 + $0x478] sm:$0xff]
        %v4588 = vld [vmem:[%s5 + $0x480] sm:$0xff]
        %v4589 = vld [vmem:[%s5 + $0x488] sm:$0xff]
        %v4590 = vld [vmem:[%s5 + $0x490] sm:$0xff]
        %v4591 = vld [vmem:[%s5 + $0x498] sm:$0xff]
        %v4592 = vld [vmem:[%s5 + $0x4a0] sm:$0xff]
        %v4593 = vld [vmem:[%s5 + $0x4a8] sm:$0xff]
        %v4594 = vld [vmem:[%s5 + $0x4b0] sm:$0xff]
        %v4595 = vld [vmem:[%s5 + $0x4b8] sm:$0xff]
        %v4596 = vld [vmem:[%s5 + $0x4c0] sm:$0xff]
        %v4597 = vld [vmem:[%s5 + $0x4c8] sm:$0xff]
        %v4598 = vld [vmem:[%s5 + $0x4d0] sm:$0xff]
        %v4599 = vld [vmem:[%s5 + $0x4d8] sm:$0xff]
        %v4600 = vld [vmem:[%s5 + $0x4e0] sm:$0xff]
        %v4601 = vld [vmem:[%s5 + $0x4e8] sm:$0xff]
        %v4602 = vld [vmem:[%s5 + $0x4f0] sm:$0xff]
        %v4603 = vld [vmem:[%s5 + $0x4f8] sm:$0xff]
        %v4604 = vld [vmem:[%s6] sm:$0x1]
        %v4607 = vlaneseq
        %v4608 = vshrl.u32 %v4607, 7
        %v4609 = vsub.s32 0, %v4608
        %v4610 = vrot.slane %v4442, %v4609
        %v4611 = vlaneseq
        %v4612 = vshrl.u32 %v4611, 7
        %v4613 = vsub.s32 1, %v4612
        %v4614 = vrot.slane %v4442, %v4613
        %v4615 = vlaneseq
        %v4616 = vshrl.u32 %v4615, 7
        %v4617 = vsub.s32 2, %v4616
        %v4618 = vrot.slane %v4442, %v4617
        %v4619 = vlaneseq
        %v4620 = vshrl.u32 %v4619, 7
        %v4621 = vsub.s32 3, %v4620
        %v4622 = vrot.slane %v4442, %v4621
        %v4623 = vlaneseq
        %v4624 = vshrl.u32 %v4623, 7
        %v4625 = vsub.s32 4, %v4624
        %v4626 = vrot.slane %v4442, %v4625
        %v4627 = vlaneseq
        %v4628 = vshrl.u32 %v4627, 7
        %v4629 = vsub.s32 5, %v4628
        %v4630 = vrot.slane %v4442, %v4629
        %v4631 = vlaneseq
        %v4632 = vshrl.u32 %v4631, 7
        %v4633 = vsub.s32 6, %v4632
        %v4634 = vrot.slane %v4442, %v4633
        %v4635 = vlaneseq
        %v4636 = vshrl.u32 %v4635, 7
        %v4637 = vsub.s32 7, %v4636
        %v4638 = vrot.slane %v4442, %v4637
        %v4639 = vlaneseq
        %v4640 = vshrl.u32 %v4639, 7
        %v4641 = vsub.s32 0, %v4640
        %v4642 = vrot.slane %v4443, %v4641
        %v4643 = vlaneseq
        %v4644 = vshrl.u32 %v4643, 7
        %v4645 = vsub.s32 1, %v4644
        %v4646 = vrot.slane %v4443, %v4645
        %4657 = vmatprep.subr.mxu0 0.0
        %4658 = vmatpush1.msra.mxu0 %v4444
        %4659 = vmatprep.subr.mxu0 0.0
        %4660 = vmatpush1.msra.mxu0 %v4445
        %4661 = vmatprep.subr.mxu0 0.0
        %4662 = vmatpush1.msra.mxu0 %v4446
        %4663 = vmatprep.subr.mxu0 0.0
        %4664 = vmatpush1.msra.mxu0 %v4447
        %4665 = vmatprep.subr.mxu0 0.0
        %4666 = vmatpush1.msra.mxu0 %v4448
        %4667 = vmatprep.subr.mxu0 0.0
        %4668 = vmatpush1.msra.mxu0 %v4449
        %4669 = vmatprep.subr.mxu0 0.0
        %4670 = vmatpush1.msra.mxu0 %v4450
        %4671 = vmatprep.subr.mxu0 0.0
        %4672 = vmatpush1.msra.mxu0 %v4451
        %4673 = vmatprep.subr.mxu0 0.0
        %4674 = vmatpush1.msra.mxu0 %v4452
        %4675 = vmatprep.subr.mxu0 0.0
        %4676 = vmatpush1.msra.mxu0 %v4453
        %4677 = vmatprep.subr.mxu0 0.0
        %4678 = vmatpush1.msra.mxu0 %v4454
        %4679 = vmatprep.subr.mxu0 0.0
        %4680 = vmatpush1.msra.mxu0 %v4455
        %4681 = vmatprep.subr.mxu0 0.0
        %4682 = vmatpush1.msra.mxu0 %v4456
        %4683 = vmatprep.subr.mxu0 0.0
        %4684 = vmatpush1.msra.mxu0 %v4457
        %4685 = vmatprep.subr.mxu0 0.0
        %4686 = vmatpush1.msra.mxu0 %v4458
        %4687 = vmatprep.subr.mxu0 0.0
        %4688 = vmatpush1.msra.mxu0 %v4459
        %4689 = vmatprep.subr.mxu0 0.0
        %4690 = vmatpush1.msra.mxu0 %v4460
        %4691 = vmatprep.subr.mxu0 0.0
        %4692 = vmatpush1.msra.mxu0 %v4461
        %4693 = vmatprep.subr.mxu0 0.0
        %4694 = vmatpush1.msra.mxu0 %v4462
        %4695 = vmatprep.subr.mxu0 0.0
        %4696 = vmatpush1.msra.mxu0 %v4463
        %4697 = vmatprep.subr.mxu0 0.0
        %4698 = vmatpush1.msra.mxu0 %v4464
        %4699 = vmatprep.subr.mxu0 0.0
        %4700 = vmatpush1.msra.mxu0 %v4465
        %4701 = vmatprep.subr.mxu0 0.0
        %4702 = vmatpush1.msra.mxu0 %v4466
        %4703 = vmatprep.subr.mxu0 0.0
        %4704 = vmatpush1.msra.mxu0 %v4467
        %4705 = vmatprep.subr.mxu0 0.0
        %4706 = vmatpush1.msra.mxu0 %v4468
        %4707 = vmatprep.subr.mxu0 0.0
        %4708 = vmatpush1.msra.mxu0 %v4469
        %4709 = vmatprep.subr.mxu0 0.0
        %4710 = vmatpush1.msra.mxu0 %v4470
        %4711 = vmatprep.subr.mxu0 0.0
        %4712 = vmatpush1.msra.mxu0 %v4471
        %4713 = vmatprep.subr.mxu0 0.0
        %4714 = vmatpush1.msra.mxu0 %v4472
        %4715 = vmatprep.subr.mxu0 0.0
        %4716 = vmatpush1.msra.mxu0 %v4473
        %4717 = vmatprep.subr.mxu0 0.0
        %4718 = vmatpush1.msra.mxu0 %v4474
        %4719 = vmatprep.subr.mxu0 0.0
        %4720 = vmatpush1.msra.mxu0 %v4475
        %4721 = vmatprep.mubr.f32.mxu0 %v4614
        %4722 = vmatmul.mubr.f32.gmra.mrb[0].mxu0 %v4610
        %v4723 = vpop.f32.mrb[0].mxu0
        %v4724 = vadd.f32 %v4604, %v4723
        %v4725 = vpop.f32.mrb[0].mxu0
        %4726 = vdwg.mxu0
        %4727 = vmatprep.subr.mxu0 0.0
        %4728 = vmatpush1.msra.mxu0 %v4476
        %4729 = vmatprep.subr.mxu0 0.0
        %4730 = vmatpush1.msra.mxu0 %v4477
        %4731 = vmatprep.subr.mxu0 0.0
        %4732 = vmatpush1.msra.mxu0 %v4478
        %4733 = vmatprep.subr.mxu0 0.0
        %4734 = vmatpush1.msra.mxu0 %v4479
        %4735 = vmatprep.subr.mxu0 0.0
        %4736 = vmatpush1.msra.mxu0 %v4480
        %4737 = vmatprep.subr.mxu0 0.0
        %4738 = vmatpush1.msra.mxu0 %v4481
        %4739 = vmatprep.subr.mxu0 0.0
        %4740 = vmatpush1.msra.mxu0 %v4482
        %4741 = vmatprep.subr.mxu0 0.0
        %4742 = vmatpush1.msra.mxu0 %v4483
        %4743 = vmatprep.subr.mxu0 0.0
        %4744 = vmatpush1.msra.mxu0 %v4484
        %4745 = vmatprep.subr.mxu0 0.0
        %4746 = vmatpush1.msra.mxu0 %v4485
        %4747 = vmatprep.subr.mxu0 0.0
        %4748 = vmatpush1.msra.mxu0 %v4486
        %4749 = vmatprep.subr.mxu0 0.0
        %4750 = vmatpush1.msra.mxu0 %v4487
        %4751 = vmatprep.subr.mxu0 0.0
        %4752 = vmatpush1.msra.mxu0 %v4488
        %4753 = vmatprep.subr.mxu0 0.0
        %4754 = vmatpush1.msra.mxu0 %v4489
        %4755 = vmatprep.subr.mxu0 0.0
        %4756 = vmatpush1.msra.mxu0 %v4490
        %4757 = vmatprep.subr.mxu0 0.0
        %4758 = vmatpush1.msra.mxu0 %v4491
        %4759 = vmatprep.subr.mxu0 0.0
        %4760 = vmatpush1.msra.mxu0 %v4492
        %4761 = vmatprep.subr.mxu0 0.0
        %4762 = vmatpush1.msra.mxu0 %v4493
        %4763 = vmatprep.subr.mxu0 0.0
        %4764 = vmatpush1.msra.mxu0 %v4494
        %4765 = vmatprep.subr.mxu0 0.0
        %4766 = vmatpush1.msra.mxu0 %v4495
        %4767 = vmatprep.subr.mxu0 0.0
        %4768 = vmatpush1.msra.mxu0 %v4496
        %4769 = vmatprep.subr.mxu0 0.0
        %4770 = vmatpush1.msra.mxu0 %v4497
        %4771 = vmatprep.subr.mxu0 0.0
        %4772 = vmatpush1.msra.mxu0 %v4498
        %4773 = vmatprep.subr.mxu0 0.0
        %4774 = vmatpush1.msra.mxu0 %v4499
        %4775 = vmatprep.subr.mxu0 0.0
        %4776 = vmatpush1.msra.mxu0 %v4500
        %4777 = vmatprep.subr.mxu0 0.0
        %4778 = vmatpush1.msra.mxu0 %v4501
        %4779 = vmatprep.subr.mxu0 0.0
        %4780 = vmatpush1.msra.mxu0 %v4502
        %4781 = vmatprep.subr.mxu0 0.0
        %4782 = vmatpush1.msra.mxu0 %v4503
        %4783 = vmatprep.subr.mxu0 0.0
        %4784 = vmatpush1.msra.mxu0 %v4504
        %4785 = vmatprep.subr.mxu0 0.0
        %4786 = vmatpush1.msra.mxu0 %v4505
        %4787 = vmatprep.subr.mxu0 0.0
        %4788 = vmatpush1.msra.mxu0 %v4506
        %4789 = vmatprep.subr.mxu0 0.0
        %4790 = vmatpush1.msra.mxu0 %v4507
        %4791 = vmatprep.mubr.f32.mxu0 %v4622
        %4792 = vmatmul.mubr.f32.gmra.mrb[0].mxu0 %v4618
        %v4793 = vpop.f32.mrb[0].mxu0
        %v4794 = vadd.f32 %v4724, %v4793
        %v4795 = vpop.f32.mrb[0].mxu0
        %4796 = vdwg.mxu0
        %4797 = vmatprep.subr.mxu0 0.0
        %4798 = vmatpush1.msra.mxu0 %v4508
        %4799 = vmatprep.subr.mxu0 0.0
        %4800 = vmatpush1.msra.mxu0 %v4509
        %4801 = vmatprep.subr.mxu0 0.0
        %4802 = vmatpush1.msra.mxu0 %v4510
        %4803 = vmatprep.subr.mxu0 0.0
        %4804 = vmatpush1.msra.mxu0 %v4511
        %4805 = vmatprep.subr.mxu0 0.0
        %4806 = vmatpush1.msra.mxu0 %v4512
        %4807 = vmatprep.subr.mxu0 0.0
        %4808 = vmatpush1.msra.mxu0 %v4513
        %4809 = vmatprep.subr.mxu0 0.0
        %4810 = vmatpush1.msra.mxu0 %v4514
        %4811 = vmatprep.subr.mxu0 0.0
        %4812 = vmatpush1.msra.mxu0 %v4515
        %4813 = vmatprep.subr.mxu0 0.0
        %4814 = vmatpush1.msra.mxu0 %v4516
        %4815 = vmatprep.subr.mxu0 0.0
        %4816 = vmatpush1.msra.mxu0 %v4517
        %4817 = vmatprep.subr.mxu0 0.0
        %4818 = vmatpush1.msra.mxu0 %v4518
        %4819 = vmatprep.subr.mxu0 0.0
        %4820 = vmatpush1.msra.mxu0 %v4519
        %4821 = vmatprep.subr.mxu0 0.0
        %4822 = vmatpush1.msra.mxu0 %v4520
        %4823 = vmatprep.subr.mxu0 0.0
        %4824 = vmatpush1.msra.mxu0 %v4521
        %4825 = vmatprep.subr.mxu0 0.0
        %4826 = vmatpush1.msra.mxu0 %v4522
        %4827 = vmatprep.subr.mxu0 0.0
        %4828 = vmatpush1.msra.mxu0 %v4523
        %4829 = vmatprep.subr.mxu0 0.0
        %4830 = vmatpush1.msra.mxu0 %v4524
        %4831 = vmatprep.subr.mxu0 0.0
        %4832 = vmatpush1.msra.mxu0 %v4525
        %4833 = vmatprep.subr.mxu0 0.0
        %4834 = vmatpush1.msra.mxu0 %v4526
        %4835 = vmatprep.subr.mxu0 0.0
        %4836 = vmatpush1.msra.mxu0 %v4527
        %4837 = vmatprep.subr.mxu0 0.0
        %4838 = vmatpush1.msra.mxu0 %v4528
        %4839 = vmatprep.subr.mxu0 0.0
        %4840 = vmatpush1.msra.mxu0 %v4529
        %4841 = vmatprep.subr.mxu0 0.0
        %4842 = vmatpush1.msra.mxu0 %v4530
        %4843 = vmatprep.subr.mxu0 0.0
        %4844 = vmatpush1.msra.mxu0 %v4531
        %4845 = vmatprep.subr.mxu0 0.0
        %4846 = vmatpush1.msra.mxu0 %v4532
        %4847 = vmatprep.subr.mxu0 0.0
        %4848 = vmatpush1.msra.mxu0 %v4533
        %4849 = vmatprep.subr.mxu0 0.0
        %4850 = vmatpush1.msra.mxu0 %v4534
        %4851 = vmatprep.subr.mxu0 0.0
        %4852 = vmatpush1.msra.mxu0 %v4535
        %4853 = vmatprep.subr.mxu0 0.0
        %4854 = vmatpush1.msra.mxu0 %v4536
        %4855 = vmatprep.subr.mxu0 0.0
        %4856 = vmatpush1.msra.mxu0 %v4537
        %4857 = vmatprep.subr.mxu0 0.0
        %4858 = vmatpush1.msra.mxu0 %v4538
        %4859 = vmatprep.subr.mxu0 0.0
        %4860 = vmatpush1.msra.mxu0 %v4539
        %4861 = vmatprep.mubr.f32.mxu0 %v4630
        %4862 = vmatmul.mubr.f32.gmra.mrb[0].mxu0 %v4626
        %v4863 = vpop.f32.mrb[0].mxu0
        %v4864 = vadd.f32 %v4794, %v4863
        %v4865 = vpop.f32.mrb[0].mxu0
        %4866 = vdwg.mxu0
        %4867 = vmatprep.subr.mxu0 0.0
        %4868 = vmatpush1.msra.mxu0 %v4540
        %4869 = vmatprep.subr.mxu0 0.0
        %4870 = vmatpush1.msra.mxu0 %v4541
        %4871 = vmatprep.subr.mxu0 0.0
        %4872 = vmatpush1.msra.mxu0 %v4542
        %4873 = vmatprep.subr.mxu0 0.0
        %4874 = vmatpush1.msra.mxu0 %v4543
        %4875 = vmatprep.subr.mxu0 0.0
        %4876 = vmatpush1.msra.mxu0 %v4544
        %4877 = vmatprep.subr.mxu0 0.0
        %4878 = vmatpush1.msra.mxu0 %v4545
        %4879 = vmatprep.subr.mxu0 0.0
        %4880 = vmatpush1.msra.mxu0 %v4546
        %4881 = vmatprep.subr.mxu0 0.0
        %4882 = vmatpush1.msra.mxu0 %v4547
        %4883 = vmatprep.subr.mxu0 0.0
        %4884 = vmatpush1.msra.mxu0 %v4548
        %4885 = vmatprep.subr.mxu0 0.0
        %4886 = vmatpush1.msra.mxu0 %v4549
        %4887 = vmatprep.subr.mxu0 0.0
        %4888 = vmatpush1.msra.mxu0 %v4550
        %4889 = vmatprep.subr.mxu0 0.0
        %4890 = vmatpush1.msra.mxu0 %v4551
        %4891 = vmatprep.subr.mxu0 0.0
        %4892 = vmatpush1.msra.mxu0 %v4552
        %4893 = vmatprep.subr.mxu0 0.0
        %4894 = vmatpush1.msra.mxu0 %v4553
        %4895 = vmatprep.subr.mxu0 0.0
        %4896 = vmatpush1.msra.mxu0 %v4554
        %4897 = vmatprep.subr.mxu0 0.0
        %4898 = vmatpush1.msra.mxu0 %v4555
        %4899 = vmatprep.subr.mxu0 0.0
        %4900 = vmatpush1.msra.mxu0 %v4556
        %4901 = vmatprep.subr.mxu0 0.0
        %4902 = vmatpush1.msra.mxu0 %v4557
        %4903 = vmatprep.subr.mxu0 0.0
        %4904 = vmatpush1.msra.mxu0 %v4558
        %4905 = vmatprep.subr.mxu0 0.0
        %4906 = vmatpush1.msra.mxu0 %v4559
        %4907 = vmatprep.subr.mxu0 0.0
        %4908 = vmatpush1.msra.mxu0 %v4560
        %4909 = vmatprep.subr.mxu0 0.0
        %4910 = vmatpush1.msra.mxu0 %v4561
        %4911 = vmatprep.subr.mxu0 0.0
        %4912 = vmatpush1.msra.mxu0 %v4562
        %4913 = vmatprep.subr.mxu0 0.0
        %4914 = vmatpush1.msra.mxu0 %v4563
        %4915 = vmatprep.subr.mxu0 0.0
        %4916 = vmatpush1.msra.mxu0 %v4564
        %4917 = vmatprep.subr.mxu0 0.0
        %4918 = vmatpush1.msra.mxu0 %v4565
        %4919 = vmatprep.subr.mxu0 0.0
        %4920 = vmatpush1.msra.mxu0 %v4566
        %4921 = vmatprep.subr.mxu0 0.0
        %4922 = vmatpush1.msra.mxu0 %v4567
        %4923 = vmatprep.subr.mxu0 0.0
        %4924 = vmatpush1.msra.mxu0 %v4568
        %4925 = vmatprep.subr.mxu0 0.0
        %4926 = vmatpush1.msra.mxu0 %v4569
        %4927 = vmatprep.subr.mxu0 0.0
        %4928 = vmatpush1.msra.mxu0 %v4570
        %4929 = vmatprep.subr.mxu0 0.0
        %4930 = vmatpush1.msra.mxu0 %v4571
        %4931 = vmatprep.mubr.f32.mxu0 %v4638
        %4932 = vmatmul.mubr.f32.gmra.mrb[0].mxu0 %v4634
        %v4933 = vpop.f32.mrb[0].mxu0
        %v4934 = vadd.f32 %v4864, %v4933
        %v4935 = vpop.f32.mrb[0].mxu0
        %4936 = vdwg.mxu0
        %4937 = vmatprep.subr.mxu0 0.0
        %4938 = vmatpush1.msra.mxu0 %v4572
        %4939 = vmatprep.subr.mxu0 0.0
        %4940 = vmatpush1.msra.mxu0 %v4573
        %4941 = vmatprep.subr.mxu0 0.0
        %4942 = vmatpush1.msra.mxu0 %v4574
        %4943 = vmatprep.subr.mxu0 0.0
        %4944 = vmatpush1.msra.mxu0 %v4575
        %4945 = vmatprep.subr.mxu0 0.0
        %4946 = vmatpush1.msra.mxu0 %v4576
        %4947 = vmatprep.subr.mxu0 0.0
        %4948 = vmatpush1.msra.mxu0 %v4577
        %4949 = vmatprep.subr.mxu0 0.0
        %4950 = vmatpush1.msra.mxu0 %v4578
        %4951 = vmatprep.subr.mxu0 0.0
        %4952 = vmatpush1.msra.mxu0 %v4579
        %4953 = vmatprep.subr.mxu0 0.0
        %4954 = vmatpush1.msra.mxu0 %v4580
        %4955 = vmatprep.subr.mxu0 0.0
        %4956 = vmatpush1.msra.mxu0 %v4581
        %4957 = vmatprep.subr.mxu0 0.0
        %4958 = vmatpush1.msra.mxu0 %v4582
        %4959 = vmatprep.subr.mxu0 0.0
        %4960 = vmatpush1.msra.mxu0 %v4583
        %4961 = vmatprep.subr.mxu0 0.0
        %4962 = vmatpush1.msra.mxu0 %v4584
        %4963 = vmatprep.subr.mxu0 0.0
        %4964 = vmatpush1.msra.mxu0 %v4585
        %4965 = vmatprep.subr.mxu0 0.0
        %4966 = vmatpush1.msra.mxu0 %v4586
        %4967 = vmatprep.subr.mxu0 0.0
        %4968 = vmatpush1.msra.mxu0 %v4587
        %4969 = vmatprep.subr.mxu0 0.0
        %4970 = vmatpush1.msra.mxu0 %v4588
        %4971 = vmatprep.subr.mxu0 0.0
        %4972 = vmatpush1.msra.mxu0 %v4589
        %4973 = vmatprep.subr.mxu0 0.0
        %4974 = vmatpush1.msra.mxu0 %v4590
        %4975 = vmatprep.subr.mxu0 0.0
        %4976 = vmatpush1.msra.mxu0 %v4591
        %4977 = vmatprep.subr.mxu0 0.0
        %4978 = vmatpush1.msra.mxu0 %v4592
        %4979 = vmatprep.subr.mxu0 0.0
        %4980 = vmatpush1.msra.mxu0 %v4593
        %4981 = vmatprep.subr.mxu0 0.0
        %4982 = vmatpush1.msra.mxu0 %v4594
        %4983 = vmatprep.subr.mxu0 0.0
        %4984 = vmatpush1.msra.mxu0 %v4595
        %4985 = vmatprep.subr.mxu0 0.0
        %4986 = vmatpush1.msra.mxu0 %v4596
        %4987 = vmatprep.subr.mxu0 0.0
        %4988 = vmatpush1.msra.mxu0 %v4597
        %4989 = vmatprep.subr.mxu0 0.0
        %4990 = vmatpush1.msra.mxu0 %v4598
        %4991 = vmatprep.subr.mxu0 0.0
        %4992 = vmatpush1.msra.mxu0 %v4599
        %4993 = vmatprep.subr.mxu0 0.0
        %4994 = vmatpush1.msra.mxu0 %v4600
        %4995 = vmatprep.subr.mxu0 0.0
        %4996 = vmatpush1.msra.mxu0 %v4601
        %4997 = vmatprep.subr.mxu0 0.0
        %4998 = vmatpush1.msra.mxu0 %v4602
        %4999 = vmatprep.subr.mxu0 0.0
        %5000 = vmatpush1.msra.mxu0 %v4603
        %5001 = vmatprep.mubr.f32.mxu0 %v4646
        %5002 = vmatmul.mubr.f32.gmra.mrb[0].mxu0 %v4642
        %v5003 = vpop.f32.mrb[0].mxu0
        %v5004 = vadd.f32 %v4934, %v5003
        %v5005 = vpop.f32.mrb[0].mxu0
        %5006 = vdwg.mxu0
        %v5007 = vmul.f32 %v5004, 0.6
        %vm5008 = vcmask 8192
        %5009 = vst.msk [vmem:[%s302] sm:$0x1] %vm5008, %v5007
      $region56: #{konet_forward.2} parent=47 // pred_fallthru
        _
      %p5010 = scmp.lt.s32.totalorder %s22, 1
      %s5011 = scalar_select %p5010, %s22, 1
      %s5012 = scalar_lea.vmem %s7, %s5011
      // Predicated region
      $region57: #{konet_forward.2} parent=47 // pred_check
        %p5013 = pneg %p202
      $region58: #{konet_forward.2} parent=47 // pred_check_branch
        %5015 = sbr.rel (%p5013) target = $region60
      $region59: #{konet_forward.2} parent=47 // pred_region
        _
      $region60: #{konet_forward.2} parent=47 // pred_fallthru
        _
    $region48: #{konet_forward.2} parent=5 // pred_fallthru
      _
    %p5016 = scmp.le.s32.totalorder 2, %s13
    // Predicated region
    $region61: #{konet_forward.2} parent=5 // pred_check
      %p5017 = pneg %p5016
    $region62: #{konet_forward.2} parent=5 // pred_check_branch
      %5019 = sbr.rel (%p5017) target = $region64
    $region63: #{konet_forward.2} parent=5 // pred_region
      %s5020 = ssub.s32 %s13, 2
      // Predicated region
      $region65: #{konet_forward.2} parent=63 // pred_check
        %p5021 = pneg %p208
      $region66: #{konet_forward.2} parent=63 // pred_check_branch
        %5023 = sbr.rel (%p5021) target = $region68
      $region67: #{konet_forward.2} parent=63 // pred_region
        %p5024 = scmp.lt.s32.totalorder %s24, 1
        %s5025 = scalar_select %p5024, %s24, 1
        %s5026 = scalar_lea.vmem %s7, %s5025
      $region68: #{konet_forward.2} parent=63 // pred_fallthru
        _
    $region64: #{konet_forward.2} parent=5 // pred_fallthru
      _
  $region6: #{konet_forward.2} parent=0 // loop_footer
    %s17 = sadd.s32 1, %s13
  $region7: #{konet_forward.2} parent=0 // loop_footer_branch
    %12 = sbr.rel target = $region3
  $region8: #{konet_forward.2} parent=0 // loop_exit
    _

</llo_original>
